<compile_context>
chip_gen: v7x
topology: tpu7x:2x2x1
jax: 0.10.0
libtpu: 0.0.40
codegen_flags: <defaults>
</compile_context>

<pallas_src>
import jax
import jax.numpy as jnp
from jax.experimental import pallas as pl
from jax.experimental.pallas import tpu as pltpu

EMBED_DIM = 100
EMBED_PAD = 128          # lane-aligned K for the layer-0 input projection
HIDDEN = 256
NUM_LAYERS = 2
NUM_CLASSES = 4
CLASS_PAD = 128          # lane-dense FC output width (sliced back to 4 in wrapper)
BATCH_ALIGN = 8          # sublane alignment for the batch dimension


# -----------------------------------------------------------------------------
# Fused kernel: 2-layer LSTM (wavefront-interleaved) + FC head, one invocation.
# -----------------------------------------------------------------------------
def _rnn_fused_kernel(x_ref, h0_ref, c0_ref,
                      wih0_ref, whh0_ref, b0_ref,
                      wih1_hbm, whh1_hbm, b1_ref,
                      fcw_ref, fcb_ref,
                      out_ref, hn_ref, cn_ref,
                      gates_scr, wih1_vmem, whh1_vmem, dma_sem):
    L, BP, H = h0_ref.shape
    TBP = x_ref.shape[0]
    T = TBP // BP

    # ---- Kick off layer-1 weight DMA; hide it behind layer-0's hoisted proj --
    cp_ih1 = pltpu.make_async_copy(wih1_hbm, wih1_vmem, dma_sem.at[0])
    cp_hh1 = pltpu.make_async_copy(whh1_hbm, whh1_vmem, dma_sem.at[1])
    cp_ih1.start()
    cp_hh1.start()

    # ---- Layer 0: hoisted input projection (one MXU-friendly bf16 matmul) ---
    gates_scr[...] = (jnp.dot(x_ref[...], wih0_ref[...],
                              preferred_element_type=jnp.float32)
                      + b0_ref[...])

    cp_ih1.wait()
    cp_hh1.wait()

    # Hoisted broadcast of the layer-1 bias (avoid re-broadcasting per step).
    b1_full = jnp.broadcast_to(b1_ref[...], (BP, 4 * H))

    def lstm_cell(gates, c):
        i_g = jax.nn.sigmoid(gates[:, 0 * H:1 * H])
        f_g = jax.nn.sigmoid(gates[:, 1 * H:2 * H])
        g_g = jnp.tanh(gates[:, 2 * H:3 * H])
        o_g = jax.nn.sigmoid(gates[:, 3 * H:4 * H])
        c_new = f_g * c + i_g * g_g
        h_new = o_g * jnp.tanh(c_new)
        return h_new, c_new

    h0 = h0_ref[0]
    c0 = c0_ref[0]
    h1 = h0_ref[1]
    c1 = c0_ref[1]

    # ---- Wavefront-interleaved recurrence (static unroll, vreg carries) -----
    # Layer-1 step t consumes h0_t right after it is produced; the two chains
    # are independent otherwise, so the scheduler overlaps their MXU/EUP work.
    for t in range(T):
        g0 = (gates_scr[pl.ds(t * BP, BP), :]
              + jnp.dot(h0.astype(jnp.bfloat16), whh0_ref[...],
                        preferred_element_type=jnp.float32))
        h0, c0 = lstm_cell(g0, c0)

        g1 = (jnp.dot(h0.astype(jnp.bfloat16), wih1_vmem[...],
                      preferred_element_type=jnp.float32)
              + jnp.dot(h1.astype(jnp.bfloat16), whh1_vmem[...],
                        preferred_element_type=jnp.float32)
              + b1_full)
        h1, c1 = lstm_cell(g1, c1)

    hn_ref[0] = h0
    cn_ref[0] = c0
    hn_ref[1] = h1
    cn_ref[1] = c1

    # ---- FC head on the final top-layer hidden state (== fc(lstmOut)[:, -1]) -
    out_ref[...] = (jnp.dot(h1.astype(jnp.bfloat16), fcw_ref[...],
                            preferred_element_type=jnp.float32)
                    + fcb_ref[...])


def _rnn_fused_call(x_flat, h0_all, c0_all, params):
    TBP, Din = x_flat.shape
    L, BP, H = h0_all.shape
    CP = params["fc_w"].shape[-1]

    const2 = lambda i: (0, 0)
    const3 = lambda i: (0, 0, 0)

    return pl.pallas_call(
        _rnn_fused_kernel,
        out_shape=(
            jax.ShapeDtypeStruct((BP, CP), jnp.float32),     # out (padded classes)
            jax.ShapeDtypeStruct((L, BP, H), jnp.float32),   # h_n
            jax.ShapeDtypeStruct((L, BP, H), jnp.float32),   # c_n
        ),
        grid_spec=pltpu.PrefetchScalarGridSpec(
            num_scalar_prefetch=0,
            grid=(1,),
            in_specs=[
                pl.BlockSpec((TBP, Din), const2),            # x (time-major, bf16)
                pl.BlockSpec((L, BP, H), const3),            # h0
                pl.BlockSpec((L, BP, H), const3),            # c0
                pl.BlockSpec((Din, 4 * H), const2),          # W_ih^T layer 0 (bf16)
                pl.BlockSpec((H, 4 * H), const2),            # W_hh^T layer 0 (bf16)
                pl.BlockSpec((1, 4 * H), const2),            # bias layer 0 (f32)
                pl.BlockSpec(memory_space=pl.ANY),           # W_ih^T layer 1 (HBM, manual DMA)
                pl.BlockSpec(memory_space=pl.ANY),           # W_hh^T layer 1 (HBM, manual DMA)
                pl.BlockSpec((1, 4 * H), const2),            # bias layer 1 (f32)
                pl.BlockSpec((H, CP), const2),               # fc W^T (bf16, padded N)
                pl.BlockSpec((1, CP), const2),               # fc b (f32, padded)
            ],
            out_specs=[
                pl.BlockSpec((BP, CP), const2),
                pl.BlockSpec((L, BP, H), const3),
                pl.BlockSpec((L, BP, H), const3),
            ],
            scratch_shapes=[
                pltpu.VMEM((TBP, 4 * H), jnp.float32),       # hoisted layer-0 gates
                pltpu.VMEM((H, 4 * H), jnp.bfloat16),        # W_ih1 landing buffer
                pltpu.VMEM((H, 4 * H), jnp.bfloat16),        # W_hh1 landing buffer
                pltpu.SemaphoreType.DMA((2,)),
            ],
        ),
        compiler_params=pltpu.CompilerParams(
            dimension_semantics=("arbitrary",)),
        cost_estimate=pl.CostEstimate(flops=120_000_000,
                                      transcendentals=170_000,
                                      bytes_accessed=2_500_000),
    )(x_flat, h0_all, c0_all,
      params["w_ih_0"], params["w_hh_0"], params["b_0"],
      params["w_ih_1"], params["w_hh_1"], params["b_1"],
      params["fc_w"], params["fc_b"])


# -----------------------------------------------------------------------------
# Full forward
# -----------------------------------------------------------------------------
@jax.jit
def rnn_extension_forward(x_tokens, hidden, params):
    """x_tokens: (B, T) int32; hidden = (h0, c0), each (2, B, 256) f32."""
    h0_all, c0_all = hidden
    B, T = x_tokens.shape
    BP = ((B + BATCH_ALIGN - 1) // BATCH_ALIGN) * BATCH_ALIGN   # sublane-aligned batch

    embeds = jnp.take(params["embedding"], x_tokens, axis=0)    # (B, T, 128) f32
    x_tb = jnp.transpose(embeds, (1, 0, 2))                     # (T, B, 128)
    x_tb = jnp.pad(x_tb, ((0, 0), (0, BP - B), (0, 0)))         # (T, BP, 128)
    x_flat = x_tb.reshape(T * BP, EMBED_PAD).astype(jnp.bfloat16)

    h0p = jnp.pad(h0_all, ((0, 0), (0, BP - B), (0, 0)))
    c0p = jnp.pad(c0_all, ((0, 0), (0, BP - B), (0, 0)))

    out_p, hn_p, cn_p = _rnn_fused_call(x_flat, h0p, c0p, params)

    out = out_p[:B, :NUM_CLASSES]
    h_n = hn_p[:, :B, :]
    c_n = cn_p[:, :B, :]
    return out, (h_n, c_n)


# -----------------------------------------------------------------------------
# Pure-JAX f32 reference (correctness check; same weight values, f32 math)
# -----------------------------------------------------------------------------
def reference_forward(x_tokens, hidden, params):
    h0_all, c0_all = hidden
    embeds = jnp.take(params["embedding"], x_tokens, axis=0)
    x = jnp.transpose(embeds, (1, 0, 2)).astype(jnp.float32)    # (T, B, 128)

    def make_step(w_ih, w_hh, b):
        def step(carry, x_t):
            h, c = carry
            g = x_t @ w_ih + h @ w_hh + b[0]
            H = h.shape[-1]
            i = jax.nn.sigmoid(g[:, :H])
            f = jax.nn.sigmoid(g[:, H:2 * H])
            gg = jnp.tanh(g[:, 2 * H:3 * H])
            o = jax.nn.sigmoid(g[:, 3 * H:])
            c_new = f * c + i * gg
            h_new = o * jnp.tanh(c_new)
            return (h_new, c_new), h_new
        return step

    h_fs, c_fs = [], []
    layer_in = x
    for layer in range(NUM_LAYERS):
        w_ih = params[f"w_ih_{layer}"].astype(jnp.float32)
        w_hh = params[f"w_hh_{layer}"].astype(jnp.float32)
        step = make_step(w_ih, w_hh, params[f"b_{layer}"])
        (h_T, c_T), seq = jax.lax.scan(step, (h0_all[layer], c0_all[layer]),
                                       layer_in)
        h_fs.append(h_T)
        c_fs.append(c_T)
        layer_in = seq
    fc_w = params["fc_w"].astype(jnp.float32)[:, :NUM_CLASSES]
    fc_b = params["fc_b"][0, :NUM_CLASSES]
    out = layer_in[-1] @ fc_w + fc_b
    return out, (jnp.stack(h_fs), jnp.stack(c_fs))


# -----------------------------------------------------------------------------
def make_params(key, vocab_size):
    ks = jax.random.split(key, 8)
    s = 1.0 / jnp.sqrt(HIDDEN)
    emb = jax.random.normal(ks[0], (vocab_size, EMBED_DIM), jnp.float32)
    fc_w = jax.random.uniform(ks[1], (HIDDEN, NUM_CLASSES), jnp.float32, -s, s)
    fc_b = jax.random.uniform(ks[2], (1, NUM_CLASSES), jnp.float32, -s, s)
    params = {
        # embedding zero-padded 100 -> 128 columns (lane-dense layer-0 K dim)
        "embedding": jnp.pad(emb, ((0, 0), (0, EMBED_PAD - EMBED_DIM))),
        # fc zero-padded 4 -> 128 output columns (lane-dense N, unmasked store)
        "fc_w": jnp.pad(fc_w, ((0, 0), (0, CLASS_PAD - NUM_CLASSES))
                        ).astype(jnp.bfloat16),
        "fc_b": jnp.pad(fc_b, ((0, 0), (0, CLASS_PAD - NUM_CLASSES))),
    }
    for layer in range(NUM_LAYERS):
        din = EMBED_DIM if layer == 0 else HIDDEN
        k = jax.random.split(ks[3 + layer], 4)
        # stored pre-transposed: (Din, 4H) / (H, 4H); PyTorch stores (4H, Din)
        w_ih = jax.random.uniform(k[0], (din, 4 * HIDDEN), jnp.float32, -s, s)
        if layer == 0:
            w_ih = jnp.pad(w_ih, ((0, EMBED_PAD - EMBED_DIM), (0, 0)))
        params[f"w_ih_{layer}"] = w_ih.astype(jnp.bfloat16)
        params[f"w_hh_{layer}"] = jax.random.uniform(
            k[1], (HIDDEN, 4 * HIDDEN), jnp.float32, -s, s).astype(jnp.bfloat16)
        b_ih = jax.random.uniform(k[2], (4 * HIDDEN,), jnp.float32, -s, s)
        b_hh = jax.random.uniform(k[3], (4 * HIDDEN,), jnp.float32, -s, s)
        params[f"b_{layer}"] = (b_ih + b_hh)[None, :]            # f32
    return params


if __name__ == "__main__":
    B, T, VOCAB = 2, 8, 32
    key = jax.random.PRNGKey(0)
    k_tok, k_par = jax.random.split(key)

    params = make_params(k_par, VOCAB)
    x_tokens = jax.random.randint(k_tok, (B, T), 0, VOCAB, dtype=jnp.int32)
    hidden = (jnp.zeros((NUM_LAYERS, B, HIDDEN), jnp.float32),
              jnp.zeros((NUM_LAYERS, B, HIDDEN), jnp.float32))

    out, (h_n, c_n) = rnn_extension_forward(x_tokens, hidden, params)
    jax.block_until_ready((out, h_n, c_n))

    ref_out, (ref_h, ref_c) = reference_forward(x_tokens, hidden, params)
    assert out.shape == (B, NUM_CLASSES)
    assert h_n.shape == (NUM_LAYERS, B, HIDDEN)
    assert c_n.shape == (NUM_LAYERS, B, HIDDEN)
    # bf16 MXU inputs with f32 accumulation -> loosened tolerance vs f32 reference
    assert jnp.allclose(out, ref_out, rtol=2e-2, atol=2e-2)
    assert jnp.allclose(h_n, ref_h, rtol=2e-2, atol=2e-2)
    assert jnp.allclose(c_n, ref_c, rtol=2e-2, atol=2e-2)

    print("KERNEL_OK")
</pallas_src>

<mosaic_0001>
module attributes {stable_mosaic.version = 11 : i64} {
  func.func @_rnn_fused_kernel(%arg0: i32, %arg1: memref<64x128xbf16, #tpu.memory_space<vmem>>, %arg2: memref<2x8x256xf32, #tpu.memory_space<vmem>>, %arg3: memref<2x8x256xf32, #tpu.memory_space<vmem>>, %arg4: memref<128x1024xbf16, #tpu.memory_space<vmem>>, %arg5: memref<256x1024xbf16, #tpu.memory_space<vmem>>, %arg6: memref<1x1024xf32, #tpu.memory_space<vmem>>, %arg7: memref<256x1024xbf16, #tpu.memory_space<any>>, %arg8: memref<256x1024xbf16, #tpu.memory_space<any>>, %arg9: memref<1x1024xf32, #tpu.memory_space<vmem>>, %arg10: memref<256x128xbf16, #tpu.memory_space<vmem>>, %arg11: memref<1x128xf32, #tpu.memory_space<vmem>>, %arg12: memref<8x128xf32, #tpu.memory_space<vmem>>, %arg13: memref<2x8x256xf32, #tpu.memory_space<vmem>>, %arg14: memref<2x8x256xf32, #tpu.memory_space<vmem>>, %arg15: memref<64x1024xf32, #tpu.memory_space<vmem>>, %arg16: memref<256x1024xbf16, #tpu.memory_space<vmem>>, %arg17: memref<256x1024xbf16, #tpu.memory_space<vmem>>, %arg18: memref<2x!tpu.dma_semaphore, #tpu.memory_space<semaphore_mem>>) attributes {dimension_semantics = [#tpu.dimension_semantics<arbitrary>], iteration_bounds = array<i64: 1>, scalar_prefetch = 0 : i64, scratch_operands = 4 : i64, tpu.core_type = #tpu.core_type<tc>, window_params = [{pipeline_mode = #tpu.pipeline_mode<synchronous>, transform_indices = @transform_0, window_bounds = array<i64: 64, 128>}, {pipeline_mode = #tpu.pipeline_mode<synchronous>, transform_indices = @transform_1, window_bounds = array<i64: 2, 8, 256>}, {pipeline_mode = #tpu.pipeline_mode<synchronous>, transform_indices = @transform_2, window_bounds = array<i64: 2, 8, 256>}, {pipeline_mode = #tpu.pipeline_mode<synchronous>, transform_indices = @transform_3, window_bounds = array<i64: 128, 1024>}, {pipeline_mode = #tpu.pipeline_mode<synchronous>, transform_indices = @transform_4, window_bounds = array<i64: 256, 1024>}, {pipeline_mode = #tpu.pipeline_mode<synchronous>, transform_indices = @transform_5, window_bounds = array<i64: 1, 1024>}, {}, {}, {pipeline_mode = #tpu.pipeline_mode<synchronous>, transform_indices = @transform_8, window_bounds = array<i64: 1, 1024>}, {pipeline_mode = #tpu.pipeline_mode<synchronous>, transform_indices = @transform_9, window_bounds = array<i64: 256, 128>}, {pipeline_mode = #tpu.pipeline_mode<synchronous>, transform_indices = @transform_10, window_bounds = array<i64: 1, 128>}, {pipeline_mode = #tpu.pipeline_mode<synchronous>, transform_indices = @transform_11, window_bounds = array<i64: 8, 128>}, {pipeline_mode = #tpu.pipeline_mode<synchronous>, transform_indices = @transform_12, window_bounds = array<i64: 2, 8, 256>}, {pipeline_mode = #tpu.pipeline_mode<synchronous>, transform_indices = @transform_13, window_bounds = array<i64: 2, 8, 256>}]} {
    %c0_i32 = arith.constant 0 : i32
    %0 = tpu.memref_slice %arg18[%c0_i32] : memref<2x!tpu.dma_semaphore, #tpu.memory_space<semaphore_mem>> -> memref<1x!tpu.dma_semaphore, #tpu.memory_space<semaphore_mem>>
    %1 = tpu.memref_squeeze %0 : memref<1x!tpu.dma_semaphore, #tpu.memory_space<semaphore_mem>> -> memref<!tpu.dma_semaphore, #tpu.memory_space<semaphore_mem>>
    tpu.enqueue_dma source(%arg7 : memref<256x1024xbf16, #tpu.memory_space<any>>) target(%arg16 : memref<256x1024xbf16, #tpu.memory_space<vmem>>) target_semaphore(%1 : memref<!tpu.dma_semaphore, #tpu.memory_space<semaphore_mem>>)
    %c1_i32 = arith.constant 1 : i32
    %2 = tpu.memref_slice %arg18[%c1_i32] : memref<2x!tpu.dma_semaphore, #tpu.memory_space<semaphore_mem>> -> memref<1x!tpu.dma_semaphore, #tpu.memory_space<semaphore_mem>>
    %3 = tpu.memref_squeeze %2 : memref<1x!tpu.dma_semaphore, #tpu.memory_space<semaphore_mem>> -> memref<!tpu.dma_semaphore, #tpu.memory_space<semaphore_mem>>
    tpu.enqueue_dma source(%arg8 : memref<256x1024xbf16, #tpu.memory_space<any>>) target(%arg17 : memref<256x1024xbf16, #tpu.memory_space<vmem>>) target_semaphore(%3 : memref<!tpu.dma_semaphore, #tpu.memory_space<semaphore_mem>>)
    %c0 = arith.constant 0 : index
    %c0_0 = arith.constant 0 : index
    %4 = vector.load %arg1[%c0, %c0_0] : memref<64x128xbf16, #tpu.memory_space<vmem>>, vector<64x128xbf16>
    %c0_1 = arith.constant 0 : index
    %c0_2 = arith.constant 0 : index
    %5 = vector.load %arg4[%c0_1, %c0_2] : memref<128x1024xbf16, #tpu.memory_space<vmem>>, vector<128x1024xbf16>
    %cst = arith.constant dense<0.000000e+00> : vector<64x1024xf32>
    %6 = tpu.matmul %4, %5, %cst {dimension_numbers = #tpu.dot_dimension_numbers<[1], [0], [0], [1], [0, 0, 1, 1], [], []>} : vector<64x128xbf16>, vector<128x1024xbf16>, vector<64x1024xf32> -> vector<64x1024xf32>
    %c0_3 = arith.constant 0 : index
    %c0_4 = arith.constant 0 : index
    %7 = vector.load %arg6[%c0_3, %c0_4] : memref<1x1024xf32, #tpu.memory_space<vmem>>, vector<1x1024xf32>
    %8 = vector.broadcast %7 : vector<1x1024xf32> to vector<64x1024xf32>
    %9 = arith.addf %6, %8 : vector<64x1024xf32>
    %c0_5 = arith.constant 0 : index
    %c0_6 = arith.constant 0 : index
    %10 = vector.load %arg15[%c0_5, %c0_6] : memref<64x1024xf32, #tpu.memory_space<vmem>>, vector<64x1024xf32>
    tpu.vector_store %arg15[%c0_5, %c0_6], %9 {strides = array<i32>} : memref<64x1024xf32, #tpu.memory_space<vmem>>, vector<64x1024xf32>,
    %c0_i32_7 = arith.constant 0 : i32
    %11 = tpu.memref_slice %arg18[%c0_i32_7] : memref<2x!tpu.dma_semaphore, #tpu.memory_space<semaphore_mem>> -> memref<1x!tpu.dma_semaphore, #tpu.memory_space<semaphore_mem>>
    %12 = tpu.memref_squeeze %11 : memref<1x!tpu.dma_semaphore, #tpu.memory_space<semaphore_mem>> -> memref<!tpu.dma_semaphore, #tpu.memory_space<semaphore_mem>>
    tpu.wait_dma2 semaphore(%12 : memref<!tpu.dma_semaphore, #tpu.memory_space<semaphore_mem>>) src(%arg7 : memref<256x1024xbf16, #tpu.memory_space<any>>) dst(%arg16 : memref<256x1024xbf16, #tpu.memory_space<vmem>>)
    %c1_i32_8 = arith.constant 1 : i32
    %13 = tpu.memref_slice %arg18[%c1_i32_8] : memref<2x!tpu.dma_semaphore, #tpu.memory_space<semaphore_mem>> -> memref<1x!tpu.dma_semaphore, #tpu.memory_space<semaphore_mem>>
    %14 = tpu.memref_squeeze %13 : memref<1x!tpu.dma_semaphore, #tpu.memory_space<semaphore_mem>> -> memref<!tpu.dma_semaphore, #tpu.memory_space<semaphore_mem>>
    tpu.wait_dma2 semaphore(%14 : memref<!tpu.dma_semaphore, #tpu.memory_space<semaphore_mem>>) src(%arg8 : memref<256x1024xbf16, #tpu.memory_space<any>>) dst(%arg17 : memref<256x1024xbf16, #tpu.memory_space<vmem>>)
    %c0_9 = arith.constant 0 : index
    %c0_10 = arith.constant 0 : index
    %15 = vector.load %arg9[%c0_9, %c0_10] : memref<1x1024xf32, #tpu.memory_space<vmem>>, vector<1x1024xf32>
    %16 = vector.shape_cast %15 : vector<1x1024xf32> to vector<1x1024xf32>
    %17 = vector.broadcast %16 : vector<1x1024xf32> to vector<8x1024xf32>
    %c0_11 = arith.constant 0 : index
    %c0_12 = arith.constant 0 : index
    %c0_13 = arith.constant 0 : index
    %18 = vector.load %arg2[%c0_11, %c0_12, %c0_13] : memref<2x8x256xf32, #tpu.memory_space<vmem>>, vector<1x8x256xf32>
    %19 = vector.shape_cast %18 : vector<1x8x256xf32> to vector<8x256xf32>
    %c0_14 = arith.constant 0 : index
    %c0_15 = arith.constant 0 : index
    %c0_16 = arith.constant 0 : index
    %20 = vector.load %arg3[%c0_14, %c0_15, %c0_16] : memref<2x8x256xf32, #tpu.memory_space<vmem>>, vector<1x8x256xf32>
    %21 = vector.shape_cast %20 : vector<1x8x256xf32> to vector<8x256xf32>
    %c1 = arith.constant 1 : index
    %c0_17 = arith.constant 0 : index
    %c0_18 = arith.constant 0 : index
    %22 = vector.load %arg2[%c1, %c0_17, %c0_18] : memref<2x8x256xf32, #tpu.memory_space<vmem>>, vector<1x8x256xf32>
    %23 = vector.shape_cast %22 : vector<1x8x256xf32> to vector<8x256xf32>
    %c1_19 = arith.constant 1 : index
    %c0_20 = arith.constant 0 : index
    %c0_21 = arith.constant 0 : index
    %24 = vector.load %arg3[%c1_19, %c0_20, %c0_21] : memref<2x8x256xf32, #tpu.memory_space<vmem>>, vector<1x8x256xf32>
    %25 = vector.shape_cast %24 : vector<1x8x256xf32> to vector<8x256xf32>
    %c0_22 = arith.constant 0 : index
    %c0_23 = arith.constant 0 : index
    %26 = vector.load %arg15[%c0_22, %c0_23] : memref<64x1024xf32, #tpu.memory_space<vmem>>, vector<8x1024xf32>
    %27 = arith.truncf %19 : vector<8x256xf32> to vector<8x256xbf16>
    %c0_24 = arith.constant 0 : index
    %c0_25 = arith.constant 0 : index
    %28 = vector.load %arg5[%c0_24, %c0_25] : memref<256x1024xbf16, #tpu.memory_space<vmem>>, vector<256x1024xbf16>
    %cst_26 = arith.constant dense<0.000000e+00> : vector<8x1024xf32>
    %29 = tpu.matmul %27, %28, %cst_26 {dimension_numbers = #tpu.dot_dimension_numbers<[1], [0], [0], [1], [0, 0, 1, 1], [], []>} : vector<8x256xbf16>, vector<256x1024xbf16>, vector<8x1024xf32> -> vector<8x1024xf32>
    %30 = arith.addf %26, %29 : vector<8x1024xf32>
    %31 = vector.extract_strided_slice %30 {offsets = [0, 0], sizes = [8, 256], strides = [1, 1]} : vector<8x1024xf32> to vector<8x256xf32>
    %32 = arith.negf %31 : vector<8x256xf32>
    %33 = math.exp %32 : vector<8x256xf32>
    %cst_27 = arith.constant 1.000000e+00 : f32
    %34 = vector.broadcast %cst_27 : f32 to vector<8x256xf32>
    %35 = arith.addf %34, %33 : vector<8x256xf32>
    %36 = arith.divf %34, %35 : vector<8x256xf32>
    %37 = vector.extract_strided_slice %30 {offsets = [0, 256], sizes = [8, 256], strides = [1, 1]} : vector<8x1024xf32> to vector<8x256xf32>
    %38 = arith.negf %37 : vector<8x256xf32>
    %39 = math.exp %38 : vector<8x256xf32>
    %cst_28 = arith.constant 1.000000e+00 : f32
    %40 = vector.broadcast %cst_28 : f32 to vector<8x256xf32>
    %41 = arith.addf %40, %39 : vector<8x256xf32>
    %42 = arith.divf %40, %41 : vector<8x256xf32>
    %43 = vector.extract_strided_slice %30 {offsets = [0, 512], sizes = [8, 256], strides = [1, 1]} : vector<8x1024xf32> to vector<8x256xf32>
    %44 = math.tanh %43 : vector<8x256xf32>
    %45 = vector.extract_strided_slice %30 {offsets = [0, 768], sizes = [8, 256], strides = [1, 1]} : vector<8x1024xf32> to vector<8x256xf32>
    %46 = arith.negf %45 : vector<8x256xf32>
    %47 = math.exp %46 : vector<8x256xf32>
    %cst_29 = arith.constant 1.000000e+00 : f32
    %48 = vector.broadcast %cst_29 : f32 to vector<8x256xf32>
    %49 = arith.addf %48, %47 : vector<8x256xf32>
    %50 = arith.divf %48, %49 : vector<8x256xf32>
    %51 = arith.mulf %42, %21 : vector<8x256xf32>
    %52 = arith.mulf %36, %44 : vector<8x256xf32>
    %53 = arith.addf %51, %52 : vector<8x256xf32>
    %54 = math.tanh %53 : vector<8x256xf32>
    %55 = arith.mulf %50, %54 : vector<8x256xf32>
    %56 = arith.truncf %55 : vector<8x256xf32> to vector<8x256xbf16>
    %c0_30 = arith.constant 0 : index
    %c0_31 = arith.constant 0 : index
    %57 = vector.load %arg16[%c0_30, %c0_31] : memref<256x1024xbf16, #tpu.memory_space<vmem>>, vector<256x1024xbf16>
    %cst_32 = arith.constant dense<0.000000e+00> : vector<8x1024xf32>
    %58 = tpu.matmul %56, %57, %cst_32 {dimension_numbers = #tpu.dot_dimension_numbers<[1], [0], [0], [1], [0, 0, 1, 1], [], []>} : vector<8x256xbf16>, vector<256x1024xbf16>, vector<8x1024xf32> -> vector<8x1024xf32>
    %59 = arith.truncf %23 : vector<8x256xf32> to vector<8x256xbf16>
    %c0_33 = arith.constant 0 : index
    %c0_34 = arith.constant 0 : index
    %60 = vector.load %arg17[%c0_33, %c0_34] : memref<256x1024xbf16, #tpu.memory_space<vmem>>, vector<256x1024xbf16>
    %cst_35 = arith.constant dense<0.000000e+00> : vector<8x1024xf32>
    %61 = tpu.matmul %59, %60, %cst_35 {dimension_numbers = #tpu.dot_dimension_numbers<[1], [0], [0], [1], [0, 0, 1, 1], [], []>} : vector<8x256xbf16>, vector<256x1024xbf16>, vector<8x1024xf32> -> vector<8x1024xf32>
    %62 = arith.addf %58, %61 : vector<8x1024xf32>
    %63 = arith.addf %62, %17 : vector<8x1024xf32>
    %64 = vector.extract_strided_slice %63 {offsets = [0, 0], sizes = [8, 256], strides = [1, 1]} : vector<8x1024xf32> to vector<8x256xf32>
    %65 = arith.negf %64 : vector<8x256xf32>
    %66 = math.exp %65 : vector<8x256xf32>
    %cst_36 = arith.constant 1.000000e+00 : f32
    %67 = vector.broadcast %cst_36 : f32 to vector<8x256xf32>
    %68 = arith.addf %67, %66 : vector<8x256xf32>
    %69 = arith.divf %67, %68 : vector<8x256xf32>
    %70 = vector.extract_strided_slice %63 {offsets = [0, 256], sizes = [8, 256], strides = [1, 1]} : vector<8x1024xf32> to vector<8x256xf32>
    %71 = arith.negf %70 : vector<8x256xf32>
    %72 = math.exp %71 : vector<8x256xf32>
    %cst_37 = arith.constant 1.000000e+00 : f32
    %73 = vector.broadcast %cst_37 : f32 to vector<8x256xf32>
    %74 = arith.addf %73, %72 : vector<8x256xf32>
    %75 = arith.divf %73, %74 : vector<8x256xf32>
    %76 = vector.extract_strided_slice %63 {offsets = [0, 512], sizes = [8, 256], strides = [1, 1]} : vector<8x1024xf32> to vector<8x256xf32>
    %77 = math.tanh %76 : vector<8x256xf32>
    %78 = vector.extract_strided_slice %63 {offsets = [0, 768], sizes = [8, 256], strides = [1, 1]} : vector<8x1024xf32> to vector<8x256xf32>
    %79 = arith.negf %78 : vector<8x256xf32>
    %80 = math.exp %79 : vector<8x256xf32>
    %cst_38 = arith.constant 1.000000e+00 : f32
    %81 = vector.broadcast %cst_38 : f32 to vector<8x256xf32>
    %82 = arith.addf %81, %80 : vector<8x256xf32>
    %83 = arith.divf %81, %82 : vector<8x256xf32>
    %84 = arith.mulf %75, %25 : vector<8x256xf32>
    %85 = arith.mulf %69, %77 : vector<8x256xf32>
    %86 = arith.addf %84, %85 : vector<8x256xf32>
    %87 = math.tanh %86 : vector<8x256xf32>
    %88 = arith.mulf %83, %87 : vector<8x256xf32>
    %c8 = arith.constant 8 : index
    %c0_39 = arith.constant 0 : index
    %89 = vector.load %arg15[%c8, %c0_39] : memref<64x1024xf32, #tpu.memory_space<vmem>>, vector<8x1024xf32>
    %90 = arith.truncf %55 : vector<8x256xf32> to vector<8x256xbf16>
    %c0_40 = arith.constant 0 : index
    %c0_41 = arith.constant 0 : index
    %91 = vector.load %arg5[%c0_40, %c0_41] : memref<256x1024xbf16, #tpu.memory_space<vmem>>, vector<256x1024xbf16>
    %cst_42 = arith.constant dense<0.000000e+00> : vector<8x1024xf32>
    %92 = tpu.matmul %90, %91, %cst_42 {dimension_numbers = #tpu.dot_dimension_numbers<[1], [0], [0], [1], [0, 0, 1, 1], [], []>} : vector<8x256xbf16>, vector<256x1024xbf16>, vector<8x1024xf32> -> vector<8x1024xf32>
    %93 = arith.addf %89, %92 : vector<8x1024xf32>
    %94 = vector.extract_strided_slice %93 {offsets = [0, 0], sizes = [8, 256], strides = [1, 1]} : vector<8x1024xf32> to vector<8x256xf32>
    %95 = arith.negf %94 : vector<8x256xf32>
    %96 = math.exp %95 : vector<8x256xf32>
    %cst_43 = arith.constant 1.000000e+00 : f32
    %97 = vector.broadcast %cst_43 : f32 to vector<8x256xf32>
    %98 = arith.addf %97, %96 : vector<8x256xf32>
    %99 = arith.divf %97, %98 : vector<8x256xf32>
    %100 = vector.extract_strided_slice %93 {offsets = [0, 256], sizes = [8, 256], strides = [1, 1]} : vector<8x1024xf32> to vector<8x256xf32>
    %101 = arith.negf %100 : vector<8x256xf32>
    %102 = math.exp %101 : vector<8x256xf32>
    %cst_44 = arith.constant 1.000000e+00 : f32
    %103 = vector.broadcast %cst_44 : f32 to vector<8x256xf32>
    %104 = arith.addf %103, %102 : vector<8x256xf32>
    %105 = arith.divf %103, %104 : vector<8x256xf32>
    %106 = vector.extract_strided_slice %93 {offsets = [0, 512], sizes = [8, 256], strides = [1, 1]} : vector<8x1024xf32> to vector<8x256xf32>
    %107 = math.tanh %106 : vector<8x256xf32>
    %108 = vector.extract_strided_slice %93 {offsets = [0, 768], sizes = [8, 256], strides = [1, 1]} : vector<8x1024xf32> to vector<8x256xf32>
    %109 = arith.negf %108 : vector<8x256xf32>
    %110 = math.exp %109 : vector<8x256xf32>
    %cst_45 = arith.constant 1.000000e+00 : f32
    %111 = vector.broadcast %cst_45 : f32 to vector<8x256xf32>
    %112 = arith.addf %111, %110 : vector<8x256xf32>
    %113 = arith.divf %111, %112 : vector<8x256xf32>
    %114 = arith.mulf %105, %53 : vector<8x256xf32>
    %115 = arith.mulf %99, %107 : vector<8x256xf32>
    %116 = arith.addf %114, %115 : vector<8x256xf32>
    %117 = math.tanh %116 : vector<8x256xf32>
    %118 = arith.mulf %113, %117 : vector<8x256xf32>
    %119 = arith.truncf %118 : vector<8x256xf32> to vector<8x256xbf16>
    %c0_46 = arith.constant 0 : index
    %c0_47 = arith.constant 0 : index
    %120 = vector.load %arg16[%c0_46, %c0_47] : memref<256x1024xbf16, #tpu.memory_space<vmem>>, vector<256x1024xbf16>
    %cst_48 = arith.constant dense<0.000000e+00> : vector<8x1024xf32>
    %121 = tpu.matmul %119, %120, %cst_48 {dimension_numbers = #tpu.dot_dimension_numbers<[1], [0], [0], [1], [0, 0, 1, 1], [], []>} : vector<8x256xbf16>, vector<256x1024xbf16>, vector<8x1024xf32> -> vector<8x1024xf32>
    %122 = arith.truncf %88 : vector<8x256xf32> to vector<8x256xbf16>
    %c0_49 = arith.constant 0 : index
    %c0_50 = arith.constant 0 : index
    %123 = vector.load %arg17[%c0_49, %c0_50] : memref<256x1024xbf16, #tpu.memory_space<vmem>>, vector<256x1024xbf16>
    %cst_51 = arith.constant dense<0.000000e+00> : vector<8x1024xf32>
    %124 = tpu.matmul %122, %123, %cst_51 {dimension_numbers = #tpu.dot_dimension_numbers<[1], [0], [0], [1], [0, 0, 1, 1], [], []>} : vector<8x256xbf16>, vector<256x1024xbf16>, vector<8x1024xf32> -> vector<8x1024xf32>
    %125 = arith.addf %121, %124 : vector<8x1024xf32>
    %126 = arith.addf %125, %17 : vector<8x1024xf32>
    %127 = vector.extract_strided_slice %126 {offsets = [0, 0], sizes = [8, 256], strides = [1, 1]} : vector<8x1024xf32> to vector<8x256xf32>
    %128 = arith.negf %127 : vector<8x256xf32>
    %129 = math.exp %128 : vector<8x256xf32>
    %cst_52 = arith.constant 1.000000e+00 : f32
    %130 = vector.broadcast %cst_52 : f32 to vector<8x256xf32>
    %131 = arith.addf %130, %129 : vector<8x256xf32>
    %132 = arith.divf %130, %131 : vector<8x256xf32>
    %133 = vector.extract_strided_slice %126 {offsets = [0, 256], sizes = [8, 256], strides = [1, 1]} : vector<8x1024xf32> to vector<8x256xf32>
    %134 = arith.negf %133 : vector<8x256xf32>
    %135 = math.exp %134 : vector<8x256xf32>
    %cst_53 = arith.constant 1.000000e+00 : f32
    %136 = vector.broadcast %cst_53 : f32 to vector<8x256xf32>
    %137 = arith.addf %136, %135 : vector<8x256xf32>
    %138 = arith.divf %136, %137 : vector<8x256xf32>
    %139 = vector.extract_strided_slice %126 {offsets = [0, 512], sizes = [8, 256], strides = [1, 1]} : vector<8x1024xf32> to vector<8x256xf32>
    %140 = math.tanh %139 : vector<8x256xf32>
    %141 = vector.extract_strided_slice %126 {offsets = [0, 768], sizes = [8, 256], strides = [1, 1]} : vector<8x1024xf32> to vector<8x256xf32>
    %142 = arith.negf %141 : vector<8x256xf32>
    %143 = math.exp %142 : vector<8x256xf32>
    %cst_54 = arith.constant 1.000000e+00 : f32
    %144 = vector.broadcast %cst_54 : f32 to vector<8x256xf32>
    %145 = arith.addf %144, %143 : vector<8x256xf32>
    %146 = arith.divf %144, %145 : vector<8x256xf32>
    %147 = arith.mulf %138, %86 : vector<8x256xf32>
    %148 = arith.mulf %132, %140 : vector<8x256xf32>
    %149 = arith.addf %147, %148 : vector<8x256xf32>
    %150 = math.tanh %149 : vector<8x256xf32>
    %151 = arith.mulf %146, %150 : vector<8x256xf32>
    %c16 = arith.constant 16 : index
    %c0_55 = arith.constant 0 : index
    %152 = vector.load %arg15[%c16, %c0_55] : memref<64x1024xf32, #tpu.memory_space<vmem>>, vector<8x1024xf32>
    %153 = arith.truncf %118 : vector<8x256xf32> to vector<8x256xbf16>
    %c0_56 = arith.constant 0 : index
    %c0_57 = arith.constant 0 : index
    %154 = vector.load %arg5[%c0_56, %c0_57] : memref<256x1024xbf16, #tpu.memory_space<vmem>>, vector<256x1024xbf16>
    %cst_58 = arith.constant dense<0.000000e+00> : vector<8x1024xf32>
    %155 = tpu.matmul %153, %154, %cst_58 {dimension_numbers = #tpu.dot_dimension_numbers<[1], [0], [0], [1], [0, 0, 1, 1], [], []>} : vector<8x256xbf16>, vector<256x1024xbf16>, vector<8x1024xf32> -> vector<8x1024xf32>
    %156 = arith.addf %152, %155 : vector<8x1024xf32>
    %157 = vector.extract_strided_slice %156 {offsets = [0, 0], sizes = [8, 256], strides = [1, 1]} : vector<8x1024xf32> to vector<8x256xf32>
    %158 = arith.negf %157 : vector<8x256xf32>
    %159 = math.exp %158 : vector<8x256xf32>
    %cst_59 = arith.constant 1.000000e+00 : f32
    %160 = vector.broadcast %cst_59 : f32 to vector<8x256xf32>
    %161 = arith.addf %160, %159 : vector<8x256xf32>
    %162 = arith.divf %160, %161 : vector<8x256xf32>
    %163 = vector.extract_strided_slice %156 {offsets = [0, 256], sizes = [8, 256], strides = [1, 1]} : vector<8x1024xf32> to vector<8x256xf32>
    %164 = arith.negf %163 : vector<8x256xf32>
    %165 = math.exp %164 : vector<8x256xf32>
    %cst_60 = arith.constant 1.000000e+00 : f32
    %166 = vector.broadcast %cst_60 : f32 to vector<8x256xf32>
    %167 = arith.addf %166, %165 : vector<8x256xf32>
    %168 = arith.divf %166, %167 : vector<8x256xf32>
    %169 = vector.extract_strided_slice %156 {offsets = [0, 512], sizes = [8, 256], strides = [1, 1]} : vector<8x1024xf32> to vector<8x256xf32>
    %170 = math.tanh %169 : vector<8x256xf32>
    %171 = vector.extract_strided_slice %156 {offsets = [0, 768], sizes = [8, 256], strides = [1, 1]} : vector<8x1024xf32> to vector<8x256xf32>
    %172 = arith.negf %171 : vector<8x256xf32>
    %173 = math.exp %172 : vector<8x256xf32>
    %cst_61 = arith.constant 1.000000e+00 : f32
    %174 = vector.broadcast %cst_61 : f32 to vector<8x256xf32>
    %175 = arith.addf %174, %173 : vector<8x256xf32>
    %176 = arith.divf %174, %175 : vector<8x256xf32>
    %177 = arith.mulf %168, %116 : vector<8x256xf32>
    %178 = arith.mulf %162, %170 : vector<8x256xf32>
    %179 = arith.addf %177, %178 : vector<8x256xf32>
    %180 = math.tanh %179 : vector<8x256xf32>
    %181 = arith.mulf %176, %180 : vector<8x256xf32>
    %182 = arith.truncf %181 : vector<8x256xf32> to vector<8x256xbf16>
    %c0_62 = arith.constant 0 : index
    %c0_63 = arith.constant 0 : index
    %183 = vector.load %arg16[%c0_62, %c0_63] : memref<256x1024xbf16, #tpu.memory_space<vmem>>, vector<256x1024xbf16>
    %cst_64 = arith.constant dense<0.000000e+00> : vector<8x1024xf32>
    %184 = tpu.matmul %182, %183, %cst_64 {dimension_numbers = #tpu.dot_dimension_numbers<[1], [0], [0], [1], [0, 0, 1, 1], [], []>} : vector<8x256xbf16>, vector<256x1024xbf16>, vector<8x1024xf32> -> vector<8x1024xf32>
    %185 = arith.truncf %151 : vector<8x256xf32> to vector<8x256xbf16>
    %c0_65 = arith.constant 0 : index
    %c0_66 = arith.constant 0 : index
    %186 = vector.load %arg17[%c0_65, %c0_66] : memref<256x1024xbf16, #tpu.memory_space<vmem>>, vector<256x1024xbf16>
    %cst_67 = arith.constant dense<0.000000e+00> : vector<8x1024xf32>
    %187 = tpu.matmul %185, %186, %cst_67 {dimension_numbers = #tpu.dot_dimension_numbers<[1], [0], [0], [1], [0, 0, 1, 1], [], []>} : vector<8x256xbf16>, vector<256x1024xbf16>, vector<8x1024xf32> -> vector<8x1024xf32>
    %188 = arith.addf %184, %187 : vector<8x1024xf32>
    %189 = arith.addf %188, %17 : vector<8x1024xf32>
    %190 = vector.extract_strided_slice %189 {offsets = [0, 0], sizes = [8, 256], strides = [1, 1]} : vector<8x1024xf32> to vector<8x256xf32>
    %191 = arith.negf %190 : vector<8x256xf32>
    %192 = math.exp %191 : vector<8x256xf32>
    %cst_68 = arith.constant 1.000000e+00 : f32
    %193 = vector.broadcast %cst_68 : f32 to vector<8x256xf32>
    %194 = arith.addf %193, %192 : vector<8x256xf32>
    %195 = arith.divf %193, %194 : vector<8x256xf32>
    %196 = vector.extract_strided_slice %189 {offsets = [0, 256], sizes = [8, 256], strides = [1, 1]} : vector<8x1024xf32> to vector<8x256xf32>
    %197 = arith.negf %196 : vector<8x256xf32>
    %198 = math.exp %197 : vector<8x256xf32>
    %cst_69 = arith.constant 1.000000e+00 : f32
    %199 = vector.broadcast %cst_69 : f32 to vector<8x256xf32>
    %200 = arith.addf %199, %198 : vector<8x256xf32>
    %201 = arith.divf %199, %200 : vector<8x256xf32>
    %202 = vector.extract_strided_slice %189 {offsets = [0, 512], sizes = [8, 256], strides = [1, 1]} : vector<8x1024xf32> to vector<8x256xf32>
    %203 = math.tanh %202 : vector<8x256xf32>
    %204 = vector.extract_strided_slice %189 {offsets = [0, 768], sizes = [8, 256], strides = [1, 1]} : vector<8x1024xf32> to vector<8x256xf32>
    %205 = arith.negf %204 : vector<8x256xf32>
    %206 = math.exp %205 : vector<8x256xf32>
    %cst_70 = arith.constant 1.000000e+00 : f32
    %207 = vector.broadcast %cst_70 : f32 to vector<8x256xf32>
    %208 = arith.addf %207, %206 : vector<8x256xf32>
    %209 = arith.divf %207, %208 : vector<8x256xf32>
    %210 = arith.mulf %201, %149 : vector<8x256xf32>
    %211 = arith.mulf %195, %203 : vector<8x256xf32>
    %212 = arith.addf %210, %211 : vector<8x256xf32>
    %213 = math.tanh %212 : vector<8x256xf32>
    %214 = arith.mulf %209, %213 : vector<8x256xf32>
    %c24 = arith.constant 24 : index
    %c0_71 = arith.constant 0 : index
    %215 = vector.load %arg15[%c24, %c0_71] : memref<64x1024xf32, #tpu.memory_space<vmem>>, vector<8x1024xf32>
    %216 = arith.truncf %181 : vector<8x256xf32> to vector<8x256xbf16>
    %c0_72 = arith.constant 0 : index
    %c0_73 = arith.constant 0 : index
    %217 = vector.load %arg5[%c0_72, %c0_73] : memref<256x1024xbf16, #tpu.memory_space<vmem>>, vector<256x1024xbf16>
    %cst_74 = arith.constant dense<0.000000e+00> : vector<8x1024xf32>
    %218 = tpu.matmul %216, %217, %cst_74 {dimension_numbers = #tpu.dot_dimension_numbers<[1], [0], [0], [1], [0, 0, 1, 1], [], []>} : vector<8x256xbf16>, vector<256x1024xbf16>, vector<8x1024xf32> -> vector<8x1024xf32>
    %219 = arith.addf %215, %218 : vector<8x1024xf32>
    %220 = vector.extract_strided_slice %219 {offsets = [0, 0], sizes = [8, 256], strides = [1, 1]} : vector<8x1024xf32> to vector<8x256xf32>
    %221 = arith.negf %220 : vector<8x256xf32>
    %222 = math.exp %221 : vector<8x256xf32>
    %cst_75 = arith.constant 1.000000e+00 : f32
    %223 = vector.broadcast %cst_75 : f32 to vector<8x256xf32>
    %224 = arith.addf %223, %222 : vector<8x256xf32>
    %225 = arith.divf %223, %224 : vector<8x256xf32>
    %226 = vector.extract_strided_slice %219 {offsets = [0, 256], sizes = [8, 256], strides = [1, 1]} : vector<8x1024xf32> to vector<8x256xf32>
    %227 = arith.negf %226 : vector<8x256xf32>
    %228 = math.exp %227 : vector<8x256xf32>
    %cst_76 = arith.constant 1.000000e+00 : f32
    %229 = vector.broadcast %cst_76 : f32 to vector<8x256xf32>
    %230 = arith.addf %229, %228 : vector<8x256xf32>
    %231 = arith.divf %229, %230 : vector<8x256xf32>
    %232 = vector.extract_strided_slice %219 {offsets = [0, 512], sizes = [8, 256], strides = [1, 1]} : vector<8x1024xf32> to vector<8x256xf32>
    %233 = math.tanh %232 : vector<8x256xf32>
    %234 = vector.extract_strided_slice %219 {offsets = [0, 768], sizes = [8, 256], strides = [1, 1]} : vector<8x1024xf32> to vector<8x256xf32>
    %235 = arith.negf %234 : vector<8x256xf32>
    %236 = math.exp %235 : vector<8x256xf32>
    %cst_77 = arith.constant 1.000000e+00 : f32
    %237 = vector.broadcast %cst_77 : f32 to vector<8x256xf32>
    %238 = arith.addf %237, %236 : vector<8x256xf32>
    %239 = arith.divf %237, %238 : vector<8x256xf32>
    %240 = arith.mulf %231, %179 : vector<8x256xf32>
    %241 = arith.mulf %225, %233 : vector<8x256xf32>
    %242 = arith.addf %240, %241 : vector<8x256xf32>
    %243 = math.tanh %242 : vector<8x256xf32>
    %244 = arith.mulf %239, %243 : vector<8x256xf32>
    %245 = arith.truncf %244 : vector<8x256xf32> to vector<8x256xbf16>
    %c0_78 = arith.constant 0 : index
    %c0_79 = arith.constant 0 : index
    %246 = vector.load %arg16[%c0_78, %c0_79] : memref<256x1024xbf16, #tpu.memory_space<vmem>>, vector<256x1024xbf16>
    %cst_80 = arith.constant dense<0.000000e+00> : vector<8x1024xf32>
    %247 = tpu.matmul %245, %246, %cst_80 {dimension_numbers = #tpu.dot_dimension_numbers<[1], [0], [0], [1], [0, 0, 1, 1], [], []>} : vector<8x256xbf16>, vector<256x1024xbf16>, vector<8x1024xf32> -> vector<8x1024xf32>
    %248 = arith.truncf %214 : vector<8x256xf32> to vector<8x256xbf16>
    %c0_81 = arith.constant 0 : index
    %c0_82 = arith.constant 0 : index
    %249 = vector.load %arg17[%c0_81, %c0_82] : memref<256x1024xbf16, #tpu.memory_space<vmem>>, vector<256x1024xbf16>
    %cst_83 = arith.constant dense<0.000000e+00> : vector<8x1024xf32>
    %250 = tpu.matmul %248, %249, %cst_83 {dimension_numbers = #tpu.dot_dimension_numbers<[1], [0], [0], [1], [0, 0, 1, 1], [], []>} : vector<8x256xbf16>, vector<256x1024xbf16>, vector<8x1024xf32> -> vector<8x1024xf32>
    %251 = arith.addf %247, %250 : vector<8x1024xf32>
    %252 = arith.addf %251, %17 : vector<8x1024xf32>
    %253 = vector.extract_strided_slice %252 {offsets = [0, 0], sizes = [8, 256], strides = [1, 1]} : vector<8x1024xf32> to vector<8x256xf32>
    %254 = arith.negf %253 : vector<8x256xf32>
    %255 = math.exp %254 : vector<8x256xf32>
    %cst_84 = arith.constant 1.000000e+00 : f32
    %256 = vector.broadcast %cst_84 : f32 to vector<8x256xf32>
    %257 = arith.addf %256, %255 : vector<8x256xf32>
    %258 = arith.divf %256, %257 : vector<8x256xf32>
    %259 = vector.extract_strided_slice %252 {offsets = [0, 256], sizes = [8, 256], strides = [1, 1]} : vector<8x1024xf32> to vector<8x256xf32>
    %260 = arith.negf %259 : vector<8x256xf32>
    %261 = math.exp %260 : vector<8x256xf32>
    %cst_85 = arith.constant 1.000000e+00 : f32
    %262 = vector.broadcast %cst_85 : f32 to vector<8x256xf32>
    %263 = arith.addf %262, %261 : vector<8x256xf32>
    %264 = arith.divf %262, %263 : vector<8x256xf32>
    %265 = vector.extract_strided_slice %252 {offsets = [0, 512], sizes = [8, 256], strides = [1, 1]} : vector<8x1024xf32> to vector<8x256xf32>
    %266 = math.tanh %265 : vector<8x256xf32>
    %267 = vector.extract_strided_slice %252 {offsets = [0, 768], sizes = [8, 256], strides = [1, 1]} : vector<8x1024xf32> to vector<8x256xf32>
    %268 = arith.negf %267 : vector<8x256xf32>
    %269 = math.exp %268 : vector<8x256xf32>
    %cst_86 = arith.constant 1.000000e+00 : f32
    %270 = vector.broadcast %cst_86 : f32 to vector<8x256xf32>
    %271 = arith.addf %270, %269 : vector<8x256xf32>
    %272 = arith.divf %270, %271 : vector<8x256xf32>
    %273 = arith.mulf %264, %212 : vector<8x256xf32>
    %274 = arith.mulf %258, %266 : vector<8x256xf32>
    %275 = arith.addf %273, %274 : vector<8x256xf32>
    %276 = math.tanh %275 : vector<8x256xf32>
    %277 = arith.mulf %272, %276 : vector<8x256xf32>
    %c32 = arith.constant 32 : index
    %c0_87 = arith.constant 0 : index
    %278 = vector.load %arg15[%c32, %c0_87] : memref<64x1024xf32, #tpu.memory_space<vmem>>, vector<8x1024xf32>
    %279 = arith.truncf %244 : vector<8x256xf32> to vector<8x256xbf16>
    %c0_88 = arith.constant 0 : index
    %c0_89 = arith.constant 0 : index
    %280 = vector.load %arg5[%c0_88, %c0_89] : memref<256x1024xbf16, #tpu.memory_space<vmem>>, vector<256x1024xbf16>
    %cst_90 = arith.constant dense<0.000000e+00> : vector<8x1024xf32>
    %281 = tpu.matmul %279, %280, %cst_90 {dimension_numbers = #tpu.dot_dimension_numbers<[1], [0], [0], [1], [0, 0, 1, 1], [], []>} : vector<8x256xbf16>, vector<256x1024xbf16>, vector<8x1024xf32> -> vector<8x1024xf32>
    %282 = arith.addf %278, %281 : vector<8x1024xf32>
    %283 = vector.extract_strided_slice %282 {offsets = [0, 0], sizes = [8, 256], strides = [1, 1]} : vector<8x1024xf32> to vector<8x256xf32>
    %284 = arith.negf %283 : vector<8x256xf32>
    %285 = math.exp %284 : vector<8x256xf32>
    %cst_91 = arith.constant 1.000000e+00 : f32
    %286 = vector.broadcast %cst_91 : f32 to vector<8x256xf32>
    %287 = arith.addf %286, %285 : vector<8x256xf32>
    %288 = arith.divf %286, %287 : vector<8x256xf32>
    %289 = vector.extract_strided_slice %282 {offsets = [0, 256], sizes = [8, 256], strides = [1, 1]} : vector<8x1024xf32> to vector<8x256xf32>
    %290 = arith.negf %289 : vector<8x256xf32>
    %291 = math.exp %290 : vector<8x256xf32>
    %cst_92 = arith.constant 1.000000e+00 : f32
    %292 = vector.broadcast %cst_92 : f32 to vector<8x256xf32>
    %293 = arith.addf %292, %291 : vector<8x256xf32>
    %294 = arith.divf %292, %293 : vector<8x256xf32>
    %295 = vector.extract_strided_slice %282 {offsets = [0, 512], sizes = [8, 256], strides = [1, 1]} : vector<8x1024xf32> to vector<8x256xf32>
    %296 = math.tanh %295 : vector<8x256xf32>
    %297 = vector.extract_strided_slice %282 {offsets = [0, 768], sizes = [8, 256], strides = [1, 1]} : vector<8x1024xf32> to vector<8x256xf32>
    %298 = arith.negf %297 : vector<8x256xf32>
    %299 = math.exp %298 : vector<8x256xf32>
    %cst_93 = arith.constant 1.000000e+00 : f32
    %300 = vector.broadcast %cst_93 : f32 to vector<8x256xf32>
    %301 = arith.addf %300, %299 : vector<8x256xf32>
    %302 = arith.divf %300, %301 : vector<8x256xf32>
    %303 = arith.mulf %294, %242 : vector<8x256xf32>
    %304 = arith.mulf %288, %296 : vector<8x256xf32>
    %305 = arith.addf %303, %304 : vector<8x256xf32>
    %306 = math.tanh %305 : vector<8x256xf32>
    %307 = arith.mulf %302, %306 : vector<8x256xf32>
    %308 = arith.truncf %307 : vector<8x256xf32> to vector<8x256xbf16>
    %c0_94 = arith.constant 0 : index
    %c0_95 = arith.constant 0 : index
    %309 = vector.load %arg16[%c0_94, %c0_95] : memref<256x1024xbf16, #tpu.memory_space<vmem>>, vector<256x1024xbf16>
    %cst_96 = arith.constant dense<0.000000e+00> : vector<8x1024xf32>
    %310 = tpu.matmul %308, %309, %cst_96 {dimension_numbers = #tpu.dot_dimension_numbers<[1], [0], [0], [1], [0, 0, 1, 1], [], []>} : vector<8x256xbf16>, vector<256x1024xbf16>, vector<8x1024xf32> -> vector<8x1024xf32>
    %311 = arith.truncf %277 : vector<8x256xf32> to vector<8x256xbf16>
    %c0_97 = arith.constant 0 : index
    %c0_98 = arith.constant 0 : index
    %312 = vector.load %arg17[%c0_97, %c0_98] : memref<256x1024xbf16, #tpu.memory_space<vmem>>, vector<256x1024xbf16>
    %cst_99 = arith.constant dense<0.000000e+00> : vector<8x1024xf32>
    %313 = tpu.matmul %311, %312, %cst_99 {dimension_numbers = #tpu.dot_dimension_numbers<[1], [0], [0], [1], [0, 0, 1, 1], [], []>} : vector<8x256xbf16>, vector<256x1024xbf16>, vector<8x1024xf32> -> vector<8x1024xf32>
    %314 = arith.addf %310, %313 : vector<8x1024xf32>
    %315 = arith.addf %314, %17 : vector<8x1024xf32>
    %316 = vector.extract_strided_slice %315 {offsets = [0, 0], sizes = [8, 256], strides = [1, 1]} : vector<8x1024xf32> to vector<8x256xf32>
    %317 = arith.negf %316 : vector<8x256xf32>
    %318 = math.exp %317 : vector<8x256xf32>
    %cst_100 = arith.constant 1.000000e+00 : f32
    %319 = vector.broadcast %cst_100 : f32 to vector<8x256xf32>
    %320 = arith.addf %319, %318 : vector<8x256xf32>
    %321 = arith.divf %319, %320 : vector<8x256xf32>
    %322 = vector.extract_strided_slice %315 {offsets = [0, 256], sizes = [8, 256], strides = [1, 1]} : vector<8x1024xf32> to vector<8x256xf32>
    %323 = arith.negf %322 : vector<8x256xf32>
    %324 = math.exp %323 : vector<8x256xf32>
    %cst_101 = arith.constant 1.000000e+00 : f32
    %325 = vector.broadcast %cst_101 : f32 to vector<8x256xf32>
    %326 = arith.addf %325, %324 : vector<8x256xf32>
    %327 = arith.divf %325, %326 : vector<8x256xf32>
    %328 = vector.extract_strided_slice %315 {offsets = [0, 512], sizes = [8, 256], strides = [1, 1]} : vector<8x1024xf32> to vector<8x256xf32>
    %329 = math.tanh %328 : vector<8x256xf32>
    %330 = vector.extract_strided_slice %315 {offsets = [0, 768], sizes = [8, 256], strides = [1, 1]} : vector<8x1024xf32> to vector<8x256xf32>
    %331 = arith.negf %330 : vector<8x256xf32>
    %332 = math.exp %331 : vector<8x256xf32>
    %cst_102 = arith.constant 1.000000e+00 : f32
    %333 = vector.broadcast %cst_102 : f32 to vector<8x256xf32>
    %334 = arith.addf %333, %332 : vector<8x256xf32>
    %335 = arith.divf %333, %334 : vector<8x256xf32>
    %336 = arith.mulf %327, %275 : vector<8x256xf32>
    %337 = arith.mulf %321, %329 : vector<8x256xf32>
    %338 = arith.addf %336, %337 : vector<8x256xf32>
    %339 = math.tanh %338 : vector<8x256xf32>
    %340 = arith.mulf %335, %339 : vector<8x256xf32>
    %c40 = arith.constant 40 : index
    %c0_103 = arith.constant 0 : index
    %341 = vector.load %arg15[%c40, %c0_103] : memref<64x1024xf32, #tpu.memory_space<vmem>>, vector<8x1024xf32>
    %342 = arith.truncf %307 : vector<8x256xf32> to vector<8x256xbf16>
    %c0_104 = arith.constant 0 : index
    %c0_105 = arith.constant 0 : index
    %343 = vector.load %arg5[%c0_104, %c0_105] : memref<256x1024xbf16, #tpu.memory_space<vmem>>, vector<256x1024xbf16>
    %cst_106 = arith.constant dense<0.000000e+00> : vector<8x1024xf32>
    %344 = tpu.matmul %342, %343, %cst_106 {dimension_numbers = #tpu.dot_dimension_numbers<[1], [0], [0], [1], [0, 0, 1, 1], [], []>} : vector<8x256xbf16>, vector<256x1024xbf16>, vector<8x1024xf32> -> vector<8x1024xf32>
    %345 = arith.addf %341, %344 : vector<8x1024xf32>
    %346 = vector.extract_strided_slice %345 {offsets = [0, 0], sizes = [8, 256], strides = [1, 1]} : vector<8x1024xf32> to vector<8x256xf32>
    %347 = arith.negf %346 : vector<8x256xf32>
    %348 = math.exp %347 : vector<8x256xf32>
    %cst_107 = arith.constant 1.000000e+00 : f32
    %349 = vector.broadcast %cst_107 : f32 to vector<8x256xf32>
    %350 = arith.addf %349, %348 : vector<8x256xf32>
    %351 = arith.divf %349, %350 : vector<8x256xf32>
    %352 = vector.extract_strided_slice %345 {offsets = [0, 256], sizes = [8, 256], strides = [1, 1]} : vector<8x1024xf32> to vector<8x256xf32>
    %353 = arith.negf %352 : vector<8x256xf32>
    %354 = math.exp %353 : vector<8x256xf32>
    %cst_108 = arith.constant 1.000000e+00 : f32
    %355 = vector.broadcast %cst_108 : f32 to vector<8x256xf32>
    %356 = arith.addf %355, %354 : vector<8x256xf32>
    %357 = arith.divf %355, %356 : vector<8x256xf32>
    %358 = vector.extract_strided_slice %345 {offsets = [0, 512], sizes = [8, 256], strides = [1, 1]} : vector<8x1024xf32> to vector<8x256xf32>
    %359 = math.tanh %358 : vector<8x256xf32>
    %360 = vector.extract_strided_slice %345 {offsets = [0, 768], sizes = [8, 256], strides = [1, 1]} : vector<8x1024xf32> to vector<8x256xf32>
    %361 = arith.negf %360 : vector<8x256xf32>
    %362 = math.exp %361 : vector<8x256xf32>
    %cst_109 = arith.constant 1.000000e+00 : f32
    %363 = vector.broadcast %cst_109 : f32 to vector<8x256xf32>
    %364 = arith.addf %363, %362 : vector<8x256xf32>
    %365 = arith.divf %363, %364 : vector<8x256xf32>
    %366 = arith.mulf %357, %305 : vector<8x256xf32>
    %367 = arith.mulf %351, %359 : vector<8x256xf32>
    %368 = arith.addf %366, %367 : vector<8x256xf32>
    %369 = math.tanh %368 : vector<8x256xf32>
    %370 = arith.mulf %365, %369 : vector<8x256xf32>
    %371 = arith.truncf %370 : vector<8x256xf32> to vector<8x256xbf16>
    %c0_110 = arith.constant 0 : index
    %c0_111 = arith.constant 0 : index
    %372 = vector.load %arg16[%c0_110, %c0_111] : memref<256x1024xbf16, #tpu.memory_space<vmem>>, vector<256x1024xbf16>
    %cst_112 = arith.constant dense<0.000000e+00> : vector<8x1024xf32>
    %373 = tpu.matmul %371, %372, %cst_112 {dimension_numbers = #tpu.dot_dimension_numbers<[1], [0], [0], [1], [0, 0, 1, 1], [], []>} : vector<8x256xbf16>, vector<256x1024xbf16>, vector<8x1024xf32> -> vector<8x1024xf32>
    %374 = arith.truncf %340 : vector<8x256xf32> to vector<8x256xbf16>
    %c0_113 = arith.constant 0 : index
    %c0_114 = arith.constant 0 : index
    %375 = vector.load %arg17[%c0_113, %c0_114] : memref<256x1024xbf16, #tpu.memory_space<vmem>>, vector<256x1024xbf16>
    %cst_115 = arith.constant dense<0.000000e+00> : vector<8x1024xf32>
    %376 = tpu.matmul %374, %375, %cst_115 {dimension_numbers = #tpu.dot_dimension_numbers<[1], [0], [0], [1], [0, 0, 1, 1], [], []>} : vector<8x256xbf16>, vector<256x1024xbf16>, vector<8x1024xf32> -> vector<8x1024xf32>
    %377 = arith.addf %373, %376 : vector<8x1024xf32>
    %378 = arith.addf %377, %17 : vector<8x1024xf32>
    %379 = vector.extract_strided_slice %378 {offsets = [0, 0], sizes = [8, 256], strides = [1, 1]} : vector<8x1024xf32> to vector<8x256xf32>
    %380 = arith.negf %379 : vector<8x256xf32>
    %381 = math.exp %380 : vector<8x256xf32>
    %cst_116 = arith.constant 1.000000e+00 : f32
    %382 = vector.broadcast %cst_116 : f32 to vector<8x256xf32>
    %383 = arith.addf %382, %381 : vector<8x256xf32>
    %384 = arith.divf %382, %383 : vector<8x256xf32>
    %385 = vector.extract_strided_slice %378 {offsets = [0, 256], sizes = [8, 256], strides = [1, 1]} : vector<8x1024xf32> to vector<8x256xf32>
    %386 = arith.negf %385 : vector<8x256xf32>
    %387 = math.exp %386 : vector<8x256xf32>
    %cst_117 = arith.constant 1.000000e+00 : f32
    %388 = vector.broadcast %cst_117 : f32 to vector<8x256xf32>
    %389 = arith.addf %388, %387 : vector<8x256xf32>
    %390 = arith.divf %388, %389 : vector<8x256xf32>
    %391 = vector.extract_strided_slice %378 {offsets = [0, 512], sizes = [8, 256], strides = [1, 1]} : vector<8x1024xf32> to vector<8x256xf32>
    %392 = math.tanh %391 : vector<8x256xf32>
    %393 = vector.extract_strided_slice %378 {offsets = [0, 768], sizes = [8, 256], strides = [1, 1]} : vector<8x1024xf32> to vector<8x256xf32>
    %394 = arith.negf %393 : vector<8x256xf32>
    %395 = math.exp %394 : vector<8x256xf32>
    %cst_118 = arith.constant 1.000000e+00 : f32
    %396 = vector.broadcast %cst_118 : f32 to vector<8x256xf32>
    %397 = arith.addf %396, %395 : vector<8x256xf32>
    %398 = arith.divf %396, %397 : vector<8x256xf32>
    %399 = arith.mulf %390, %338 : vector<8x256xf32>
    %400 = arith.mulf %384, %392 : vector<8x256xf32>
    %401 = arith.addf %399, %400 : vector<8x256xf32>
    %402 = math.tanh %401 : vector<8x256xf32>
    %403 = arith.mulf %398, %402 : vector<8x256xf32>
    %c48 = arith.constant 48 : index
    %c0_119 = arith.constant 0 : index
    %404 = vector.load %arg15[%c48, %c0_119] : memref<64x1024xf32, #tpu.memory_space<vmem>>, vector<8x1024xf32>
    %405 = arith.truncf %370 : vector<8x256xf32> to vector<8x256xbf16>
    %c0_120 = arith.constant 0 : index
    %c0_121 = arith.constant 0 : index
    %406 = vector.load %arg5[%c0_120, %c0_121] : memref<256x1024xbf16, #tpu.memory_space<vmem>>, vector<256x1024xbf16>
    %cst_122 = arith.constant dense<0.000000e+00> : vector<8x1024xf32>
    %407 = tpu.matmul %405, %406, %cst_122 {dimension_numbers = #tpu.dot_dimension_numbers<[1], [0], [0], [1], [0, 0, 1, 1], [], []>} : vector<8x256xbf16>, vector<256x1024xbf16>, vector<8x1024xf32> -> vector<8x1024xf32>
    %408 = arith.addf %404, %407 : vector<8x1024xf32>
    %409 = vector.extract_strided_slice %408 {offsets = [0, 0], sizes = [8, 256], strides = [1, 1]} : vector<8x1024xf32> to vector<8x256xf32>
    %410 = arith.negf %409 : vector<8x256xf32>
    %411 = math.exp %410 : vector<8x256xf32>
    %cst_123 = arith.constant 1.000000e+00 : f32
    %412 = vector.broadcast %cst_123 : f32 to vector<8x256xf32>
    %413 = arith.addf %412, %411 : vector<8x256xf32>
    %414 = arith.divf %412, %413 : vector<8x256xf32>
    %415 = vector.extract_strided_slice %408 {offsets = [0, 256], sizes = [8, 256], strides = [1, 1]} : vector<8x1024xf32> to vector<8x256xf32>
    %416 = arith.negf %415 : vector<8x256xf32>
    %417 = math.exp %416 : vector<8x256xf32>
    %cst_124 = arith.constant 1.000000e+00 : f32
    %418 = vector.broadcast %cst_124 : f32 to vector<8x256xf32>
    %419 = arith.addf %418, %417 : vector<8x256xf32>
    %420 = arith.divf %418, %419 : vector<8x256xf32>
    %421 = vector.extract_strided_slice %408 {offsets = [0, 512], sizes = [8, 256], strides = [1, 1]} : vector<8x1024xf32> to vector<8x256xf32>
    %422 = math.tanh %421 : vector<8x256xf32>
    %423 = vector.extract_strided_slice %408 {offsets = [0, 768], sizes = [8, 256], strides = [1, 1]} : vector<8x1024xf32> to vector<8x256xf32>
    %424 = arith.negf %423 : vector<8x256xf32>
    %425 = math.exp %424 : vector<8x256xf32>
    %cst_125 = arith.constant 1.000000e+00 : f32
    %426 = vector.broadcast %cst_125 : f32 to vector<8x256xf32>
    %427 = arith.addf %426, %425 : vector<8x256xf32>
    %428 = arith.divf %426, %427 : vector<8x256xf32>
    %429 = arith.mulf %420, %368 : vector<8x256xf32>
    %430 = arith.mulf %414, %422 : vector<8x256xf32>
    %431 = arith.addf %429, %430 : vector<8x256xf32>
    %432 = math.tanh %431 : vector<8x256xf32>
    %433 = arith.mulf %428, %432 : vector<8x256xf32>
    %434 = arith.truncf %433 : vector<8x256xf32> to vector<8x256xbf16>
    %c0_126 = arith.constant 0 : index
    %c0_127 = arith.constant 0 : index
    %435 = vector.load %arg16[%c0_126, %c0_127] : memref<256x1024xbf16, #tpu.memory_space<vmem>>, vector<256x1024xbf16>
    %cst_128 = arith.constant dense<0.000000e+00> : vector<8x1024xf32>
    %436 = tpu.matmul %434, %435, %cst_128 {dimension_numbers = #tpu.dot_dimension_numbers<[1], [0], [0], [1], [0, 0, 1, 1], [], []>} : vector<8x256xbf16>, vector<256x1024xbf16>, vector<8x1024xf32> -> vector<8x1024xf32>
    %437 = arith.truncf %403 : vector<8x256xf32> to vector<8x256xbf16>
    %c0_129 = arith.constant 0 : index
    %c0_130 = arith.constant 0 : index
    %438 = vector.load %arg17[%c0_129, %c0_130] : memref<256x1024xbf16, #tpu.memory_space<vmem>>, vector<256x1024xbf16>
    %cst_131 = arith.constant dense<0.000000e+00> : vector<8x1024xf32>
    %439 = tpu.matmul %437, %438, %cst_131 {dimension_numbers = #tpu.dot_dimension_numbers<[1], [0], [0], [1], [0, 0, 1, 1], [], []>} : vector<8x256xbf16>, vector<256x1024xbf16>, vector<8x1024xf32> -> vector<8x1024xf32>
    %440 = arith.addf %436, %439 : vector<8x1024xf32>
    %441 = arith.addf %440, %17 : vector<8x1024xf32>
    %442 = vector.extract_strided_slice %441 {offsets = [0, 0], sizes = [8, 256], strides = [1, 1]} : vector<8x1024xf32> to vector<8x256xf32>
    %443 = arith.negf %442 : vector<8x256xf32>
    %444 = math.exp %443 : vector<8x256xf32>
    %cst_132 = arith.constant 1.000000e+00 : f32
    %445 = vector.broadcast %cst_132 : f32 to vector<8x256xf32>
    %446 = arith.addf %445, %444 : vector<8x256xf32>
    %447 = arith.divf %445, %446 : vector<8x256xf32>
    %448 = vector.extract_strided_slice %441 {offsets = [0, 256], sizes = [8, 256], strides = [1, 1]} : vector<8x1024xf32> to vector<8x256xf32>
    %449 = arith.negf %448 : vector<8x256xf32>
    %450 = math.exp %449 : vector<8x256xf32>
    %cst_133 = arith.constant 1.000000e+00 : f32
    %451 = vector.broadcast %cst_133 : f32 to vector<8x256xf32>
    %452 = arith.addf %451, %450 : vector<8x256xf32>
    %453 = arith.divf %451, %452 : vector<8x256xf32>
    %454 = vector.extract_strided_slice %441 {offsets = [0, 512], sizes = [8, 256], strides = [1, 1]} : vector<8x1024xf32> to vector<8x256xf32>
    %455 = math.tanh %454 : vector<8x256xf32>
    %456 = vector.extract_strided_slice %441 {offsets = [0, 768], sizes = [8, 256], strides = [1, 1]} : vector<8x1024xf32> to vector<8x256xf32>
    %457 = arith.negf %456 : vector<8x256xf32>
    %458 = math.exp %457 : vector<8x256xf32>
    %cst_134 = arith.constant 1.000000e+00 : f32
    %459 = vector.broadcast %cst_134 : f32 to vector<8x256xf32>
    %460 = arith.addf %459, %458 : vector<8x256xf32>
    %461 = arith.divf %459, %460 : vector<8x256xf32>
    %462 = arith.mulf %453, %401 : vector<8x256xf32>
    %463 = arith.mulf %447, %455 : vector<8x256xf32>
    %464 = arith.addf %462, %463 : vector<8x256xf32>
    %465 = math.tanh %464 : vector<8x256xf32>
    %466 = arith.mulf %461, %465 : vector<8x256xf32>
    %c56 = arith.constant 56 : index
    %c0_135 = arith.constant 0 : index
    %467 = vector.load %arg15[%c56, %c0_135] : memref<64x1024xf32, #tpu.memory_space<vmem>>, vector<8x1024xf32>
    %468 = arith.truncf %433 : vector<8x256xf32> to vector<8x256xbf16>
    %c0_136 = arith.constant 0 : index
    %c0_137 = arith.constant 0 : index
    %469 = vector.load %arg5[%c0_136, %c0_137] : memref<256x1024xbf16, #tpu.memory_space<vmem>>, vector<256x1024xbf16>
    %cst_138 = arith.constant dense<0.000000e+00> : vector<8x1024xf32>
    %470 = tpu.matmul %468, %469, %cst_138 {dimension_numbers = #tpu.dot_dimension_numbers<[1], [0], [0], [1], [0, 0, 1, 1], [], []>} : vector<8x256xbf16>, vector<256x1024xbf16>, vector<8x1024xf32> -> vector<8x1024xf32>
    %471 = arith.addf %467, %470 : vector<8x1024xf32>
    %472 = vector.extract_strided_slice %471 {offsets = [0, 0], sizes = [8, 256], strides = [1, 1]} : vector<8x1024xf32> to vector<8x256xf32>
    %473 = arith.negf %472 : vector<8x256xf32>
    %474 = math.exp %473 : vector<8x256xf32>
    %cst_139 = arith.constant 1.000000e+00 : f32
    %475 = vector.broadcast %cst_139 : f32 to vector<8x256xf32>
    %476 = arith.addf %475, %474 : vector<8x256xf32>
    %477 = arith.divf %475, %476 : vector<8x256xf32>
    %478 = vector.extract_strided_slice %471 {offsets = [0, 256], sizes = [8, 256], strides = [1, 1]} : vector<8x1024xf32> to vector<8x256xf32>
    %479 = arith.negf %478 : vector<8x256xf32>
    %480 = math.exp %479 : vector<8x256xf32>
    %cst_140 = arith.constant 1.000000e+00 : f32
    %481 = vector.broadcast %cst_140 : f32 to vector<8x256xf32>
    %482 = arith.addf %481, %480 : vector<8x256xf32>
    %483 = arith.divf %481, %482 : vector<8x256xf32>
    %484 = vector.extract_strided_slice %471 {offsets = [0, 512], sizes = [8, 256], strides = [1, 1]} : vector<8x1024xf32> to vector<8x256xf32>
    %485 = math.tanh %484 : vector<8x256xf32>
    %486 = vector.extract_strided_slice %471 {offsets = [0, 768], sizes = [8, 256], strides = [1, 1]} : vector<8x1024xf32> to vector<8x256xf32>
    %487 = arith.negf %486 : vector<8x256xf32>
    %488 = math.exp %487 : vector<8x256xf32>
    %cst_141 = arith.constant 1.000000e+00 : f32
    %489 = vector.broadcast %cst_141 : f32 to vector<8x256xf32>
    %490 = arith.addf %489, %488 : vector<8x256xf32>
    %491 = arith.divf %489, %490 : vector<8x256xf32>
    %492 = arith.mulf %483, %431 : vector<8x256xf32>
    %493 = arith.mulf %477, %485 : vector<8x256xf32>
    %494 = arith.addf %492, %493 : vector<8x256xf32>
    %495 = math.tanh %494 : vector<8x256xf32>
    %496 = arith.mulf %491, %495 : vector<8x256xf32>
    %497 = arith.truncf %496 : vector<8x256xf32> to vector<8x256xbf16>
    %c0_142 = arith.constant 0 : index
    %c0_143 = arith.constant 0 : index
    %498 = vector.load %arg16[%c0_142, %c0_143] : memref<256x1024xbf16, #tpu.memory_space<vmem>>, vector<256x1024xbf16>
    %cst_144 = arith.constant dense<0.000000e+00> : vector<8x1024xf32>
    %499 = tpu.matmul %497, %498, %cst_144 {dimension_numbers = #tpu.dot_dimension_numbers<[1], [0], [0], [1], [0, 0, 1, 1], [], []>} : vector<8x256xbf16>, vector<256x1024xbf16>, vector<8x1024xf32> -> vector<8x1024xf32>
    %500 = arith.truncf %466 : vector<8x256xf32> to vector<8x256xbf16>
    %c0_145 = arith.constant 0 : index
    %c0_146 = arith.constant 0 : index
    %501 = vector.load %arg17[%c0_145, %c0_146] : memref<256x1024xbf16, #tpu.memory_space<vmem>>, vector<256x1024xbf16>
    %cst_147 = arith.constant dense<0.000000e+00> : vector<8x1024xf32>
    %502 = tpu.matmul %500, %501, %cst_147 {dimension_numbers = #tpu.dot_dimension_numbers<[1], [0], [0], [1], [0, 0, 1, 1], [], []>} : vector<8x256xbf16>, vector<256x1024xbf16>, vector<8x1024xf32> -> vector<8x1024xf32>
    %503 = arith.addf %499, %502 : vector<8x1024xf32>
    %504 = arith.addf %503, %17 : vector<8x1024xf32>
    %505 = vector.extract_strided_slice %504 {offsets = [0, 0], sizes = [8, 256], strides = [1, 1]} : vector<8x1024xf32> to vector<8x256xf32>
    %506 = arith.negf %505 : vector<8x256xf32>
    %507 = math.exp %506 : vector<8x256xf32>
    %cst_148 = arith.constant 1.000000e+00 : f32
    %508 = vector.broadcast %cst_148 : f32 to vector<8x256xf32>
    %509 = arith.addf %508, %507 : vector<8x256xf32>
    %510 = arith.divf %508, %509 : vector<8x256xf32>
    %511 = vector.extract_strided_slice %504 {offsets = [0, 256], sizes = [8, 256], strides = [1, 1]} : vector<8x1024xf32> to vector<8x256xf32>
    %512 = arith.negf %511 : vector<8x256xf32>
    %513 = math.exp %512 : vector<8x256xf32>
    %cst_149 = arith.constant 1.000000e+00 : f32
    %514 = vector.broadcast %cst_149 : f32 to vector<8x256xf32>
    %515 = arith.addf %514, %513 : vector<8x256xf32>
    %516 = arith.divf %514, %515 : vector<8x256xf32>
    %517 = vector.extract_strided_slice %504 {offsets = [0, 512], sizes = [8, 256], strides = [1, 1]} : vector<8x1024xf32> to vector<8x256xf32>
    %518 = math.tanh %517 : vector<8x256xf32>
    %519 = vector.extract_strided_slice %504 {offsets = [0, 768], sizes = [8, 256], strides = [1, 1]} : vector<8x1024xf32> to vector<8x256xf32>
    %520 = arith.negf %519 : vector<8x256xf32>
    %521 = math.exp %520 : vector<8x256xf32>
    %cst_150 = arith.constant 1.000000e+00 : f32
    %522 = vector.broadcast %cst_150 : f32 to vector<8x256xf32>
    %523 = arith.addf %522, %521 : vector<8x256xf32>
    %524 = arith.divf %522, %523 : vector<8x256xf32>
    %525 = arith.mulf %516, %464 : vector<8x256xf32>
    %526 = arith.mulf %510, %518 : vector<8x256xf32>
    %527 = arith.addf %525, %526 : vector<8x256xf32>
    %528 = math.tanh %527 : vector<8x256xf32>
    %529 = arith.mulf %524, %528 : vector<8x256xf32>
    %c0_151 = arith.constant 0 : index
    %c0_152 = arith.constant 0 : index
    %c0_153 = arith.constant 0 : index
    %530 = vector.load %arg13[%c0_151, %c0_152, %c0_153] : memref<2x8x256xf32, #tpu.memory_space<vmem>>, vector<1x8x256xf32>
    %531 = vector.shape_cast %530 : vector<1x8x256xf32> to vector<8x256xf32>
    %532 = vector.shape_cast %496 : vector<8x256xf32> to vector<1x8x256xf32>
    tpu.vector_store %arg13[%c0_151, %c0_152, %c0_153], %532 {strides = array<i32>} : memref<2x8x256xf32, #tpu.memory_space<vmem>>, vector<1x8x256xf32>,
    %c0_154 = arith.constant 0 : index
    %c0_155 = arith.constant 0 : index
    %c0_156 = arith.constant 0 : index
    %533 = vector.load %arg14[%c0_154, %c0_155, %c0_156] : memref<2x8x256xf32, #tpu.memory_space<vmem>>, vector<1x8x256xf32>
    %534 = vector.shape_cast %533 : vector<1x8x256xf32> to vector<8x256xf32>
    %535 = vector.shape_cast %494 : vector<8x256xf32> to vector<1x8x256xf32>
    tpu.vector_store %arg14[%c0_154, %c0_155, %c0_156], %535 {strides = array<i32>} : memref<2x8x256xf32, #tpu.memory_space<vmem>>, vector<1x8x256xf32>,
    %c1_157 = arith.constant 1 : index
    %c0_158 = arith.constant 0 : index
    %c0_159 = arith.constant 0 : index
    %536 = vector.load %arg13[%c1_157, %c0_158, %c0_159] : memref<2x8x256xf32, #tpu.memory_space<vmem>>, vector<1x8x256xf32>
    %537 = vector.shape_cast %536 : vector<1x8x256xf32> to vector<8x256xf32>
    %538 = vector.shape_cast %529 : vector<8x256xf32> to vector<1x8x256xf32>
    tpu.vector_store %arg13[%c1_157, %c0_158, %c0_159], %538 {strides = array<i32>} : memref<2x8x256xf32, #tpu.memory_space<vmem>>, vector<1x8x256xf32>,
    %c1_160 = arith.constant 1 : index
    %c0_161 = arith.constant 0 : index
    %c0_162 = arith.constant 0 : index
    %539 = vector.load %arg14[%c1_160, %c0_161, %c0_162] : memref<2x8x256xf32, #tpu.memory_space<vmem>>, vector<1x8x256xf32>
    %540 = vector.shape_cast %539 : vector<1x8x256xf32> to vector<8x256xf32>
    %541 = vector.shape_cast %527 : vector<8x256xf32> to vector<1x8x256xf32>
    tpu.vector_store %arg14[%c1_160, %c0_161, %c0_162], %541 {strides = array<i32>} : memref<2x8x256xf32, #tpu.memory_space<vmem>>, vector<1x8x256xf32>,
    %542 = arith.truncf %529 : vector<8x256xf32> to vector<8x256xbf16>
    %c0_163 = arith.constant 0 : index
    %c0_164 = arith.constant 0 : index
    %543 = vector.load %arg10[%c0_163, %c0_164] : memref<256x128xbf16, #tpu.memory_space<vmem>>, vector<256x128xbf16>
    %cst_165 = arith.constant dense<0.000000e+00> : vector<8x128xf32>
    %544 = tpu.matmul %542, %543, %cst_165 {dimension_numbers = #tpu.dot_dimension_numbers<[1], [0], [0], [1], [0, 0, 1, 1], [], []>} : vector<8x256xbf16>, vector<256x128xbf16>, vector<8x128xf32> -> vector<8x128xf32>
    %c0_166 = arith.constant 0 : index
    %c0_167 = arith.constant 0 : index
    %545 = vector.load %arg11[%c0_166, %c0_167] : memref<1x128xf32, #tpu.memory_space<vmem>>, vector<1x128xf32>
    %546 = vector.broadcast %545 : vector<1x128xf32> to vector<8x128xf32>
    %547 = arith.addf %544, %546 : vector<8x128xf32>
    %c0_168 = arith.constant 0 : index
    %c0_169 = arith.constant 0 : index
    %548 = vector.load %arg12[%c0_168, %c0_169] : memref<8x128xf32, #tpu.memory_space<vmem>>, vector<8x128xf32>
    tpu.vector_store %arg12[%c0_168, %c0_169], %547 {strides = array<i32>} : memref<8x128xf32, #tpu.memory_space<vmem>>, vector<8x128xf32>,
    return
  }
  func.func @transform_0(%arg0: i32) -> (i32, i32) {
    %c0_i32 = arith.constant 0 : i32
    %c0_i32_0 = arith.constant 0 : i32
    %c0_i32_1 = arith.constant 0 : i32
    return %c0_i32, %c0_i32_0 : i32, i32
  }
  func.func @transform_1(%arg0: i32) -> (i32, i32, i32) {
    %c0_i32 = arith.constant 0 : i32
    %c0_i32_0 = arith.constant 0 : i32
    %c0_i32_1 = arith.constant 0 : i32
    %c0_i32_2 = arith.constant 0 : i32
    return %c0_i32, %c0_i32_0, %c0_i32_1 : i32, i32, i32
  }
  func.func @transform_2(%arg0: i32) -> (i32, i32, i32) {
    %c0_i32 = arith.constant 0 : i32
    %c0_i32_0 = arith.constant 0 : i32
    %c0_i32_1 = arith.constant 0 : i32
    %c0_i32_2 = arith.constant 0 : i32
    return %c0_i32, %c0_i32_0, %c0_i32_1 : i32, i32, i32
  }
  func.func @transform_3(%arg0: i32) -> (i32, i32) {
    %c0_i32 = arith.constant 0 : i32
    %c0_i32_0 = arith.constant 0 : i32
    %c0_i32_1 = arith.constant 0 : i32
    return %c0_i32, %c0_i32_0 : i32, i32
  }
  func.func @transform_4(%arg0: i32) -> (i32, i32) {
    %c0_i32 = arith.constant 0 : i32
    %c0_i32_0 = arith.constant 0 : i32
    %c0_i32_1 = arith.constant 0 : i32
    return %c0_i32, %c0_i32_0 : i32, i32
  }
  func.func @transform_5(%arg0: i32) -> (i32, i32) {
    %c0_i32 = arith.constant 0 : i32
    %c0_i32_0 = arith.constant 0 : i32
    %c0_i32_1 = arith.constant 0 : i32
    return %c0_i32, %c0_i32_0 : i32, i32
  }
  func.func @transform_8(%arg0: i32) -> (i32, i32) {
    %c0_i32 = arith.constant 0 : i32
    %c0_i32_0 = arith.constant 0 : i32
    %c0_i32_1 = arith.constant 0 : i32
    return %c0_i32, %c0_i32_0 : i32, i32
  }
  func.func @transform_9(%arg0: i32) -> (i32, i32) {
    %c0_i32 = arith.constant 0 : i32
    %c0_i32_0 = arith.constant 0 : i32
    %c0_i32_1 = arith.constant 0 : i32
    return %c0_i32, %c0_i32_0 : i32, i32
  }
  func.func @transform_10(%arg0: i32) -> (i32, i32) {
    %c0_i32 = arith.constant 0 : i32
    %c0_i32_0 = arith.constant 0 : i32
    %c0_i32_1 = arith.constant 0 : i32
    return %c0_i32, %c0_i32_0 : i32, i32
  }
  func.func @transform_11(%arg0: i32) -> (i32, i32) {
    %c0_i32 = arith.constant 0 : i32
    %c0_i32_0 = arith.constant 0 : i32
    %c0_i32_1 = arith.constant 0 : i32
    return %c0_i32, %c0_i32_0 : i32, i32
  }
  func.func @transform_12(%arg0: i32) -> (i32, i32, i32) {
    %c0_i32 = arith.constant 0 : i32
    %c0_i32_0 = arith.constant 0 : i32
    %c0_i32_1 = arith.constant 0 : i32
    %c0_i32_2 = arith.constant 0 : i32
    return %c0_i32, %c0_i32_0, %c0_i32_1 : i32, i32, i32
  }
  func.func @transform_13(%arg0: i32) -> (i32, i32, i32) {
    %c0_i32 = arith.constant 0 : i32
    %c0_i32_0 = arith.constant 0 : i32
    %c0_i32_1 = arith.constant 0 : i32
    %c0_i32_2 = arith.constant 0 : i32
    return %c0_i32, %c0_i32_0, %c0_i32_1 : i32, i32, i32
  }
}

</mosaic_0001>

<llo_original>
// kernel: rnn_extension_forward.1
$region0: #{rnn_extension_forward.1}
  #allocation0 [shape = 'u32[]', space=smem, size = 0x4, offset = 0x4, fixed_abs, tag = 'smem constant byte address 0x4 - core index']
  #allocation1 [shape = 'u32[144,128]{1,0:T(1,128)}', space=vmem, size = 0x12000, scoped, tag = 'internal scratch']
  #allocation2 [shape = 'f32[64,1024]{1,0:T(8,128)}', space=vmem, size = 0x40000, scoped, tag = 'scratch operand']
  #allocation3 [shape = 'bf16[256,1024]{1,0:T(16,128)(2,1)}', space=vmem, size = 0x80000, scoped, tag = 'scratch operand']
  #allocation4 [shape = 'bf16[256,1024]{1,0:T(16,128)(2,1)}', space=vmem, size = 0x80000, scoped, tag = 'scratch operand']
  #allocation5 [shape = 's32[2]{0}', space=sflag, size = 0x8, scoped, tag = 'scratch operand']
  #allocation10 [shape = 's32[]', space=sflag, size = 0x4, offset = 0, fixed_abs, tag = 'sflag constant byte address 0x0 - dummy sync flag']
  #allocation12 [shape = 's32[]', space=sflag, size = 0x4, offset = 0, fixed_abs, tag = 'sflag constant byte address 0x0 - dummy sync flag']
  %s0 = inlined_call_operand.vmem [shape: bf16[64,128], index: 0, kind: input, shape index: {}]
  %s1 = inlined_call_operand.vmem [shape: f32[2,8,256], index: 1, kind: input, shape index: {}]
  %s2 = inlined_call_operand.vmem [shape: f32[2,8,256], index: 2, kind: input, shape index: {}]
  %s3 = inlined_call_operand.hbm [shape: bf16[128,1024], index: 3, kind: input, shape index: {}]
  %s4 = inlined_call_operand.hbm [shape: bf16[256,1024], index: 4, kind: input, shape index: {}]
  %s5 = inlined_call_operand.vmem [shape: f32[1,1024], index: 5, kind: input, shape index: {}]
  %s6 = inlined_call_operand.hbm [shape: bf16[256,1024], index: 6, kind: input, shape index: {}]
  %s7 = inlined_call_operand.hbm [shape: bf16[256,1024], index: 7, kind: input, shape index: {}]
  %s8 = inlined_call_operand.vmem [shape: f32[1,1024], index: 8, kind: input, shape index: {}]
  %s9 = inlined_call_operand.vmem [shape: bf16[256,128], index: 9, kind: input, shape index: {}]
  %s10 = inlined_call_operand.vmem [shape: f32[1,128], index: 10, kind: input, shape index: {}]
  %s11 = inlined_call_operand.vmem [shape: f32[8,128], index: 11, kind: output, shape index: {0}]
  %s12 = inlined_call_operand.vmem [shape: f32[2,8,256], index: 12, kind: output, shape index: {1}]
  %s13 = inlined_call_operand.vmem [shape: f32[2,8,256], index: 13, kind: output, shape index: {2}]
  %14 = xla_tuple %s11, %s12, %s13
  %s15 = sld [smem:[#allocation0]]
  $region70: #{rnn_extension_forward.1} parent=0
    _
  %s17 = ssub.s32 1, %s15
  %s18 = scalar_select 0, %s17, %s15
  $region1: #{rnn_extension_forward.1} parent=0
    #allocation6 [shape = 'u8[262144]{0}', space=vmem, size = 0x40000, scoped, tag = 'input window, operand 3, single buffered']
    #allocation7 [shape = 's32[1]{0}', space=sflag, size = 0x4, scoped, tag = 'scoped memory for rnn_extension_forward.1']
    #allocation8 [shape = 'u8[524288]{0}', space=vmem, size = 0x80000, scoped, tag = 'input window, operand 4, single buffered']
    #allocation9 [shape = 's32[1]{0}', space=sflag, size = 0x4, scoped, tag = 'scoped memory for rnn_extension_forward.1']
    #allocation11 [shape = 'u32[9]{0}', space=smem, size = 0x24, scoped, tag = 'DMA stride descriptor']
    #allocation13 [shape = 'u32[9]{0}', space=smem, size = 0x24, scoped, tag = 'DMA stride descriptor']
    %19 = vsyncpa [#allocation7], 0
    %20 = vsyncpa [#allocation9], 0
    // Predicated region
    $region2: #{rnn_extension_forward.1} parent=1 // pred_check
      _
    $region3: #{rnn_extension_forward.1} parent=1 // pred_check_branch
      %22 = sbr.rel (0) target = $region5
    $region4: #{rnn_extension_forward.1} parent=1 // pred_region
      _
    $region5: #{rnn_extension_forward.1} parent=1 // pred_fallthru
      _
    // Predicated region
    $region6: #{rnn_extension_forward.1} parent=1 // pred_check
      _
    $region7: #{rnn_extension_forward.1} parent=1 // pred_check_branch
      %24 = sbr.rel (0) target = $region9
    $region8: #{rnn_extension_forward.1} parent=1 // pred_region
      _
    $region9: #{rnn_extension_forward.1} parent=1 // pred_fallthru
      _
    // Predicated region
    $region10: #{rnn_extension_forward.1} parent=1 // pred_check
      _
    $region11: #{rnn_extension_forward.1} parent=1 // pred_check_branch
      %26 = sbr.rel (0) target = $region13
    $region12: #{rnn_extension_forward.1} parent=1 // pred_region
      _
    $region13: #{rnn_extension_forward.1} parent=1 // pred_fallthru
      _
    // Predicated region
    $region14: #{rnn_extension_forward.1} parent=1 // pred_check
      _
    $region15: #{rnn_extension_forward.1} parent=1 // pred_check_branch
      %28 = sbr.rel (0) target = $region17
    $region16: #{rnn_extension_forward.1} parent=1 // pred_region
      %s30 = ssub.s32 8192, 8192
      %31 = vsyncadd [#allocation7], %s30
      %s32 = sshll.u32 [#allocation6], 4
      %s33 = int_to_ptr.vmem [resolvable:$true] %s32
      %38 = dma.hbm_to_vmem [thread:$0]  %s3, 8192, %s33, [#allocation7], 512, 512, 32
    $region17: #{rnn_extension_forward.1} parent=1 // pred_fallthru
      _
    // Predicated region
    $region18: #{rnn_extension_forward.1} parent=1 // pred_check
      _
    $region19: #{rnn_extension_forward.1} parent=1 // pred_check_branch
      %40 = sbr.rel (0) target = $region21
    $region20: #{rnn_extension_forward.1} parent=1 // pred_region
      %s42 = ssub.s32 16384, 16384
      %43 = vsyncadd [#allocation9], %s42
      %s44 = sshll.u32 [#allocation8], 4
      %s45 = int_to_ptr.vmem [resolvable:$true] %s44
      %50 = dma.hbm_to_vmem [thread:$0]  %s4, 16384, %s45, [#allocation9], 512, 512, 32
    $region21: #{rnn_extension_forward.1} parent=1 // pred_fallthru
      _
    // Predicated region
    $region22: #{rnn_extension_forward.1} parent=1 // pred_check
      _
    $region23: #{rnn_extension_forward.1} parent=1 // pred_check_branch
      %52 = sbr.rel (0) target = $region25
    $region24: #{rnn_extension_forward.1} parent=1 // pred_region
      _
    $region25: #{rnn_extension_forward.1} parent=1 // pred_fallthru
      _
    // Predicated region
    $region26: #{rnn_extension_forward.1} parent=1 // pred_check
      _
    $region27: #{rnn_extension_forward.1} parent=1 // pred_check_branch
      %54 = sbr.rel (0) target = $region29
    $region28: #{rnn_extension_forward.1} parent=1 // pred_region
      _
    $region29: #{rnn_extension_forward.1} parent=1 // pred_fallthru
      _
    // Predicated region
    $region30: #{rnn_extension_forward.1} parent=1 // pred_check
      _
    $region31: #{rnn_extension_forward.1} parent=1 // pred_check_branch
      %56 = sbr.rel (0) target = $region33
    $region32: #{rnn_extension_forward.1} parent=1 // pred_region
      _
    $region33: #{rnn_extension_forward.1} parent=1 // pred_fallthru
      _
    // Predicated region
    $region34: #{rnn_extension_forward.1} parent=1 // pred_check
      _
    $region35: #{rnn_extension_forward.1} parent=1 // pred_check_branch
      %58 = sbr.rel (0) target = $region37
    $region36: #{rnn_extension_forward.1} parent=1 // pred_region
      _
    $region37: #{rnn_extension_forward.1} parent=1 // pred_fallthru
      _
    // Predicated region
    $region38: #{rnn_extension_forward.1} parent=1 // pred_check
      _
    $region39: #{rnn_extension_forward.1} parent=1 // pred_check_branch
      %60 = sbr.rel (0) target = $region41
    $region40: #{rnn_extension_forward.1} parent=1 // pred_region
      %61 = dma.done [#allocation7], 8192
    $region41: #{rnn_extension_forward.1} parent=1 // pred_fallthru
      _
    // Predicated region
    $region42: #{rnn_extension_forward.1} parent=1 // pred_check
      _
    $region43: #{rnn_extension_forward.1} parent=1 // pred_check_branch
      %63 = sbr.rel (0) target = $region45
    $region44: #{rnn_extension_forward.1} parent=1 // pred_region
      %64 = dma.done [#allocation9], 16384
    $region45: #{rnn_extension_forward.1} parent=1 // pred_fallthru
      _
    %s67 = sshll.u32 1, 14
    %s68 = sxor.u32 4294967295, %s67
    %s70 = sld [smem:[#allocation0]]
    %s71 = sadd.s32 2, %s70
    %s73 = sshll.u32 7, 26
    %s74 = sxor.u32 4294967295, %s73
    %s75 = sand.u32 0, %s74
    %s76 = sshll.u32 %s71, 26
    %s77 = sor.u32 %s75, %s76
    %s78 = sshll.u32 [#allocation3], 4
    %s79 = int_to_ptr.vmem [resolvable:$true] %s78
    %82 = sst [smem:[#allocation11]] 1024
    %s83 = scalar_lea.smem [#allocation11], 1
    %84 = sst [smem:[%s83]] 1024
    %s85 = scalar_lea.smem [#allocation11], 2
    %86 = sst [smem:[%s85]] 8
    %s87 = scalar_lea.smem [#allocation11], 3
    %88 = sst [smem:[%s87]] 64
    %s89 = scalar_lea.smem [#allocation11], 4
    %90 = sst [smem:[%s89]] 128
    %s91 = scalar_lea.smem [#allocation11], 5
    %92 = sst [smem:[%s91]] 2
    %s93 = scalar_lea.smem [#allocation11], 6
    %94 = sst [smem:[%s93]] 512
    %s95 = scalar_lea.smem [#allocation11], 7
    %96 = sst [smem:[%s95]] 64
    %s97 = scalar_lea.smem [#allocation11], 8
    %98 = sst [smem:[%s97]] 4
    %100 = dma.general %s6, 16384, %s79, [#allocation5], [#allocation10], [#allocation11], %s77, 0
    %s101 = scalar_lea.sflag [#allocation5], 1
    %s103 = sshll.u32 1, 14
    %s104 = sxor.u32 4294967295, %s103
    %s106 = sadd.s32 2, %s70
    %s108 = sshll.u32 7, 26
    %s109 = sxor.u32 4294967295, %s108
    %s110 = sand.u32 0, %s109
    %s111 = sshll.u32 %s106, 26
    %s112 = sor.u32 %s110, %s111
    %s113 = sshll.u32 [#allocation4], 4
    %s114 = int_to_ptr.vmem [resolvable:$true] %s113
    %117 = sst [smem:[#allocation13]] 1024
    %s118 = scalar_lea.smem [#allocation13], 1
    %119 = sst [smem:[%s118]] 1024
    %s120 = scalar_lea.smem [#allocation13], 2
    %121 = sst [smem:[%s120]] 8
    %s122 = scalar_lea.smem [#allocation13], 3
    %123 = sst [smem:[%s122]] 64
    %s124 = scalar_lea.smem [#allocation13], 4
    %125 = sst [smem:[%s124]] 128
    %s126 = scalar_lea.smem [#allocation13], 5
    %127 = sst [smem:[%s126]] 2
    %s128 = scalar_lea.smem [#allocation13], 6
    %129 = sst [smem:[%s128]] 512
    %s130 = scalar_lea.smem [#allocation13], 7
    %131 = sst [smem:[%s130]] 64
    %s132 = scalar_lea.smem [#allocation13], 8
    %133 = sst [smem:[%s132]] 4
    %135 = dma.general %s7, 16384, %s114, %s101, [#allocation12], [#allocation13], %s112, 0
    %v136 = vld [vmem:[%s0] sm:$0xf]
    %v137 = vld [vmem:[%s0 + $0x4] sm:$0xf]
    %v138 = vld [vmem:[%s0 + $0x8] sm:$0xf]
    %v139 = vld [vmem:[%s0 + $0xc] sm:$0xf]
    %v140 = vld [vmem:[%s0 + $0x10] sm:$0xf]
    %v141 = vld [vmem:[%s0 + $0x14] sm:$0xf]
    %v142 = vld [vmem:[%s0 + $0x18] sm:$0xf]
    %v143 = vld [vmem:[%s0 + $0x1c] sm:$0xf]
    %v144 = vld [vmem:[#allocation6] sm:$0xff]
    %v145 = vld [vmem:[#allocation6 + $0x8] sm:$0xff]
    %v146 = vld [vmem:[#allocation6 + $0x10] sm:$0xff]
    %v147 = vld [vmem:[#allocation6 + $0x18] sm:$0xff]
    %v148 = vld [vmem:[#allocation6 + $0x20] sm:$0xff]
    %v149 = vld [vmem:[#allocation6 + $0x28] sm:$0xff]
    %v150 = vld [vmem:[#allocation6 + $0x30] sm:$0xff]
    %v151 = vld [vmem:[#allocation6 + $0x38] sm:$0xff]
    %v152 = vld [vmem:[#allocation6 + $0x40] sm:$0xff]
    %v153 = vld [vmem:[#allocation6 + $0x48] sm:$0xff]
    %v154 = vld [vmem:[#allocation6 + $0x50] sm:$0xff]
    %v155 = vld [vmem:[#allocation6 + $0x58] sm:$0xff]
    %v156 = vld [vmem:[#allocation6 + $0x60] sm:$0xff]
    %v157 = vld [vmem:[#allocation6 + $0x68] sm:$0xff]
    %v158 = vld [vmem:[#allocation6 + $0x70] sm:$0xff]
    %v159 = vld [vmem:[#allocation6 + $0x78] sm:$0xff]
    %v160 = vld [vmem:[#allocation6 + $0x80] sm:$0xff]
    %v161 = vld [vmem:[#allocation6 + $0x88] sm:$0xff]
    %v162 = vld [vmem:[#allocation6 + $0x90] sm:$0xff]
    %v163 = vld [vmem:[#allocation6 + $0x98] sm:$0xff]
    %v164 = vld [vmem:[#allocation6 + $0xa0] sm:$0xff]
    %v165 = vld [vmem:[#allocation6 + $0xa8] sm:$0xff]
    %v166 = vld [vmem:[#allocation6 + $0xb0] sm:$0xff]
    %v167 = vld [vmem:[#allocation6 + $0xb8] sm:$0xff]
    %v168 = vld [vmem:[#allocation6 + $0xc0] sm:$0xff]
    %v169 = vld [vmem:[#allocation6 + $0xc8] sm:$0xff]
    %v170 = vld [vmem:[#allocation6 + $0xd0] sm:$0xff]
    %v171 = vld [vmem:[#allocation6 + $0xd8] sm:$0xff]
    %v172 = vld [vmem:[#allocation6 + $0xe0] sm:$0xff]
    %v173 = vld [vmem:[#allocation6 + $0xe8] sm:$0xff]
    %v174 = vld [vmem:[#allocation6 + $0xf0] sm:$0xff]
    %v175 = vld [vmem:[#allocation6 + $0xf8] sm:$0xff]
    %v176 = vld [vmem:[#allocation6 + $0x100] sm:$0xff]
    %v177 = vld [vmem:[#allocation6 + $0x108] sm:$0xff]
    %v178 = vld [vmem:[#allocation6 + $0x110] sm:$0xff]
    %v179 = vld [vmem:[#allocation6 + $0x118] sm:$0xff]
    %v180 = vld [vmem:[#allocation6 + $0x120] sm:$0xff]
    %v181 = vld [vmem:[#allocation6 + $0x128] sm:$0xff]
    %v182 = vld [vmem:[#allocation6 + $0x130] sm:$0xff]
    %v183 = vld [vmem:[#allocation6 + $0x138] sm:$0xff]
    %v184 = vld [vmem:[#allocation6 + $0x140] sm:$0xff]
    %v185 = vld [vmem:[#allocation6 + $0x148] sm:$0xff]
    %v186 = vld [vmem:[#allocation6 + $0x150] sm:$0xff]
    %v187 = vld [vmem:[#allocation6 + $0x158] sm:$0xff]
    %v188 = vld [vmem:[#allocation6 + $0x160] sm:$0xff]
    %v189 = vld [vmem:[#allocation6 + $0x168] sm:$0xff]
    %v190 = vld [vmem:[#allocation6 + $0x170] sm:$0xff]
    %v191 = vld [vmem:[#allocation6 + $0x178] sm:$0xff]
    %v192 = vld [vmem:[#allocation6 + $0x180] sm:$0xff]
    %v193 = vld [vmem:[#allocation6 + $0x188] sm:$0xff]
    %v194 = vld [vmem:[#allocation6 + $0x190] sm:$0xff]
    %v195 = vld [vmem:[#allocation6 + $0x198] sm:$0xff]
    %v196 = vld [vmem:[#allocation6 + $0x1a0] sm:$0xff]
    %v197 = vld [vmem:[#allocation6 + $0x1a8] sm:$0xff]
    %v198 = vld [vmem:[#allocation6 + $0x1b0] sm:$0xff]
    %v199 = vld [vmem:[#allocation6 + $0x1b8] sm:$0xff]
    %v200 = vld [vmem:[#allocation6 + $0x1c0] sm:$0xff]
    %v201 = vld [vmem:[#allocation6 + $0x1c8] sm:$0xff]
    %v202 = vld [vmem:[#allocation6 + $0x1d0] sm:$0xff]
    %v203 = vld [vmem:[#allocation6 + $0x1d8] sm:$0xff]
    %v204 = vld [vmem:[#allocation6 + $0x1e0] sm:$0xff]
    %v205 = vld [vmem:[#allocation6 + $0x1e8] sm:$0xff]
    %v206 = vld [vmem:[#allocation6 + $0x1f0] sm:$0xff]
    %v207 = vld [vmem:[#allocation6 + $0x1f8] sm:$0xff]
    %v208 = vld [vmem:[%s5] sm:$0xff]
    %v210 = vlaneseq
    %v211 = vshrl.u32 %v210, 7
    %v212 = vsub.s32 0, %v211
    %v213 = vrot.slane %v208, %v212
    %v214 = vlaneseq
    %v215 = vshrl.u32 %v214, 7
    %v216 = vsub.s32 1, %v215
    %v217 = vrot.slane %v208, %v216
    %v218 = vlaneseq
    %v219 = vshrl.u32 %v218, 7
    %v220 = vsub.s32 2, %v219
    %v221 = vrot.slane %v208, %v220
    %v222 = vlaneseq
    %v223 = vshrl.u32 %v222, 7
    %v224 = vsub.s32 3, %v223
    %v225 = vrot.slane %v208, %v224
    %v226 = vlaneseq
    %v227 = vshrl.u32 %v226, 7
    %v228 = vsub.s32 4, %v227
    %v229 = vrot.slane %v208, %v228
    %v230 = vlaneseq
    %v231 = vshrl.u32 %v230, 7
    %v232 = vsub.s32 5, %v231
    %v233 = vrot.slane %v208, %v232
    %v234 = vlaneseq
    %v235 = vshrl.u32 %v234, 7
    %v236 = vsub.s32 6, %v235
    %v237 = vrot.slane %v208, %v236
    %v238 = vlaneseq
    %v239 = vshrl.u32 %v238, 7
    %v240 = vsub.s32 7, %v239
    %v241 = vrot.slane %v208, %v240
    %v258 = vunpack.c.l.b16 %v136
    %v259 = vunpack.c.l.b16 %v137
    %v260 = vunpack.c.l.b16 %v138
    %v261 = vunpack.c.l.b16 %v139
    %v262 = vunpack.c.l.b16 %v140
    %v263 = vunpack.c.l.b16 %v141
    %v264 = vunpack.c.l.b16 %v142
    %v265 = vunpack.c.l.b16 %v143
    %v266 = vpack.c.b16 %v259, %v258
    %v267 = vpack.c.b16 %v261, %v260
    %v268 = vpack.c.b16 %v263, %v262
    %v269 = vpack.c.b16 %v265, %v264
    %v338 = vunpack.c.l.b16 %v144
    %v339 = vunpack.c.h.b16 %v144
    %v340 = vunpack.c.l.b16 %v145
    %v341 = vunpack.c.h.b16 %v145
    %v342 = vunpack.c.l.b16 %v146
    %v343 = vunpack.c.h.b16 %v146
    %v344 = vunpack.c.l.b16 %v147
    %v345 = vunpack.c.h.b16 %v147
    %v346 = vunpack.c.l.b16 %v148
    %v347 = vunpack.c.h.b16 %v148
    %v348 = vunpack.c.l.b16 %v149
    %v349 = vunpack.c.h.b16 %v149
    %v350 = vunpack.c.l.b16 %v150
    %v351 = vunpack.c.h.b16 %v150
    %v352 = vunpack.c.l.b16 %v151
    %v353 = vunpack.c.h.b16 %v151
    %v354 = vunpack.c.l.b16 %v152
    %v355 = vunpack.c.h.b16 %v152
    %v356 = vunpack.c.l.b16 %v153
    %v357 = vunpack.c.h.b16 %v153
    %v358 = vunpack.c.l.b16 %v154
    %v359 = vunpack.c.h.b16 %v154
    %v360 = vunpack.c.l.b16 %v155
    %v361 = vunpack.c.h.b16 %v155
    %v362 = vunpack.c.l.b16 %v156
    %v363 = vunpack.c.h.b16 %v156
    %v364 = vunpack.c.l.b16 %v157
    %v365 = vunpack.c.h.b16 %v157
    %v366 = vunpack.c.l.b16 %v158
    %v367 = vunpack.c.h.b16 %v158
    %v368 = vunpack.c.l.b16 %v159
    %v369 = vunpack.c.h.b16 %v159
    %v370 = vunpack.c.l.b16 %v160
    %v371 = vunpack.c.h.b16 %v160
    %v372 = vunpack.c.l.b16 %v161
    %v373 = vunpack.c.h.b16 %v161
    %v374 = vunpack.c.l.b16 %v162
    %v375 = vunpack.c.h.b16 %v162
    %v376 = vunpack.c.l.b16 %v163
    %v377 = vunpack.c.h.b16 %v163
    %v378 = vunpack.c.l.b16 %v164
    %v379 = vunpack.c.h.b16 %v164
    %v380 = vunpack.c.l.b16 %v165
    %v381 = vunpack.c.h.b16 %v165
    %v382 = vunpack.c.l.b16 %v166
    %v383 = vunpack.c.h.b16 %v166
    %v384 = vunpack.c.l.b16 %v167
    %v385 = vunpack.c.h.b16 %v167
    %v386 = vunpack.c.l.b16 %v168
    %v387 = vunpack.c.h.b16 %v168
    %v388 = vunpack.c.l.b16 %v169
    %v389 = vunpack.c.h.b16 %v169
    %v390 = vunpack.c.l.b16 %v170
    %v391 = vunpack.c.h.b16 %v170
    %v392 = vunpack.c.l.b16 %v171
    %v393 = vunpack.c.h.b16 %v171
    %v394 = vunpack.c.l.b16 %v172
    %v395 = vunpack.c.h.b16 %v172
    %v396 = vunpack.c.l.b16 %v173
    %v397 = vunpack.c.h.b16 %v173
    %v398 = vunpack.c.l.b16 %v174
    %v399 = vunpack.c.h.b16 %v174
    %v400 = vunpack.c.l.b16 %v175
    %v401 = vunpack.c.h.b16 %v175
    %v402 = vunpack.c.l.b16 %v176
    %v403 = vunpack.c.h.b16 %v176
    %v404 = vunpack.c.l.b16 %v177
    %v405 = vunpack.c.h.b16 %v177
    %v406 = vunpack.c.l.b16 %v178
    %v407 = vunpack.c.h.b16 %v178
    %v408 = vunpack.c.l.b16 %v179
    %v409 = vunpack.c.h.b16 %v179
    %v410 = vunpack.c.l.b16 %v180
    %v411 = vunpack.c.h.b16 %v180
    %v412 = vunpack.c.l.b16 %v181
    %v413 = vunpack.c.h.b16 %v181
    %v414 = vunpack.c.l.b16 %v182
    %v415 = vunpack.c.h.b16 %v182
    %v416 = vunpack.c.l.b16 %v183
    %v417 = vunpack.c.h.b16 %v183
    %v418 = vunpack.c.l.b16 %v184
    %v419 = vunpack.c.h.b16 %v184
    %v420 = vunpack.c.l.b16 %v185
    %v421 = vunpack.c.h.b16 %v185
    %v422 = vunpack.c.l.b16 %v186
    %v423 = vunpack.c.h.b16 %v186
    %v424 = vunpack.c.l.b16 %v187
    %v425 = vunpack.c.h.b16 %v187
    %v426 = vunpack.c.l.b16 %v188
    %v427 = vunpack.c.h.b16 %v188
    %v428 = vunpack.c.l.b16 %v189
    %v429 = vunpack.c.h.b16 %v189
    %v430 = vunpack.c.l.b16 %v190
    %v431 = vunpack.c.h.b16 %v190
    %v432 = vunpack.c.l.b16 %v191
    %v433 = vunpack.c.h.b16 %v191
    %v434 = vunpack.c.l.b16 %v192
    %v435 = vunpack.c.h.b16 %v192
    %v436 = vunpack.c.l.b16 %v193
    %v437 = vunpack.c.h.b16 %v193
    %v438 = vunpack.c.l.b16 %v194
    %v439 = vunpack.c.h.b16 %v194
    %v440 = vunpack.c.l.b16 %v195
    %v441 = vunpack.c.h.b16 %v195
    %v442 = vunpack.c.l.b16 %v196
    %v443 = vunpack.c.h.b16 %v196
    %v444 = vunpack.c.l.b16 %v197
    %v445 = vunpack.c.h.b16 %v197
    %v446 = vunpack.c.l.b16 %v198
    %v447 = vunpack.c.h.b16 %v198
    %v448 = vunpack.c.l.b16 %v199
    %v449 = vunpack.c.h.b16 %v199
    %v450 = vunpack.c.l.b16 %v200
    %v451 = vunpack.c.h.b16 %v200
    %v452 = vunpack.c.l.b16 %v201
    %v453 = vunpack.c.h.b16 %v201
    %v454 = vunpack.c.l.b16 %v202
    %v455 = vunpack.c.h.b16 %v202
    %v456 = vunpack.c.l.b16 %v203
    %v457 = vunpack.c.h.b16 %v203
    %v458 = vunpack.c.l.b16 %v204
    %v459 = vunpack.c.h.b16 %v204
    %v460 = vunpack.c.l.b16 %v205
    %v461 = vunpack.c.h.b16 %v205
    %v462 = vunpack.c.l.b16 %v206
    %v463 = vunpack.c.h.b16 %v206
    %v464 = vunpack.c.l.b16 %v207
    %v465 = vunpack.c.h.b16 %v207
    %v466 = vpack.c.b16 %v346, %v338
    %v467 = vpack.c.b16 %v347, %v339
    %v468 = vpack.c.b16 %v348, %v340
    %v469 = vpack.c.b16 %v349, %v341
    %v470 = vpack.c.b16 %v350, %v342
    %v471 = vpack.c.b16 %v351, %v343
    %v472 = vpack.c.b16 %v352, %v344
    %v473 = vpack.c.b16 %v353, %v345
    %v474 = vpack.c.b16 %v362, %v354
    %v475 = vpack.c.b16 %v363, %v355
    %v476 = vpack.c.b16 %v364, %v356
    %v477 = vpack.c.b16 %v365, %v357
    %v478 = vpack.c.b16 %v366, %v358
    %v479 = vpack.c.b16 %v367, %v359
    %v480 = vpack.c.b16 %v368, %v360
    %v481 = vpack.c.b16 %v369, %v361
    %v482 = vpack.c.b16 %v378, %v370
    %v483 = vpack.c.b16 %v379, %v371
    %v484 = vpack.c.b16 %v380, %v372
    %v485 = vpack.c.b16 %v381, %v373
    %v486 = vpack.c.b16 %v382, %v374
    %v487 = vpack.c.b16 %v383, %v375
    %v488 = vpack.c.b16 %v384, %v376
    %v489 = vpack.c.b16 %v385, %v377
    %v490 = vpack.c.b16 %v394, %v386
    %v491 = vpack.c.b16 %v395, %v387
    %v492 = vpack.c.b16 %v396, %v388
    %v493 = vpack.c.b16 %v397, %v389
    %v494 = vpack.c.b16 %v398, %v390
    %v495 = vpack.c.b16 %v399, %v391
    %v496 = vpack.c.b16 %v400, %v392
    %v497 = vpack.c.b16 %v401, %v393
    %v498 = vpack.c.b16 %v410, %v402
    %v499 = vpack.c.b16 %v411, %v403
    %v500 = vpack.c.b16 %v412, %v404
    %v501 = vpack.c.b16 %v413, %v405
    %v502 = vpack.c.b16 %v414, %v406
    %v503 = vpack.c.b16 %v415, %v407
    %v504 = vpack.c.b16 %v416, %v408
    %v505 = vpack.c.b16 %v417, %v409
    %v506 = vpack.c.b16 %v426, %v418
    %v507 = vpack.c.b16 %v427, %v419
    %v508 = vpack.c.b16 %v428, %v420
    %v509 = vpack.c.b16 %v429, %v421
    %v510 = vpack.c.b16 %v430, %v422
    %v511 = vpack.c.b16 %v431, %v423
    %v512 = vpack.c.b16 %v432, %v424
    %v513 = vpack.c.b16 %v433, %v425
    %v514 = vpack.c.b16 %v442, %v434
    %v515 = vpack.c.b16 %v443, %v435
    %v516 = vpack.c.b16 %v444, %v436
    %v517 = vpack.c.b16 %v445, %v437
    %v518 = vpack.c.b16 %v446, %v438
    %v519 = vpack.c.b16 %v447, %v439
    %v520 = vpack.c.b16 %v448, %v440
    %v521 = vpack.c.b16 %v449, %v441
    %v522 = vpack.c.b16 %v458, %v450
    %v523 = vpack.c.b16 %v459, %v451
    %v524 = vpack.c.b16 %v460, %v452
    %v525 = vpack.c.b16 %v461, %v453
    %v526 = vpack.c.b16 %v462, %v454
    %v527 = vpack.c.b16 %v463, %v455
    %v528 = vpack.c.b16 %v464, %v456
    %v529 = vpack.c.b16 %v465, %v457
    %594 = vmatprep.subr.bf16.mxu0 %v467
    %595 = vmatpush1.bf16.msra.mxu0 %v466
    %596 = vmatprep.subr.bf16.mxu0 %v475
    %597 = vmatpush1.bf16.msra.mxu0 %v474
    %598 = vmatprep.subr.bf16.mxu0 %v483
    %599 = vmatpush1.bf16.msra.mxu0 %v482
    %600 = vmatprep.subr.bf16.mxu0 %v491
    %601 = vmatpush1.bf16.msra.mxu0 %v490
    %602 = vmatprep.subr.bf16.mxu0 %v499
    %603 = vmatpush1.bf16.msra.mxu0 %v498
    %604 = vmatprep.subr.bf16.mxu0 %v507
    %605 = vmatpush1.bf16.msra.mxu0 %v506
    %606 = vmatprep.subr.bf16.mxu0 %v515
    %607 = vmatpush1.bf16.msra.mxu0 %v514
    %608 = vmatprep.subr.bf16.mxu0 %v523
    %609 = vmatpush1.bf16.msra.mxu0 %v522
    %610 = vmatprep.subr.bf16.mxu0 0
    %611 = vmatpush1.bf16.msra.mxu0 0
    %612 = vmatprep.subr.bf16.mxu0 0
    %613 = vmatpush1.bf16.msra.mxu0 0
    %614 = vmatprep.subr.bf16.mxu0 0
    %615 = vmatpush1.bf16.msra.mxu0 0
    %616 = vmatprep.subr.bf16.mxu0 0
    %617 = vmatpush1.bf16.msra.mxu0 0
    %618 = vmatprep.subr.bf16.mxu0 0
    %619 = vmatpush1.bf16.msra.mxu0 0
    %620 = vmatprep.subr.bf16.mxu0 0
    %621 = vmatpush1.bf16.msra.mxu0 0
    %622 = vmatprep.subr.bf16.mxu0 0
    %623 = vmatpush1.bf16.msra.mxu0 0
    %624 = vmatprep.subr.bf16.mxu0 0
    %625 = vmatpush1.bf16.msra.mxu0 0
    %626 = vmatprep.mubr.bf16.mxu0 0
    %627 = vmatmul.mubr.bf16.gmra.mrb[0].mxu0 %v266
    %v628 = vpop.f32.mrb[0].mxu0
    %v629 = vadd.f32 %v213, %v628
    %v630 = vpop.f32.mrb[0].mxu0
    %v631 = vadd.f32 %v217, %v630
    %v632 = vpop.f32.mrb[0].mxu0
    %v633 = vadd.f32 %v213, %v632
    %v634 = vpop.f32.mrb[0].mxu0
    %v635 = vadd.f32 %v217, %v634
    %636 = vmatprep.mubr.bf16.mxu0 0
    %637 = vmatmul.mubr.bf16.gmra.mrb[0].mxu0 %v267
    %v638 = vpop.f32.mrb[0].mxu0
    %v639 = vadd.f32 %v213, %v638
    %v640 = vpop.f32.mrb[0].mxu0
    %v641 = vadd.f32 %v217, %v640
    %v642 = vpop.f32.mrb[0].mxu0
    %v643 = vadd.f32 %v213, %v642
    %v644 = vpop.f32.mrb[0].mxu0
    %v645 = vadd.f32 %v217, %v644
    %646 = vmatprep.mubr.bf16.mxu0 0
    %647 = vmatmul.mubr.bf16.gmra.mrb[0].mxu0 %v268
    %v648 = vpop.f32.mrb[0].mxu0
    %v649 = vadd.f32 %v213, %v648
    %v650 = vpop.f32.mrb[0].mxu0
    %v651 = vadd.f32 %v217, %v650
    %v652 = vpop.f32.mrb[0].mxu0
    %v653 = vadd.f32 %v213, %v652
    %v654 = vpop.f32.mrb[0].mxu0
    %v655 = vadd.f32 %v217, %v654
    %656 = vmatprep.mubr.bf16.mxu0 0
    %657 = vmatmul.mubr.bf16.gmra.mrb[0].mxu0 %v269
    %v658 = vpop.f32.mrb[0].mxu0
    %v659 = vadd.f32 %v213, %v658
    %v660 = vpop.f32.mrb[0].mxu0
    %v661 = vadd.f32 %v217, %v660
    %v662 = vpop.f32.mrb[0].mxu0
    %v663 = vadd.f32 %v213, %v662
    %v664 = vpop.f32.mrb[0].mxu0
    %v665 = vadd.f32 %v217, %v664
    %666 = vdwg.mxu0
    %667 = vmatprep.subr.bf16.mxu0 %v469
    %668 = vmatpush1.bf16.msra.mxu0 %v468
    %669 = vmatprep.subr.bf16.mxu0 %v477
    %670 = vmatpush1.bf16.msra.mxu0 %v476
    %671 = vmatprep.subr.bf16.mxu0 %v485
    %672 = vmatpush1.bf16.msra.mxu0 %v484
    %673 = vmatprep.subr.bf16.mxu0 %v493
    %674 = vmatpush1.bf16.msra.mxu0 %v492
    %675 = vmatprep.subr.bf16.mxu0 %v501
    %676 = vmatpush1.bf16.msra.mxu0 %v500
    %677 = vmatprep.subr.bf16.mxu0 %v509
    %678 = vmatpush1.bf16.msra.mxu0 %v508
    %679 = vmatprep.subr.bf16.mxu0 %v517
    %680 = vmatpush1.bf16.msra.mxu0 %v516
    %681 = vmatprep.subr.bf16.mxu0 %v525
    %682 = vmatpush1.bf16.msra.mxu0 %v524
    %683 = vmatprep.subr.bf16.mxu0 0
    %684 = vmatpush1.bf16.msra.mxu0 0
    %685 = vmatprep.subr.bf16.mxu0 0
    %686 = vmatpush1.bf16.msra.mxu0 0
    %687 = vmatprep.subr.bf16.mxu0 0
    %688 = vmatpush1.bf16.msra.mxu0 0
    %689 = vmatprep.subr.bf16.mxu0 0
    %690 = vmatpush1.bf16.msra.mxu0 0
    %691 = vmatprep.subr.bf16.mxu0 0
    %692 = vmatpush1.bf16.msra.mxu0 0
    %693 = vmatprep.subr.bf16.mxu0 0
    %694 = vmatpush1.bf16.msra.mxu0 0
    %695 = vmatprep.subr.bf16.mxu0 0
    %696 = vmatpush1.bf16.msra.mxu0 0
    %697 = vmatprep.subr.bf16.mxu0 0
    %698 = vmatpush1.bf16.msra.mxu0 0
    %699 = vmatprep.mubr.bf16.mxu0 0
    %700 = vmatmul.mubr.bf16.gmra.mrb[0].mxu0 %v266
    %v701 = vpop.f32.mrb[0].mxu0
    %v702 = vadd.f32 %v221, %v701
    %v703 = vpop.f32.mrb[0].mxu0
    %v704 = vadd.f32 %v225, %v703
    %v705 = vpop.f32.mrb[0].mxu0
    %v706 = vadd.f32 %v221, %v705
    %v707 = vpop.f32.mrb[0].mxu0
    %v708 = vadd.f32 %v225, %v707
    %709 = vmatprep.mubr.bf16.mxu0 0
    %710 = vmatmul.mubr.bf16.gmra.mrb[0].mxu0 %v267
    %v711 = vpop.f32.mrb[0].mxu0
    %v712 = vadd.f32 %v221, %v711
    %v713 = vpop.f32.mrb[0].mxu0
    %v714 = vadd.f32 %v225, %v713
    %v715 = vpop.f32.mrb[0].mxu0
    %v716 = vadd.f32 %v221, %v715
    %v717 = vpop.f32.mrb[0].mxu0
    %v718 = vadd.f32 %v225, %v717
    %719 = vmatprep.mubr.bf16.mxu0 0
    %720 = vmatmul.mubr.bf16.gmra.mrb[0].mxu0 %v268
    %v721 = vpop.f32.mrb[0].mxu0
    %v722 = vadd.f32 %v221, %v721
    %v723 = vpop.f32.mrb[0].mxu0
    %v724 = vadd.f32 %v225, %v723
    %v725 = vpop.f32.mrb[0].mxu0
    %v726 = vadd.f32 %v221, %v725
    %v727 = vpop.f32.mrb[0].mxu0
    %v728 = vadd.f32 %v225, %v727
    %729 = vmatprep.mubr.bf16.mxu0 0
    %730 = vmatmul.mubr.bf16.gmra.mrb[0].mxu0 %v269
    %v731 = vpop.f32.mrb[0].mxu0
    %v732 = vadd.f32 %v221, %v731
    %v733 = vpop.f32.mrb[0].mxu0
    %v734 = vadd.f32 %v225, %v733
    %v735 = vpop.f32.mrb[0].mxu0
    %v736 = vadd.f32 %v221, %v735
    %v737 = vpop.f32.mrb[0].mxu0
    %v738 = vadd.f32 %v225, %v737
    %739 = vdwg.mxu0
    %740 = vmatprep.subr.bf16.mxu0 %v471
    %741 = vmatpush1.bf16.msra.mxu0 %v470
    %742 = vmatprep.subr.bf16.mxu0 %v479
    %743 = vmatpush1.bf16.msra.mxu0 %v478
    %744 = vmatprep.subr.bf16.mxu0 %v487
    %745 = vmatpush1.bf16.msra.mxu0 %v486
    %746 = vmatprep.subr.bf16.mxu0 %v495
    %747 = vmatpush1.bf16.msra.mxu0 %v494
    %748 = vmatprep.subr.bf16.mxu0 %v503
    %749 = vmatpush1.bf16.msra.mxu0 %v502
    %750 = vmatprep.subr.bf16.mxu0 %v511
    %751 = vmatpush1.bf16.msra.mxu0 %v510
    %752 = vmatprep.subr.bf16.mxu0 %v519
    %753 = vmatpush1.bf16.msra.mxu0 %v518
    %754 = vmatprep.subr.bf16.mxu0 %v527
    %755 = vmatpush1.bf16.msra.mxu0 %v526
    %756 = vmatprep.subr.bf16.mxu0 0
    %757 = vmatpush1.bf16.msra.mxu0 0
    %758 = vmatprep.subr.bf16.mxu0 0
    %759 = vmatpush1.bf16.msra.mxu0 0
    %760 = vmatprep.subr.bf16.mxu0 0
    %761 = vmatpush1.bf16.msra.mxu0 0
    %762 = vmatprep.subr.bf16.mxu0 0
    %763 = vmatpush1.bf16.msra.mxu0 0
    %764 = vmatprep.subr.bf16.mxu0 0
    %765 = vmatpush1.bf16.msra.mxu0 0
    %766 = vmatprep.subr.bf16.mxu0 0
    %767 = vmatpush1.bf16.msra.mxu0 0
    %768 = vmatprep.subr.bf16.mxu0 0
    %769 = vmatpush1.bf16.msra.mxu0 0
    %770 = vmatprep.subr.bf16.mxu0 0
    %771 = vmatpush1.bf16.msra.mxu0 0
    %772 = vmatprep.mubr.bf16.mxu0 0
    %773 = vmatmul.mubr.bf16.gmra.mrb[0].mxu0 %v266
    %v774 = vpop.f32.mrb[0].mxu0
    %v775 = vadd.f32 %v229, %v774
    %v776 = vpop.f32.mrb[0].mxu0
    %v777 = vadd.f32 %v233, %v776
    %v778 = vpop.f32.mrb[0].mxu0
    %v779 = vadd.f32 %v229, %v778
    %v780 = vpop.f32.mrb[0].mxu0
    %v781 = vadd.f32 %v233, %v780
    %782 = vmatprep.mubr.bf16.mxu0 0
    %783 = vmatmul.mubr.bf16.gmra.mrb[0].mxu0 %v267
    %v784 = vpop.f32.mrb[0].mxu0
    %v785 = vadd.f32 %v229, %v784
    %v786 = vpop.f32.mrb[0].mxu0
    %v787 = vadd.f32 %v233, %v786
    %v788 = vpop.f32.mrb[0].mxu0
    %v789 = vadd.f32 %v229, %v788
    %v790 = vpop.f32.mrb[0].mxu0
    %v791 = vadd.f32 %v233, %v790
    %792 = vmatprep.mubr.bf16.mxu0 0
    %793 = vmatmul.mubr.bf16.gmra.mrb[0].mxu0 %v268
    %v794 = vpop.f32.mrb[0].mxu0
    %v795 = vadd.f32 %v229, %v794
    %v796 = vpop.f32.mrb[0].mxu0
    %v797 = vadd.f32 %v233, %v796
    %v798 = vpop.f32.mrb[0].mxu0
    %v799 = vadd.f32 %v229, %v798
    %v800 = vpop.f32.mrb[0].mxu0
    %v801 = vadd.f32 %v233, %v800
    %802 = vmatprep.mubr.bf16.mxu0 0
    %803 = vmatmul.mubr.bf16.gmra.mrb[0].mxu0 %v269
    %v804 = vpop.f32.mrb[0].mxu0
    %v805 = vadd.f32 %v229, %v804
    %v806 = vpop.f32.mrb[0].mxu0
    %v807 = vadd.f32 %v233, %v806
    %v808 = vpop.f32.mrb[0].mxu0
    %v809 = vadd.f32 %v229, %v808
    %v810 = vpop.f32.mrb[0].mxu0
    %v811 = vadd.f32 %v233, %v810
    %812 = vdwg.mxu0
    %813 = vmatprep.subr.bf16.mxu0 %v473
    %814 = vmatpush1.bf16.msra.mxu0 %v472
    %815 = vmatprep.subr.bf16.mxu0 %v481
    %816 = vmatpush1.bf16.msra.mxu0 %v480
    %817 = vmatprep.subr.bf16.mxu0 %v489
    %818 = vmatpush1.bf16.msra.mxu0 %v488
    %819 = vmatprep.subr.bf16.mxu0 %v497
    %820 = vmatpush1.bf16.msra.mxu0 %v496
    %821 = vmatprep.subr.bf16.mxu0 %v505
    %822 = vmatpush1.bf16.msra.mxu0 %v504
    %823 = vmatprep.subr.bf16.mxu0 %v513
    %824 = vmatpush1.bf16.msra.mxu0 %v512
    %825 = vmatprep.subr.bf16.mxu0 %v521
    %826 = vmatpush1.bf16.msra.mxu0 %v520
    %827 = vmatprep.subr.bf16.mxu0 %v529
    %828 = vmatpush1.bf16.msra.mxu0 %v528
    %829 = vmatprep.subr.bf16.mxu0 0
    %830 = vmatpush1.bf16.msra.mxu0 0
    %831 = vmatprep.subr.bf16.mxu0 0
    %832 = vmatpush1.bf16.msra.mxu0 0
    %833 = vmatprep.subr.bf16.mxu0 0
    %834 = vmatpush1.bf16.msra.mxu0 0
    %835 = vmatprep.subr.bf16.mxu0 0
    %836 = vmatpush1.bf16.msra.mxu0 0
    %837 = vmatprep.subr.bf16.mxu0 0
    %838 = vmatpush1.bf16.msra.mxu0 0
    %839 = vmatprep.subr.bf16.mxu0 0
    %840 = vmatpush1.bf16.msra.mxu0 0
    %841 = vmatprep.subr.bf16.mxu0 0
    %842 = vmatpush1.bf16.msra.mxu0 0
    %843 = vmatprep.subr.bf16.mxu0 0
    %844 = vmatpush1.bf16.msra.mxu0 0
    %845 = vmatprep.mubr.bf16.mxu0 0
    %846 = vmatmul.mubr.bf16.gmra.mrb[0].mxu0 %v266
    %v847 = vpop.f32.mrb[0].mxu0
    %v848 = vadd.f32 %v237, %v847
    %v849 = vpop.f32.mrb[0].mxu0
    %v850 = vadd.f32 %v241, %v849
    %v851 = vpop.f32.mrb[0].mxu0
    %v852 = vadd.f32 %v237, %v851
    %v853 = vpop.f32.mrb[0].mxu0
    %v854 = vadd.f32 %v241, %v853
    %855 = vmatprep.mubr.bf16.mxu0 0
    %856 = vmatmul.mubr.bf16.gmra.mrb[0].mxu0 %v267
    %v857 = vpop.f32.mrb[0].mxu0
    %v858 = vadd.f32 %v237, %v857
    %v859 = vpop.f32.mrb[0].mxu0
    %v860 = vadd.f32 %v241, %v859
    %v861 = vpop.f32.mrb[0].mxu0
    %v862 = vadd.f32 %v237, %v861
    %v863 = vpop.f32.mrb[0].mxu0
    %v864 = vadd.f32 %v241, %v863
    %865 = vmatprep.mubr.bf16.mxu0 0
    %866 = vmatmul.mubr.bf16.gmra.mrb[0].mxu0 %v268
    %v867 = vpop.f32.mrb[0].mxu0
    %v868 = vadd.f32 %v237, %v867
    %v869 = vpop.f32.mrb[0].mxu0
    %v870 = vadd.f32 %v241, %v869
    %v871 = vpop.f32.mrb[0].mxu0
    %v872 = vadd.f32 %v237, %v871
    %v873 = vpop.f32.mrb[0].mxu0
    %v874 = vadd.f32 %v241, %v873
    %875 = vmatprep.mubr.bf16.mxu0 0
    %876 = vmatmul.mubr.bf16.gmra.mrb[0].mxu0 %v269
    %v877 = vpop.f32.mrb[0].mxu0
    %v878 = vadd.f32 %v237, %v877
    %v879 = vpop.f32.mrb[0].mxu0
    %v880 = vadd.f32 %v241, %v879
    %v881 = vpop.f32.mrb[0].mxu0
    %v882 = vadd.f32 %v237, %v881
    %v883 = vpop.f32.mrb[0].mxu0
    %v884 = vadd.f32 %v241, %v883
    %885 = vdwg.mxu0
    %886 = vst [vmem:[#allocation2] sm:$0xff] %v629
    %887 = vst [vmem:[#allocation2 + $0x8] sm:$0xff] %v631
    %888 = vst [vmem:[#allocation2 + $0x10] sm:$0xff] %v702
    %889 = vst [vmem:[#allocation2 + $0x18] sm:$0xff] %v704
    %890 = vst [vmem:[#allocation2 + $0x20] sm:$0xff] %v775
    %891 = vst [vmem:[#allocation2 + $0x28] sm:$0xff] %v777
    %892 = vst [vmem:[#allocation2 + $0x30] sm:$0xff] %v848
    %893 = vst [vmem:[#allocation2 + $0x38] sm:$0xff] %v850
    %894 = vst [vmem:[#allocation2 + $0x40] sm:$0xff] %v633
    %895 = vst [vmem:[#allocation2 + $0x48] sm:$0xff] %v635
    %896 = vst [vmem:[#allocation2 + $0x50] sm:$0xff] %v706
    %897 = vst [vmem:[#allocation2 + $0x58] sm:$0xff] %v708
    %898 = vst [vmem:[#allocation2 + $0x60] sm:$0xff] %v779
    %899 = vst [vmem:[#allocation2 + $0x68] sm:$0xff] %v781
    %900 = vst [vmem:[#allocation2 + $0x70] sm:$0xff] %v852
    %901 = vst [vmem:[#allocation2 + $0x78] sm:$0xff] %v854
    %902 = vst [vmem:[#allocation2 + $0x80] sm:$0xff] %v639
    %903 = vst [vmem:[#allocation2 + $0x88] sm:$0xff] %v641
    %904 = vst [vmem:[#allocation2 + $0x90] sm:$0xff] %v712
    %905 = vst [vmem:[#allocation2 + $0x98] sm:$0xff] %v714
    %906 = vst [vmem:[#allocation2 + $0xa0] sm:$0xff] %v785
    %907 = vst [vmem:[#allocation2 + $0xa8] sm:$0xff] %v787
    %908 = vst [vmem:[#allocation2 + $0xb0] sm:$0xff] %v858
    %909 = vst [vmem:[#allocation2 + $0xb8] sm:$0xff] %v860
    %910 = vst [vmem:[#allocation2 + $0xc0] sm:$0xff] %v643
    %911 = vst [vmem:[#allocation2 + $0xc8] sm:$0xff] %v645
    %912 = vst [vmem:[#allocation2 + $0xd0] sm:$0xff] %v716
    %913 = vst [vmem:[#allocation2 + $0xd8] sm:$0xff] %v718
    %914 = vst [vmem:[#allocation2 + $0xe0] sm:$0xff] %v789
    %915 = vst [vmem:[#allocation2 + $0xe8] sm:$0xff] %v791
    %916 = vst [vmem:[#allocation2 + $0xf0] sm:$0xff] %v862
    %917 = vst [vmem:[#allocation2 + $0xf8] sm:$0xff] %v864
    %918 = vst [vmem:[#allocation2 + $0x100] sm:$0xff] %v649
    %919 = vst [vmem:[#allocation2 + $0x108] sm:$0xff] %v651
    %920 = vst [vmem:[#allocation2 + $0x110] sm:$0xff] %v722
    %921 = vst [vmem:[#allocation2 + $0x118] sm:$0xff] %v724
    %922 = vst [vmem:[#allocation2 + $0x120] sm:$0xff] %v795
    %923 = vst [vmem:[#allocation2 + $0x128] sm:$0xff] %v797
    %924 = vst [vmem:[#allocation2 + $0x130] sm:$0xff] %v868
    %925 = vst [vmem:[#allocation2 + $0x138] sm:$0xff] %v870
    %926 = vst [vmem:[#allocation2 + $0x140] sm:$0xff] %v653
    %927 = vst [vmem:[#allocation2 + $0x148] sm:$0xff] %v655
    %928 = vst [vmem:[#allocation2 + $0x150] sm:$0xff] %v726
    %929 = vst [vmem:[#allocation2 + $0x158] sm:$0xff] %v728
    %930 = vst [vmem:[#allocation2 + $0x160] sm:$0xff] %v799
    %931 = vst [vmem:[#allocation2 + $0x168] sm:$0xff] %v801
    %932 = vst [vmem:[#allocation2 + $0x170] sm:$0xff] %v872
    %933 = vst [vmem:[#allocation2 + $0x178] sm:$0xff] %v874
    %934 = vst [vmem:[#allocation2 + $0x180] sm:$0xff] %v659
    %935 = vst [vmem:[#allocation2 + $0x188] sm:$0xff] %v661
    %936 = vst [vmem:[#allocation2 + $0x190] sm:$0xff] %v732
    %937 = vst [vmem:[#allocation2 + $0x198] sm:$0xff] %v734
    %938 = vst [vmem:[#allocation2 + $0x1a0] sm:$0xff] %v805
    %939 = vst [vmem:[#allocation2 + $0x1a8] sm:$0xff] %v807
    %940 = vst [vmem:[#allocation2 + $0x1b0] sm:$0xff] %v878
    %941 = vst [vmem:[#allocation2 + $0x1b8] sm:$0xff] %v880
    %942 = vst [vmem:[#allocation2 + $0x1c0] sm:$0xff] %v663
    %943 = vst [vmem:[#allocation2 + $0x1c8] sm:$0xff] %v665
    %944 = vst [vmem:[#allocation2 + $0x1d0] sm:$0xff] %v736
    %945 = vst [vmem:[#allocation2 + $0x1d8] sm:$0xff] %v738
    %946 = vst [vmem:[#allocation2 + $0x1e0] sm:$0xff] %v809
    %947 = vst [vmem:[#allocation2 + $0x1e8] sm:$0xff] %v811
    %948 = vst [vmem:[#allocation2 + $0x1f0] sm:$0xff] %v882
    %949 = vst [vmem:[#allocation2 + $0x1f8] sm:$0xff] %v884
    %s950 = smul.u32 4, 32
    %s951 = smul.u32 %s950, 8
    %s952 = sshll.u32 %s951, 4
    %953 = dma.done [#allocation5], %s952
    %s954 = sshll.u32 %s951, 4
    %955 = dma.done %s101, %s954
    %v956 = vld [vmem:[%s8] sm:$0xff]
    %v958 = vlaneseq
    %v959 = vshrl.u32 %v958, 7
    %v960 = vsub.s32 0, %v959
    %v961 = vrot.slane %v956, %v960
    %v962 = vlaneseq
    %v963 = vshrl.u32 %v962, 7
    %v964 = vsub.s32 1, %v963
    %v965 = vrot.slane %v956, %v964
    %v966 = vlaneseq
    %v967 = vshrl.u32 %v966, 7
    %v968 = vsub.s32 2, %v967
    %v969 = vrot.slane %v956, %v968
    %v970 = vlaneseq
    %v971 = vshrl.u32 %v970, 7
    %v972 = vsub.s32 3, %v971
    %v973 = vrot.slane %v956, %v972
    %v974 = vlaneseq
    %v975 = vshrl.u32 %v974, 7
    %v976 = vsub.s32 4, %v975
    %v977 = vrot.slane %v956, %v976
    %v978 = vlaneseq
    %v979 = vshrl.u32 %v978, 7
    %v980 = vsub.s32 5, %v979
    %v981 = vrot.slane %v956, %v980
    %v982 = vlaneseq
    %v983 = vshrl.u32 %v982, 7
    %v984 = vsub.s32 6, %v983
    %v985 = vrot.slane %v956, %v984
    %v986 = vlaneseq
    %v987 = vshrl.u32 %v986, 7
    %v988 = vsub.s32 7, %v987
    %v989 = vrot.slane %v956, %v988
    %v998 = vld [vmem:[%s1] sm:$0xff]
    %v999 = vld [vmem:[%s1 + $0x8] sm:$0xff]
    %v1000 = vld [vmem:[%s2] sm:$0xff]
    %v1001 = vld [vmem:[%s2 + $0x8] sm:$0xff]
    %s1002 = scalar_lea.vmem %s1, 16
    %v1003 = vld [vmem:[%s1002] sm:$0xff]
    %v1004 = vld [vmem:[%s1002 + $0x8] sm:$0xff]
    %s1005 = scalar_lea.vmem %s2, 16
    %v1006 = vld [vmem:[%s1005] sm:$0xff]
    %v1007 = vld [vmem:[%s1005 + $0x8] sm:$0xff]
    %v1008 = vld [vmem:[#allocation2] sm:$0xff]
    %v1009 = vld [vmem:[#allocation2 + $0x8] sm:$0xff]
    %v1010 = vld [vmem:[#allocation2 + $0x10] sm:$0xff]
    %v1011 = vld [vmem:[#allocation2 + $0x18] sm:$0xff]
    %v1012 = vld [vmem:[#allocation2 + $0x20] sm:$0xff]
    %v1013 = vld [vmem:[#allocation2 + $0x28] sm:$0xff]
    %v1014 = vld [vmem:[#allocation2 + $0x30] sm:$0xff]
    %v1015 = vld [vmem:[#allocation2 + $0x38] sm:$0xff]
    %v1016 = vpack.c.bf16 %v998, %v998
    %v1017 = vpack.c.bf16 %v999, %v999
    %v1018 = vld [vmem:[#allocation8] sm:$0xff]
    %v1019 = vld [vmem:[#allocation8 + $0x8] sm:$0xff]
    %v1020 = vld [vmem:[#allocation8 + $0x10] sm:$0xff]
    %v1021 = vld [vmem:[#allocation8 + $0x18] sm:$0xff]
    %v1022 = vld [vmem:[#allocation8 + $0x20] sm:$0xff]
    %v1023 = vld [vmem:[#allocation8 + $0x28] sm:$0xff]
    %v1024 = vld [vmem:[#allocation8 + $0x30] sm:$0xff]
    %v1025 = vld [vmem:[#allocation8 + $0x38] sm:$0xff]
    %v1026 = vld [vmem:[#allocation8 + $0x40] sm:$0xff]
    %v1027 = vld [vmem:[#allocation8 + $0x48] sm:$0xff]
    %v1028 = vld [vmem:[#allocation8 + $0x50] sm:$0xff]
    %v1029 = vld [vmem:[#allocation8 + $0x58] sm:$0xff]
    %v1030 = vld [vmem:[#allocation8 + $0x60] sm:$0xff]
    %v1031 = vld [vmem:[#allocation8 + $0x68] sm:$0xff]
    %v1032 = vld [vmem:[#allocation8 + $0x70] sm:$0xff]
    %v1033 = vld [vmem:[#allocation8 + $0x78] sm:$0xff]
    %v1034 = vld [vmem:[#allocation8 + $0x80] sm:$0xff]
    %v1035 = vld [vmem:[#allocation8 + $0x88] sm:$0xff]
    %v1036 = vld [vmem:[#allocation8 + $0x90] sm:$0xff]
    %v1037 = vld [vmem:[#allocation8 + $0x98] sm:$0xff]
    %v1038 = vld [vmem:[#allocation8 + $0xa0] sm:$0xff]
    %v1039 = vld [vmem:[#allocation8 + $0xa8] sm:$0xff]
    %v1040 = vld [vmem:[#allocation8 + $0xb0] sm:$0xff]
    %v1041 = vld [vmem:[#allocation8 + $0xb8] sm:$0xff]
    %v1042 = vld [vmem:[#allocation8 + $0xc0] sm:$0xff]
    %v1043 = vld [vmem:[#allocation8 + $0xc8] sm:$0xff]
    %v1044 = vld [vmem:[#allocation8 + $0xd0] sm:$0xff]
    %v1045 = vld [vmem:[#allocation8 + $0xd8] sm:$0xff]
    %v1046 = vld [vmem:[#allocation8 + $0xe0] sm:$0xff]
    %v1047 = vld [vmem:[#allocation8 + $0xe8] sm:$0xff]
    %v1048 = vld [vmem:[#allocation8 + $0xf0] sm:$0xff]
    %v1049 = vld [vmem:[#allocation8 + $0xf8] sm:$0xff]
    %v1050 = vld [vmem:[#allocation8 + $0x100] sm:$0xff]
    %v1051 = vld [vmem:[#allocation8 + $0x108] sm:$0xff]
    %v1052 = vld [vmem:[#allocation8 + $0x110] sm:$0xff]
    %v1053 = vld [vmem:[#allocation8 + $0x118] sm:$0xff]
    %v1054 = vld [vmem:[#allocation8 + $0x120] sm:$0xff]
    %v1055 = vld [vmem:[#allocation8 + $0x128] sm:$0xff]
    %v1056 = vld [vmem:[#allocation8 + $0x130] sm:$0xff]
    %v1057 = vld [vmem:[#allocation8 + $0x138] sm:$0xff]
    %v1058 = vld [vmem:[#allocation8 + $0x140] sm:$0xff]
    %v1059 = vld [vmem:[#allocation8 + $0x148] sm:$0xff]
    %v1060 = vld [vmem:[#allocation8 + $0x150] sm:$0xff]
    %v1061 = vld [vmem:[#allocation8 + $0x158] sm:$0xff]
    %v1062 = vld [vmem:[#allocation8 + $0x160] sm:$0xff]
    %v1063 = vld [vmem:[#allocation8 + $0x168] sm:$0xff]
    %v1064 = vld [vmem:[#allocation8 + $0x170] sm:$0xff]
    %v1065 = vld [vmem:[#allocation8 + $0x178] sm:$0xff]
    %v1066 = vld [vmem:[#allocation8 + $0x180] sm:$0xff]
    %v1067 = vld [vmem:[#allocation8 + $0x188] sm:$0xff]
    %v1068 = vld [vmem:[#allocation8 + $0x190] sm:$0xff]
    %v1069 = vld [vmem:[#allocation8 + $0x198] sm:$0xff]
    %v1070 = vld [vmem:[#allocation8 + $0x1a0] sm:$0xff]
    %v1071 = vld [vmem:[#allocation8 + $0x1a8] sm:$0xff]
    %v1072 = vld [vmem:[#allocation8 + $0x1b0] sm:$0xff]
    %v1073 = vld [vmem:[#allocation8 + $0x1b8] sm:$0xff]
    %v1074 = vld [vmem:[#allocation8 + $0x1c0] sm:$0xff]
    %v1075 = vld [vmem:[#allocation8 + $0x1c8] sm:$0xff]
    %v1076 = vld [vmem:[#allocation8 + $0x1d0] sm:$0xff]
    %v1077 = vld [vmem:[#allocation8 + $0x1d8] sm:$0xff]
    %v1078 = vld [vmem:[#allocation8 + $0x1e0] sm:$0xff]
    %v1079 = vld [vmem:[#allocation8 + $0x1e8] sm:$0xff]
    %v1080 = vld [vmem:[#allocation8 + $0x1f0] sm:$0xff]
    %v1081 = vld [vmem:[#allocation8 + $0x1f8] sm:$0xff]
    %v1082 = vld [vmem:[#allocation8 + $0x200] sm:$0xff]
    %v1083 = vld [vmem:[#allocation8 + $0x208] sm:$0xff]
    %v1084 = vld [vmem:[#allocation8 + $0x210] sm:$0xff]
    %v1085 = vld [vmem:[#allocation8 + $0x218] sm:$0xff]
    %v1086 = vld [vmem:[#allocation8 + $0x220] sm:$0xff]
    %v1087 = vld [vmem:[#allocation8 + $0x228] sm:$0xff]
    %v1088 = vld [vmem:[#allocation8 + $0x230] sm:$0xff]
    %v1089 = vld [vmem:[#allocation8 + $0x238] sm:$0xff]
    %v1090 = vld [vmem:[#allocation8 + $0x240] sm:$0xff]
    %v1091 = vld [vmem:[#allocation8 + $0x248] sm:$0xff]
    %v1092 = vld [vmem:[#allocation8 + $0x250] sm:$0xff]
    %v1093 = vld [vmem:[#allocation8 + $0x258] sm:$0xff]
    %v1094 = vld [vmem:[#allocation8 + $0x260] sm:$0xff]
    %v1095 = vld [vmem:[#allocation8 + $0x268] sm:$0xff]
    %v1096 = vld [vmem:[#allocation8 + $0x270] sm:$0xff]
    %v1097 = vld [vmem:[#allocation8 + $0x278] sm:$0xff]
    %v1098 = vld [vmem:[#allocation8 + $0x280] sm:$0xff]
    %v1099 = vld [vmem:[#allocation8 + $0x288] sm:$0xff]
    %v1100 = vld [vmem:[#allocation8 + $0x290] sm:$0xff]
    %v1101 = vld [vmem:[#allocation8 + $0x298] sm:$0xff]
    %v1102 = vld [vmem:[#allocation8 + $0x2a0] sm:$0xff]
    %v1103 = vld [vmem:[#allocation8 + $0x2a8] sm:$0xff]
    %v1104 = vld [vmem:[#allocation8 + $0x2b0] sm:$0xff]
    %v1105 = vld [vmem:[#allocation8 + $0x2b8] sm:$0xff]
    %v1106 = vld [vmem:[#allocation8 + $0x2c0] sm:$0xff]
    %v1107 = vld [vmem:[#allocation8 + $0x2c8] sm:$0xff]
    %v1108 = vld [vmem:[#allocation8 + $0x2d0] sm:$0xff]
    %v1109 = vld [vmem:[#allocation8 + $0x2d8] sm:$0xff]
    %v1110 = vld [vmem:[#allocation8 + $0x2e0] sm:$0xff]
    %v1111 = vld [vmem:[#allocation8 + $0x2e8] sm:$0xff]
    %v1112 = vld [vmem:[#allocation8 + $0x2f0] sm:$0xff]
    %v1113 = vld [vmem:[#allocation8 + $0x2f8] sm:$0xff]
    %v1114 = vld [vmem:[#allocation8 + $0x300] sm:$0xff]
    %v1115 = vld [vmem:[#allocation8 + $0x308] sm:$0xff]
    %v1116 = vld [vmem:[#allocation8 + $0x310] sm:$0xff]
    %v1117 = vld [vmem:[#allocation8 + $0x318] sm:$0xff]
    %v1118 = vld [vmem:[#allocation8 + $0x320] sm:$0xff]
    %v1119 = vld [vmem:[#allocation8 + $0x328] sm:$0xff]
    %v1120 = vld [vmem:[#allocation8 + $0x330] sm:$0xff]
    %v1121 = vld [vmem:[#allocation8 + $0x338] sm:$0xff]
    %v1122 = vld [vmem:[#allocation8 + $0x340] sm:$0xff]
    %v1123 = vld [vmem:[#allocation8 + $0x348] sm:$0xff]
    %v1124 = vld [vmem:[#allocation8 + $0x350] sm:$0xff]
    %v1125 = vld [vmem:[#allocation8 + $0x358] sm:$0xff]
    %v1126 = vld [vmem:[#allocation8 + $0x360] sm:$0xff]
    %v1127 = vld [vmem:[#allocation8 + $0x368] sm:$0xff]
    %v1128 = vld [vmem:[#allocation8 + $0x370] sm:$0xff]
    %v1129 = vld [vmem:[#allocation8 + $0x378] sm:$0xff]
    %v1130 = vld [vmem:[#allocation8 + $0x380] sm:$0xff]
    %v1131 = vld [vmem:[#allocation8 + $0x388] sm:$0xff]
    %v1132 = vld [vmem:[#allocation8 + $0x390] sm:$0xff]
    %v1133 = vld [vmem:[#allocation8 + $0x398] sm:$0xff]
    %v1134 = vld [vmem:[#allocation8 + $0x3a0] sm:$0xff]
    %v1135 = vld [vmem:[#allocation8 + $0x3a8] sm:$0xff]
    %v1136 = vld [vmem:[#allocation8 + $0x3b0] sm:$0xff]
    %v1137 = vld [vmem:[#allocation8 + $0x3b8] sm:$0xff]
    %v1138 = vld [vmem:[#allocation8 + $0x3c0] sm:$0xff]
    %v1139 = vld [vmem:[#allocation8 + $0x3c8] sm:$0xff]
    %v1140 = vld [vmem:[#allocation8 + $0x3d0] sm:$0xff]
    %v1141 = vld [vmem:[#allocation8 + $0x3d8] sm:$0xff]
    %v1142 = vld [vmem:[#allocation8 + $0x3e0] sm:$0xff]
    %v1143 = vld [vmem:[#allocation8 + $0x3e8] sm:$0xff]
    %v1144 = vld [vmem:[#allocation8 + $0x3f0] sm:$0xff]
    %v1145 = vld [vmem:[#allocation8 + $0x3f8] sm:$0xff]
    %v1274 = vunpack.c.l.b16 %v1018
    %v1275 = vunpack.c.h.b16 %v1018
    %v1276 = vunpack.c.l.b16 %v1019
    %v1277 = vunpack.c.h.b16 %v1019
    %v1278 = vunpack.c.l.b16 %v1020
    %v1279 = vunpack.c.h.b16 %v1020
    %v1280 = vunpack.c.l.b16 %v1021
    %v1281 = vunpack.c.h.b16 %v1021
    %v1282 = vunpack.c.l.b16 %v1022
    %v1283 = vunpack.c.h.b16 %v1022
    %v1284 = vunpack.c.l.b16 %v1023
    %v1285 = vunpack.c.h.b16 %v1023
    %v1286 = vunpack.c.l.b16 %v1024
    %v1287 = vunpack.c.h.b16 %v1024
    %v1288 = vunpack.c.l.b16 %v1025
    %v1289 = vunpack.c.h.b16 %v1025
    %v1290 = vunpack.c.l.b16 %v1026
    %v1291 = vunpack.c.h.b16 %v1026
    %v1292 = vunpack.c.l.b16 %v1027
    %v1293 = vunpack.c.h.b16 %v1027
    %v1294 = vunpack.c.l.b16 %v1028
    %v1295 = vunpack.c.h.b16 %v1028
    %v1296 = vunpack.c.l.b16 %v1029
    %v1297 = vunpack.c.h.b16 %v1029
    %v1298 = vunpack.c.l.b16 %v1030
    %v1299 = vunpack.c.h.b16 %v1030
    %v1300 = vunpack.c.l.b16 %v1031
    %v1301 = vunpack.c.h.b16 %v1031
    %v1302 = vunpack.c.l.b16 %v1032
    %v1303 = vunpack.c.h.b16 %v1032
    %v1304 = vunpack.c.l.b16 %v1033
    %v1305 = vunpack.c.h.b16 %v1033
    %v1306 = vunpack.c.l.b16 %v1034
    %v1307 = vunpack.c.h.b16 %v1034
    %v1308 = vunpack.c.l.b16 %v1035
    %v1309 = vunpack.c.h.b16 %v1035
    %v1310 = vunpack.c.l.b16 %v1036
    %v1311 = vunpack.c.h.b16 %v1036
    %v1312 = vunpack.c.l.b16 %v1037
    %v1313 = vunpack.c.h.b16 %v1037
    %v1314 = vunpack.c.l.b16 %v1038
    %v1315 = vunpack.c.h.b16 %v1038
    %v1316 = vunpack.c.l.b16 %v1039
    %v1317 = vunpack.c.h.b16 %v1039
    %v1318 = vunpack.c.l.b16 %v1040
    %v1319 = vunpack.c.h.b16 %v1040
    %v1320 = vunpack.c.l.b16 %v1041
    %v1321 = vunpack.c.h.b16 %v1041
    %v1322 = vunpack.c.l.b16 %v1042
    %v1323 = vunpack.c.h.b16 %v1042
    %v1324 = vunpack.c.l.b16 %v1043
    %v1325 = vunpack.c.h.b16 %v1043
    %v1326 = vunpack.c.l.b16 %v1044
    %v1327 = vunpack.c.h.b16 %v1044
    %v1328 = vunpack.c.l.b16 %v1045
    %v1329 = vunpack.c.h.b16 %v1045
    %v1330 = vunpack.c.l.b16 %v1046
    %v1331 = vunpack.c.h.b16 %v1046
    %v1332 = vunpack.c.l.b16 %v1047
    %v1333 = vunpack.c.h.b16 %v1047
    %v1334 = vunpack.c.l.b16 %v1048
    %v1335 = vunpack.c.h.b16 %v1048
    %v1336 = vunpack.c.l.b16 %v1049
    %v1337 = vunpack.c.h.b16 %v1049
    %v1338 = vunpack.c.l.b16 %v1050
    %v1339 = vunpack.c.h.b16 %v1050
    %v1340 = vunpack.c.l.b16 %v1051
    %v1341 = vunpack.c.h.b16 %v1051
    %v1342 = vunpack.c.l.b16 %v1052
    %v1343 = vunpack.c.h.b16 %v1052
    %v1344 = vunpack.c.l.b16 %v1053
    %v1345 = vunpack.c.h.b16 %v1053
    %v1346 = vunpack.c.l.b16 %v1054
    %v1347 = vunpack.c.h.b16 %v1054
    %v1348 = vunpack.c.l.b16 %v1055
    %v1349 = vunpack.c.h.b16 %v1055
    %v1350 = vunpack.c.l.b16 %v1056
    %v1351 = vunpack.c.h.b16 %v1056
    %v1352 = vunpack.c.l.b16 %v1057
    %v1353 = vunpack.c.h.b16 %v1057
    %v1354 = vunpack.c.l.b16 %v1058
    %v1355 = vunpack.c.h.b16 %v1058
    %v1356 = vunpack.c.l.b16 %v1059
    %v1357 = vunpack.c.h.b16 %v1059
    %v1358 = vunpack.c.l.b16 %v1060
    %v1359 = vunpack.c.h.b16 %v1060
    %v1360 = vunpack.c.l.b16 %v1061
    %v1361 = vunpack.c.h.b16 %v1061
    %v1362 = vunpack.c.l.b16 %v1062
    %v1363 = vunpack.c.h.b16 %v1062
    %v1364 = vunpack.c.l.b16 %v1063
    %v1365 = vunpack.c.h.b16 %v1063
    %v1366 = vunpack.c.l.b16 %v1064
    %v1367 = vunpack.c.h.b16 %v1064
    %v1368 = vunpack.c.l.b16 %v1065
    %v1369 = vunpack.c.h.b16 %v1065
    %v1370 = vunpack.c.l.b16 %v1066
    %v1371 = vunpack.c.h.b16 %v1066
    %v1372 = vunpack.c.l.b16 %v1067
    %v1373 = vunpack.c.h.b16 %v1067
    %v1374 = vunpack.c.l.b16 %v1068
    %v1375 = vunpack.c.h.b16 %v1068
    %v1376 = vunpack.c.l.b16 %v1069
    %v1377 = vunpack.c.h.b16 %v1069
    %v1378 = vunpack.c.l.b16 %v1070
    %v1379 = vunpack.c.h.b16 %v1070
    %v1380 = vunpack.c.l.b16 %v1071
    %v1381 = vunpack.c.h.b16 %v1071
    %v1382 = vunpack.c.l.b16 %v1072
    %v1383 = vunpack.c.h.b16 %v1072
    %v1384 = vunpack.c.l.b16 %v1073
    %v1385 = vunpack.c.h.b16 %v1073
    %v1386 = vunpack.c.l.b16 %v1074
    %v1387 = vunpack.c.h.b16 %v1074
    %v1388 = vunpack.c.l.b16 %v1075
    %v1389 = vunpack.c.h.b16 %v1075
    %v1390 = vunpack.c.l.b16 %v1076
    %v1391 = vunpack.c.h.b16 %v1076
    %v1392 = vunpack.c.l.b16 %v1077
    %v1393 = vunpack.c.h.b16 %v1077
    %v1394 = vunpack.c.l.b16 %v1078
    %v1395 = vunpack.c.h.b16 %v1078
    %v1396 = vunpack.c.l.b16 %v1079
    %v1397 = vunpack.c.h.b16 %v1079
    %v1398 = vunpack.c.l.b16 %v1080
    %v1399 = vunpack.c.h.b16 %v1080
    %v1400 = vunpack.c.l.b16 %v1081
    %v1401 = vunpack.c.h.b16 %v1081
    %v1402 = vunpack.c.l.b16 %v1082
    %v1403 = vunpack.c.h.b16 %v1082
    %v1404 = vunpack.c.l.b16 %v1083
    %v1405 = vunpack.c.h.b16 %v1083
    %v1406 = vunpack.c.l.b16 %v1084
    %v1407 = vunpack.c.h.b16 %v1084
    %v1408 = vunpack.c.l.b16 %v1085
    %v1409 = vunpack.c.h.b16 %v1085
    %v1410 = vunpack.c.l.b16 %v1086
    %v1411 = vunpack.c.h.b16 %v1086
    %v1412 = vunpack.c.l.b16 %v1087
    %v1413 = vunpack.c.h.b16 %v1087
    %v1414 = vunpack.c.l.b16 %v1088
    %v1415 = vunpack.c.h.b16 %v1088
    %v1416 = vunpack.c.l.b16 %v1089
    %v1417 = vunpack.c.h.b16 %v1089
    %v1418 = vunpack.c.l.b16 %v1090
    %v1419 = vunpack.c.h.b16 %v1090
    %v1420 = vunpack.c.l.b16 %v1091
    %v1421 = vunpack.c.h.b16 %v1091
    %v1422 = vunpack.c.l.b16 %v1092
    %v1423 = vunpack.c.h.b16 %v1092
    %v1424 = vunpack.c.l.b16 %v1093
    %v1425 = vunpack.c.h.b16 %v1093
    %v1426 = vunpack.c.l.b16 %v1094
    %v1427 = vunpack.c.h.b16 %v1094
    %v1428 = vunpack.c.l.b16 %v1095
    %v1429 = vunpack.c.h.b16 %v1095
    %v1430 = vunpack.c.l.b16 %v1096
    %v1431 = vunpack.c.h.b16 %v1096
    %v1432 = vunpack.c.l.b16 %v1097
    %v1433 = vunpack.c.h.b16 %v1097
    %v1434 = vunpack.c.l.b16 %v1098
    %v1435 = vunpack.c.h.b16 %v1098
    %v1436 = vunpack.c.l.b16 %v1099
    %v1437 = vunpack.c.h.b16 %v1099
    %v1438 = vunpack.c.l.b16 %v1100
    %v1439 = vunpack.c.h.b16 %v1100
    %v1440 = vunpack.c.l.b16 %v1101
    %v1441 = vunpack.c.h.b16 %v1101
    %v1442 = vunpack.c.l.b16 %v1102
    %v1443 = vunpack.c.h.b16 %v1102
    %v1444 = vunpack.c.l.b16 %v1103
    %v1445 = vunpack.c.h.b16 %v1103
    %v1446 = vunpack.c.l.b16 %v1104
    %v1447 = vunpack.c.h.b16 %v1104
    %v1448 = vunpack.c.l.b16 %v1105
    %v1449 = vunpack.c.h.b16 %v1105
    %v1450 = vunpack.c.l.b16 %v1106
    %v1451 = vunpack.c.h.b16 %v1106
    %v1452 = vunpack.c.l.b16 %v1107
    %v1453 = vunpack.c.h.b16 %v1107
    %v1454 = vunpack.c.l.b16 %v1108
    %v1455 = vunpack.c.h.b16 %v1108
    %v1456 = vunpack.c.l.b16 %v1109
    %v1457 = vunpack.c.h.b16 %v1109
    %v1458 = vunpack.c.l.b16 %v1110
    %v1459 = vunpack.c.h.b16 %v1110
    %v1460 = vunpack.c.l.b16 %v1111
    %v1461 = vunpack.c.h.b16 %v1111
    %v1462 = vunpack.c.l.b16 %v1112
    %v1463 = vunpack.c.h.b16 %v1112
    %v1464 = vunpack.c.l.b16 %v1113
    %v1465 = vunpack.c.h.b16 %v1113
    %v1466 = vunpack.c.l.b16 %v1114
    %v1467 = vunpack.c.h.b16 %v1114
    %v1468 = vunpack.c.l.b16 %v1115
    %v1469 = vunpack.c.h.b16 %v1115
    %v1470 = vunpack.c.l.b16 %v1116
    %v1471 = vunpack.c.h.b16 %v1116
    %v1472 = vunpack.c.l.b16 %v1117
    %v1473 = vunpack.c.h.b16 %v1117
    %v1474 = vunpack.c.l.b16 %v1118
    %v1475 = vunpack.c.h.b16 %v1118
    %v1476 = vunpack.c.l.b16 %v1119
    %v1477 = vunpack.c.h.b16 %v1119
    %v1478 = vunpack.c.l.b16 %v1120
    %v1479 = vunpack.c.h.b16 %v1120
    %v1480 = vunpack.c.l.b16 %v1121
    %v1481 = vunpack.c.h.b16 %v1121
    %v1482 = vunpack.c.l.b16 %v1122
    %v1483 = vunpack.c.h.b16 %v1122
    %v1484 = vunpack.c.l.b16 %v1123
    %v1485 = vunpack.c.h.b16 %v1123
    %v1486 = vunpack.c.l.b16 %v1124
    %v1487 = vunpack.c.h.b16 %v1124
    %v1488 = vunpack.c.l.b16 %v1125
    %v1489 = vunpack.c.h.b16 %v1125
    %v1490 = vunpack.c.l.b16 %v1126
    %v1491 = vunpack.c.h.b16 %v1126
    %v1492 = vunpack.c.l.b16 %v1127
    %v1493 = vunpack.c.h.b16 %v1127
    %v1494 = vunpack.c.l.b16 %v1128
    %v1495 = vunpack.c.h.b16 %v1128
    %v1496 = vunpack.c.l.b16 %v1129
    %v1497 = vunpack.c.h.b16 %v1129
    %v1498 = vunpack.c.l.b16 %v1130
    %v1499 = vunpack.c.h.b16 %v1130
    %v1500 = vunpack.c.l.b16 %v1131
    %v1501 = vunpack.c.h.b16 %v1131
    %v1502 = vunpack.c.l.b16 %v1132
    %v1503 = vunpack.c.h.b16 %v1132
    %v1504 = vunpack.c.l.b16 %v1133
    %v1505 = vunpack.c.h.b16 %v1133
    %v1506 = vunpack.c.l.b16 %v1134
    %v1507 = vunpack.c.h.b16 %v1134
    %v1508 = vunpack.c.l.b16 %v1135
    %v1509 = vunpack.c.h.b16 %v1135
    %v1510 = vunpack.c.l.b16 %v1136
    %v1511 = vunpack.c.h.b16 %v1136
    %v1512 = vunpack.c.l.b16 %v1137
    %v1513 = vunpack.c.h.b16 %v1137
    %v1514 = vunpack.c.l.b16 %v1138
    %v1515 = vunpack.c.h.b16 %v1138
    %v1516 = vunpack.c.l.b16 %v1139
    %v1517 = vunpack.c.h.b16 %v1139
    %v1518 = vunpack.c.l.b16 %v1140
    %v1519 = vunpack.c.h.b16 %v1140
    %v1520 = vunpack.c.l.b16 %v1141
    %v1521 = vunpack.c.h.b16 %v1141
    %v1522 = vunpack.c.l.b16 %v1142
    %v1523 = vunpack.c.h.b16 %v1142
    %v1524 = vunpack.c.l.b16 %v1143
    %v1525 = vunpack.c.h.b16 %v1143
    %v1526 = vunpack.c.l.b16 %v1144
    %v1527 = vunpack.c.h.b16 %v1144
    %v1528 = vunpack.c.l.b16 %v1145
    %v1529 = vunpack.c.h.b16 %v1145
    %v1530 = vpack.c.b16 %v1282, %v1274
    %v1531 = vpack.c.b16 %v1283, %v1275
    %v1532 = vpack.c.b16 %v1284, %v1276
    %v1533 = vpack.c.b16 %v1285, %v1277
    %v1534 = vpack.c.b16 %v1286, %v1278
    %v1535 = vpack.c.b16 %v1287, %v1279
    %v1536 = vpack.c.b16 %v1288, %v1280
    %v1537 = vpack.c.b16 %v1289, %v1281
    %v1538 = vpack.c.b16 %v1298, %v1290
    %v1539 = vpack.c.b16 %v1299, %v1291
    %v1540 = vpack.c.b16 %v1300, %v1292
    %v1541 = vpack.c.b16 %v1301, %v1293
    %v1542 = vpack.c.b16 %v1302, %v1294
    %v1543 = vpack.c.b16 %v1303, %v1295
    %v1544 = vpack.c.b16 %v1304, %v1296
    %v1545 = vpack.c.b16 %v1305, %v1297
    %v1546 = vpack.c.b16 %v1314, %v1306
    %v1547 = vpack.c.b16 %v1315, %v1307
    %v1548 = vpack.c.b16 %v1316, %v1308
    %v1549 = vpack.c.b16 %v1317, %v1309
    %v1550 = vpack.c.b16 %v1318, %v1310
    %v1551 = vpack.c.b16 %v1319, %v1311
    %v1552 = vpack.c.b16 %v1320, %v1312
    %v1553 = vpack.c.b16 %v1321, %v1313
    %v1554 = vpack.c.b16 %v1330, %v1322
    %v1555 = vpack.c.b16 %v1331, %v1323
    %v1556 = vpack.c.b16 %v1332, %v1324
    %v1557 = vpack.c.b16 %v1333, %v1325
    %v1558 = vpack.c.b16 %v1334, %v1326
    %v1559 = vpack.c.b16 %v1335, %v1327
    %v1560 = vpack.c.b16 %v1336, %v1328
    %v1561 = vpack.c.b16 %v1337, %v1329
    %v1562 = vpack.c.b16 %v1346, %v1338
    %v1563 = vpack.c.b16 %v1347, %v1339
    %v1564 = vpack.c.b16 %v1348, %v1340
    %v1565 = vpack.c.b16 %v1349, %v1341
    %v1566 = vpack.c.b16 %v1350, %v1342
    %v1567 = vpack.c.b16 %v1351, %v1343
    %v1568 = vpack.c.b16 %v1352, %v1344
    %v1569 = vpack.c.b16 %v1353, %v1345
    %v1570 = vpack.c.b16 %v1362, %v1354
    %v1571 = vpack.c.b16 %v1363, %v1355
    %v1572 = vpack.c.b16 %v1364, %v1356
    %v1573 = vpack.c.b16 %v1365, %v1357
    %v1574 = vpack.c.b16 %v1366, %v1358
    %v1575 = vpack.c.b16 %v1367, %v1359
    %v1576 = vpack.c.b16 %v1368, %v1360
    %v1577 = vpack.c.b16 %v1369, %v1361
    %v1578 = vpack.c.b16 %v1378, %v1370
    %v1579 = vpack.c.b16 %v1379, %v1371
    %v1580 = vpack.c.b16 %v1380, %v1372
    %v1581 = vpack.c.b16 %v1381, %v1373
    %v1582 = vpack.c.b16 %v1382, %v1374
    %v1583 = vpack.c.b16 %v1383, %v1375
    %v1584 = vpack.c.b16 %v1384, %v1376
    %v1585 = vpack.c.b16 %v1385, %v1377
    %v1586 = vpack.c.b16 %v1394, %v1386
    %v1587 = vpack.c.b16 %v1395, %v1387
    %v1588 = vpack.c.b16 %v1396, %v1388
    %v1589 = vpack.c.b16 %v1397, %v1389
    %v1590 = vpack.c.b16 %v1398, %v1390
    %v1591 = vpack.c.b16 %v1399, %v1391
    %v1592 = vpack.c.b16 %v1400, %v1392
    %v1593 = vpack.c.b16 %v1401, %v1393
    %v1594 = vpack.c.b16 %v1410, %v1402
    %v1595 = vpack.c.b16 %v1411, %v1403
    %v1596 = vpack.c.b16 %v1412, %v1404
    %v1597 = vpack.c.b16 %v1413, %v1405
    %v1598 = vpack.c.b16 %v1414, %v1406
    %v1599 = vpack.c.b16 %v1415, %v1407
    %v1600 = vpack.c.b16 %v1416, %v1408
    %v1601 = vpack.c.b16 %v1417, %v1409
    %v1602 = vpack.c.b16 %v1426, %v1418
    %v1603 = vpack.c.b16 %v1427, %v1419
    %v1604 = vpack.c.b16 %v1428, %v1420
    %v1605 = vpack.c.b16 %v1429, %v1421
    %v1606 = vpack.c.b16 %v1430, %v1422
    %v1607 = vpack.c.b16 %v1431, %v1423
    %v1608 = vpack.c.b16 %v1432, %v1424
    %v1609 = vpack.c.b16 %v1433, %v1425
    %v1610 = vpack.c.b16 %v1442, %v1434
    %v1611 = vpack.c.b16 %v1443, %v1435
    %v1612 = vpack.c.b16 %v1444, %v1436
    %v1613 = vpack.c.b16 %v1445, %v1437
    %v1614 = vpack.c.b16 %v1446, %v1438
    %v1615 = vpack.c.b16 %v1447, %v1439
    %v1616 = vpack.c.b16 %v1448, %v1440
    %v1617 = vpack.c.b16 %v1449, %v1441
    %v1618 = vpack.c.b16 %v1458, %v1450
    %v1619 = vpack.c.b16 %v1459, %v1451
    %v1620 = vpack.c.b16 %v1460, %v1452
    %v1621 = vpack.c.b16 %v1461, %v1453
    %v1622 = vpack.c.b16 %v1462, %v1454
    %v1623 = vpack.c.b16 %v1463, %v1455
    %v1624 = vpack.c.b16 %v1464, %v1456
    %v1625 = vpack.c.b16 %v1465, %v1457
    %v1626 = vpack.c.b16 %v1474, %v1466
    %v1627 = vpack.c.b16 %v1475, %v1467
    %v1628 = vpack.c.b16 %v1476, %v1468
    %v1629 = vpack.c.b16 %v1477, %v1469
    %v1630 = vpack.c.b16 %v1478, %v1470
    %v1631 = vpack.c.b16 %v1479, %v1471
    %v1632 = vpack.c.b16 %v1480, %v1472
    %v1633 = vpack.c.b16 %v1481, %v1473
    %v1634 = vpack.c.b16 %v1490, %v1482
    %v1635 = vpack.c.b16 %v1491, %v1483
    %v1636 = vpack.c.b16 %v1492, %v1484
    %v1637 = vpack.c.b16 %v1493, %v1485
    %v1638 = vpack.c.b16 %v1494, %v1486
    %v1639 = vpack.c.b16 %v1495, %v1487
    %v1640 = vpack.c.b16 %v1496, %v1488
    %v1641 = vpack.c.b16 %v1497, %v1489
    %v1642 = vpack.c.b16 %v1506, %v1498
    %v1643 = vpack.c.b16 %v1507, %v1499
    %v1644 = vpack.c.b16 %v1508, %v1500
    %v1645 = vpack.c.b16 %v1509, %v1501
    %v1646 = vpack.c.b16 %v1510, %v1502
    %v1647 = vpack.c.b16 %v1511, %v1503
    %v1648 = vpack.c.b16 %v1512, %v1504
    %v1649 = vpack.c.b16 %v1513, %v1505
    %v1650 = vpack.c.b16 %v1522, %v1514
    %v1651 = vpack.c.b16 %v1523, %v1515
    %v1652 = vpack.c.b16 %v1524, %v1516
    %v1653 = vpack.c.b16 %v1525, %v1517
    %v1654 = vpack.c.b16 %v1526, %v1518
    %v1655 = vpack.c.b16 %v1527, %v1519
    %v1656 = vpack.c.b16 %v1528, %v1520
    %v1657 = vpack.c.b16 %v1529, %v1521
    %1786 = vmatprep.subr.bf16.mxu0 %v1531
    %1787 = vmatpush1.bf16.msra.mxu0 %v1530
    %1788 = vmatprep.subr.bf16.mxu0 %v1539
    %1789 = vmatpush1.bf16.msra.mxu0 %v1538
    %1790 = vmatprep.subr.bf16.mxu0 %v1547
    %1791 = vmatpush1.bf16.msra.mxu0 %v1546
    %1792 = vmatprep.subr.bf16.mxu0 %v1555
    %1793 = vmatpush1.bf16.msra.mxu0 %v1554
    %1794 = vmatprep.subr.bf16.mxu0 %v1563
    %1795 = vmatpush1.bf16.msra.mxu0 %v1562
    %1796 = vmatprep.subr.bf16.mxu0 %v1571
    %1797 = vmatpush1.bf16.msra.mxu0 %v1570
    %1798 = vmatprep.subr.bf16.mxu0 %v1579
    %1799 = vmatpush1.bf16.msra.mxu0 %v1578
    %1800 = vmatprep.subr.bf16.mxu0 %v1587
    %1801 = vmatpush1.bf16.msra.mxu0 %v1586
    %1802 = vmatprep.subr.bf16.mxu0 %v1595
    %1803 = vmatpush1.bf16.msra.mxu0 %v1594
    %1804 = vmatprep.subr.bf16.mxu0 %v1603
    %1805 = vmatpush1.bf16.msra.mxu0 %v1602
    %1806 = vmatprep.subr.bf16.mxu0 %v1611
    %1807 = vmatpush1.bf16.msra.mxu0 %v1610
    %1808 = vmatprep.subr.bf16.mxu0 %v1619
    %1809 = vmatpush1.bf16.msra.mxu0 %v1618
    %1810 = vmatprep.subr.bf16.mxu0 %v1627
    %1811 = vmatpush1.bf16.msra.mxu0 %v1626
    %1812 = vmatprep.subr.bf16.mxu0 %v1635
    %1813 = vmatpush1.bf16.msra.mxu0 %v1634
    %1814 = vmatprep.subr.bf16.mxu0 %v1643
    %1815 = vmatpush1.bf16.msra.mxu0 %v1642
    %1816 = vmatprep.subr.bf16.mxu0 %v1651
    %1817 = vmatpush1.bf16.msra.mxu0 %v1650
    %1818 = vmatprep.mubr.bf16.mxu0 %v1017
    %1819 = vmatmul.mubr.bf16.gmra.mrb[0].mxu0 %v1016
    %v1820 = vpop.f32.mrb[0].mxu0
    %v1821 = vadd.f32 0.0, %v1820
    %v1822 = vpop.f32.mrb[0].mxu0
    %v1823 = vadd.f32 0.0, %v1822
    %v1824 = vpop.f32.mrb[0].mxu0
    %v1825 = vpop.f32.mrb[0].mxu0
    %1826 = vdwg.mxu0
    %1827 = vmatprep.subr.bf16.mxu0 %v1533
    %1828 = vmatpush1.bf16.msra.mxu0 %v1532
    %1829 = vmatprep.subr.bf16.mxu0 %v1541
    %1830 = vmatpush1.bf16.msra.mxu0 %v1540
    %1831 = vmatprep.subr.bf16.mxu0 %v1549
    %1832 = vmatpush1.bf16.msra.mxu0 %v1548
    %1833 = vmatprep.subr.bf16.mxu0 %v1557
    %1834 = vmatpush1.bf16.msra.mxu0 %v1556
    %1835 = vmatprep.subr.bf16.mxu0 %v1565
    %1836 = vmatpush1.bf16.msra.mxu0 %v1564
    %1837 = vmatprep.subr.bf16.mxu0 %v1573
    %1838 = vmatpush1.bf16.msra.mxu0 %v1572
    %1839 = vmatprep.subr.bf16.mxu0 %v1581
    %1840 = vmatpush1.bf16.msra.mxu0 %v1580
    %1841 = vmatprep.subr.bf16.mxu0 %v1589
    %1842 = vmatpush1.bf16.msra.mxu0 %v1588
    %1843 = vmatprep.subr.bf16.mxu0 %v1597
    %1844 = vmatpush1.bf16.msra.mxu0 %v1596
    %1845 = vmatprep.subr.bf16.mxu0 %v1605
    %1846 = vmatpush1.bf16.msra.mxu0 %v1604
    %1847 = vmatprep.subr.bf16.mxu0 %v1613
    %1848 = vmatpush1.bf16.msra.mxu0 %v1612
    %1849 = vmatprep.subr.bf16.mxu0 %v1621
    %1850 = vmatpush1.bf16.msra.mxu0 %v1620
    %1851 = vmatprep.subr.bf16.mxu0 %v1629
    %1852 = vmatpush1.bf16.msra.mxu0 %v1628
    %1853 = vmatprep.subr.bf16.mxu0 %v1637
    %1854 = vmatpush1.bf16.msra.mxu0 %v1636
    %1855 = vmatprep.subr.bf16.mxu0 %v1645
    %1856 = vmatpush1.bf16.msra.mxu0 %v1644
    %1857 = vmatprep.subr.bf16.mxu0 %v1653
    %1858 = vmatpush1.bf16.msra.mxu0 %v1652
    %1859 = vmatprep.mubr.bf16.mxu0 %v1017
    %1860 = vmatmul.mubr.bf16.gmra.mrb[0].mxu0 %v1016
    %v1861 = vpop.f32.mrb[0].mxu0
    %v1862 = vadd.f32 0.0, %v1861
    %v1863 = vpop.f32.mrb[0].mxu0
    %v1864 = vadd.f32 0.0, %v1863
    %v1865 = vpop.f32.mrb[0].mxu0
    %v1866 = vpop.f32.mrb[0].mxu0
    %1867 = vdwg.mxu0
    %1868 = vmatprep.subr.bf16.mxu0 %v1535
    %1869 = vmatpush1.bf16.msra.mxu0 %v1534
    %1870 = vmatprep.subr.bf16.mxu0 %v1543
    %1871 = vmatpush1.bf16.msra.mxu0 %v1542
    %1872 = vmatprep.subr.bf16.mxu0 %v1551
    %1873 = vmatpush1.bf16.msra.mxu0 %v1550
    %1874 = vmatprep.subr.bf16.mxu0 %v1559
    %1875 = vmatpush1.bf16.msra.mxu0 %v1558
    %1876 = vmatprep.subr.bf16.mxu0 %v1567
    %1877 = vmatpush1.bf16.msra.mxu0 %v1566
    %1878 = vmatprep.subr.bf16.mxu0 %v1575
    %1879 = vmatpush1.bf16.msra.mxu0 %v1574
    %1880 = vmatprep.subr.bf16.mxu0 %v1583
    %1881 = vmatpush1.bf16.msra.mxu0 %v1582
    %1882 = vmatprep.subr.bf16.mxu0 %v1591
    %1883 = vmatpush1.bf16.msra.mxu0 %v1590
    %1884 = vmatprep.subr.bf16.mxu0 %v1599
    %1885 = vmatpush1.bf16.msra.mxu0 %v1598
    %1886 = vmatprep.subr.bf16.mxu0 %v1607
    %1887 = vmatpush1.bf16.msra.mxu0 %v1606
    %1888 = vmatprep.subr.bf16.mxu0 %v1615
    %1889 = vmatpush1.bf16.msra.mxu0 %v1614
    %1890 = vmatprep.subr.bf16.mxu0 %v1623
    %1891 = vmatpush1.bf16.msra.mxu0 %v1622
    %1892 = vmatprep.subr.bf16.mxu0 %v1631
    %1893 = vmatpush1.bf16.msra.mxu0 %v1630
    %1894 = vmatprep.subr.bf16.mxu0 %v1639
    %1895 = vmatpush1.bf16.msra.mxu0 %v1638
    %1896 = vmatprep.subr.bf16.mxu0 %v1647
    %1897 = vmatpush1.bf16.msra.mxu0 %v1646
    %1898 = vmatprep.subr.bf16.mxu0 %v1655
    %1899 = vmatpush1.bf16.msra.mxu0 %v1654
    %1900 = vmatprep.mubr.bf16.mxu0 %v1017
    %1901 = vmatmul.mubr.bf16.gmra.mrb[0].mxu0 %v1016
    %v1902 = vpop.f32.mrb[0].mxu0
    %v1903 = vadd.f32 0.0, %v1902
    %v1904 = vpop.f32.mrb[0].mxu0
    %v1905 = vadd.f32 0.0, %v1904
    %v1906 = vpop.f32.mrb[0].mxu0
    %v1907 = vpop.f32.mrb[0].mxu0
    %1908 = vdwg.mxu0
    %1909 = vmatprep.subr.bf16.mxu0 %v1537
    %1910 = vmatpush1.bf16.msra.mxu0 %v1536
    %1911 = vmatprep.subr.bf16.mxu0 %v1545
    %1912 = vmatpush1.bf16.msra.mxu0 %v1544
    %1913 = vmatprep.subr.bf16.mxu0 %v1553
    %1914 = vmatpush1.bf16.msra.mxu0 %v1552
    %1915 = vmatprep.subr.bf16.mxu0 %v1561
    %1916 = vmatpush1.bf16.msra.mxu0 %v1560
    %1917 = vmatprep.subr.bf16.mxu0 %v1569
    %1918 = vmatpush1.bf16.msra.mxu0 %v1568
    %1919 = vmatprep.subr.bf16.mxu0 %v1577
    %1920 = vmatpush1.bf16.msra.mxu0 %v1576
    %1921 = vmatprep.subr.bf16.mxu0 %v1585
    %1922 = vmatpush1.bf16.msra.mxu0 %v1584
    %1923 = vmatprep.subr.bf16.mxu0 %v1593
    %1924 = vmatpush1.bf16.msra.mxu0 %v1592
    %1925 = vmatprep.subr.bf16.mxu0 %v1601
    %1926 = vmatpush1.bf16.msra.mxu0 %v1600
    %1927 = vmatprep.subr.bf16.mxu0 %v1609
    %1928 = vmatpush1.bf16.msra.mxu0 %v1608
    %1929 = vmatprep.subr.bf16.mxu0 %v1617
    %1930 = vmatpush1.bf16.msra.mxu0 %v1616
    %1931 = vmatprep.subr.bf16.mxu0 %v1625
    %1932 = vmatpush1.bf16.msra.mxu0 %v1624
    %1933 = vmatprep.subr.bf16.mxu0 %v1633
    %1934 = vmatpush1.bf16.msra.mxu0 %v1632
    %1935 = vmatprep.subr.bf16.mxu0 %v1641
    %1936 = vmatpush1.bf16.msra.mxu0 %v1640
    %1937 = vmatprep.subr.bf16.mxu0 %v1649
    %1938 = vmatpush1.bf16.msra.mxu0 %v1648
    %1939 = vmatprep.subr.bf16.mxu0 %v1657
    %1940 = vmatpush1.bf16.msra.mxu0 %v1656
    %1941 = vmatprep.mubr.bf16.mxu0 %v1017
    %1942 = vmatmul.mubr.bf16.gmra.mrb[0].mxu0 %v1016
    %v1943 = vpop.f32.mrb[0].mxu0
    %v1944 = vadd.f32 0.0, %v1943
    %v1945 = vpop.f32.mrb[0].mxu0
    %v1946 = vadd.f32 0.0, %v1945
    %v1947 = vpop.f32.mrb[0].mxu0
    %v1948 = vpop.f32.mrb[0].mxu0
    %1949 = vdwg.mxu0
    %v1950 = vadd.f32 %v1008, %v1821
    %v1951 = vadd.f32 %v1009, %v1823
    %v1952 = vadd.f32 %v1010, %v1862
    %v1953 = vadd.f32 %v1011, %v1864
    %v1954 = vadd.f32 %v1012, %v1903
    %v1955 = vadd.f32 %v1013, %v1905
    %v1956 = vadd.f32 %v1014, %v1944
    %v1957 = vadd.f32 %v1015, %v1946
    %v1958 = vxor.u32 %v1950, 2147483648
    %v1959 = vxor.u32 %v1951, 2147483648
    %v1960 = vmul.f32 %v1958, 1.442695
    %v1961 = vpow.pop %v1960
    %v1962 = vmul.f32 %v1959, 1.442695
    %v1963 = vpow.pop %v1962
    %v1964 = vadd.f32 %v1961, 1.0
    %v1965 = vadd.f32 %v1963, 1.0
    %v1966 = vrcp.pop %v1964
    %v1967 = vmul.f32 1.0, %v1966
    %v1968 = vrcp.pop %v1965
    %v1969 = vmul.f32 1.0, %v1968
    %v1970 = vxor.u32 %v1952, 2147483648
    %v1971 = vxor.u32 %v1953, 2147483648
    %v1972 = vmul.f32 %v1970, 1.442695
    %v1973 = vpow.pop %v1972
    %v1974 = vmul.f32 %v1971, 1.442695
    %v1975 = vpow.pop %v1974
    %v1976 = vadd.f32 %v1973, 1.0
    %v1977 = vadd.f32 %v1975, 1.0
    %v1978 = vrcp.pop %v1976
    %v1979 = vmul.f32 1.0, %v1978
    %v1980 = vrcp.pop %v1977
    %v1981 = vmul.f32 1.0, %v1980
    %v1982 = vtanh.pop %v1954
    %v1983 = vtanh.pop %v1955
    %v1984 = vxor.u32 %v1956, 2147483648
    %v1985 = vxor.u32 %v1957, 2147483648
    %v1986 = vmul.f32 %v1984, 1.442695
    %v1987 = vpow.pop %v1986
    %v1988 = vmul.f32 %v1985, 1.442695
    %v1989 = vpow.pop %v1988
    %v1990 = vadd.f32 %v1987, 1.0
    %v1991 = vadd.f32 %v1989, 1.0
    %v1992 = vrcp.pop %v1990
    %v1993 = vmul.f32 1.0, %v1992
    %v1994 = vrcp.pop %v1991
    %v1995 = vmul.f32 1.0, %v1994
    %v1996 = vmul.f32 %v1979, %v1000
    %v1997 = vmul.f32 %v1981, %v1001
    %v1998 = vmul.f32 %v1967, %v1982
    %v1999 = vmul.f32 %v1969, %v1983
    %v2000 = vadd.f32 %v1996, %v1998
    %v2001 = vadd.f32 %v1997, %v1999
    %v2002 = vtanh.pop %v2000
    %v2003 = vtanh.pop %v2001
    %v2004 = vmul.f32 %v1993, %v2002
    %v2005 = vmul.f32 %v1995, %v2003
    %v2006 = vpack.c.bf16 %v2004, %v2004
    %v2007 = vpack.c.bf16 %v2005, %v2005
    %v2008 = vld [vmem:[#allocation3] sm:$0xff]
    %v2009 = vld [vmem:[#allocation3 + $0x8] sm:$0xff]
    %v2010 = vld [vmem:[#allocation3 + $0x10] sm:$0xff]
    %v2011 = vld [vmem:[#allocation3 + $0x18] sm:$0xff]
    %v2012 = vld [vmem:[#allocation3 + $0x20] sm:$0xff]
    %v2013 = vld [vmem:[#allocation3 + $0x28] sm:$0xff]
    %v2014 = vld [vmem:[#allocation3 + $0x30] sm:$0xff]
    %v2015 = vld [vmem:[#allocation3 + $0x38] sm:$0xff]
    %v2016 = vld [vmem:[#allocation3 + $0x40] sm:$0xff]
    %v2017 = vld [vmem:[#allocation3 + $0x48] sm:$0xff]
    %v2018 = vld [vmem:[#allocation3 + $0x50] sm:$0xff]
    %v2019 = vld [vmem:[#allocation3 + $0x58] sm:$0xff]
    %v2020 = vld [vmem:[#allocation3 + $0x60] sm:$0xff]
    %v2021 = vld [vmem:[#allocation3 + $0x68] sm:$0xff]
    %v2022 = vld [vmem:[#allocation3 + $0x70] sm:$0xff]
    %v2023 = vld [vmem:[#allocation3 + $0x78] sm:$0xff]
    %v2024 = vld [vmem:[#allocation3 + $0x80] sm:$0xff]
    %v2025 = vld [vmem:[#allocation3 + $0x88] sm:$0xff]
    %v2026 = vld [vmem:[#allocation3 + $0x90] sm:$0xff]
    %v2027 = vld [vmem:[#allocation3 + $0x98] sm:$0xff]
    %v2028 = vld [vmem:[#allocation3 + $0xa0] sm:$0xff]
    %v2029 = vld [vmem:[#allocation3 + $0xa8] sm:$0xff]
    %v2030 = vld [vmem:[#allocation3 + $0xb0] sm:$0xff]
    %v2031 = vld [vmem:[#allocation3 + $0xb8] sm:$0xff]
    %v2032 = vld [vmem:[#allocation3 + $0xc0] sm:$0xff]
    %v2033 = vld [vmem:[#allocation3 + $0xc8] sm:$0xff]
    %v2034 = vld [vmem:[#allocation3 + $0xd0] sm:$0xff]
    %v2035 = vld [vmem:[#allocation3 + $0xd8] sm:$0xff]
    %v2036 = vld [vmem:[#allocation3 + $0xe0] sm:$0xff]
    %v2037 = vld [vmem:[#allocation3 + $0xe8] sm:$0xff]
    %v2038 = vld [vmem:[#allocation3 + $0xf0] sm:$0xff]
    %v2039 = vld [vmem:[#allocation3 + $0xf8] sm:$0xff]
    %v2040 = vld [vmem:[#allocation3 + $0x100] sm:$0xff]
    %v2041 = vld [vmem:[#allocation3 + $0x108] sm:$0xff]
    %v2042 = vld [vmem:[#allocation3 + $0x110] sm:$0xff]
    %v2043 = vld [vmem:[#allocation3 + $0x118] sm:$0xff]
    %v2044 = vld [vmem:[#allocation3 + $0x120] sm:$0xff]
    %v2045 = vld [vmem:[#allocation3 + $0x128] sm:$0xff]
    %v2046 = vld [vmem:[#allocation3 + $0x130] sm:$0xff]
    %v2047 = vld [vmem:[#allocation3 + $0x138] sm:$0xff]
    %v2048 = vld [vmem:[#allocation3 + $0x140] sm:$0xff]
    %v2049 = vld [vmem:[#allocation3 + $0x148] sm:$0xff]
    %v2050 = vld [vmem:[#allocation3 + $0x150] sm:$0xff]
    %v2051 = vld [vmem:[#allocation3 + $0x158] sm:$0xff]
    %v2052 = vld [vmem:[#allocation3 + $0x160] sm:$0xff]
    %v2053 = vld [vmem:[#allocation3 + $0x168] sm:$0xff]
    %v2054 = vld [vmem:[#allocation3 + $0x170] sm:$0xff]
    %v2055 = vld [vmem:[#allocation3 + $0x178] sm:$0xff]
    %v2056 = vld [vmem:[#allocation3 + $0x180] sm:$0xff]
    %v2057 = vld [vmem:[#allocation3 + $0x188] sm:$0xff]
    %v2058 = vld [vmem:[#allocation3 + $0x190] sm:$0xff]
    %v2059 = vld [vmem:[#allocation3 + $0x198] sm:$0xff]
    %v2060 = vld [vmem:[#allocation3 + $0x1a0] sm:$0xff]
    %v2061 = vld [vmem:[#allocation3 + $0x1a8] sm:$0xff]
    %v2062 = vld [vmem:[#allocation3 + $0x1b0] sm:$0xff]
    %v2063 = vld [vmem:[#allocation3 + $0x1b8] sm:$0xff]
    %v2064 = vld [vmem:[#allocation3 + $0x1c0] sm:$0xff]
    %v2065 = vld [vmem:[#allocation3 + $0x1c8] sm:$0xff]
    %v2066 = vld [vmem:[#allocation3 + $0x1d0] sm:$0xff]
    %v2067 = vld [vmem:[#allocation3 + $0x1d8] sm:$0xff]
    %v2068 = vld [vmem:[#allocation3 + $0x1e0] sm:$0xff]
    %v2069 = vld [vmem:[#allocation3 + $0x1e8] sm:$0xff]
    %v2070 = vld [vmem:[#allocation3 + $0x1f0] sm:$0xff]
    %v2071 = vld [vmem:[#allocation3 + $0x1f8] sm:$0xff]
    %v2072 = vld [vmem:[#allocation3 + $0x200] sm:$0xff]
    %v2073 = vld [vmem:[#allocation3 + $0x208] sm:$0xff]
    %v2074 = vld [vmem:[#allocation3 + $0x210] sm:$0xff]
    %v2075 = vld [vmem:[#allocation3 + $0x218] sm:$0xff]
    %v2076 = vld [vmem:[#allocation3 + $0x220] sm:$0xff]
    %v2077 = vld [vmem:[#allocation3 + $0x228] sm:$0xff]
    %v2078 = vld [vmem:[#allocation3 + $0x230] sm:$0xff]
    %v2079 = vld [vmem:[#allocation3 + $0x238] sm:$0xff]
    %v2080 = vld [vmem:[#allocation3 + $0x240] sm:$0xff]
    %v2081 = vld [vmem:[#allocation3 + $0x248] sm:$0xff]
    %v2082 = vld [vmem:[#allocation3 + $0x250] sm:$0xff]
    %v2083 = vld [vmem:[#allocation3 + $0x258] sm:$0xff]
    %v2084 = vld [vmem:[#allocation3 + $0x260] sm:$0xff]
    %v2085 = vld [vmem:[#allocation3 + $0x268] sm:$0xff]
    %v2086 = vld [vmem:[#allocation3 + $0x270] sm:$0xff]
    %v2087 = vld [vmem:[#allocation3 + $0x278] sm:$0xff]
    %v2088 = vld [vmem:[#allocation3 + $0x280] sm:$0xff]
    %v2089 = vld [vmem:[#allocation3 + $0x288] sm:$0xff]
    %v2090 = vld [vmem:[#allocation3 + $0x290] sm:$0xff]
    %v2091 = vld [vmem:[#allocation3 + $0x298] sm:$0xff]
    %v2092 = vld [vmem:[#allocation3 + $0x2a0] sm:$0xff]
    %v2093 = vld [vmem:[#allocation3 + $0x2a8] sm:$0xff]
    %v2094 = vld [vmem:[#allocation3 + $0x2b0] sm:$0xff]
    %v2095 = vld [vmem:[#allocation3 + $0x2b8] sm:$0xff]
    %v2096 = vld [vmem:[#allocation3 + $0x2c0] sm:$0xff]
    %v2097 = vld [vmem:[#allocation3 + $0x2c8] sm:$0xff]
    %v2098 = vld [vmem:[#allocation3 + $0x2d0] sm:$0xff]
    %v2099 = vld [vmem:[#allocation3 + $0x2d8] sm:$0xff]
    %v2100 = vld [vmem:[#allocation3 + $0x2e0] sm:$0xff]
    %v2101 = vld [vmem:[#allocation3 + $0x2e8] sm:$0xff]
    %v2102 = vld [vmem:[#allocation3 + $0x2f0] sm:$0xff]
    %v2103 = vld [vmem:[#allocation3 + $0x2f8] sm:$0xff]
    %v2104 = vld [vmem:[#allocation3 + $0x300] sm:$0xff]
    %v2105 = vld [vmem:[#allocation3 + $0x308] sm:$0xff]
    %v2106 = vld [vmem:[#allocation3 + $0x310] sm:$0xff]
    %v2107 = vld [vmem:[#allocation3 + $0x318] sm:$0xff]
    %v2108 = vld [vmem:[#allocation3 + $0x320] sm:$0xff]
    %v2109 = vld [vmem:[#allocation3 + $0x328] sm:$0xff]
    %v2110 = vld [vmem:[#allocation3 + $0x330] sm:$0xff]
    %v2111 = vld [vmem:[#allocation3 + $0x338] sm:$0xff]
    %v2112 = vld [vmem:[#allocation3 + $0x340] sm:$0xff]
    %v2113 = vld [vmem:[#allocation3 + $0x348] sm:$0xff]
    %v2114 = vld [vmem:[#allocation3 + $0x350] sm:$0xff]
    %v2115 = vld [vmem:[#allocation3 + $0x358] sm:$0xff]
    %v2116 = vld [vmem:[#allocation3 + $0x360] sm:$0xff]
    %v2117 = vld [vmem:[#allocation3 + $0x368] sm:$0xff]
    %v2118 = vld [vmem:[#allocation3 + $0x370] sm:$0xff]
    %v2119 = vld [vmem:[#allocation3 + $0x378] sm:$0xff]
    %v2120 = vld [vmem:[#allocation3 + $0x380] sm:$0xff]
    %v2121 = vld [vmem:[#allocation3 + $0x388] sm:$0xff]
    %v2122 = vld [vmem:[#allocation3 + $0x390] sm:$0xff]
    %v2123 = vld [vmem:[#allocation3 + $0x398] sm:$0xff]
    %v2124 = vld [vmem:[#allocation3 + $0x3a0] sm:$0xff]
    %v2125 = vld [vmem:[#allocation3 + $0x3a8] sm:$0xff]
    %v2126 = vld [vmem:[#allocation3 + $0x3b0] sm:$0xff]
    %v2127 = vld [vmem:[#allocation3 + $0x3b8] sm:$0xff]
    %v2128 = vld [vmem:[#allocation3 + $0x3c0] sm:$0xff]
    %v2129 = vld [vmem:[#allocation3 + $0x3c8] sm:$0xff]
    %v2130 = vld [vmem:[#allocation3 + $0x3d0] sm:$0xff]
    %v2131 = vld [vmem:[#allocation3 + $0x3d8] sm:$0xff]
    %v2132 = vld [vmem:[#allocation3 + $0x3e0] sm:$0xff]
    %v2133 = vld [vmem:[#allocation3 + $0x3e8] sm:$0xff]
    %v2134 = vld [vmem:[#allocation3 + $0x3f0] sm:$0xff]
    %v2135 = vld [vmem:[#allocation3 + $0x3f8] sm:$0xff]
    %v2136 = vpack.c.bf16 %v1003, %v1003
    %v2137 = vpack.c.bf16 %v1004, %v1004
    %v2138 = vld [vmem:[#allocation4] sm:$0xff]
    %v2139 = vld [vmem:[#allocation4 + $0x8] sm:$0xff]
    %v2140 = vld [vmem:[#allocation4 + $0x10] sm:$0xff]
    %v2141 = vld [vmem:[#allocation4 + $0x18] sm:$0xff]
    %v2142 = vld [vmem:[#allocation4 + $0x20] sm:$0xff]
    %v2143 = vld [vmem:[#allocation4 + $0x28] sm:$0xff]
    %v2144 = vld [vmem:[#allocation4 + $0x30] sm:$0xff]
    %v2145 = vld [vmem:[#allocation4 + $0x38] sm:$0xff]
    %v2146 = vld [vmem:[#allocation4 + $0x40] sm:$0xff]
    %v2147 = vld [vmem:[#allocation4 + $0x48] sm:$0xff]
    %v2148 = vld [vmem:[#allocation4 + $0x50] sm:$0xff]
    %v2149 = vld [vmem:[#allocation4 + $0x58] sm:$0xff]
    %v2150 = vld [vmem:[#allocation4 + $0x60] sm:$0xff]
    %v2151 = vld [vmem:[#allocation4 + $0x68] sm:$0xff]
    %v2152 = vld [vmem:[#allocation4 + $0x70] sm:$0xff]
    %v2153 = vld [vmem:[#allocation4 + $0x78] sm:$0xff]
    %v2154 = vld [vmem:[#allocation4 + $0x80] sm:$0xff]
    %v2155 = vld [vmem:[#allocation4 + $0x88] sm:$0xff]
    %v2156 = vld [vmem:[#allocation4 + $0x90] sm:$0xff]
    %v2157 = vld [vmem:[#allocation4 + $0x98] sm:$0xff]
    %v2158 = vld [vmem:[#allocation4 + $0xa0] sm:$0xff]
    %v2159 = vld [vmem:[#allocation4 + $0xa8] sm:$0xff]
    %v2160 = vld [vmem:[#allocation4 + $0xb0] sm:$0xff]
    %v2161 = vld [vmem:[#allocation4 + $0xb8] sm:$0xff]
    %v2162 = vld [vmem:[#allocation4 + $0xc0] sm:$0xff]
    %v2163 = vld [vmem:[#allocation4 + $0xc8] sm:$0xff]
    %v2164 = vld [vmem:[#allocation4 + $0xd0] sm:$0xff]
    %v2165 = vld [vmem:[#allocation4 + $0xd8] sm:$0xff]
    %v2166 = vld [vmem:[#allocation4 + $0xe0] sm:$0xff]
    %v2167 = vld [vmem:[#allocation4 + $0xe8] sm:$0xff]
    %v2168 = vld [vmem:[#allocation4 + $0xf0] sm:$0xff]
    %v2169 = vld [vmem:[#allocation4 + $0xf8] sm:$0xff]
    %v2170 = vld [vmem:[#allocation4 + $0x100] sm:$0xff]
    %v2171 = vld [vmem:[#allocation4 + $0x108] sm:$0xff]
    %v2172 = vld [vmem:[#allocation4 + $0x110] sm:$0xff]
    %v2173 = vld [vmem:[#allocation4 + $0x118] sm:$0xff]
    %v2174 = vld [vmem:[#allocation4 + $0x120] sm:$0xff]
    %v2175 = vld [vmem:[#allocation4 + $0x128] sm:$0xff]
    %v2176 = vld [vmem:[#allocation4 + $0x130] sm:$0xff]
    %v2177 = vld [vmem:[#allocation4 + $0x138] sm:$0xff]
    %v2178 = vld [vmem:[#allocation4 + $0x140] sm:$0xff]
    %v2179 = vld [vmem:[#allocation4 + $0x148] sm:$0xff]
    %v2180 = vld [vmem:[#allocation4 + $0x150] sm:$0xff]
    %v2181 = vld [vmem:[#allocation4 + $0x158] sm:$0xff]
    %v2182 = vld [vmem:[#allocation4 + $0x160] sm:$0xff]
    %v2183 = vld [vmem:[#allocation4 + $0x168] sm:$0xff]
    %v2184 = vld [vmem:[#allocation4 + $0x170] sm:$0xff]
    %v2185 = vld [vmem:[#allocation4 + $0x178] sm:$0xff]
    %v2186 = vld [vmem:[#allocation4 + $0x180] sm:$0xff]
    %v2187 = vld [vmem:[#allocation4 + $0x188] sm:$0xff]
    %v2188 = vld [vmem:[#allocation4 + $0x190] sm:$0xff]
    %v2189 = vld [vmem:[#allocation4 + $0x198] sm:$0xff]
    %v2190 = vld [vmem:[#allocation4 + $0x1a0] sm:$0xff]
    %v2191 = vld [vmem:[#allocation4 + $0x1a8] sm:$0xff]
    %v2192 = vld [vmem:[#allocation4 + $0x1b0] sm:$0xff]
    %v2193 = vld [vmem:[#allocation4 + $0x1b8] sm:$0xff]
    %v2194 = vld [vmem:[#allocation4 + $0x1c0] sm:$0xff]
    %v2195 = vld [vmem:[#allocation4 + $0x1c8] sm:$0xff]
    %v2196 = vld [vmem:[#allocation4 + $0x1d0] sm:$0xff]
    %v2197 = vld [vmem:[#allocation4 + $0x1d8] sm:$0xff]
    %v2198 = vld [vmem:[#allocation4 + $0x1e0] sm:$0xff]
    %v2199 = vld [vmem:[#allocation4 + $0x1e8] sm:$0xff]
    %v2200 = vld [vmem:[#allocation4 + $0x1f0] sm:$0xff]
    %v2201 = vld [vmem:[#allocation4 + $0x1f8] sm:$0xff]
    %v2202 = vld [vmem:[#allocation4 + $0x200] sm:$0xff]
    %v2203 = vld [vmem:[#allocation4 + $0x208] sm:$0xff]
    %v2204 = vld [vmem:[#allocation4 + $0x210] sm:$0xff]
    %v2205 = vld [vmem:[#allocation4 + $0x218] sm:$0xff]
    %v2206 = vld [vmem:[#allocation4 + $0x220] sm:$0xff]
    %v2207 = vld [vmem:[#allocation4 + $0x228] sm:$0xff]
    %v2208 = vld [vmem:[#allocation4 + $0x230] sm:$0xff]
    %v2209 = vld [vmem:[#allocation4 + $0x238] sm:$0xff]
    %v2210 = vld [vmem:[#allocation4 + $0x240] sm:$0xff]
    %v2211 = vld [vmem:[#allocation4 + $0x248] sm:$0xff]
    %v2212 = vld [vmem:[#allocation4 + $0x250] sm:$0xff]
    %v2213 = vld [vmem:[#allocation4 + $0x258] sm:$0xff]
    %v2214 = vld [vmem:[#allocation4 + $0x260] sm:$0xff]
    %v2215 = vld [vmem:[#allocation4 + $0x268] sm:$0xff]
    %v2216 = vld [vmem:[#allocation4 + $0x270] sm:$0xff]
    %v2217 = vld [vmem:[#allocation4 + $0x278] sm:$0xff]
    %v2218 = vld [vmem:[#allocation4 + $0x280] sm:$0xff]
    %v2219 = vld [vmem:[#allocation4 + $0x288] sm:$0xff]
    %v2220 = vld [vmem:[#allocation4 + $0x290] sm:$0xff]
    %v2221 = vld [vmem:[#allocation4 + $0x298] sm:$0xff]
    %v2222 = vld [vmem:[#allocation4 + $0x2a0] sm:$0xff]
    %v2223 = vld [vmem:[#allocation4 + $0x2a8] sm:$0xff]
    %v2224 = vld [vmem:[#allocation4 + $0x2b0] sm:$0xff]
    %v2225 = vld [vmem:[#allocation4 + $0x2b8] sm:$0xff]
    %v2226 = vld [vmem:[#allocation4 + $0x2c0] sm:$0xff]
    %v2227 = vld [vmem:[#allocation4 + $0x2c8] sm:$0xff]
    %v2228 = vld [vmem:[#allocation4 + $0x2d0] sm:$0xff]
    %v2229 = vld [vmem:[#allocation4 + $0x2d8] sm:$0xff]
    %v2230 = vld [vmem:[#allocation4 + $0x2e0] sm:$0xff]
    %v2231 = vld [vmem:[#allocation4 + $0x2e8] sm:$0xff]
    %v2232 = vld [vmem:[#allocation4 + $0x2f0] sm:$0xff]
    %v2233 = vld [vmem:[#allocation4 + $0x2f8] sm:$0xff]
    %v2234 = vld [vmem:[#allocation4 + $0x300] sm:$0xff]
    %v2235 = vld [vmem:[#allocation4 + $0x308] sm:$0xff]
    %v2236 = vld [vmem:[#allocation4 + $0x310] sm:$0xff]
    %v2237 = vld [vmem:[#allocation4 + $0x318] sm:$0xff]
    %v2238 = vld [vmem:[#allocation4 + $0x320] sm:$0xff]
    %v2239 = vld [vmem:[#allocation4 + $0x328] sm:$0xff]
    %v2240 = vld [vmem:[#allocation4 + $0x330] sm:$0xff]
    %v2241 = vld [vmem:[#allocation4 + $0x338] sm:$0xff]
    %v2242 = vld [vmem:[#allocation4 + $0x340] sm:$0xff]
    %v2243 = vld [vmem:[#allocation4 + $0x348] sm:$0xff]
    %v2244 = vld [vmem:[#allocation4 + $0x350] sm:$0xff]
    %v2245 = vld [vmem:[#allocation4 + $0x358] sm:$0xff]
    %v2246 = vld [vmem:[#allocation4 + $0x360] sm:$0xff]
    %v2247 = vld [vmem:[#allocation4 + $0x368] sm:$0xff]
    %v2248 = vld [vmem:[#allocation4 + $0x370] sm:$0xff]
    %v2249 = vld [vmem:[#allocation4 + $0x378] sm:$0xff]
    %v2250 = vld [vmem:[#allocation4 + $0x380] sm:$0xff]
    %v2251 = vld [vmem:[#allocation4 + $0x388] sm:$0xff]
    %v2252 = vld [vmem:[#allocation4 + $0x390] sm:$0xff]
    %v2253 = vld [vmem:[#allocation4 + $0x398] sm:$0xff]
    %v2254 = vld [vmem:[#allocation4 + $0x3a0] sm:$0xff]
    %v2255 = vld [vmem:[#allocation4 + $0x3a8] sm:$0xff]
    %v2256 = vld [vmem:[#allocation4 + $0x3b0] sm:$0xff]
    %v2257 = vld [vmem:[#allocation4 + $0x3b8] sm:$0xff]
    %v2258 = vld [vmem:[#allocation4 + $0x3c0] sm:$0xff]
    %v2259 = vld [vmem:[#allocation4 + $0x3c8] sm:$0xff]
    %v2260 = vld [vmem:[#allocation4 + $0x3d0] sm:$0xff]
    %v2261 = vld [vmem:[#allocation4 + $0x3d8] sm:$0xff]
    %v2262 = vld [vmem:[#allocation4 + $0x3e0] sm:$0xff]
    %v2263 = vld [vmem:[#allocation4 + $0x3e8] sm:$0xff]
    %v2264 = vld [vmem:[#allocation4 + $0x3f0] sm:$0xff]
    %v2265 = vld [vmem:[#allocation4 + $0x3f8] sm:$0xff]
    %2266 = vmatprep.subr.bf16.mxu0 %v2139
    %2267 = vmatpush1.bf16.msra.mxu0 %v2138
    %2268 = vmatprep.subr.bf16.mxu0 %v2147
    %2269 = vmatpush1.bf16.msra.mxu0 %v2146
    %2270 = vmatprep.subr.bf16.mxu0 %v2155
    %2271 = vmatpush1.bf16.msra.mxu0 %v2154
    %2272 = vmatprep.subr.bf16.mxu0 %v2163
    %2273 = vmatpush1.bf16.msra.mxu0 %v2162
    %2274 = vmatprep.subr.bf16.mxu0 %v2171
    %2275 = vmatpush1.bf16.msra.mxu0 %v2170
    %2276 = vmatprep.subr.bf16.mxu0 %v2179
    %2277 = vmatpush1.bf16.msra.mxu0 %v2178
    %2278 = vmatprep.subr.bf16.mxu0 %v2187
    %2279 = vmatpush1.bf16.msra.mxu0 %v2186
    %2280 = vmatprep.subr.bf16.mxu0 %v2195
    %2281 = vmatpush1.bf16.msra.mxu0 %v2194
    %2282 = vmatprep.subr.bf16.mxu0 %v2203
    %2283 = vmatpush1.bf16.msra.mxu0 %v2202
    %2284 = vmatprep.subr.bf16.mxu0 %v2211
    %2285 = vmatpush1.bf16.msra.mxu0 %v2210
    %2286 = vmatprep.subr.bf16.mxu0 %v2219
    %2287 = vmatpush1.bf16.msra.mxu0 %v2218
    %2288 = vmatprep.subr.bf16.mxu0 %v2227
    %2289 = vmatpush1.bf16.msra.mxu0 %v2226
    %2290 = vmatprep.subr.bf16.mxu0 %v2235
    %2291 = vmatpush1.bf16.msra.mxu0 %v2234
    %2292 = vmatprep.subr.bf16.mxu0 %v2243
    %2293 = vmatpush1.bf16.msra.mxu0 %v2242
    %2294 = vmatprep.subr.bf16.mxu0 %v2251
    %2295 = vmatpush1.bf16.msra.mxu0 %v2250
    %2296 = vmatprep.subr.bf16.mxu0 %v2259
    %2297 = vmatpush1.bf16.msra.mxu0 %v2258
    %2298 = vmatprep.mubr.bf16.mxu0 %v2137
    %2299 = vmatmul.mubr.bf16.gmra.mrb[0].mxu0 %v2136
    %v2300 = vpop.f32.mrb[0].mxu0
    %v2301 = vadd.f32 0.0, %v2300
    %v2302 = vpop.f32.mrb[0].mxu0
    %v2303 = vadd.f32 0.0, %v2302
    %v2304 = vpop.f32.mrb[0].mxu0
    %v2305 = vpop.f32.mrb[0].mxu0
    %2306 = vdwg.mxu0
    %2307 = vmatprep.subr.bf16.mxu0 %v2141
    %2308 = vmatpush1.bf16.msra.mxu0 %v2140
    %2309 = vmatprep.subr.bf16.mxu0 %v2149
    %2310 = vmatpush1.bf16.msra.mxu0 %v2148
    %2311 = vmatprep.subr.bf16.mxu0 %v2157
    %2312 = vmatpush1.bf16.msra.mxu0 %v2156
    %2313 = vmatprep.subr.bf16.mxu0 %v2165
    %2314 = vmatpush1.bf16.msra.mxu0 %v2164
    %2315 = vmatprep.subr.bf16.mxu0 %v2173
    %2316 = vmatpush1.bf16.msra.mxu0 %v2172
    %2317 = vmatprep.subr.bf16.mxu0 %v2181
    %2318 = vmatpush1.bf16.msra.mxu0 %v2180
    %2319 = vmatprep.subr.bf16.mxu0 %v2189
    %2320 = vmatpush1.bf16.msra.mxu0 %v2188
    %2321 = vmatprep.subr.bf16.mxu0 %v2197
    %2322 = vmatpush1.bf16.msra.mxu0 %v2196
    %2323 = vmatprep.subr.bf16.mxu0 %v2205
    %2324 = vmatpush1.bf16.msra.mxu0 %v2204
    %2325 = vmatprep.subr.bf16.mxu0 %v2213
    %2326 = vmatpush1.bf16.msra.mxu0 %v2212
    %2327 = vmatprep.subr.bf16.mxu0 %v2221
    %2328 = vmatpush1.bf16.msra.mxu0 %v2220
    %2329 = vmatprep.subr.bf16.mxu0 %v2229
    %2330 = vmatpush1.bf16.msra.mxu0 %v2228
    %2331 = vmatprep.subr.bf16.mxu0 %v2237
    %2332 = vmatpush1.bf16.msra.mxu0 %v2236
    %2333 = vmatprep.subr.bf16.mxu0 %v2245
    %2334 = vmatpush1.bf16.msra.mxu0 %v2244
    %2335 = vmatprep.subr.bf16.mxu0 %v2253
    %2336 = vmatpush1.bf16.msra.mxu0 %v2252
    %2337 = vmatprep.subr.bf16.mxu0 %v2261
    %2338 = vmatpush1.bf16.msra.mxu0 %v2260
    %2339 = vmatprep.mubr.bf16.mxu0 %v2137
    %2340 = vmatmul.mubr.bf16.gmra.mrb[0].mxu0 %v2136
    %v2341 = vpop.f32.mrb[0].mxu0
    %v2342 = vadd.f32 0.0, %v2341
    %v2343 = vpop.f32.mrb[0].mxu0
    %v2344 = vadd.f32 0.0, %v2343
    %v2345 = vpop.f32.mrb[0].mxu0
    %v2346 = vpop.f32.mrb[0].mxu0
    %2347 = vdwg.mxu0
    %2348 = vmatprep.subr.bf16.mxu0 %v2143
    %2349 = vmatpush1.bf16.msra.mxu0 %v2142
    %2350 = vmatprep.subr.bf16.mxu0 %v2151
    %2351 = vmatpush1.bf16.msra.mxu0 %v2150
    %2352 = vmatprep.subr.bf16.mxu0 %v2159
    %2353 = vmatpush1.bf16.msra.mxu0 %v2158
    %2354 = vmatprep.subr.bf16.mxu0 %v2167
    %2355 = vmatpush1.bf16.msra.mxu0 %v2166
    %2356 = vmatprep.subr.bf16.mxu0 %v2175
    %2357 = vmatpush1.bf16.msra.mxu0 %v2174
    %2358 = vmatprep.subr.bf16.mxu0 %v2183
    %2359 = vmatpush1.bf16.msra.mxu0 %v2182
    %2360 = vmatprep.subr.bf16.mxu0 %v2191
    %2361 = vmatpush1.bf16.msra.mxu0 %v2190
    %2362 = vmatprep.subr.bf16.mxu0 %v2199
    %2363 = vmatpush1.bf16.msra.mxu0 %v2198
    %2364 = vmatprep.subr.bf16.mxu0 %v2207
    %2365 = vmatpush1.bf16.msra.mxu0 %v2206
    %2366 = vmatprep.subr.bf16.mxu0 %v2215
    %2367 = vmatpush1.bf16.msra.mxu0 %v2214
    %2368 = vmatprep.subr.bf16.mxu0 %v2223
    %2369 = vmatpush1.bf16.msra.mxu0 %v2222
    %2370 = vmatprep.subr.bf16.mxu0 %v2231
    %2371 = vmatpush1.bf16.msra.mxu0 %v2230
    %2372 = vmatprep.subr.bf16.mxu0 %v2239
    %2373 = vmatpush1.bf16.msra.mxu0 %v2238
    %2374 = vmatprep.subr.bf16.mxu0 %v2247
    %2375 = vmatpush1.bf16.msra.mxu0 %v2246
    %2376 = vmatprep.subr.bf16.mxu0 %v2255
    %2377 = vmatpush1.bf16.msra.mxu0 %v2254
    %2378 = vmatprep.subr.bf16.mxu0 %v2263
    %2379 = vmatpush1.bf16.msra.mxu0 %v2262
    %2380 = vmatprep.mubr.bf16.mxu0 %v2137
    %2381 = vmatmul.mubr.bf16.gmra.mrb[0].mxu0 %v2136
    %v2382 = vpop.f32.mrb[0].mxu0
    %v2383 = vadd.f32 0.0, %v2382
    %v2384 = vpop.f32.mrb[0].mxu0
    %v2385 = vadd.f32 0.0, %v2384
    %v2386 = vpop.f32.mrb[0].mxu0
    %v2387 = vpop.f32.mrb[0].mxu0
    %2388 = vdwg.mxu0
    %2389 = vmatprep.subr.bf16.mxu0 %v2145
    %2390 = vmatpush1.bf16.msra.mxu0 %v2144
    %2391 = vmatprep.subr.bf16.mxu0 %v2153
    %2392 = vmatpush1.bf16.msra.mxu0 %v2152
    %2393 = vmatprep.subr.bf16.mxu0 %v2161
    %2394 = vmatpush1.bf16.msra.mxu0 %v2160
    %2395 = vmatprep.subr.bf16.mxu0 %v2169
    %2396 = vmatpush1.bf16.msra.mxu0 %v2168
    %2397 = vmatprep.subr.bf16.mxu0 %v2177
    %2398 = vmatpush1.bf16.msra.mxu0 %v2176
    %2399 = vmatprep.subr.bf16.mxu0 %v2185
    %2400 = vmatpush1.bf16.msra.mxu0 %v2184
    %2401 = vmatprep.subr.bf16.mxu0 %v2193
    %2402 = vmatpush1.bf16.msra.mxu0 %v2192
    %2403 = vmatprep.subr.bf16.mxu0 %v2201
    %2404 = vmatpush1.bf16.msra.mxu0 %v2200
    %2405 = vmatprep.subr.bf16.mxu0 %v2209
    %2406 = vmatpush1.bf16.msra.mxu0 %v2208
    %2407 = vmatprep.subr.bf16.mxu0 %v2217
    %2408 = vmatpush1.bf16.msra.mxu0 %v2216
    %2409 = vmatprep.subr.bf16.mxu0 %v2225
    %2410 = vmatpush1.bf16.msra.mxu0 %v2224
    %2411 = vmatprep.subr.bf16.mxu0 %v2233
    %2412 = vmatpush1.bf16.msra.mxu0 %v2232
    %2413 = vmatprep.subr.bf16.mxu0 %v2241
    %2414 = vmatpush1.bf16.msra.mxu0 %v2240
    %2415 = vmatprep.subr.bf16.mxu0 %v2249
    %2416 = vmatpush1.bf16.msra.mxu0 %v2248
    %2417 = vmatprep.subr.bf16.mxu0 %v2257
    %2418 = vmatpush1.bf16.msra.mxu0 %v2256
    %2419 = vmatprep.subr.bf16.mxu0 %v2265
    %2420 = vmatpush1.bf16.msra.mxu0 %v2264
    %2421 = vmatprep.mubr.bf16.mxu0 %v2137
    %2422 = vmatmul.mubr.bf16.gmra.mrb[0].mxu0 %v2136
    %v2423 = vpop.f32.mrb[0].mxu0
    %v2424 = vadd.f32 0.0, %v2423
    %v2425 = vpop.f32.mrb[0].mxu0
    %v2426 = vadd.f32 0.0, %v2425
    %v2427 = vpop.f32.mrb[0].mxu0
    %v2428 = vpop.f32.mrb[0].mxu0
    %2429 = vdwg.mxu0
    %2430 = vmatprep.subr.bf16.mxu0 %v2009
    %2431 = vmatpush1.bf16.msra.mxu0 %v2008
    %2432 = vmatprep.subr.bf16.mxu0 %v2017
    %2433 = vmatpush1.bf16.msra.mxu0 %v2016
    %2434 = vmatprep.subr.bf16.mxu0 %v2025
    %2435 = vmatpush1.bf16.msra.mxu0 %v2024
    %2436 = vmatprep.subr.bf16.mxu0 %v2033
    %2437 = vmatpush1.bf16.msra.mxu0 %v2032
    %2438 = vmatprep.subr.bf16.mxu0 %v2041
    %2439 = vmatpush1.bf16.msra.mxu0 %v2040
    %2440 = vmatprep.subr.bf16.mxu0 %v2049
    %2441 = vmatpush1.bf16.msra.mxu0 %v2048
    %2442 = vmatprep.subr.bf16.mxu0 %v2057
    %2443 = vmatpush1.bf16.msra.mxu0 %v2056
    %2444 = vmatprep.subr.bf16.mxu0 %v2065
    %2445 = vmatpush1.bf16.msra.mxu0 %v2064
    %2446 = vmatprep.subr.bf16.mxu0 %v2073
    %2447 = vmatpush1.bf16.msra.mxu0 %v2072
    %2448 = vmatprep.subr.bf16.mxu0 %v2081
    %2449 = vmatpush1.bf16.msra.mxu0 %v2080
    %2450 = vmatprep.subr.bf16.mxu0 %v2089
    %2451 = vmatpush1.bf16.msra.mxu0 %v2088
    %2452 = vmatprep.subr.bf16.mxu0 %v2097
    %2453 = vmatpush1.bf16.msra.mxu0 %v2096
    %2454 = vmatprep.subr.bf16.mxu0 %v2105
    %2455 = vmatpush1.bf16.msra.mxu0 %v2104
    %2456 = vmatprep.subr.bf16.mxu0 %v2113
    %2457 = vmatpush1.bf16.msra.mxu0 %v2112
    %2458 = vmatprep.subr.bf16.mxu0 %v2121
    %2459 = vmatpush1.bf16.msra.mxu0 %v2120
    %2460 = vmatprep.subr.bf16.mxu0 %v2129
    %2461 = vmatpush1.bf16.msra.mxu0 %v2128
    %2462 = vmatprep.mubr.bf16.mxu0 %v2007
    %2463 = vmatmul.mubr.bf16.gmra.mrb[0].mxu0 %v2006
    %v2464 = vpop.f32.mrb[0].mxu0
    %v2465 = vadd.f32 %v2301, %v2464
    %v2466 = vpop.f32.mrb[0].mxu0
    %v2467 = vadd.f32 %v2303, %v2466
    %v2468 = vpop.f32.mrb[0].mxu0
    %v2469 = vpop.f32.mrb[0].mxu0
    %2470 = vdwg.mxu0
    %2471 = vmatprep.subr.bf16.mxu0 %v2011
    %2472 = vmatpush1.bf16.msra.mxu0 %v2010
    %2473 = vmatprep.subr.bf16.mxu0 %v2019
    %2474 = vmatpush1.bf16.msra.mxu0 %v2018
    %2475 = vmatprep.subr.bf16.mxu0 %v2027
    %2476 = vmatpush1.bf16.msra.mxu0 %v2026
    %2477 = vmatprep.subr.bf16.mxu0 %v2035
    %2478 = vmatpush1.bf16.msra.mxu0 %v2034
    %2479 = vmatprep.subr.bf16.mxu0 %v2043
    %2480 = vmatpush1.bf16.msra.mxu0 %v2042
    %2481 = vmatprep.subr.bf16.mxu0 %v2051
    %2482 = vmatpush1.bf16.msra.mxu0 %v2050
    %2483 = vmatprep.subr.bf16.mxu0 %v2059
    %2484 = vmatpush1.bf16.msra.mxu0 %v2058
    %2485 = vmatprep.subr.bf16.mxu0 %v2067
    %2486 = vmatpush1.bf16.msra.mxu0 %v2066
    %2487 = vmatprep.subr.bf16.mxu0 %v2075
    %2488 = vmatpush1.bf16.msra.mxu0 %v2074
    %2489 = vmatprep.subr.bf16.mxu0 %v2083
    %2490 = vmatpush1.bf16.msra.mxu0 %v2082
    %2491 = vmatprep.subr.bf16.mxu0 %v2091
    %2492 = vmatpush1.bf16.msra.mxu0 %v2090
    %2493 = vmatprep.subr.bf16.mxu0 %v2099
    %2494 = vmatpush1.bf16.msra.mxu0 %v2098
    %2495 = vmatprep.subr.bf16.mxu0 %v2107
    %2496 = vmatpush1.bf16.msra.mxu0 %v2106
    %2497 = vmatprep.subr.bf16.mxu0 %v2115
    %2498 = vmatpush1.bf16.msra.mxu0 %v2114
    %2499 = vmatprep.subr.bf16.mxu0 %v2123
    %2500 = vmatpush1.bf16.msra.mxu0 %v2122
    %2501 = vmatprep.subr.bf16.mxu0 %v2131
    %2502 = vmatpush1.bf16.msra.mxu0 %v2130
    %2503 = vmatprep.mubr.bf16.mxu0 %v2007
    %2504 = vmatmul.mubr.bf16.gmra.mrb[0].mxu0 %v2006
    %v2505 = vpop.f32.mrb[0].mxu0
    %v2506 = vadd.f32 %v2342, %v2505
    %v2507 = vpop.f32.mrb[0].mxu0
    %v2508 = vadd.f32 %v2344, %v2507
    %v2509 = vpop.f32.mrb[0].mxu0
    %v2510 = vpop.f32.mrb[0].mxu0
    %2511 = vdwg.mxu0
    %2512 = vmatprep.subr.bf16.mxu0 %v2013
    %2513 = vmatpush1.bf16.msra.mxu0 %v2012
    %2514 = vmatprep.subr.bf16.mxu0 %v2021
    %2515 = vmatpush1.bf16.msra.mxu0 %v2020
    %2516 = vmatprep.subr.bf16.mxu0 %v2029
    %2517 = vmatpush1.bf16.msra.mxu0 %v2028
    %2518 = vmatprep.subr.bf16.mxu0 %v2037
    %2519 = vmatpush1.bf16.msra.mxu0 %v2036
    %2520 = vmatprep.subr.bf16.mxu0 %v2045
    %2521 = vmatpush1.bf16.msra.mxu0 %v2044
    %2522 = vmatprep.subr.bf16.mxu0 %v2053
    %2523 = vmatpush1.bf16.msra.mxu0 %v2052
    %2524 = vmatprep.subr.bf16.mxu0 %v2061
    %2525 = vmatpush1.bf16.msra.mxu0 %v2060
    %2526 = vmatprep.subr.bf16.mxu0 %v2069
    %2527 = vmatpush1.bf16.msra.mxu0 %v2068
    %2528 = vmatprep.subr.bf16.mxu0 %v2077
    %2529 = vmatpush1.bf16.msra.mxu0 %v2076
    %2530 = vmatprep.subr.bf16.mxu0 %v2085
    %2531 = vmatpush1.bf16.msra.mxu0 %v2084
    %2532 = vmatprep.subr.bf16.mxu0 %v2093
    %2533 = vmatpush1.bf16.msra.mxu0 %v2092
    %2534 = vmatprep.subr.bf16.mxu0 %v2101
    %2535 = vmatpush1.bf16.msra.mxu0 %v2100
    %2536 = vmatprep.subr.bf16.mxu0 %v2109
    %2537 = vmatpush1.bf16.msra.mxu0 %v2108
    %2538 = vmatprep.subr.bf16.mxu0 %v2117
    %2539 = vmatpush1.bf16.msra.mxu0 %v2116
    %2540 = vmatprep.subr.bf16.mxu0 %v2125
    %2541 = vmatpush1.bf16.msra.mxu0 %v2124
    %2542 = vmatprep.subr.bf16.mxu0 %v2133
    %2543 = vmatpush1.bf16.msra.mxu0 %v2132
    %2544 = vmatprep.mubr.bf16.mxu0 %v2007
    %2545 = vmatmul.mubr.bf16.gmra.mrb[0].mxu0 %v2006
    %v2546 = vpop.f32.mrb[0].mxu0
    %v2547 = vadd.f32 %v2383, %v2546
    %v2548 = vpop.f32.mrb[0].mxu0
    %v2549 = vadd.f32 %v2385, %v2548
    %v2550 = vpop.f32.mrb[0].mxu0
    %v2551 = vpop.f32.mrb[0].mxu0
    %2552 = vdwg.mxu0
    %2553 = vmatprep.subr.bf16.mxu0 %v2015
    %2554 = vmatpush1.bf16.msra.mxu0 %v2014
    %2555 = vmatprep.subr.bf16.mxu0 %v2023
    %2556 = vmatpush1.bf16.msra.mxu0 %v2022
    %2557 = vmatprep.subr.bf16.mxu0 %v2031
    %2558 = vmatpush1.bf16.msra.mxu0 %v2030
    %2559 = vmatprep.subr.bf16.mxu0 %v2039
    %2560 = vmatpush1.bf16.msra.mxu0 %v2038
    %2561 = vmatprep.subr.bf16.mxu0 %v2047
    %2562 = vmatpush1.bf16.msra.mxu0 %v2046
    %2563 = vmatprep.subr.bf16.mxu0 %v2055
    %2564 = vmatpush1.bf16.msra.mxu0 %v2054
    %2565 = vmatprep.subr.bf16.mxu0 %v2063
    %2566 = vmatpush1.bf16.msra.mxu0 %v2062
    %2567 = vmatprep.subr.bf16.mxu0 %v2071
    %2568 = vmatpush1.bf16.msra.mxu0 %v2070
    %2569 = vmatprep.subr.bf16.mxu0 %v2079
    %2570 = vmatpush1.bf16.msra.mxu0 %v2078
    %2571 = vmatprep.subr.bf16.mxu0 %v2087
    %2572 = vmatpush1.bf16.msra.mxu0 %v2086
    %2573 = vmatprep.subr.bf16.mxu0 %v2095
    %2574 = vmatpush1.bf16.msra.mxu0 %v2094
    %2575 = vmatprep.subr.bf16.mxu0 %v2103
    %2576 = vmatpush1.bf16.msra.mxu0 %v2102
    %2577 = vmatprep.subr.bf16.mxu0 %v2111
    %2578 = vmatpush1.bf16.msra.mxu0 %v2110
    %2579 = vmatprep.subr.bf16.mxu0 %v2119
    %2580 = vmatpush1.bf16.msra.mxu0 %v2118
    %2581 = vmatprep.subr.bf16.mxu0 %v2127
    %2582 = vmatpush1.bf16.msra.mxu0 %v2126
    %2583 = vmatprep.subr.bf16.mxu0 %v2135
    %2584 = vmatpush1.bf16.msra.mxu0 %v2134
    %2585 = vmatprep.mubr.bf16.mxu0 %v2007
    %2586 = vmatmul.mubr.bf16.gmra.mrb[0].mxu0 %v2006
    %v2587 = vpop.f32.mrb[0].mxu0
    %v2588 = vadd.f32 %v2424, %v2587
    %v2589 = vpop.f32.mrb[0].mxu0
    %v2590 = vadd.f32 %v2426, %v2589
    %v2591 = vpop.f32.mrb[0].mxu0
    %v2592 = vpop.f32.mrb[0].mxu0
    %2593 = vdwg.mxu0
    %v2594 = vadd.f32 %v2465, %v961
    %v2595 = vadd.f32 %v2467, %v965
    %v2596 = vadd.f32 %v2506, %v969
    %v2597 = vadd.f32 %v2508, %v973
    %v2598 = vadd.f32 %v2547, %v977
    %v2599 = vadd.f32 %v2549, %v981
    %v2600 = vadd.f32 %v2588, %v985
    %v2601 = vadd.f32 %v2590, %v989
    %v2602 = vxor.u32 %v2594, 2147483648
    %v2603 = vxor.u32 %v2595, 2147483648
    %v2604 = vmul.f32 %v2602, 1.442695
    %v2605 = vpow.pop %v2604
    %v2606 = vmul.f32 %v2603, 1.442695
    %v2607 = vpow.pop %v2606
    %v2608 = vadd.f32 %v2605, 1.0
    %v2609 = vadd.f32 %v2607, 1.0
    %v2610 = vrcp.pop %v2608
    %v2611 = vmul.f32 1.0, %v2610
    %v2612 = vrcp.pop %v2609
    %v2613 = vmul.f32 1.0, %v2612
    %v2614 = vxor.u32 %v2596, 2147483648
    %v2615 = vxor.u32 %v2597, 2147483648
    %v2616 = vmul.f32 %v2614, 1.442695
    %v2617 = vpow.pop %v2616
    %v2618 = vmul.f32 %v2615, 1.442695
    %v2619 = vpow.pop %v2618
    %v2620 = vadd.f32 %v2617, 1.0
    %v2621 = vadd.f32 %v2619, 1.0
    %v2622 = vrcp.pop %v2620
    %v2623 = vmul.f32 1.0, %v2622
    %v2624 = vrcp.pop %v2621
    %v2625 = vmul.f32 1.0, %v2624
    %v2626 = vtanh.pop %v2598
    %v2627 = vtanh.pop %v2599
    %v2628 = vxor.u32 %v2600, 2147483648
    %v2629 = vxor.u32 %v2601, 2147483648
    %v2630 = vmul.f32 %v2628, 1.442695
    %v2631 = vpow.pop %v2630
    %v2632 = vmul.f32 %v2629, 1.442695
    %v2633 = vpow.pop %v2632
    %v2634 = vadd.f32 %v2631, 1.0
    %v2635 = vadd.f32 %v2633, 1.0
    %v2636 = vrcp.pop %v2634
    %v2637 = vmul.f32 1.0, %v2636
    %v2638 = vrcp.pop %v2635
    %v2639 = vmul.f32 1.0, %v2638
    %v2640 = vmul.f32 %v2623, %v1006
    %v2641 = vmul.f32 %v2625, %v1007
    %v2642 = vmul.f32 %v2611, %v2626
    %v2643 = vmul.f32 %v2613, %v2627
    %v2644 = vadd.f32 %v2640, %v2642
    %v2645 = vadd.f32 %v2641, %v2643
    %v2646 = vtanh.pop %v2644
    %v2647 = vtanh.pop %v2645
    %v2648 = vmul.f32 %v2637, %v2646
    %v2649 = vmul.f32 %v2639, %v2647
    %v2650 = vld [vmem:[#allocation2 + $0x40] sm:$0xff]
    %v2651 = vld [vmem:[#allocation2 + $0x48] sm:$0xff]
    %v2652 = vld [vmem:[#allocation2 + $0x50] sm:$0xff]
    %v2653 = vld [vmem:[#allocation2 + $0x58] sm:$0xff]
    %v2654 = vld [vmem:[#allocation2 + $0x60] sm:$0xff]
    %v2655 = vld [vmem:[#allocation2 + $0x68] sm:$0xff]
    %v2656 = vld [vmem:[#allocation2 + $0x70] sm:$0xff]
    %v2657 = vld [vmem:[#allocation2 + $0x78] sm:$0xff]
    %2658 = vmatprep.subr.bf16.mxu0 %v1531
    %2659 = vmatpush1.bf16.msra.mxu0 %v1530
    %2660 = vmatprep.subr.bf16.mxu0 %v1539
    %2661 = vmatpush1.bf16.msra.mxu0 %v1538
    %2662 = vmatprep.subr.bf16.mxu0 %v1547
    %2663 = vmatpush1.bf16.msra.mxu0 %v1546
    %2664 = vmatprep.subr.bf16.mxu0 %v1555
    %2665 = vmatpush1.bf16.msra.mxu0 %v1554
    %2666 = vmatprep.subr.bf16.mxu0 %v1563
    %2667 = vmatpush1.bf16.msra.mxu0 %v1562
    %2668 = vmatprep.subr.bf16.mxu0 %v1571
    %2669 = vmatpush1.bf16.msra.mxu0 %v1570
    %2670 = vmatprep.subr.bf16.mxu0 %v1579
    %2671 = vmatpush1.bf16.msra.mxu0 %v1578
    %2672 = vmatprep.subr.bf16.mxu0 %v1587
    %2673 = vmatpush1.bf16.msra.mxu0 %v1586
    %2674 = vmatprep.subr.bf16.mxu0 %v1595
    %2675 = vmatpush1.bf16.msra.mxu0 %v1594
    %2676 = vmatprep.subr.bf16.mxu0 %v1603
    %2677 = vmatpush1.bf16.msra.mxu0 %v1602
    %2678 = vmatprep.subr.bf16.mxu0 %v1611
    %2679 = vmatpush1.bf16.msra.mxu0 %v1610
    %2680 = vmatprep.subr.bf16.mxu0 %v1619
    %2681 = vmatpush1.bf16.msra.mxu0 %v1618
    %2682 = vmatprep.subr.bf16.mxu0 %v1627
    %2683 = vmatpush1.bf16.msra.mxu0 %v1626
    %2684 = vmatprep.subr.bf16.mxu0 %v1635
    %2685 = vmatpush1.bf16.msra.mxu0 %v1634
    %2686 = vmatprep.subr.bf16.mxu0 %v1643
    %2687 = vmatpush1.bf16.msra.mxu0 %v1642
    %2688 = vmatprep.subr.bf16.mxu0 %v1651
    %2689 = vmatpush1.bf16.msra.mxu0 %v1650
    %2690 = vmatprep.mubr.bf16.mxu0 %v2007
    %2691 = vmatmul.mubr.bf16.gmra.mrb[0].mxu0 %v2006
    %v2692 = vpop.f32.mrb[0].mxu0
    %v2693 = vadd.f32 0.0, %v2692
    %v2694 = vpop.f32.mrb[0].mxu0
    %v2695 = vadd.f32 0.0, %v2694
    %v2696 = vpop.f32.mrb[0].mxu0
    %v2697 = vpop.f32.mrb[0].mxu0
    %2698 = vdwg.mxu0
    %2699 = vmatprep.subr.bf16.mxu0 %v1533
    %2700 = vmatpush1.bf16.msra.mxu0 %v1532
    %2701 = vmatprep.subr.bf16.mxu0 %v1541
    %2702 = vmatpush1.bf16.msra.mxu0 %v1540
    %2703 = vmatprep.subr.bf16.mxu0 %v1549
    %2704 = vmatpush1.bf16.msra.mxu0 %v1548
    %2705 = vmatprep.subr.bf16.mxu0 %v1557
    %2706 = vmatpush1.bf16.msra.mxu0 %v1556
    %2707 = vmatprep.subr.bf16.mxu0 %v1565
    %2708 = vmatpush1.bf16.msra.mxu0 %v1564
    %2709 = vmatprep.subr.bf16.mxu0 %v1573
    %2710 = vmatpush1.bf16.msra.mxu0 %v1572
    %2711 = vmatprep.subr.bf16.mxu0 %v1581
    %2712 = vmatpush1.bf16.msra.mxu0 %v1580
    %2713 = vmatprep.subr.bf16.mxu0 %v1589
    %2714 = vmatpush1.bf16.msra.mxu0 %v1588
    %2715 = vmatprep.subr.bf16.mxu0 %v1597
    %2716 = vmatpush1.bf16.msra.mxu0 %v1596
    %2717 = vmatprep.subr.bf16.mxu0 %v1605
    %2718 = vmatpush1.bf16.msra.mxu0 %v1604
    %2719 = vmatprep.subr.bf16.mxu0 %v1613
    %2720 = vmatpush1.bf16.msra.mxu0 %v1612
    %2721 = vmatprep.subr.bf16.mxu0 %v1621
    %2722 = vmatpush1.bf16.msra.mxu0 %v1620
    %2723 = vmatprep.subr.bf16.mxu0 %v1629
    %2724 = vmatpush1.bf16.msra.mxu0 %v1628
    %2725 = vmatprep.subr.bf16.mxu0 %v1637
    %2726 = vmatpush1.bf16.msra.mxu0 %v1636
    %2727 = vmatprep.subr.bf16.mxu0 %v1645
    %2728 = vmatpush1.bf16.msra.mxu0 %v1644
    %2729 = vmatprep.subr.bf16.mxu0 %v1653
    %2730 = vmatpush1.bf16.msra.mxu0 %v1652
    %2731 = vmatprep.mubr.bf16.mxu0 %v2007
    %2732 = vmatmul.mubr.bf16.gmra.mrb[0].mxu0 %v2006
    %v2733 = vpop.f32.mrb[0].mxu0
    %v2734 = vadd.f32 0.0, %v2733
    %v2735 = vpop.f32.mrb[0].mxu0
    %v2736 = vadd.f32 0.0, %v2735
    %v2737 = vpop.f32.mrb[0].mxu0
    %v2738 = vpop.f32.mrb[0].mxu0
    %2739 = vdwg.mxu0
    %2740 = vmatprep.subr.bf16.mxu0 %v1535
    %2741 = vmatpush1.bf16.msra.mxu0 %v1534
    %2742 = vmatprep.subr.bf16.mxu0 %v1543
    %2743 = vmatpush1.bf16.msra.mxu0 %v1542
    %2744 = vmatprep.subr.bf16.mxu0 %v1551
    %2745 = vmatpush1.bf16.msra.mxu0 %v1550
    %2746 = vmatprep.subr.bf16.mxu0 %v1559
    %2747 = vmatpush1.bf16.msra.mxu0 %v1558
    %2748 = vmatprep.subr.bf16.mxu0 %v1567
    %2749 = vmatpush1.bf16.msra.mxu0 %v1566
    %2750 = vmatprep.subr.bf16.mxu0 %v1575
    %2751 = vmatpush1.bf16.msra.mxu0 %v1574
    %2752 = vmatprep.subr.bf16.mxu0 %v1583
    %2753 = vmatpush1.bf16.msra.mxu0 %v1582
    %2754 = vmatprep.subr.bf16.mxu0 %v1591
    %2755 = vmatpush1.bf16.msra.mxu0 %v1590
    %2756 = vmatprep.subr.bf16.mxu0 %v1599
    %2757 = vmatpush1.bf16.msra.mxu0 %v1598
    %2758 = vmatprep.subr.bf16.mxu0 %v1607
    %2759 = vmatpush1.bf16.msra.mxu0 %v1606
    %2760 = vmatprep.subr.bf16.mxu0 %v1615
    %2761 = vmatpush1.bf16.msra.mxu0 %v1614
    %2762 = vmatprep.subr.bf16.mxu0 %v1623
    %2763 = vmatpush1.bf16.msra.mxu0 %v1622
    %2764 = vmatprep.subr.bf16.mxu0 %v1631
    %2765 = vmatpush1.bf16.msra.mxu0 %v1630
    %2766 = vmatprep.subr.bf16.mxu0 %v1639
    %2767 = vmatpush1.bf16.msra.mxu0 %v1638
    %2768 = vmatprep.subr.bf16.mxu0 %v1647
    %2769 = vmatpush1.bf16.msra.mxu0 %v1646
    %2770 = vmatprep.subr.bf16.mxu0 %v1655
    %2771 = vmatpush1.bf16.msra.mxu0 %v1654
    %2772 = vmatprep.mubr.bf16.mxu0 %v2007
    %2773 = vmatmul.mubr.bf16.gmra.mrb[0].mxu0 %v2006
    %v2774 = vpop.f32.mrb[0].mxu0
    %v2775 = vadd.f32 0.0, %v2774
    %v2776 = vpop.f32.mrb[0].mxu0
    %v2777 = vadd.f32 0.0, %v2776
    %v2778 = vpop.f32.mrb[0].mxu0
    %v2779 = vpop.f32.mrb[0].mxu0
    %2780 = vdwg.mxu0
    %2781 = vmatprep.subr.bf16.mxu0 %v1537
    %2782 = vmatpush1.bf16.msra.mxu0 %v1536
    %2783 = vmatprep.subr.bf16.mxu0 %v1545
    %2784 = vmatpush1.bf16.msra.mxu0 %v1544
    %2785 = vmatprep.subr.bf16.mxu0 %v1553
    %2786 = vmatpush1.bf16.msra.mxu0 %v1552
    %2787 = vmatprep.subr.bf16.mxu0 %v1561
    %2788 = vmatpush1.bf16.msra.mxu0 %v1560
    %2789 = vmatprep.subr.bf16.mxu0 %v1569
    %2790 = vmatpush1.bf16.msra.mxu0 %v1568
    %2791 = vmatprep.subr.bf16.mxu0 %v1577
    %2792 = vmatpush1.bf16.msra.mxu0 %v1576
    %2793 = vmatprep.subr.bf16.mxu0 %v1585
    %2794 = vmatpush1.bf16.msra.mxu0 %v1584
    %2795 = vmatprep.subr.bf16.mxu0 %v1593
    %2796 = vmatpush1.bf16.msra.mxu0 %v1592
    %2797 = vmatprep.subr.bf16.mxu0 %v1601
    %2798 = vmatpush1.bf16.msra.mxu0 %v1600
    %2799 = vmatprep.subr.bf16.mxu0 %v1609
    %2800 = vmatpush1.bf16.msra.mxu0 %v1608
    %2801 = vmatprep.subr.bf16.mxu0 %v1617
    %2802 = vmatpush1.bf16.msra.mxu0 %v1616
    %2803 = vmatprep.subr.bf16.mxu0 %v1625
    %2804 = vmatpush1.bf16.msra.mxu0 %v1624
    %2805 = vmatprep.subr.bf16.mxu0 %v1633
    %2806 = vmatpush1.bf16.msra.mxu0 %v1632
    %2807 = vmatprep.subr.bf16.mxu0 %v1641
    %2808 = vmatpush1.bf16.msra.mxu0 %v1640
    %2809 = vmatprep.subr.bf16.mxu0 %v1649
    %2810 = vmatpush1.bf16.msra.mxu0 %v1648
    %2811 = vmatprep.subr.bf16.mxu0 %v1657
    %2812 = vmatpush1.bf16.msra.mxu0 %v1656
    %2813 = vmatprep.mubr.bf16.mxu0 %v2007
    %2814 = vmatmul.mubr.bf16.gmra.mrb[0].mxu0 %v2006
    %v2815 = vpop.f32.mrb[0].mxu0
    %v2816 = vadd.f32 0.0, %v2815
    %v2817 = vpop.f32.mrb[0].mxu0
    %v2818 = vadd.f32 0.0, %v2817
    %v2819 = vpop.f32.mrb[0].mxu0
    %v2820 = vpop.f32.mrb[0].mxu0
    %2821 = vdwg.mxu0
    %v2822 = vadd.f32 %v2650, %v2693
    %v2823 = vadd.f32 %v2651, %v2695
    %v2824 = vadd.f32 %v2652, %v2734
    %v2825 = vadd.f32 %v2653, %v2736
    %v2826 = vadd.f32 %v2654, %v2775
    %v2827 = vadd.f32 %v2655, %v2777
    %v2828 = vadd.f32 %v2656, %v2816
    %v2829 = vadd.f32 %v2657, %v2818
    %v2830 = vxor.u32 %v2822, 2147483648
    %v2831 = vxor.u32 %v2823, 2147483648
    %v2832 = vmul.f32 %v2830, 1.442695
    %v2833 = vpow.pop %v2832
    %v2834 = vmul.f32 %v2831, 1.442695
    %v2835 = vpow.pop %v2834
    %v2836 = vadd.f32 %v2833, 1.0
    %v2837 = vadd.f32 %v2835, 1.0
    %v2838 = vrcp.pop %v2836
    %v2839 = vmul.f32 1.0, %v2838
    %v2840 = vrcp.pop %v2837
    %v2841 = vmul.f32 1.0, %v2840
    %v2842 = vxor.u32 %v2824, 2147483648
    %v2843 = vxor.u32 %v2825, 2147483648
    %v2844 = vmul.f32 %v2842, 1.442695
    %v2845 = vpow.pop %v2844
    %v2846 = vmul.f32 %v2843, 1.442695
    %v2847 = vpow.pop %v2846
    %v2848 = vadd.f32 %v2845, 1.0
    %v2849 = vadd.f32 %v2847, 1.0
    %v2850 = vrcp.pop %v2848
    %v2851 = vmul.f32 1.0, %v2850
    %v2852 = vrcp.pop %v2849
    %v2853 = vmul.f32 1.0, %v2852
    %v2854 = vtanh.pop %v2826
    %v2855 = vtanh.pop %v2827
    %v2856 = vxor.u32 %v2828, 2147483648
    %v2857 = vxor.u32 %v2829, 2147483648
    %v2858 = vmul.f32 %v2856, 1.442695
    %v2859 = vpow.pop %v2858
    %v2860 = vmul.f32 %v2857, 1.442695
    %v2861 = vpow.pop %v2860
    %v2862 = vadd.f32 %v2859, 1.0
    %v2863 = vadd.f32 %v2861, 1.0
    %v2864 = vrcp.pop %v2862
    %v2865 = vmul.f32 1.0, %v2864
    %v2866 = vrcp.pop %v2863
    %v2867 = vmul.f32 1.0, %v2866
    %v2868 = vmul.f32 %v2851, %v2000
    %v2869 = vmul.f32 %v2853, %v2001
    %v2870 = vmul.f32 %v2839, %v2854
    %v2871 = vmul.f32 %v2841, %v2855
    %v2872 = vadd.f32 %v2868, %v2870
    %v2873 = vadd.f32 %v2869, %v2871
    %v2874 = vtanh.pop %v2872
    %v2875 = vtanh.pop %v2873
    %v2876 = vmul.f32 %v2865, %v2874
    %v2877 = vmul.f32 %v2867, %v2875
    %v2878 = vpack.c.bf16 %v2876, %v2876
    %v2879 = vpack.c.bf16 %v2877, %v2877
    %v2880 = vpack.c.bf16 %v2648, %v2648
    %v2881 = vpack.c.bf16 %v2649, %v2649
    %2882 = vmatprep.subr.bf16.mxu0 %v2139
    %2883 = vmatpush1.bf16.msra.mxu0 %v2138
    %2884 = vmatprep.subr.bf16.mxu0 %v2147
    %2885 = vmatpush1.bf16.msra.mxu0 %v2146
    %2886 = vmatprep.subr.bf16.mxu0 %v2155
    %2887 = vmatpush1.bf16.msra.mxu0 %v2154
    %2888 = vmatprep.subr.bf16.mxu0 %v2163
    %2889 = vmatpush1.bf16.msra.mxu0 %v2162
    %2890 = vmatprep.subr.bf16.mxu0 %v2171
    %2891 = vmatpush1.bf16.msra.mxu0 %v2170
    %2892 = vmatprep.subr.bf16.mxu0 %v2179
    %2893 = vmatpush1.bf16.msra.mxu0 %v2178
    %2894 = vmatprep.subr.bf16.mxu0 %v2187
    %2895 = vmatpush1.bf16.msra.mxu0 %v2186
    %2896 = vmatprep.subr.bf16.mxu0 %v2195
    %2897 = vmatpush1.bf16.msra.mxu0 %v2194
    %2898 = vmatprep.subr.bf16.mxu0 %v2203
    %2899 = vmatpush1.bf16.msra.mxu0 %v2202
    %2900 = vmatprep.subr.bf16.mxu0 %v2211
    %2901 = vmatpush1.bf16.msra.mxu0 %v2210
    %2902 = vmatprep.subr.bf16.mxu0 %v2219
    %2903 = vmatpush1.bf16.msra.mxu0 %v2218
    %2904 = vmatprep.subr.bf16.mxu0 %v2227
    %2905 = vmatpush1.bf16.msra.mxu0 %v2226
    %2906 = vmatprep.subr.bf16.mxu0 %v2235
    %2907 = vmatpush1.bf16.msra.mxu0 %v2234
    %2908 = vmatprep.subr.bf16.mxu0 %v2243
    %2909 = vmatpush1.bf16.msra.mxu0 %v2242
    %2910 = vmatprep.subr.bf16.mxu0 %v2251
    %2911 = vmatpush1.bf16.msra.mxu0 %v2250
    %2912 = vmatprep.subr.bf16.mxu0 %v2259
    %2913 = vmatpush1.bf16.msra.mxu0 %v2258
    %2914 = vmatprep.mubr.bf16.mxu0 %v2881
    %2915 = vmatmul.mubr.bf16.gmra.mrb[0].mxu0 %v2880
    %v2916 = vpop.f32.mrb[0].mxu0
    %v2917 = vadd.f32 0.0, %v2916
    %v2918 = vpop.f32.mrb[0].mxu0
    %v2919 = vadd.f32 0.0, %v2918
    %v2920 = vpop.f32.mrb[0].mxu0
    %v2921 = vpop.f32.mrb[0].mxu0
    %2922 = vdwg.mxu0
    %2923 = vmatprep.subr.bf16.mxu0 %v2141
    %2924 = vmatpush1.bf16.msra.mxu0 %v2140
    %2925 = vmatprep.subr.bf16.mxu0 %v2149
    %2926 = vmatpush1.bf16.msra.mxu0 %v2148
    %2927 = vmatprep.subr.bf16.mxu0 %v2157
    %2928 = vmatpush1.bf16.msra.mxu0 %v2156
    %2929 = vmatprep.subr.bf16.mxu0 %v2165
    %2930 = vmatpush1.bf16.msra.mxu0 %v2164
    %2931 = vmatprep.subr.bf16.mxu0 %v2173
    %2932 = vmatpush1.bf16.msra.mxu0 %v2172
    %2933 = vmatprep.subr.bf16.mxu0 %v2181
    %2934 = vmatpush1.bf16.msra.mxu0 %v2180
    %2935 = vmatprep.subr.bf16.mxu0 %v2189
    %2936 = vmatpush1.bf16.msra.mxu0 %v2188
    %2937 = vmatprep.subr.bf16.mxu0 %v2197
    %2938 = vmatpush1.bf16.msra.mxu0 %v2196
    %2939 = vmatprep.subr.bf16.mxu0 %v2205
    %2940 = vmatpush1.bf16.msra.mxu0 %v2204
    %2941 = vmatprep.subr.bf16.mxu0 %v2213
    %2942 = vmatpush1.bf16.msra.mxu0 %v2212
    %2943 = vmatprep.subr.bf16.mxu0 %v2221
    %2944 = vmatpush1.bf16.msra.mxu0 %v2220
    %2945 = vmatprep.subr.bf16.mxu0 %v2229
    %2946 = vmatpush1.bf16.msra.mxu0 %v2228
    %2947 = vmatprep.subr.bf16.mxu0 %v2237
    %2948 = vmatpush1.bf16.msra.mxu0 %v2236
    %2949 = vmatprep.subr.bf16.mxu0 %v2245
    %2950 = vmatpush1.bf16.msra.mxu0 %v2244
    %2951 = vmatprep.subr.bf16.mxu0 %v2253
    %2952 = vmatpush1.bf16.msra.mxu0 %v2252
    %2953 = vmatprep.subr.bf16.mxu0 %v2261
    %2954 = vmatpush1.bf16.msra.mxu0 %v2260
    %2955 = vmatprep.mubr.bf16.mxu0 %v2881
    %2956 = vmatmul.mubr.bf16.gmra.mrb[0].mxu0 %v2880
    %v2957 = vpop.f32.mrb[0].mxu0
    %v2958 = vadd.f32 0.0, %v2957
    %v2959 = vpop.f32.mrb[0].mxu0
    %v2960 = vadd.f32 0.0, %v2959
    %v2961 = vpop.f32.mrb[0].mxu0
    %v2962 = vpop.f32.mrb[0].mxu0
    %2963 = vdwg.mxu0
    %2964 = vmatprep.subr.bf16.mxu0 %v2143
    %2965 = vmatpush1.bf16.msra.mxu0 %v2142
    %2966 = vmatprep.subr.bf16.mxu0 %v2151
    %2967 = vmatpush1.bf16.msra.mxu0 %v2150
    %2968 = vmatprep.subr.bf16.mxu0 %v2159
    %2969 = vmatpush1.bf16.msra.mxu0 %v2158
    %2970 = vmatprep.subr.bf16.mxu0 %v2167
    %2971 = vmatpush1.bf16.msra.mxu0 %v2166
    %2972 = vmatprep.subr.bf16.mxu0 %v2175
    %2973 = vmatpush1.bf16.msra.mxu0 %v2174
    %2974 = vmatprep.subr.bf16.mxu0 %v2183
    %2975 = vmatpush1.bf16.msra.mxu0 %v2182
    %2976 = vmatprep.subr.bf16.mxu0 %v2191
    %2977 = vmatpush1.bf16.msra.mxu0 %v2190
    %2978 = vmatprep.subr.bf16.mxu0 %v2199
    %2979 = vmatpush1.bf16.msra.mxu0 %v2198
    %2980 = vmatprep.subr.bf16.mxu0 %v2207
    %2981 = vmatpush1.bf16.msra.mxu0 %v2206
    %2982 = vmatprep.subr.bf16.mxu0 %v2215
    %2983 = vmatpush1.bf16.msra.mxu0 %v2214
    %2984 = vmatprep.subr.bf16.mxu0 %v2223
    %2985 = vmatpush1.bf16.msra.mxu0 %v2222
    %2986 = vmatprep.subr.bf16.mxu0 %v2231
    %2987 = vmatpush1.bf16.msra.mxu0 %v2230
    %2988 = vmatprep.subr.bf16.mxu0 %v2239
    %2989 = vmatpush1.bf16.msra.mxu0 %v2238
    %2990 = vmatprep.subr.bf16.mxu0 %v2247
    %2991 = vmatpush1.bf16.msra.mxu0 %v2246
    %2992 = vmatprep.subr.bf16.mxu0 %v2255
    %2993 = vmatpush1.bf16.msra.mxu0 %v2254
    %2994 = vmatprep.subr.bf16.mxu0 %v2263
    %2995 = vmatpush1.bf16.msra.mxu0 %v2262
    %2996 = vmatprep.mubr.bf16.mxu0 %v2881
    %2997 = vmatmul.mubr.bf16.gmra.mrb[0].mxu0 %v2880
    %v2998 = vpop.f32.mrb[0].mxu0
    %v2999 = vadd.f32 0.0, %v2998
    %v3000 = vpop.f32.mrb[0].mxu0
    %v3001 = vadd.f32 0.0, %v3000
    %v3002 = vpop.f32.mrb[0].mxu0
    %v3003 = vpop.f32.mrb[0].mxu0
    %3004 = vdwg.mxu0
    %3005 = vmatprep.subr.bf16.mxu0 %v2145
    %3006 = vmatpush1.bf16.msra.mxu0 %v2144
    %3007 = vmatprep.subr.bf16.mxu0 %v2153
    %3008 = vmatpush1.bf16.msra.mxu0 %v2152
    %3009 = vmatprep.subr.bf16.mxu0 %v2161
    %3010 = vmatpush1.bf16.msra.mxu0 %v2160
    %3011 = vmatprep.subr.bf16.mxu0 %v2169
    %3012 = vmatpush1.bf16.msra.mxu0 %v2168
    %3013 = vmatprep.subr.bf16.mxu0 %v2177
    %3014 = vmatpush1.bf16.msra.mxu0 %v2176
    %3015 = vmatprep.subr.bf16.mxu0 %v2185
    %3016 = vmatpush1.bf16.msra.mxu0 %v2184
    %3017 = vmatprep.subr.bf16.mxu0 %v2193
    %3018 = vmatpush1.bf16.msra.mxu0 %v2192
    %3019 = vmatprep.subr.bf16.mxu0 %v2201
    %3020 = vmatpush1.bf16.msra.mxu0 %v2200
    %3021 = vmatprep.subr.bf16.mxu0 %v2209
    %3022 = vmatpush1.bf16.msra.mxu0 %v2208
    %3023 = vmatprep.subr.bf16.mxu0 %v2217
    %3024 = vmatpush1.bf16.msra.mxu0 %v2216
    %3025 = vmatprep.subr.bf16.mxu0 %v2225
    %3026 = vmatpush1.bf16.msra.mxu0 %v2224
    %3027 = vmatprep.subr.bf16.mxu0 %v2233
    %3028 = vmatpush1.bf16.msra.mxu0 %v2232
    %3029 = vmatprep.subr.bf16.mxu0 %v2241
    %3030 = vmatpush1.bf16.msra.mxu0 %v2240
    %3031 = vmatprep.subr.bf16.mxu0 %v2249
    %3032 = vmatpush1.bf16.msra.mxu0 %v2248
    %3033 = vmatprep.subr.bf16.mxu0 %v2257
    %3034 = vmatpush1.bf16.msra.mxu0 %v2256
    %3035 = vmatprep.subr.bf16.mxu0 %v2265
    %3036 = vmatpush1.bf16.msra.mxu0 %v2264
    %3037 = vmatprep.mubr.bf16.mxu0 %v2881
    %3038 = vmatmul.mubr.bf16.gmra.mrb[0].mxu0 %v2880
    %v3039 = vpop.f32.mrb[0].mxu0
    %v3040 = vadd.f32 0.0, %v3039
    %v3041 = vpop.f32.mrb[0].mxu0
    %v3042 = vadd.f32 0.0, %v3041
    %v3043 = vpop.f32.mrb[0].mxu0
    %v3044 = vpop.f32.mrb[0].mxu0
    %3045 = vdwg.mxu0
    %3046 = vmatprep.subr.bf16.mxu0 %v2009
    %3047 = vmatpush1.bf16.msra.mxu0 %v2008
    %3048 = vmatprep.subr.bf16.mxu0 %v2017
    %3049 = vmatpush1.bf16.msra.mxu0 %v2016
    %3050 = vmatprep.subr.bf16.mxu0 %v2025
    %3051 = vmatpush1.bf16.msra.mxu0 %v2024
    %3052 = vmatprep.subr.bf16.mxu0 %v2033
    %3053 = vmatpush1.bf16.msra.mxu0 %v2032
    %3054 = vmatprep.subr.bf16.mxu0 %v2041
    %3055 = vmatpush1.bf16.msra.mxu0 %v2040
    %3056 = vmatprep.subr.bf16.mxu0 %v2049
    %3057 = vmatpush1.bf16.msra.mxu0 %v2048
    %3058 = vmatprep.subr.bf16.mxu0 %v2057
    %3059 = vmatpush1.bf16.msra.mxu0 %v2056
    %3060 = vmatprep.subr.bf16.mxu0 %v2065
    %3061 = vmatpush1.bf16.msra.mxu0 %v2064
    %3062 = vmatprep.subr.bf16.mxu0 %v2073
    %3063 = vmatpush1.bf16.msra.mxu0 %v2072
    %3064 = vmatprep.subr.bf16.mxu0 %v2081
    %3065 = vmatpush1.bf16.msra.mxu0 %v2080
    %3066 = vmatprep.subr.bf16.mxu0 %v2089
    %3067 = vmatpush1.bf16.msra.mxu0 %v2088
    %3068 = vmatprep.subr.bf16.mxu0 %v2097
    %3069 = vmatpush1.bf16.msra.mxu0 %v2096
    %3070 = vmatprep.subr.bf16.mxu0 %v2105
    %3071 = vmatpush1.bf16.msra.mxu0 %v2104
    %3072 = vmatprep.subr.bf16.mxu0 %v2113
    %3073 = vmatpush1.bf16.msra.mxu0 %v2112
    %3074 = vmatprep.subr.bf16.mxu0 %v2121
    %3075 = vmatpush1.bf16.msra.mxu0 %v2120
    %3076 = vmatprep.subr.bf16.mxu0 %v2129
    %3077 = vmatpush1.bf16.msra.mxu0 %v2128
    %3078 = vmatprep.mubr.bf16.mxu0 %v2879
    %3079 = vmatmul.mubr.bf16.gmra.mrb[0].mxu0 %v2878
    %v3080 = vpop.f32.mrb[0].mxu0
    %v3081 = vadd.f32 %v2917, %v3080
    %v3082 = vpop.f32.mrb[0].mxu0
    %v3083 = vadd.f32 %v2919, %v3082
    %v3084 = vpop.f32.mrb[0].mxu0
    %v3085 = vpop.f32.mrb[0].mxu0
    %3086 = vdwg.mxu0
    %3087 = vmatprep.subr.bf16.mxu0 %v2011
    %3088 = vmatpush1.bf16.msra.mxu0 %v2010
    %3089 = vmatprep.subr.bf16.mxu0 %v2019
    %3090 = vmatpush1.bf16.msra.mxu0 %v2018
    %3091 = vmatprep.subr.bf16.mxu0 %v2027
    %3092 = vmatpush1.bf16.msra.mxu0 %v2026
    %3093 = vmatprep.subr.bf16.mxu0 %v2035
    %3094 = vmatpush1.bf16.msra.mxu0 %v2034
    %3095 = vmatprep.subr.bf16.mxu0 %v2043
    %3096 = vmatpush1.bf16.msra.mxu0 %v2042
    %3097 = vmatprep.subr.bf16.mxu0 %v2051
    %3098 = vmatpush1.bf16.msra.mxu0 %v2050
    %3099 = vmatprep.subr.bf16.mxu0 %v2059
    %3100 = vmatpush1.bf16.msra.mxu0 %v2058
    %3101 = vmatprep.subr.bf16.mxu0 %v2067
    %3102 = vmatpush1.bf16.msra.mxu0 %v2066
    %3103 = vmatprep.subr.bf16.mxu0 %v2075
    %3104 = vmatpush1.bf16.msra.mxu0 %v2074
    %3105 = vmatprep.subr.bf16.mxu0 %v2083
    %3106 = vmatpush1.bf16.msra.mxu0 %v2082
    %3107 = vmatprep.subr.bf16.mxu0 %v2091
    %3108 = vmatpush1.bf16.msra.mxu0 %v2090
    %3109 = vmatprep.subr.bf16.mxu0 %v2099
    %3110 = vmatpush1.bf16.msra.mxu0 %v2098
    %3111 = vmatprep.subr.bf16.mxu0 %v2107
    %3112 = vmatpush1.bf16.msra.mxu0 %v2106
    %3113 = vmatprep.subr.bf16.mxu0 %v2115
    %3114 = vmatpush1.bf16.msra.mxu0 %v2114
    %3115 = vmatprep.subr.bf16.mxu0 %v2123
    %3116 = vmatpush1.bf16.msra.mxu0 %v2122
    %3117 = vmatprep.subr.bf16.mxu0 %v2131
    %3118 = vmatpush1.bf16.msra.mxu0 %v2130
    %3119 = vmatprep.mubr.bf16.mxu0 %v2879
    %3120 = vmatmul.mubr.bf16.gmra.mrb[0].mxu0 %v2878
    %v3121 = vpop.f32.mrb[0].mxu0
    %v3122 = vadd.f32 %v2958, %v3121
    %v3123 = vpop.f32.mrb[0].mxu0
    %v3124 = vadd.f32 %v2960, %v3123
    %v3125 = vpop.f32.mrb[0].mxu0
    %v3126 = vpop.f32.mrb[0].mxu0
    %3127 = vdwg.mxu0
    %3128 = vmatprep.subr.bf16.mxu0 %v2013
    %3129 = vmatpush1.bf16.msra.mxu0 %v2012
    %3130 = vmatprep.subr.bf16.mxu0 %v2021
    %3131 = vmatpush1.bf16.msra.mxu0 %v2020
    %3132 = vmatprep.subr.bf16.mxu0 %v2029
    %3133 = vmatpush1.bf16.msra.mxu0 %v2028
    %3134 = vmatprep.subr.bf16.mxu0 %v2037
    %3135 = vmatpush1.bf16.msra.mxu0 %v2036
    %3136 = vmatprep.subr.bf16.mxu0 %v2045
    %3137 = vmatpush1.bf16.msra.mxu0 %v2044
    %3138 = vmatprep.subr.bf16.mxu0 %v2053
    %3139 = vmatpush1.bf16.msra.mxu0 %v2052
    %3140 = vmatprep.subr.bf16.mxu0 %v2061
    %3141 = vmatpush1.bf16.msra.mxu0 %v2060
    %3142 = vmatprep.subr.bf16.mxu0 %v2069
    %3143 = vmatpush1.bf16.msra.mxu0 %v2068
    %3144 = vmatprep.subr.bf16.mxu0 %v2077
    %3145 = vmatpush1.bf16.msra.mxu0 %v2076
    %3146 = vmatprep.subr.bf16.mxu0 %v2085
    %3147 = vmatpush1.bf16.msra.mxu0 %v2084
    %3148 = vmatprep.subr.bf16.mxu0 %v2093
    %3149 = vmatpush1.bf16.msra.mxu0 %v2092
    %3150 = vmatprep.subr.bf16.mxu0 %v2101
    %3151 = vmatpush1.bf16.msra.mxu0 %v2100
    %3152 = vmatprep.subr.bf16.mxu0 %v2109
    %3153 = vmatpush1.bf16.msra.mxu0 %v2108
    %3154 = vmatprep.subr.bf16.mxu0 %v2117
    %3155 = vmatpush1.bf16.msra.mxu0 %v2116
    %3156 = vmatprep.subr.bf16.mxu0 %v2125
    %3157 = vmatpush1.bf16.msra.mxu0 %v2124
    %3158 = vmatprep.subr.bf16.mxu0 %v2133
    %3159 = vmatpush1.bf16.msra.mxu0 %v2132
    %3160 = vmatprep.mubr.bf16.mxu0 %v2879
    %3161 = vmatmul.mubr.bf16.gmra.mrb[0].mxu0 %v2878
    %v3162 = vpop.f32.mrb[0].mxu0
    %v3163 = vadd.f32 %v2999, %v3162
    %v3164 = vpop.f32.mrb[0].mxu0
    %v3165 = vadd.f32 %v3001, %v3164
    %v3166 = vpop.f32.mrb[0].mxu0
    %v3167 = vpop.f32.mrb[0].mxu0
    %3168 = vdwg.mxu0
    %3169 = vmatprep.subr.bf16.mxu0 %v2015
    %3170 = vmatpush1.bf16.msra.mxu0 %v2014
    %3171 = vmatprep.subr.bf16.mxu0 %v2023
    %3172 = vmatpush1.bf16.msra.mxu0 %v2022
    %3173 = vmatprep.subr.bf16.mxu0 %v2031
    %3174 = vmatpush1.bf16.msra.mxu0 %v2030
    %3175 = vmatprep.subr.bf16.mxu0 %v2039
    %3176 = vmatpush1.bf16.msra.mxu0 %v2038
    %3177 = vmatprep.subr.bf16.mxu0 %v2047
    %3178 = vmatpush1.bf16.msra.mxu0 %v2046
    %3179 = vmatprep.subr.bf16.mxu0 %v2055
    %3180 = vmatpush1.bf16.msra.mxu0 %v2054
    %3181 = vmatprep.subr.bf16.mxu0 %v2063
    %3182 = vmatpush1.bf16.msra.mxu0 %v2062
    %3183 = vmatprep.subr.bf16.mxu0 %v2071
    %3184 = vmatpush1.bf16.msra.mxu0 %v2070
    %3185 = vmatprep.subr.bf16.mxu0 %v2079
    %3186 = vmatpush1.bf16.msra.mxu0 %v2078
    %3187 = vmatprep.subr.bf16.mxu0 %v2087
    %3188 = vmatpush1.bf16.msra.mxu0 %v2086
    %3189 = vmatprep.subr.bf16.mxu0 %v2095
    %3190 = vmatpush1.bf16.msra.mxu0 %v2094
    %3191 = vmatprep.subr.bf16.mxu0 %v2103
    %3192 = vmatpush1.bf16.msra.mxu0 %v2102
    %3193 = vmatprep.subr.bf16.mxu0 %v2111
    %3194 = vmatpush1.bf16.msra.mxu0 %v2110
    %3195 = vmatprep.subr.bf16.mxu0 %v2119
    %3196 = vmatpush1.bf16.msra.mxu0 %v2118
    %3197 = vmatprep.subr.bf16.mxu0 %v2127
    %3198 = vmatpush1.bf16.msra.mxu0 %v2126
    %3199 = vmatprep.subr.bf16.mxu0 %v2135
    %3200 = vmatpush1.bf16.msra.mxu0 %v2134
    %3201 = vmatprep.mubr.bf16.mxu0 %v2879
    %3202 = vmatmul.mubr.bf16.gmra.mrb[0].mxu0 %v2878
    %v3203 = vpop.f32.mrb[0].mxu0
    %v3204 = vadd.f32 %v3040, %v3203
    %v3205 = vpop.f32.mrb[0].mxu0
    %v3206 = vadd.f32 %v3042, %v3205
    %v3207 = vpop.f32.mrb[0].mxu0
    %v3208 = vpop.f32.mrb[0].mxu0
    %3209 = vdwg.mxu0
    %v3210 = vadd.f32 %v3081, %v961
    %v3211 = vadd.f32 %v3083, %v965
    %v3212 = vadd.f32 %v3122, %v969
    %v3213 = vadd.f32 %v3124, %v973
    %v3214 = vadd.f32 %v3163, %v977
    %v3215 = vadd.f32 %v3165, %v981
    %v3216 = vadd.f32 %v3204, %v985
    %v3217 = vadd.f32 %v3206, %v989
    %v3218 = vxor.u32 %v3210, 2147483648
    %v3219 = vxor.u32 %v3211, 2147483648
    %v3220 = vmul.f32 %v3218, 1.442695
    %v3221 = vpow.pop %v3220
    %v3222 = vmul.f32 %v3219, 1.442695
    %v3223 = vpow.pop %v3222
    %v3224 = vadd.f32 %v3221, 1.0
    %v3225 = vadd.f32 %v3223, 1.0
    %v3226 = vrcp.pop %v3224
    %v3227 = vmul.f32 1.0, %v3226
    %v3228 = vrcp.pop %v3225
    %v3229 = vmul.f32 1.0, %v3228
    %v3230 = vxor.u32 %v3212, 2147483648
    %v3231 = vxor.u32 %v3213, 2147483648
    %v3232 = vmul.f32 %v3230, 1.442695
    %v3233 = vpow.pop %v3232
    %v3234 = vmul.f32 %v3231, 1.442695
    %v3235 = vpow.pop %v3234
    %v3236 = vadd.f32 %v3233, 1.0
    %v3237 = vadd.f32 %v3235, 1.0
    %v3238 = vrcp.pop %v3236
    %v3239 = vmul.f32 1.0, %v3238
    %v3240 = vrcp.pop %v3237
    %v3241 = vmul.f32 1.0, %v3240
    %v3242 = vtanh.pop %v3214
    %v3243 = vtanh.pop %v3215
    %v3244 = vxor.u32 %v3216, 2147483648
    %v3245 = vxor.u32 %v3217, 2147483648
    %v3246 = vmul.f32 %v3244, 1.442695
    %v3247 = vpow.pop %v3246
    %v3248 = vmul.f32 %v3245, 1.442695
    %v3249 = vpow.pop %v3248
    %v3250 = vadd.f32 %v3247, 1.0
    %v3251 = vadd.f32 %v3249, 1.0
    %v3252 = vrcp.pop %v3250
    %v3253 = vmul.f32 1.0, %v3252
    %v3254 = vrcp.pop %v3251
    %v3255 = vmul.f32 1.0, %v3254
    %v3256 = vmul.f32 %v3239, %v2644
    %v3257 = vmul.f32 %v3241, %v2645
    %v3258 = vmul.f32 %v3227, %v3242
    %v3259 = vmul.f32 %v3229, %v3243
    %v3260 = vadd.f32 %v3256, %v3258
    %v3261 = vadd.f32 %v3257, %v3259
    %v3262 = vtanh.pop %v3260
    %v3263 = vtanh.pop %v3261
    %v3264 = vmul.f32 %v3253, %v3262
    %v3265 = vmul.f32 %v3255, %v3263
    %v3266 = vld [vmem:[#allocation2 + $0x80] sm:$0xff]
    %v3267 = vld [vmem:[#allocation2 + $0x88] sm:$0xff]
    %v3268 = vld [vmem:[#allocation2 + $0x90] sm:$0xff]
    %v3269 = vld [vmem:[#allocation2 + $0x98] sm:$0xff]
    %v3270 = vld [vmem:[#allocation2 + $0xa0] sm:$0xff]
    %v3271 = vld [vmem:[#allocation2 + $0xa8] sm:$0xff]
    %v3272 = vld [vmem:[#allocation2 + $0xb0] sm:$0xff]
    %v3273 = vld [vmem:[#allocation2 + $0xb8] sm:$0xff]
    %3274 = vmatprep.subr.bf16.mxu0 %v1531
    %3275 = vmatpush1.bf16.msra.mxu0 %v1530
    %3276 = vmatprep.subr.bf16.mxu0 %v1539
    %3277 = vmatpush1.bf16.msra.mxu0 %v1538
    %3278 = vmatprep.subr.bf16.mxu0 %v1547
    %3279 = vmatpush1.bf16.msra.mxu0 %v1546
    %3280 = vmatprep.subr.bf16.mxu0 %v1555
    %3281 = vmatpush1.bf16.msra.mxu0 %v1554
    %3282 = vmatprep.subr.bf16.mxu0 %v1563
    %3283 = vmatpush1.bf16.msra.mxu0 %v1562
    %3284 = vmatprep.subr.bf16.mxu0 %v1571
    %3285 = vmatpush1.bf16.msra.mxu0 %v1570
    %3286 = vmatprep.subr.bf16.mxu0 %v1579
    %3287 = vmatpush1.bf16.msra.mxu0 %v1578
    %3288 = vmatprep.subr.bf16.mxu0 %v1587
    %3289 = vmatpush1.bf16.msra.mxu0 %v1586
    %3290 = vmatprep.subr.bf16.mxu0 %v1595
    %3291 = vmatpush1.bf16.msra.mxu0 %v1594
    %3292 = vmatprep.subr.bf16.mxu0 %v1603
    %3293 = vmatpush1.bf16.msra.mxu0 %v1602
    %3294 = vmatprep.subr.bf16.mxu0 %v1611
    %3295 = vmatpush1.bf16.msra.mxu0 %v1610
    %3296 = vmatprep.subr.bf16.mxu0 %v1619
    %3297 = vmatpush1.bf16.msra.mxu0 %v1618
    %3298 = vmatprep.subr.bf16.mxu0 %v1627
    %3299 = vmatpush1.bf16.msra.mxu0 %v1626
    %3300 = vmatprep.subr.bf16.mxu0 %v1635
    %3301 = vmatpush1.bf16.msra.mxu0 %v1634
    %3302 = vmatprep.subr.bf16.mxu0 %v1643
    %3303 = vmatpush1.bf16.msra.mxu0 %v1642
    %3304 = vmatprep.subr.bf16.mxu0 %v1651
    %3305 = vmatpush1.bf16.msra.mxu0 %v1650
    %3306 = vmatprep.mubr.bf16.mxu0 %v2879
    %3307 = vmatmul.mubr.bf16.gmra.mrb[0].mxu0 %v2878
    %v3308 = vpop.f32.mrb[0].mxu0
    %v3309 = vadd.f32 0.0, %v3308
    %v3310 = vpop.f32.mrb[0].mxu0
    %v3311 = vadd.f32 0.0, %v3310
    %v3312 = vpop.f32.mrb[0].mxu0
    %v3313 = vpop.f32.mrb[0].mxu0
    %3314 = vdwg.mxu0
    %3315 = vmatprep.subr.bf16.mxu0 %v1533
    %3316 = vmatpush1.bf16.msra.mxu0 %v1532
    %3317 = vmatprep.subr.bf16.mxu0 %v1541
    %3318 = vmatpush1.bf16.msra.mxu0 %v1540
    %3319 = vmatprep.subr.bf16.mxu0 %v1549
    %3320 = vmatpush1.bf16.msra.mxu0 %v1548
    %3321 = vmatprep.subr.bf16.mxu0 %v1557
    %3322 = vmatpush1.bf16.msra.mxu0 %v1556
    %3323 = vmatprep.subr.bf16.mxu0 %v1565
    %3324 = vmatpush1.bf16.msra.mxu0 %v1564
    %3325 = vmatprep.subr.bf16.mxu0 %v1573
    %3326 = vmatpush1.bf16.msra.mxu0 %v1572
    %3327 = vmatprep.subr.bf16.mxu0 %v1581
    %3328 = vmatpush1.bf16.msra.mxu0 %v1580
    %3329 = vmatprep.subr.bf16.mxu0 %v1589
    %3330 = vmatpush1.bf16.msra.mxu0 %v1588
    %3331 = vmatprep.subr.bf16.mxu0 %v1597
    %3332 = vmatpush1.bf16.msra.mxu0 %v1596
    %3333 = vmatprep.subr.bf16.mxu0 %v1605
    %3334 = vmatpush1.bf16.msra.mxu0 %v1604
    %3335 = vmatprep.subr.bf16.mxu0 %v1613
    %3336 = vmatpush1.bf16.msra.mxu0 %v1612
    %3337 = vmatprep.subr.bf16.mxu0 %v1621
    %3338 = vmatpush1.bf16.msra.mxu0 %v1620
    %3339 = vmatprep.subr.bf16.mxu0 %v1629
    %3340 = vmatpush1.bf16.msra.mxu0 %v1628
    %3341 = vmatprep.subr.bf16.mxu0 %v1637
    %3342 = vmatpush1.bf16.msra.mxu0 %v1636
    %3343 = vmatprep.subr.bf16.mxu0 %v1645
    %3344 = vmatpush1.bf16.msra.mxu0 %v1644
    %3345 = vmatprep.subr.bf16.mxu0 %v1653
    %3346 = vmatpush1.bf16.msra.mxu0 %v1652
    %3347 = vmatprep.mubr.bf16.mxu0 %v2879
    %3348 = vmatmul.mubr.bf16.gmra.mrb[0].mxu0 %v2878
    %v3349 = vpop.f32.mrb[0].mxu0
    %v3350 = vadd.f32 0.0, %v3349
    %v3351 = vpop.f32.mrb[0].mxu0
    %v3352 = vadd.f32 0.0, %v3351
    %v3353 = vpop.f32.mrb[0].mxu0
    %v3354 = vpop.f32.mrb[0].mxu0
    %3355 = vdwg.mxu0
    %3356 = vmatprep.subr.bf16.mxu0 %v1535
    %3357 = vmatpush1.bf16.msra.mxu0 %v1534
    %3358 = vmatprep.subr.bf16.mxu0 %v1543
    %3359 = vmatpush1.bf16.msra.mxu0 %v1542
    %3360 = vmatprep.subr.bf16.mxu0 %v1551
    %3361 = vmatpush1.bf16.msra.mxu0 %v1550
    %3362 = vmatprep.subr.bf16.mxu0 %v1559
    %3363 = vmatpush1.bf16.msra.mxu0 %v1558
    %3364 = vmatprep.subr.bf16.mxu0 %v1567
    %3365 = vmatpush1.bf16.msra.mxu0 %v1566
    %3366 = vmatprep.subr.bf16.mxu0 %v1575
    %3367 = vmatpush1.bf16.msra.mxu0 %v1574
    %3368 = vmatprep.subr.bf16.mxu0 %v1583
    %3369 = vmatpush1.bf16.msra.mxu0 %v1582
    %3370 = vmatprep.subr.bf16.mxu0 %v1591
    %3371 = vmatpush1.bf16.msra.mxu0 %v1590
    %3372 = vmatprep.subr.bf16.mxu0 %v1599
    %3373 = vmatpush1.bf16.msra.mxu0 %v1598
    %3374 = vmatprep.subr.bf16.mxu0 %v1607
    %3375 = vmatpush1.bf16.msra.mxu0 %v1606
    %3376 = vmatprep.subr.bf16.mxu0 %v1615
    %3377 = vmatpush1.bf16.msra.mxu0 %v1614
    %3378 = vmatprep.subr.bf16.mxu0 %v1623
    %3379 = vmatpush1.bf16.msra.mxu0 %v1622
    %3380 = vmatprep.subr.bf16.mxu0 %v1631
    %3381 = vmatpush1.bf16.msra.mxu0 %v1630
    %3382 = vmatprep.subr.bf16.mxu0 %v1639
    %3383 = vmatpush1.bf16.msra.mxu0 %v1638
    %3384 = vmatprep.subr.bf16.mxu0 %v1647
    %3385 = vmatpush1.bf16.msra.mxu0 %v1646
    %3386 = vmatprep.subr.bf16.mxu0 %v1655
    %3387 = vmatpush1.bf16.msra.mxu0 %v1654
    %3388 = vmatprep.mubr.bf16.mxu0 %v2879
    %3389 = vmatmul.mubr.bf16.gmra.mrb[0].mxu0 %v2878
    %v3390 = vpop.f32.mrb[0].mxu0
    %v3391 = vadd.f32 0.0, %v3390
    %v3392 = vpop.f32.mrb[0].mxu0
    %v3393 = vadd.f32 0.0, %v3392
    %v3394 = vpop.f32.mrb[0].mxu0
    %v3395 = vpop.f32.mrb[0].mxu0
    %3396 = vdwg.mxu0
    %3397 = vmatprep.subr.bf16.mxu0 %v1537
    %3398 = vmatpush1.bf16.msra.mxu0 %v1536
    %3399 = vmatprep.subr.bf16.mxu0 %v1545
    %3400 = vmatpush1.bf16.msra.mxu0 %v1544
    %3401 = vmatprep.subr.bf16.mxu0 %v1553
    %3402 = vmatpush1.bf16.msra.mxu0 %v1552
    %3403 = vmatprep.subr.bf16.mxu0 %v1561
    %3404 = vmatpush1.bf16.msra.mxu0 %v1560
    %3405 = vmatprep.subr.bf16.mxu0 %v1569
    %3406 = vmatpush1.bf16.msra.mxu0 %v1568
    %3407 = vmatprep.subr.bf16.mxu0 %v1577
    %3408 = vmatpush1.bf16.msra.mxu0 %v1576
    %3409 = vmatprep.subr.bf16.mxu0 %v1585
    %3410 = vmatpush1.bf16.msra.mxu0 %v1584
    %3411 = vmatprep.subr.bf16.mxu0 %v1593
    %3412 = vmatpush1.bf16.msra.mxu0 %v1592
    %3413 = vmatprep.subr.bf16.mxu0 %v1601
    %3414 = vmatpush1.bf16.msra.mxu0 %v1600
    %3415 = vmatprep.subr.bf16.mxu0 %v1609
    %3416 = vmatpush1.bf16.msra.mxu0 %v1608
    %3417 = vmatprep.subr.bf16.mxu0 %v1617
    %3418 = vmatpush1.bf16.msra.mxu0 %v1616
    %3419 = vmatprep.subr.bf16.mxu0 %v1625
    %3420 = vmatpush1.bf16.msra.mxu0 %v1624
    %3421 = vmatprep.subr.bf16.mxu0 %v1633
    %3422 = vmatpush1.bf16.msra.mxu0 %v1632
    %3423 = vmatprep.subr.bf16.mxu0 %v1641
    %3424 = vmatpush1.bf16.msra.mxu0 %v1640
    %3425 = vmatprep.subr.bf16.mxu0 %v1649
    %3426 = vmatpush1.bf16.msra.mxu0 %v1648
    %3427 = vmatprep.subr.bf16.mxu0 %v1657
    %3428 = vmatpush1.bf16.msra.mxu0 %v1656
    %3429 = vmatprep.mubr.bf16.mxu0 %v2879
    %3430 = vmatmul.mubr.bf16.gmra.mrb[0].mxu0 %v2878
    %v3431 = vpop.f32.mrb[0].mxu0
    %v3432 = vadd.f32 0.0, %v3431
    %v3433 = vpop.f32.mrb[0].mxu0
    %v3434 = vadd.f32 0.0, %v3433
    %v3435 = vpop.f32.mrb[0].mxu0
    %v3436 = vpop.f32.mrb[0].mxu0
    %3437 = vdwg.mxu0
    %v3438 = vadd.f32 %v3266, %v3309
    %v3439 = vadd.f32 %v3267, %v3311
    %v3440 = vadd.f32 %v3268, %v3350
    %v3441 = vadd.f32 %v3269, %v3352
    %v3442 = vadd.f32 %v3270, %v3391
    %v3443 = vadd.f32 %v3271, %v3393
    %v3444 = vadd.f32 %v3272, %v3432
    %v3445 = vadd.f32 %v3273, %v3434
    %v3446 = vxor.u32 %v3438, 2147483648
    %v3447 = vxor.u32 %v3439, 2147483648
    %v3448 = vmul.f32 %v3446, 1.442695
    %v3449 = vpow.pop %v3448
    %v3450 = vmul.f32 %v3447, 1.442695
    %v3451 = vpow.pop %v3450
    %v3452 = vadd.f32 %v3449, 1.0
    %v3453 = vadd.f32 %v3451, 1.0
    %v3454 = vrcp.pop %v3452
    %v3455 = vmul.f32 1.0, %v3454
    %v3456 = vrcp.pop %v3453
    %v3457 = vmul.f32 1.0, %v3456
    %v3458 = vxor.u32 %v3440, 2147483648
    %v3459 = vxor.u32 %v3441, 2147483648
    %v3460 = vmul.f32 %v3458, 1.442695
    %v3461 = vpow.pop %v3460
    %v3462 = vmul.f32 %v3459, 1.442695
    %v3463 = vpow.pop %v3462
    %v3464 = vadd.f32 %v3461, 1.0
    %v3465 = vadd.f32 %v3463, 1.0
    %v3466 = vrcp.pop %v3464
    %v3467 = vmul.f32 1.0, %v3466
    %v3468 = vrcp.pop %v3465
    %v3469 = vmul.f32 1.0, %v3468
    %v3470 = vtanh.pop %v3442
    %v3471 = vtanh.pop %v3443
    %v3472 = vxor.u32 %v3444, 2147483648
    %v3473 = vxor.u32 %v3445, 2147483648
    %v3474 = vmul.f32 %v3472, 1.442695
    %v3475 = vpow.pop %v3474
    %v3476 = vmul.f32 %v3473, 1.442695
    %v3477 = vpow.pop %v3476
    %v3478 = vadd.f32 %v3475, 1.0
    %v3479 = vadd.f32 %v3477, 1.0
    %v3480 = vrcp.pop %v3478
    %v3481 = vmul.f32 1.0, %v3480
    %v3482 = vrcp.pop %v3479
    %v3483 = vmul.f32 1.0, %v3482
    %v3484 = vmul.f32 %v3467, %v2872
    %v3485 = vmul.f32 %v3469, %v2873
    %v3486 = vmul.f32 %v3455, %v3470
    %v3487 = vmul.f32 %v3457, %v3471
    %v3488 = vadd.f32 %v3484, %v3486
    %v3489 = vadd.f32 %v3485, %v3487
    %v3490 = vtanh.pop %v3488
    %v3491 = vtanh.pop %v3489
    %v3492 = vmul.f32 %v3481, %v3490
    %v3493 = vmul.f32 %v3483, %v3491
    %v3494 = vpack.c.bf16 %v3492, %v3492
    %v3495 = vpack.c.bf16 %v3493, %v3493
    %v3496 = vpack.c.bf16 %v3264, %v3264
    %v3497 = vpack.c.bf16 %v3265, %v3265
    %3498 = vmatprep.subr.bf16.mxu0 %v2139
    %3499 = vmatpush1.bf16.msra.mxu0 %v2138
    %3500 = vmatprep.subr.bf16.mxu0 %v2147
    %3501 = vmatpush1.bf16.msra.mxu0 %v2146
    %3502 = vmatprep.subr.bf16.mxu0 %v2155
    %3503 = vmatpush1.bf16.msra.mxu0 %v2154
    %3504 = vmatprep.subr.bf16.mxu0 %v2163
    %3505 = vmatpush1.bf16.msra.mxu0 %v2162
    %3506 = vmatprep.subr.bf16.mxu0 %v2171
    %3507 = vmatpush1.bf16.msra.mxu0 %v2170
    %3508 = vmatprep.subr.bf16.mxu0 %v2179
    %3509 = vmatpush1.bf16.msra.mxu0 %v2178
    %3510 = vmatprep.subr.bf16.mxu0 %v2187
    %3511 = vmatpush1.bf16.msra.mxu0 %v2186
    %3512 = vmatprep.subr.bf16.mxu0 %v2195
    %3513 = vmatpush1.bf16.msra.mxu0 %v2194
    %3514 = vmatprep.subr.bf16.mxu0 %v2203
    %3515 = vmatpush1.bf16.msra.mxu0 %v2202
    %3516 = vmatprep.subr.bf16.mxu0 %v2211
    %3517 = vmatpush1.bf16.msra.mxu0 %v2210
    %3518 = vmatprep.subr.bf16.mxu0 %v2219
    %3519 = vmatpush1.bf16.msra.mxu0 %v2218
    %3520 = vmatprep.subr.bf16.mxu0 %v2227
    %3521 = vmatpush1.bf16.msra.mxu0 %v2226
    %3522 = vmatprep.subr.bf16.mxu0 %v2235
    %3523 = vmatpush1.bf16.msra.mxu0 %v2234
    %3524 = vmatprep.subr.bf16.mxu0 %v2243
    %3525 = vmatpush1.bf16.msra.mxu0 %v2242
    %3526 = vmatprep.subr.bf16.mxu0 %v2251
    %3527 = vmatpush1.bf16.msra.mxu0 %v2250
    %3528 = vmatprep.subr.bf16.mxu0 %v2259
    %3529 = vmatpush1.bf16.msra.mxu0 %v2258
    %3530 = vmatprep.mubr.bf16.mxu0 %v3497
    %3531 = vmatmul.mubr.bf16.gmra.mrb[0].mxu0 %v3496
    %v3532 = vpop.f32.mrb[0].mxu0
    %v3533 = vadd.f32 0.0, %v3532
    %v3534 = vpop.f32.mrb[0].mxu0
    %v3535 = vadd.f32 0.0, %v3534
    %v3536 = vpop.f32.mrb[0].mxu0
    %v3537 = vpop.f32.mrb[0].mxu0
    %3538 = vdwg.mxu0
    %3539 = vmatprep.subr.bf16.mxu0 %v2141
    %3540 = vmatpush1.bf16.msra.mxu0 %v2140
    %3541 = vmatprep.subr.bf16.mxu0 %v2149
    %3542 = vmatpush1.bf16.msra.mxu0 %v2148
    %3543 = vmatprep.subr.bf16.mxu0 %v2157
    %3544 = vmatpush1.bf16.msra.mxu0 %v2156
    %3545 = vmatprep.subr.bf16.mxu0 %v2165
    %3546 = vmatpush1.bf16.msra.mxu0 %v2164
    %3547 = vmatprep.subr.bf16.mxu0 %v2173
    %3548 = vmatpush1.bf16.msra.mxu0 %v2172
    %3549 = vmatprep.subr.bf16.mxu0 %v2181
    %3550 = vmatpush1.bf16.msra.mxu0 %v2180
    %3551 = vmatprep.subr.bf16.mxu0 %v2189
    %3552 = vmatpush1.bf16.msra.mxu0 %v2188
    %3553 = vmatprep.subr.bf16.mxu0 %v2197
    %3554 = vmatpush1.bf16.msra.mxu0 %v2196
    %3555 = vmatprep.subr.bf16.mxu0 %v2205
    %3556 = vmatpush1.bf16.msra.mxu0 %v2204
    %3557 = vmatprep.subr.bf16.mxu0 %v2213
    %3558 = vmatpush1.bf16.msra.mxu0 %v2212
    %3559 = vmatprep.subr.bf16.mxu0 %v2221
    %3560 = vmatpush1.bf16.msra.mxu0 %v2220
    %3561 = vmatprep.subr.bf16.mxu0 %v2229
    %3562 = vmatpush1.bf16.msra.mxu0 %v2228
    %3563 = vmatprep.subr.bf16.mxu0 %v2237
    %3564 = vmatpush1.bf16.msra.mxu0 %v2236
    %3565 = vmatprep.subr.bf16.mxu0 %v2245
    %3566 = vmatpush1.bf16.msra.mxu0 %v2244
    %3567 = vmatprep.subr.bf16.mxu0 %v2253
    %3568 = vmatpush1.bf16.msra.mxu0 %v2252
    %3569 = vmatprep.subr.bf16.mxu0 %v2261
    %3570 = vmatpush1.bf16.msra.mxu0 %v2260
    %3571 = vmatprep.mubr.bf16.mxu0 %v3497
    %3572 = vmatmul.mubr.bf16.gmra.mrb[0].mxu0 %v3496
    %v3573 = vpop.f32.mrb[0].mxu0
    %v3574 = vadd.f32 0.0, %v3573
    %v3575 = vpop.f32.mrb[0].mxu0
    %v3576 = vadd.f32 0.0, %v3575
    %v3577 = vpop.f32.mrb[0].mxu0
    %v3578 = vpop.f32.mrb[0].mxu0
    %3579 = vdwg.mxu0
    %3580 = vmatprep.subr.bf16.mxu0 %v2143
    %3581 = vmatpush1.bf16.msra.mxu0 %v2142
    %3582 = vmatprep.subr.bf16.mxu0 %v2151
    %3583 = vmatpush1.bf16.msra.mxu0 %v2150
    %3584 = vmatprep.subr.bf16.mxu0 %v2159
    %3585 = vmatpush1.bf16.msra.mxu0 %v2158
    %3586 = vmatprep.subr.bf16.mxu0 %v2167
    %3587 = vmatpush1.bf16.msra.mxu0 %v2166
    %3588 = vmatprep.subr.bf16.mxu0 %v2175
    %3589 = vmatpush1.bf16.msra.mxu0 %v2174
    %3590 = vmatprep.subr.bf16.mxu0 %v2183
    %3591 = vmatpush1.bf16.msra.mxu0 %v2182
    %3592 = vmatprep.subr.bf16.mxu0 %v2191
    %3593 = vmatpush1.bf16.msra.mxu0 %v2190
    %3594 = vmatprep.subr.bf16.mxu0 %v2199
    %3595 = vmatpush1.bf16.msra.mxu0 %v2198
    %3596 = vmatprep.subr.bf16.mxu0 %v2207
    %3597 = vmatpush1.bf16.msra.mxu0 %v2206
    %3598 = vmatprep.subr.bf16.mxu0 %v2215
    %3599 = vmatpush1.bf16.msra.mxu0 %v2214
    %3600 = vmatprep.subr.bf16.mxu0 %v2223
    %3601 = vmatpush1.bf16.msra.mxu0 %v2222
    %3602 = vmatprep.subr.bf16.mxu0 %v2231
    %3603 = vmatpush1.bf16.msra.mxu0 %v2230
    %3604 = vmatprep.subr.bf16.mxu0 %v2239
    %3605 = vmatpush1.bf16.msra.mxu0 %v2238
    %3606 = vmatprep.subr.bf16.mxu0 %v2247
    %3607 = vmatpush1.bf16.msra.mxu0 %v2246
    %3608 = vmatprep.subr.bf16.mxu0 %v2255
    %3609 = vmatpush1.bf16.msra.mxu0 %v2254
    %3610 = vmatprep.subr.bf16.mxu0 %v2263
    %3611 = vmatpush1.bf16.msra.mxu0 %v2262
    %3612 = vmatprep.mubr.bf16.mxu0 %v3497
    %3613 = vmatmul.mubr.bf16.gmra.mrb[0].mxu0 %v3496
    %v3614 = vpop.f32.mrb[0].mxu0
    %v3615 = vadd.f32 0.0, %v3614
    %v3616 = vpop.f32.mrb[0].mxu0
    %v3617 = vadd.f32 0.0, %v3616
    %v3618 = vpop.f32.mrb[0].mxu0
    %v3619 = vpop.f32.mrb[0].mxu0
    %3620 = vdwg.mxu0
    %3621 = vmatprep.subr.bf16.mxu0 %v2145
    %3622 = vmatpush1.bf16.msra.mxu0 %v2144
    %3623 = vmatprep.subr.bf16.mxu0 %v2153
    %3624 = vmatpush1.bf16.msra.mxu0 %v2152
    %3625 = vmatprep.subr.bf16.mxu0 %v2161
    %3626 = vmatpush1.bf16.msra.mxu0 %v2160
    %3627 = vmatprep.subr.bf16.mxu0 %v2169
    %3628 = vmatpush1.bf16.msra.mxu0 %v2168
    %3629 = vmatprep.subr.bf16.mxu0 %v2177
    %3630 = vmatpush1.bf16.msra.mxu0 %v2176
    %3631 = vmatprep.subr.bf16.mxu0 %v2185
    %3632 = vmatpush1.bf16.msra.mxu0 %v2184
    %3633 = vmatprep.subr.bf16.mxu0 %v2193
    %3634 = vmatpush1.bf16.msra.mxu0 %v2192
    %3635 = vmatprep.subr.bf16.mxu0 %v2201
    %3636 = vmatpush1.bf16.msra.mxu0 %v2200
    %3637 = vmatprep.subr.bf16.mxu0 %v2209
    %3638 = vmatpush1.bf16.msra.mxu0 %v2208
    %3639 = vmatprep.subr.bf16.mxu0 %v2217
    %3640 = vmatpush1.bf16.msra.mxu0 %v2216
    %3641 = vmatprep.subr.bf16.mxu0 %v2225
    %3642 = vmatpush1.bf16.msra.mxu0 %v2224
    %3643 = vmatprep.subr.bf16.mxu0 %v2233
    %3644 = vmatpush1.bf16.msra.mxu0 %v2232
    %3645 = vmatprep.subr.bf16.mxu0 %v2241
    %3646 = vmatpush1.bf16.msra.mxu0 %v2240
    %3647 = vmatprep.subr.bf16.mxu0 %v2249
    %3648 = vmatpush1.bf16.msra.mxu0 %v2248
    %3649 = vmatprep.subr.bf16.mxu0 %v2257
    %3650 = vmatpush1.bf16.msra.mxu0 %v2256
    %3651 = vmatprep.subr.bf16.mxu0 %v2265
    %3652 = vmatpush1.bf16.msra.mxu0 %v2264
    %3653 = vmatprep.mubr.bf16.mxu0 %v3497
    %3654 = vmatmul.mubr.bf16.gmra.mrb[0].mxu0 %v3496
    %v3655 = vpop.f32.mrb[0].mxu0
    %v3656 = vadd.f32 0.0, %v3655
    %v3657 = vpop.f32.mrb[0].mxu0
    %v3658 = vadd.f32 0.0, %v3657
    %v3659 = vpop.f32.mrb[0].mxu0
    %v3660 = vpop.f32.mrb[0].mxu0
    %3661 = vdwg.mxu0
    %3662 = vmatprep.subr.bf16.mxu0 %v2009
    %3663 = vmatpush1.bf16.msra.mxu0 %v2008
    %3664 = vmatprep.subr.bf16.mxu0 %v2017
    %3665 = vmatpush1.bf16.msra.mxu0 %v2016
    %3666 = vmatprep.subr.bf16.mxu0 %v2025
    %3667 = vmatpush1.bf16.msra.mxu0 %v2024
    %3668 = vmatprep.subr.bf16.mxu0 %v2033
    %3669 = vmatpush1.bf16.msra.mxu0 %v2032
    %3670 = vmatprep.subr.bf16.mxu0 %v2041
    %3671 = vmatpush1.bf16.msra.mxu0 %v2040
    %3672 = vmatprep.subr.bf16.mxu0 %v2049
    %3673 = vmatpush1.bf16.msra.mxu0 %v2048
    %3674 = vmatprep.subr.bf16.mxu0 %v2057
    %3675 = vmatpush1.bf16.msra.mxu0 %v2056
    %3676 = vmatprep.subr.bf16.mxu0 %v2065
    %3677 = vmatpush1.bf16.msra.mxu0 %v2064
    %3678 = vmatprep.subr.bf16.mxu0 %v2073
    %3679 = vmatpush1.bf16.msra.mxu0 %v2072
    %3680 = vmatprep.subr.bf16.mxu0 %v2081
    %3681 = vmatpush1.bf16.msra.mxu0 %v2080
    %3682 = vmatprep.subr.bf16.mxu0 %v2089
    %3683 = vmatpush1.bf16.msra.mxu0 %v2088
    %3684 = vmatprep.subr.bf16.mxu0 %v2097
    %3685 = vmatpush1.bf16.msra.mxu0 %v2096
    %3686 = vmatprep.subr.bf16.mxu0 %v2105
    %3687 = vmatpush1.bf16.msra.mxu0 %v2104
    %3688 = vmatprep.subr.bf16.mxu0 %v2113
    %3689 = vmatpush1.bf16.msra.mxu0 %v2112
    %3690 = vmatprep.subr.bf16.mxu0 %v2121
    %3691 = vmatpush1.bf16.msra.mxu0 %v2120
    %3692 = vmatprep.subr.bf16.mxu0 %v2129
    %3693 = vmatpush1.bf16.msra.mxu0 %v2128
    %3694 = vmatprep.mubr.bf16.mxu0 %v3495
    %3695 = vmatmul.mubr.bf16.gmra.mrb[0].mxu0 %v3494
    %v3696 = vpop.f32.mrb[0].mxu0
    %v3697 = vadd.f32 %v3533, %v3696
    %v3698 = vpop.f32.mrb[0].mxu0
    %v3699 = vadd.f32 %v3535, %v3698
    %v3700 = vpop.f32.mrb[0].mxu0
    %v3701 = vpop.f32.mrb[0].mxu0
    %3702 = vdwg.mxu0
    %3703 = vmatprep.subr.bf16.mxu0 %v2011
    %3704 = vmatpush1.bf16.msra.mxu0 %v2010
    %3705 = vmatprep.subr.bf16.mxu0 %v2019
    %3706 = vmatpush1.bf16.msra.mxu0 %v2018
    %3707 = vmatprep.subr.bf16.mxu0 %v2027
    %3708 = vmatpush1.bf16.msra.mxu0 %v2026
    %3709 = vmatprep.subr.bf16.mxu0 %v2035
    %3710 = vmatpush1.bf16.msra.mxu0 %v2034
    %3711 = vmatprep.subr.bf16.mxu0 %v2043
    %3712 = vmatpush1.bf16.msra.mxu0 %v2042
    %3713 = vmatprep.subr.bf16.mxu0 %v2051
    %3714 = vmatpush1.bf16.msra.mxu0 %v2050
    %3715 = vmatprep.subr.bf16.mxu0 %v2059
    %3716 = vmatpush1.bf16.msra.mxu0 %v2058
    %3717 = vmatprep.subr.bf16.mxu0 %v2067
    %3718 = vmatpush1.bf16.msra.mxu0 %v2066
    %3719 = vmatprep.subr.bf16.mxu0 %v2075
    %3720 = vmatpush1.bf16.msra.mxu0 %v2074
    %3721 = vmatprep.subr.bf16.mxu0 %v2083
    %3722 = vmatpush1.bf16.msra.mxu0 %v2082
    %3723 = vmatprep.subr.bf16.mxu0 %v2091
    %3724 = vmatpush1.bf16.msra.mxu0 %v2090
    %3725 = vmatprep.subr.bf16.mxu0 %v2099
    %3726 = vmatpush1.bf16.msra.mxu0 %v2098
    %3727 = vmatprep.subr.bf16.mxu0 %v2107
    %3728 = vmatpush1.bf16.msra.mxu0 %v2106
    %3729 = vmatprep.subr.bf16.mxu0 %v2115
    %3730 = vmatpush1.bf16.msra.mxu0 %v2114
    %3731 = vmatprep.subr.bf16.mxu0 %v2123
    %3732 = vmatpush1.bf16.msra.mxu0 %v2122
    %3733 = vmatprep.subr.bf16.mxu0 %v2131
    %3734 = vmatpush1.bf16.msra.mxu0 %v2130
    %3735 = vmatprep.mubr.bf16.mxu0 %v3495
    %3736 = vmatmul.mubr.bf16.gmra.mrb[0].mxu0 %v3494
    %v3737 = vpop.f32.mrb[0].mxu0
    %v3738 = vadd.f32 %v3574, %v3737
    %v3739 = vpop.f32.mrb[0].mxu0
    %v3740 = vadd.f32 %v3576, %v3739
    %v3741 = vpop.f32.mrb[0].mxu0
    %v3742 = vpop.f32.mrb[0].mxu0
    %3743 = vdwg.mxu0
    %3744 = vmatprep.subr.bf16.mxu0 %v2013
    %3745 = vmatpush1.bf16.msra.mxu0 %v2012
    %3746 = vmatprep.subr.bf16.mxu0 %v2021
    %3747 = vmatpush1.bf16.msra.mxu0 %v2020
    %3748 = vmatprep.subr.bf16.mxu0 %v2029
    %3749 = vmatpush1.bf16.msra.mxu0 %v2028
    %3750 = vmatprep.subr.bf16.mxu0 %v2037
    %3751 = vmatpush1.bf16.msra.mxu0 %v2036
    %3752 = vmatprep.subr.bf16.mxu0 %v2045
    %3753 = vmatpush1.bf16.msra.mxu0 %v2044
    %3754 = vmatprep.subr.bf16.mxu0 %v2053
    %3755 = vmatpush1.bf16.msra.mxu0 %v2052
    %3756 = vmatprep.subr.bf16.mxu0 %v2061
    %3757 = vmatpush1.bf16.msra.mxu0 %v2060
    %3758 = vmatprep.subr.bf16.mxu0 %v2069
    %3759 = vmatpush1.bf16.msra.mxu0 %v2068
    %3760 = vmatprep.subr.bf16.mxu0 %v2077
    %3761 = vmatpush1.bf16.msra.mxu0 %v2076
    %3762 = vmatprep.subr.bf16.mxu0 %v2085
    %3763 = vmatpush1.bf16.msra.mxu0 %v2084
    %3764 = vmatprep.subr.bf16.mxu0 %v2093
    %3765 = vmatpush1.bf16.msra.mxu0 %v2092
    %3766 = vmatprep.subr.bf16.mxu0 %v2101
    %3767 = vmatpush1.bf16.msra.mxu0 %v2100
    %3768 = vmatprep.subr.bf16.mxu0 %v2109
    %3769 = vmatpush1.bf16.msra.mxu0 %v2108
    %3770 = vmatprep.subr.bf16.mxu0 %v2117
    %3771 = vmatpush1.bf16.msra.mxu0 %v2116
    %3772 = vmatprep.subr.bf16.mxu0 %v2125
    %3773 = vmatpush1.bf16.msra.mxu0 %v2124
    %3774 = vmatprep.subr.bf16.mxu0 %v2133
    %3775 = vmatpush1.bf16.msra.mxu0 %v2132
    %3776 = vmatprep.mubr.bf16.mxu0 %v3495
    %3777 = vmatmul.mubr.bf16.gmra.mrb[0].mxu0 %v3494
    %v3778 = vpop.f32.mrb[0].mxu0
    %v3779 = vadd.f32 %v3615, %v3778
    %v3780 = vpop.f32.mrb[0].mxu0
    %v3781 = vadd.f32 %v3617, %v3780
    %v3782 = vpop.f32.mrb[0].mxu0
    %v3783 = vpop.f32.mrb[0].mxu0
    %3784 = vdwg.mxu0
    %3785 = vmatprep.subr.bf16.mxu0 %v2015
    %3786 = vmatpush1.bf16.msra.mxu0 %v2014
    %3787 = vmatprep.subr.bf16.mxu0 %v2023
    %3788 = vmatpush1.bf16.msra.mxu0 %v2022
    %3789 = vmatprep.subr.bf16.mxu0 %v2031
    %3790 = vmatpush1.bf16.msra.mxu0 %v2030
    %3791 = vmatprep.subr.bf16.mxu0 %v2039
    %3792 = vmatpush1.bf16.msra.mxu0 %v2038
    %3793 = vmatprep.subr.bf16.mxu0 %v2047
    %3794 = vmatpush1.bf16.msra.mxu0 %v2046
    %3795 = vmatprep.subr.bf16.mxu0 %v2055
    %3796 = vmatpush1.bf16.msra.mxu0 %v2054
    %3797 = vmatprep.subr.bf16.mxu0 %v2063
    %3798 = vmatpush1.bf16.msra.mxu0 %v2062
    %3799 = vmatprep.subr.bf16.mxu0 %v2071
    %3800 = vmatpush1.bf16.msra.mxu0 %v2070
    %3801 = vmatprep.subr.bf16.mxu0 %v2079
    %3802 = vmatpush1.bf16.msra.mxu0 %v2078
    %3803 = vmatprep.subr.bf16.mxu0 %v2087
    %3804 = vmatpush1.bf16.msra.mxu0 %v2086
    %3805 = vmatprep.subr.bf16.mxu0 %v2095
    %3806 = vmatpush1.bf16.msra.mxu0 %v2094
    %3807 = vmatprep.subr.bf16.mxu0 %v2103
    %3808 = vmatpush1.bf16.msra.mxu0 %v2102
    %3809 = vmatprep.subr.bf16.mxu0 %v2111
    %3810 = vmatpush1.bf16.msra.mxu0 %v2110
    %3811 = vmatprep.subr.bf16.mxu0 %v2119
    %3812 = vmatpush1.bf16.msra.mxu0 %v2118
    %3813 = vmatprep.subr.bf16.mxu0 %v2127
    %3814 = vmatpush1.bf16.msra.mxu0 %v2126
    %3815 = vmatprep.subr.bf16.mxu0 %v2135
    %3816 = vmatpush1.bf16.msra.mxu0 %v2134
    %3817 = vmatprep.mubr.bf16.mxu0 %v3495
    %3818 = vmatmul.mubr.bf16.gmra.mrb[0].mxu0 %v3494
    %v3819 = vpop.f32.mrb[0].mxu0
    %v3820 = vadd.f32 %v3656, %v3819
    %v3821 = vpop.f32.mrb[0].mxu0
    %v3822 = vadd.f32 %v3658, %v3821
    %v3823 = vpop.f32.mrb[0].mxu0
    %v3824 = vpop.f32.mrb[0].mxu0
    %3825 = vdwg.mxu0
    %v3826 = vadd.f32 %v3697, %v961
    %v3827 = vadd.f32 %v3699, %v965
    %v3828 = vadd.f32 %v3738, %v969
    %v3829 = vadd.f32 %v3740, %v973
    %v3830 = vadd.f32 %v3779, %v977
    %v3831 = vadd.f32 %v3781, %v981
    %v3832 = vadd.f32 %v3820, %v985
    %v3833 = vadd.f32 %v3822, %v989
    %v3834 = vxor.u32 %v3826, 2147483648
    %v3835 = vxor.u32 %v3827, 2147483648
    %v3836 = vmul.f32 %v3834, 1.442695
    %v3837 = vpow.pop %v3836
    %v3838 = vmul.f32 %v3835, 1.442695
    %v3839 = vpow.pop %v3838
    %v3840 = vadd.f32 %v3837, 1.0
    %v3841 = vadd.f32 %v3839, 1.0
    %v3842 = vrcp.pop %v3840
    %v3843 = vmul.f32 1.0, %v3842
    %v3844 = vrcp.pop %v3841
    %v3845 = vmul.f32 1.0, %v3844
    %v3846 = vxor.u32 %v3828, 2147483648
    %v3847 = vxor.u32 %v3829, 2147483648
    %v3848 = vmul.f32 %v3846, 1.442695
    %v3849 = vpow.pop %v3848
    %v3850 = vmul.f32 %v3847, 1.442695
    %v3851 = vpow.pop %v3850
    %v3852 = vadd.f32 %v3849, 1.0
    %v3853 = vadd.f32 %v3851, 1.0
    %v3854 = vrcp.pop %v3852
    %v3855 = vmul.f32 1.0, %v3854
    %v3856 = vrcp.pop %v3853
    %v3857 = vmul.f32 1.0, %v3856
    %v3858 = vtanh.pop %v3830
    %v3859 = vtanh.pop %v3831
    %v3860 = vxor.u32 %v3832, 2147483648
    %v3861 = vxor.u32 %v3833, 2147483648
    %v3862 = vmul.f32 %v3860, 1.442695
    %v3863 = vpow.pop %v3862
    %v3864 = vmul.f32 %v3861, 1.442695
    %v3865 = vpow.pop %v3864
    %v3866 = vadd.f32 %v3863, 1.0
    %v3867 = vadd.f32 %v3865, 1.0
    %v3868 = vrcp.pop %v3866
    %v3869 = vmul.f32 1.0, %v3868
    %v3870 = vrcp.pop %v3867
    %v3871 = vmul.f32 1.0, %v3870
    %v3872 = vmul.f32 %v3855, %v3260
    %v3873 = vmul.f32 %v3857, %v3261
    %v3874 = vmul.f32 %v3843, %v3858
    %v3875 = vmul.f32 %v3845, %v3859
    %v3876 = vadd.f32 %v3872, %v3874
    %v3877 = vadd.f32 %v3873, %v3875
    %v3878 = vtanh.pop %v3876
    %v3879 = vtanh.pop %v3877
    %v3880 = vmul.f32 %v3869, %v3878
    %v3881 = vmul.f32 %v3871, %v3879
    %v3882 = vld [vmem:[#allocation2 + $0xc0] sm:$0xff]
    %v3883 = vld [vmem:[#allocation2 + $0xc8] sm:$0xff]
    %v3884 = vld [vmem:[#allocation2 + $0xd0] sm:$0xff]
    %v3885 = vld [vmem:[#allocation2 + $0xd8] sm:$0xff]
    %v3886 = vld [vmem:[#allocation2 + $0xe0] sm:$0xff]
    %v3887 = vld [vmem:[#allocation2 + $0xe8] sm:$0xff]
    %v3888 = vld [vmem:[#allocation2 + $0xf0] sm:$0xff]
    %v3889 = vld [vmem:[#allocation2 + $0xf8] sm:$0xff]
    %3890 = vmatprep.subr.bf16.mxu0 %v1531
    %3891 = vmatpush1.bf16.msra.mxu0 %v1530
    %3892 = vmatprep.subr.bf16.mxu0 %v1539
    %3893 = vmatpush1.bf16.msra.mxu0 %v1538
    %3894 = vmatprep.subr.bf16.mxu0 %v1547
    %3895 = vmatpush1.bf16.msra.mxu0 %v1546
    %3896 = vmatprep.subr.bf16.mxu0 %v1555
    %3897 = vmatpush1.bf16.msra.mxu0 %v1554
    %3898 = vmatprep.subr.bf16.mxu0 %v1563
    %3899 = vmatpush1.bf16.msra.mxu0 %v1562
    %3900 = vmatprep.subr.bf16.mxu0 %v1571
    %3901 = vmatpush1.bf16.msra.mxu0 %v1570
    %3902 = vmatprep.subr.bf16.mxu0 %v1579
    %3903 = vmatpush1.bf16.msra.mxu0 %v1578
    %3904 = vmatprep.subr.bf16.mxu0 %v1587
    %3905 = vmatpush1.bf16.msra.mxu0 %v1586
    %3906 = vmatprep.subr.bf16.mxu0 %v1595
    %3907 = vmatpush1.bf16.msra.mxu0 %v1594
    %3908 = vmatprep.subr.bf16.mxu0 %v1603
    %3909 = vmatpush1.bf16.msra.mxu0 %v1602
    %3910 = vmatprep.subr.bf16.mxu0 %v1611
    %3911 = vmatpush1.bf16.msra.mxu0 %v1610
    %3912 = vmatprep.subr.bf16.mxu0 %v1619
    %3913 = vmatpush1.bf16.msra.mxu0 %v1618
    %3914 = vmatprep.subr.bf16.mxu0 %v1627
    %3915 = vmatpush1.bf16.msra.mxu0 %v1626
    %3916 = vmatprep.subr.bf16.mxu0 %v1635
    %3917 = vmatpush1.bf16.msra.mxu0 %v1634
    %3918 = vmatprep.subr.bf16.mxu0 %v1643
    %3919 = vmatpush1.bf16.msra.mxu0 %v1642
    %3920 = vmatprep.subr.bf16.mxu0 %v1651
    %3921 = vmatpush1.bf16.msra.mxu0 %v1650
    %3922 = vmatprep.mubr.bf16.mxu0 %v3495
    %3923 = vmatmul.mubr.bf16.gmra.mrb[0].mxu0 %v3494
    %v3924 = vpop.f32.mrb[0].mxu0
    %v3925 = vadd.f32 0.0, %v3924
    %v3926 = vpop.f32.mrb[0].mxu0
    %v3927 = vadd.f32 0.0, %v3926
    %v3928 = vpop.f32.mrb[0].mxu0
    %v3929 = vpop.f32.mrb[0].mxu0
    %3930 = vdwg.mxu0
    %3931 = vmatprep.subr.bf16.mxu0 %v1533
    %3932 = vmatpush1.bf16.msra.mxu0 %v1532
    %3933 = vmatprep.subr.bf16.mxu0 %v1541
    %3934 = vmatpush1.bf16.msra.mxu0 %v1540
    %3935 = vmatprep.subr.bf16.mxu0 %v1549
    %3936 = vmatpush1.bf16.msra.mxu0 %v1548
    %3937 = vmatprep.subr.bf16.mxu0 %v1557
    %3938 = vmatpush1.bf16.msra.mxu0 %v1556
    %3939 = vmatprep.subr.bf16.mxu0 %v1565
    %3940 = vmatpush1.bf16.msra.mxu0 %v1564
    %3941 = vmatprep.subr.bf16.mxu0 %v1573
    %3942 = vmatpush1.bf16.msra.mxu0 %v1572
    %3943 = vmatprep.subr.bf16.mxu0 %v1581
    %3944 = vmatpush1.bf16.msra.mxu0 %v1580
    %3945 = vmatprep.subr.bf16.mxu0 %v1589
    %3946 = vmatpush1.bf16.msra.mxu0 %v1588
    %3947 = vmatprep.subr.bf16.mxu0 %v1597
    %3948 = vmatpush1.bf16.msra.mxu0 %v1596
    %3949 = vmatprep.subr.bf16.mxu0 %v1605
    %3950 = vmatpush1.bf16.msra.mxu0 %v1604
    %3951 = vmatprep.subr.bf16.mxu0 %v1613
    %3952 = vmatpush1.bf16.msra.mxu0 %v1612
    %3953 = vmatprep.subr.bf16.mxu0 %v1621
    %3954 = vmatpush1.bf16.msra.mxu0 %v1620
    %3955 = vmatprep.subr.bf16.mxu0 %v1629
    %3956 = vmatpush1.bf16.msra.mxu0 %v1628
    %3957 = vmatprep.subr.bf16.mxu0 %v1637
    %3958 = vmatpush1.bf16.msra.mxu0 %v1636
    %3959 = vmatprep.subr.bf16.mxu0 %v1645
    %3960 = vmatpush1.bf16.msra.mxu0 %v1644
    %3961 = vmatprep.subr.bf16.mxu0 %v1653
    %3962 = vmatpush1.bf16.msra.mxu0 %v1652
    %3963 = vmatprep.mubr.bf16.mxu0 %v3495
    %3964 = vmatmul.mubr.bf16.gmra.mrb[0].mxu0 %v3494
    %v3965 = vpop.f32.mrb[0].mxu0
    %v3966 = vadd.f32 0.0, %v3965
    %v3967 = vpop.f32.mrb[0].mxu0
    %v3968 = vadd.f32 0.0, %v3967
    %v3969 = vpop.f32.mrb[0].mxu0
    %v3970 = vpop.f32.mrb[0].mxu0
    %3971 = vdwg.mxu0
    %3972 = vmatprep.subr.bf16.mxu0 %v1535
    %3973 = vmatpush1.bf16.msra.mxu0 %v1534
    %3974 = vmatprep.subr.bf16.mxu0 %v1543
    %3975 = vmatpush1.bf16.msra.mxu0 %v1542
    %3976 = vmatprep.subr.bf16.mxu0 %v1551
    %3977 = vmatpush1.bf16.msra.mxu0 %v1550
    %3978 = vmatprep.subr.bf16.mxu0 %v1559
    %3979 = vmatpush1.bf16.msra.mxu0 %v1558
    %3980 = vmatprep.subr.bf16.mxu0 %v1567
    %3981 = vmatpush1.bf16.msra.mxu0 %v1566
    %3982 = vmatprep.subr.bf16.mxu0 %v1575
    %3983 = vmatpush1.bf16.msra.mxu0 %v1574
    %3984 = vmatprep.subr.bf16.mxu0 %v1583
    %3985 = vmatpush1.bf16.msra.mxu0 %v1582
    %3986 = vmatprep.subr.bf16.mxu0 %v1591
    %3987 = vmatpush1.bf16.msra.mxu0 %v1590
    %3988 = vmatprep.subr.bf16.mxu0 %v1599
    %3989 = vmatpush1.bf16.msra.mxu0 %v1598
    %3990 = vmatprep.subr.bf16.mxu0 %v1607
    %3991 = vmatpush1.bf16.msra.mxu0 %v1606
    %3992 = vmatprep.subr.bf16.mxu0 %v1615
    %3993 = vmatpush1.bf16.msra.mxu0 %v1614
    %3994 = vmatprep.subr.bf16.mxu0 %v1623
    %3995 = vmatpush1.bf16.msra.mxu0 %v1622
    %3996 = vmatprep.subr.bf16.mxu0 %v1631
    %3997 = vmatpush1.bf16.msra.mxu0 %v1630
    %3998 = vmatprep.subr.bf16.mxu0 %v1639
    %3999 = vmatpush1.bf16.msra.mxu0 %v1638
    %4000 = vmatprep.subr.bf16.mxu0 %v1647
    %4001 = vmatpush1.bf16.msra.mxu0 %v1646
    %4002 = vmatprep.subr.bf16.mxu0 %v1655
    %4003 = vmatpush1.bf16.msra.mxu0 %v1654
    %4004 = vmatprep.mubr.bf16.mxu0 %v3495
    %4005 = vmatmul.mubr.bf16.gmra.mrb[0].mxu0 %v3494
    %v4006 = vpop.f32.mrb[0].mxu0
    %v4007 = vadd.f32 0.0, %v4006
    %v4008 = vpop.f32.mrb[0].mxu0
    %v4009 = vadd.f32 0.0, %v4008
    %v4010 = vpop.f32.mrb[0].mxu0
    %v4011 = vpop.f32.mrb[0].mxu0
    %4012 = vdwg.mxu0
    %4013 = vmatprep.subr.bf16.mxu0 %v1537
    %4014 = vmatpush1.bf16.msra.mxu0 %v1536
    %4015 = vmatprep.subr.bf16.mxu0 %v1545
    %4016 = vmatpush1.bf16.msra.mxu0 %v1544
    %4017 = vmatprep.subr.bf16.mxu0 %v1553
    %4018 = vmatpush1.bf16.msra.mxu0 %v1552
    %4019 = vmatprep.subr.bf16.mxu0 %v1561
    %4020 = vmatpush1.bf16.msra.mxu0 %v1560
    %4021 = vmatprep.subr.bf16.mxu0 %v1569
    %4022 = vmatpush1.bf16.msra.mxu0 %v1568
    %4023 = vmatprep.subr.bf16.mxu0 %v1577
    %4024 = vmatpush1.bf16.msra.mxu0 %v1576
    %4025 = vmatprep.subr.bf16.mxu0 %v1585
    %4026 = vmatpush1.bf16.msra.mxu0 %v1584
    %4027 = vmatprep.subr.bf16.mxu0 %v1593
    %4028 = vmatpush1.bf16.msra.mxu0 %v1592
    %4029 = vmatprep.subr.bf16.mxu0 %v1601
    %4030 = vmatpush1.bf16.msra.mxu0 %v1600
    %4031 = vmatprep.subr.bf16.mxu0 %v1609
    %4032 = vmatpush1.bf16.msra.mxu0 %v1608
    %4033 = vmatprep.subr.bf16.mxu0 %v1617
    %4034 = vmatpush1.bf16.msra.mxu0 %v1616
    %4035 = vmatprep.subr.bf16.mxu0 %v1625
    %4036 = vmatpush1.bf16.msra.mxu0 %v1624
    %4037 = vmatprep.subr.bf16.mxu0 %v1633
    %4038 = vmatpush1.bf16.msra.mxu0 %v1632
    %4039 = vmatprep.subr.bf16.mxu0 %v1641
    %4040 = vmatpush1.bf16.msra.mxu0 %v1640
    %4041 = vmatprep.subr.bf16.mxu0 %v1649
    %4042 = vmatpush1.bf16.msra.mxu0 %v1648
    %4043 = vmatprep.subr.bf16.mxu0 %v1657
    %4044 = vmatpush1.bf16.msra.mxu0 %v1656
    %4045 = vmatprep.mubr.bf16.mxu0 %v3495
    %4046 = vmatmul.mubr.bf16.gmra.mrb[0].mxu0 %v3494
    %v4047 = vpop.f32.mrb[0].mxu0
    %v4048 = vadd.f32 0.0, %v4047
    %v4049 = vpop.f32.mrb[0].mxu0
    %v4050 = vadd.f32 0.0, %v4049
    %v4051 = vpop.f32.mrb[0].mxu0
    %v4052 = vpop.f32.mrb[0].mxu0
    %4053 = vdwg.mxu0
    %v4054 = vadd.f32 %v3882, %v3925
    %v4055 = vadd.f32 %v3883, %v3927
    %v4056 = vadd.f32 %v3884, %v3966
    %v4057 = vadd.f32 %v3885, %v3968
    %v4058 = vadd.f32 %v3886, %v4007
    %v4059 = vadd.f32 %v3887, %v4009
    %v4060 = vadd.f32 %v3888, %v4048
    %v4061 = vadd.f32 %v3889, %v4050
    %v4062 = vxor.u32 %v4054, 2147483648
    %v4063 = vxor.u32 %v4055, 2147483648
    %v4064 = vmul.f32 %v4062, 1.442695
    %v4065 = vpow.pop %v4064
    %v4066 = vmul.f32 %v4063, 1.442695
    %v4067 = vpow.pop %v4066
    %v4068 = vadd.f32 %v4065, 1.0
    %v4069 = vadd.f32 %v4067, 1.0
    %v4070 = vrcp.pop %v4068
    %v4071 = vmul.f32 1.0, %v4070
    %v4072 = vrcp.pop %v4069
    %v4073 = vmul.f32 1.0, %v4072
    %v4074 = vxor.u32 %v4056, 2147483648
    %v4075 = vxor.u32 %v4057, 2147483648
    %v4076 = vmul.f32 %v4074, 1.442695
    %v4077 = vpow.pop %v4076
    %v4078 = vmul.f32 %v4075, 1.442695
    %v4079 = vpow.pop %v4078
    %v4080 = vadd.f32 %v4077, 1.0
    %v4081 = vadd.f32 %v4079, 1.0
    %v4082 = vrcp.pop %v4080
    %v4083 = vmul.f32 1.0, %v4082
    %v4084 = vrcp.pop %v4081
    %v4085 = vmul.f32 1.0, %v4084
    %v4086 = vtanh.pop %v4058
    %v4087 = vtanh.pop %v4059
    %v4088 = vxor.u32 %v4060, 2147483648
    %v4089 = vxor.u32 %v4061, 2147483648
    %v4090 = vmul.f32 %v4088, 1.442695
    %v4091 = vpow.pop %v4090
    %v4092 = vmul.f32 %v4089, 1.442695
    %v4093 = vpow.pop %v4092
    %v4094 = vadd.f32 %v4091, 1.0
    %v4095 = vadd.f32 %v4093, 1.0
    %v4096 = vrcp.pop %v4094
    %v4097 = vmul.f32 1.0, %v4096
    %v4098 = vrcp.pop %v4095
    %v4099 = vmul.f32 1.0, %v4098
    %v4100 = vmul.f32 %v4083, %v3488
    %v4101 = vmul.f32 %v4085, %v3489
    %v4102 = vmul.f32 %v4071, %v4086
    %v4103 = vmul.f32 %v4073, %v4087
    %v4104 = vadd.f32 %v4100, %v4102
    %v4105 = vadd.f32 %v4101, %v4103
    %v4106 = vtanh.pop %v4104
    %v4107 = vtanh.pop %v4105
    %v4108 = vmul.f32 %v4097, %v4106
    %v4109 = vmul.f32 %v4099, %v4107
    %v4110 = vpack.c.bf16 %v4108, %v4108
    %v4111 = vpack.c.bf16 %v4109, %v4109
    %v4112 = vpack.c.bf16 %v3880, %v3880
    %v4113 = vpack.c.bf16 %v3881, %v3881
    %4114 = vmatprep.subr.bf16.mxu0 %v2139
    %4115 = vmatpush1.bf16.msra.mxu0 %v2138
    %4116 = vmatprep.subr.bf16.mxu0 %v2147
    %4117 = vmatpush1.bf16.msra.mxu0 %v2146
    %4118 = vmatprep.subr.bf16.mxu0 %v2155
    %4119 = vmatpush1.bf16.msra.mxu0 %v2154
    %4120 = vmatprep.subr.bf16.mxu0 %v2163
    %4121 = vmatpush1.bf16.msra.mxu0 %v2162
    %4122 = vmatprep.subr.bf16.mxu0 %v2171
    %4123 = vmatpush1.bf16.msra.mxu0 %v2170
    %4124 = vmatprep.subr.bf16.mxu0 %v2179
    %4125 = vmatpush1.bf16.msra.mxu0 %v2178
    %4126 = vmatprep.subr.bf16.mxu0 %v2187
    %4127 = vmatpush1.bf16.msra.mxu0 %v2186
    %4128 = vmatprep.subr.bf16.mxu0 %v2195
    %4129 = vmatpush1.bf16.msra.mxu0 %v2194
    %4130 = vmatprep.subr.bf16.mxu0 %v2203
    %4131 = vmatpush1.bf16.msra.mxu0 %v2202
    %4132 = vmatprep.subr.bf16.mxu0 %v2211
    %4133 = vmatpush1.bf16.msra.mxu0 %v2210
    %4134 = vmatprep.subr.bf16.mxu0 %v2219
    %4135 = vmatpush1.bf16.msra.mxu0 %v2218
    %4136 = vmatprep.subr.bf16.mxu0 %v2227
    %4137 = vmatpush1.bf16.msra.mxu0 %v2226
    %4138 = vmatprep.subr.bf16.mxu0 %v2235
    %4139 = vmatpush1.bf16.msra.mxu0 %v2234
    %4140 = vmatprep.subr.bf16.mxu0 %v2243
    %4141 = vmatpush1.bf16.msra.mxu0 %v2242
    %4142 = vmatprep.subr.bf16.mxu0 %v2251
    %4143 = vmatpush1.bf16.msra.mxu0 %v2250
    %4144 = vmatprep.subr.bf16.mxu0 %v2259
    %4145 = vmatpush1.bf16.msra.mxu0 %v2258
    %4146 = vmatprep.mubr.bf16.mxu0 %v4113
    %4147 = vmatmul.mubr.bf16.gmra.mrb[0].mxu0 %v4112
    %v4148 = vpop.f32.mrb[0].mxu0
    %v4149 = vadd.f32 0.0, %v4148
    %v4150 = vpop.f32.mrb[0].mxu0
    %v4151 = vadd.f32 0.0, %v4150
    %v4152 = vpop.f32.mrb[0].mxu0
    %v4153 = vpop.f32.mrb[0].mxu0
    %4154 = vdwg.mxu0
    %4155 = vmatprep.subr.bf16.mxu0 %v2141
    %4156 = vmatpush1.bf16.msra.mxu0 %v2140
    %4157 = vmatprep.subr.bf16.mxu0 %v2149
    %4158 = vmatpush1.bf16.msra.mxu0 %v2148
    %4159 = vmatprep.subr.bf16.mxu0 %v2157
    %4160 = vmatpush1.bf16.msra.mxu0 %v2156
    %4161 = vmatprep.subr.bf16.mxu0 %v2165
    %4162 = vmatpush1.bf16.msra.mxu0 %v2164
    %4163 = vmatprep.subr.bf16.mxu0 %v2173
    %4164 = vmatpush1.bf16.msra.mxu0 %v2172
    %4165 = vmatprep.subr.bf16.mxu0 %v2181
    %4166 = vmatpush1.bf16.msra.mxu0 %v2180
    %4167 = vmatprep.subr.bf16.mxu0 %v2189
    %4168 = vmatpush1.bf16.msra.mxu0 %v2188
    %4169 = vmatprep.subr.bf16.mxu0 %v2197
    %4170 = vmatpush1.bf16.msra.mxu0 %v2196
    %4171 = vmatprep.subr.bf16.mxu0 %v2205
    %4172 = vmatpush1.bf16.msra.mxu0 %v2204
    %4173 = vmatprep.subr.bf16.mxu0 %v2213
    %4174 = vmatpush1.bf16.msra.mxu0 %v2212
    %4175 = vmatprep.subr.bf16.mxu0 %v2221
    %4176 = vmatpush1.bf16.msra.mxu0 %v2220
    %4177 = vmatprep.subr.bf16.mxu0 %v2229
    %4178 = vmatpush1.bf16.msra.mxu0 %v2228
    %4179 = vmatprep.subr.bf16.mxu0 %v2237
    %4180 = vmatpush1.bf16.msra.mxu0 %v2236
    %4181 = vmatprep.subr.bf16.mxu0 %v2245
    %4182 = vmatpush1.bf16.msra.mxu0 %v2244
    %4183 = vmatprep.subr.bf16.mxu0 %v2253
    %4184 = vmatpush1.bf16.msra.mxu0 %v2252
    %4185 = vmatprep.subr.bf16.mxu0 %v2261
    %4186 = vmatpush1.bf16.msra.mxu0 %v2260
    %4187 = vmatprep.mubr.bf16.mxu0 %v4113
    %4188 = vmatmul.mubr.bf16.gmra.mrb[0].mxu0 %v4112
    %v4189 = vpop.f32.mrb[0].mxu0
    %v4190 = vadd.f32 0.0, %v4189
    %v4191 = vpop.f32.mrb[0].mxu0
    %v4192 = vadd.f32 0.0, %v4191
    %v4193 = vpop.f32.mrb[0].mxu0
    %v4194 = vpop.f32.mrb[0].mxu0
    %4195 = vdwg.mxu0
    %4196 = vmatprep.subr.bf16.mxu0 %v2143
    %4197 = vmatpush1.bf16.msra.mxu0 %v2142
    %4198 = vmatprep.subr.bf16.mxu0 %v2151
    %4199 = vmatpush1.bf16.msra.mxu0 %v2150
    %4200 = vmatprep.subr.bf16.mxu0 %v2159
    %4201 = vmatpush1.bf16.msra.mxu0 %v2158
    %4202 = vmatprep.subr.bf16.mxu0 %v2167
    %4203 = vmatpush1.bf16.msra.mxu0 %v2166
    %4204 = vmatprep.subr.bf16.mxu0 %v2175
    %4205 = vmatpush1.bf16.msra.mxu0 %v2174
    %4206 = vmatprep.subr.bf16.mxu0 %v2183
    %4207 = vmatpush1.bf16.msra.mxu0 %v2182
    %4208 = vmatprep.subr.bf16.mxu0 %v2191
    %4209 = vmatpush1.bf16.msra.mxu0 %v2190
    %4210 = vmatprep.subr.bf16.mxu0 %v2199
    %4211 = vmatpush1.bf16.msra.mxu0 %v2198
    %4212 = vmatprep.subr.bf16.mxu0 %v2207
    %4213 = vmatpush1.bf16.msra.mxu0 %v2206
    %4214 = vmatprep.subr.bf16.mxu0 %v2215
    %4215 = vmatpush1.bf16.msra.mxu0 %v2214
    %4216 = vmatprep.subr.bf16.mxu0 %v2223
    %4217 = vmatpush1.bf16.msra.mxu0 %v2222
    %4218 = vmatprep.subr.bf16.mxu0 %v2231
    %4219 = vmatpush1.bf16.msra.mxu0 %v2230
    %4220 = vmatprep.subr.bf16.mxu0 %v2239
    %4221 = vmatpush1.bf16.msra.mxu0 %v2238
    %4222 = vmatprep.subr.bf16.mxu0 %v2247
    %4223 = vmatpush1.bf16.msra.mxu0 %v2246
    %4224 = vmatprep.subr.bf16.mxu0 %v2255
    %4225 = vmatpush1.bf16.msra.mxu0 %v2254
    %4226 = vmatprep.subr.bf16.mxu0 %v2263
    %4227 = vmatpush1.bf16.msra.mxu0 %v2262
    %4228 = vmatprep.mubr.bf16.mxu0 %v4113
    %4229 = vmatmul.mubr.bf16.gmra.mrb[0].mxu0 %v4112
    %v4230 = vpop.f32.mrb[0].mxu0
    %v4231 = vadd.f32 0.0, %v4230
    %v4232 = vpop.f32.mrb[0].mxu0
    %v4233 = vadd.f32 0.0, %v4232
    %v4234 = vpop.f32.mrb[0].mxu0
    %v4235 = vpop.f32.mrb[0].mxu0
    %4236 = vdwg.mxu0
    %4237 = vmatprep.subr.bf16.mxu0 %v2145
    %4238 = vmatpush1.bf16.msra.mxu0 %v2144
    %4239 = vmatprep.subr.bf16.mxu0 %v2153
    %4240 = vmatpush1.bf16.msra.mxu0 %v2152
    %4241 = vmatprep.subr.bf16.mxu0 %v2161
    %4242 = vmatpush1.bf16.msra.mxu0 %v2160
    %4243 = vmatprep.subr.bf16.mxu0 %v2169
    %4244 = vmatpush1.bf16.msra.mxu0 %v2168
    %4245 = vmatprep.subr.bf16.mxu0 %v2177
    %4246 = vmatpush1.bf16.msra.mxu0 %v2176
    %4247 = vmatprep.subr.bf16.mxu0 %v2185
    %4248 = vmatpush1.bf16.msra.mxu0 %v2184
    %4249 = vmatprep.subr.bf16.mxu0 %v2193
    %4250 = vmatpush1.bf16.msra.mxu0 %v2192
    %4251 = vmatprep.subr.bf16.mxu0 %v2201
    %4252 = vmatpush1.bf16.msra.mxu0 %v2200
    %4253 = vmatprep.subr.bf16.mxu0 %v2209
    %4254 = vmatpush1.bf16.msra.mxu0 %v2208
    %4255 = vmatprep.subr.bf16.mxu0 %v2217
    %4256 = vmatpush1.bf16.msra.mxu0 %v2216
    %4257 = vmatprep.subr.bf16.mxu0 %v2225
    %4258 = vmatpush1.bf16.msra.mxu0 %v2224
    %4259 = vmatprep.subr.bf16.mxu0 %v2233
    %4260 = vmatpush1.bf16.msra.mxu0 %v2232
    %4261 = vmatprep.subr.bf16.mxu0 %v2241
    %4262 = vmatpush1.bf16.msra.mxu0 %v2240
    %4263 = vmatprep.subr.bf16.mxu0 %v2249
    %4264 = vmatpush1.bf16.msra.mxu0 %v2248
    %4265 = vmatprep.subr.bf16.mxu0 %v2257
    %4266 = vmatpush1.bf16.msra.mxu0 %v2256
    %4267 = vmatprep.subr.bf16.mxu0 %v2265
    %4268 = vmatpush1.bf16.msra.mxu0 %v2264
    %4269 = vmatprep.mubr.bf16.mxu0 %v4113
    %4270 = vmatmul.mubr.bf16.gmra.mrb[0].mxu0 %v4112
    %v4271 = vpop.f32.mrb[0].mxu0
    %v4272 = vadd.f32 0.0, %v4271
    %v4273 = vpop.f32.mrb[0].mxu0
    %v4274 = vadd.f32 0.0, %v4273
    %v4275 = vpop.f32.mrb[0].mxu0
    %v4276 = vpop.f32.mrb[0].mxu0
    %4277 = vdwg.mxu0
    %4278 = vmatprep.subr.bf16.mxu0 %v2009
    %4279 = vmatpush1.bf16.msra.mxu0 %v2008
    %4280 = vmatprep.subr.bf16.mxu0 %v2017
    %4281 = vmatpush1.bf16.msra.mxu0 %v2016
    %4282 = vmatprep.subr.bf16.mxu0 %v2025
    %4283 = vmatpush1.bf16.msra.mxu0 %v2024
    %4284 = vmatprep.subr.bf16.mxu0 %v2033
    %4285 = vmatpush1.bf16.msra.mxu0 %v2032
    %4286 = vmatprep.subr.bf16.mxu0 %v2041
    %4287 = vmatpush1.bf16.msra.mxu0 %v2040
    %4288 = vmatprep.subr.bf16.mxu0 %v2049
    %4289 = vmatpush1.bf16.msra.mxu0 %v2048
    %4290 = vmatprep.subr.bf16.mxu0 %v2057
    %4291 = vmatpush1.bf16.msra.mxu0 %v2056
    %4292 = vmatprep.subr.bf16.mxu0 %v2065
    %4293 = vmatpush1.bf16.msra.mxu0 %v2064
    %4294 = vmatprep.subr.bf16.mxu0 %v2073
    %4295 = vmatpush1.bf16.msra.mxu0 %v2072
    %4296 = vmatprep.subr.bf16.mxu0 %v2081
    %4297 = vmatpush1.bf16.msra.mxu0 %v2080
    %4298 = vmatprep.subr.bf16.mxu0 %v2089
    %4299 = vmatpush1.bf16.msra.mxu0 %v2088
    %4300 = vmatprep.subr.bf16.mxu0 %v2097
    %4301 = vmatpush1.bf16.msra.mxu0 %v2096
    %4302 = vmatprep.subr.bf16.mxu0 %v2105
    %4303 = vmatpush1.bf16.msra.mxu0 %v2104
    %4304 = vmatprep.subr.bf16.mxu0 %v2113
    %4305 = vmatpush1.bf16.msra.mxu0 %v2112
    %4306 = vmatprep.subr.bf16.mxu0 %v2121
    %4307 = vmatpush1.bf16.msra.mxu0 %v2120
    %4308 = vmatprep.subr.bf16.mxu0 %v2129
    %4309 = vmatpush1.bf16.msra.mxu0 %v2128
    %4310 = vmatprep.mubr.bf16.mxu0 %v4111
    %4311 = vmatmul.mubr.bf16.gmra.mrb[0].mxu0 %v4110
    %v4312 = vpop.f32.mrb[0].mxu0
    %v4313 = vadd.f32 %v4149, %v4312
    %v4314 = vpop.f32.mrb[0].mxu0
    %v4315 = vadd.f32 %v4151, %v4314
    %v4316 = vpop.f32.mrb[0].mxu0
    %v4317 = vpop.f32.mrb[0].mxu0
    %4318 = vdwg.mxu0
    %4319 = vmatprep.subr.bf16.mxu0 %v2011
    %4320 = vmatpush1.bf16.msra.mxu0 %v2010
    %4321 = vmatprep.subr.bf16.mxu0 %v2019
    %4322 = vmatpush1.bf16.msra.mxu0 %v2018
    %4323 = vmatprep.subr.bf16.mxu0 %v2027
    %4324 = vmatpush1.bf16.msra.mxu0 %v2026
    %4325 = vmatprep.subr.bf16.mxu0 %v2035
    %4326 = vmatpush1.bf16.msra.mxu0 %v2034
    %4327 = vmatprep.subr.bf16.mxu0 %v2043
    %4328 = vmatpush1.bf16.msra.mxu0 %v2042
    %4329 = vmatprep.subr.bf16.mxu0 %v2051
    %4330 = vmatpush1.bf16.msra.mxu0 %v2050
    %4331 = vmatprep.subr.bf16.mxu0 %v2059
    %4332 = vmatpush1.bf16.msra.mxu0 %v2058
    %4333 = vmatprep.subr.bf16.mxu0 %v2067
    %4334 = vmatpush1.bf16.msra.mxu0 %v2066
    %4335 = vmatprep.subr.bf16.mxu0 %v2075
    %4336 = vmatpush1.bf16.msra.mxu0 %v2074
    %4337 = vmatprep.subr.bf16.mxu0 %v2083
    %4338 = vmatpush1.bf16.msra.mxu0 %v2082
    %4339 = vmatprep.subr.bf16.mxu0 %v2091
    %4340 = vmatpush1.bf16.msra.mxu0 %v2090
    %4341 = vmatprep.subr.bf16.mxu0 %v2099
    %4342 = vmatpush1.bf16.msra.mxu0 %v2098
    %4343 = vmatprep.subr.bf16.mxu0 %v2107
    %4344 = vmatpush1.bf16.msra.mxu0 %v2106
    %4345 = vmatprep.subr.bf16.mxu0 %v2115
    %4346 = vmatpush1.bf16.msra.mxu0 %v2114
    %4347 = vmatprep.subr.bf16.mxu0 %v2123
    %4348 = vmatpush1.bf16.msra.mxu0 %v2122
    %4349 = vmatprep.subr.bf16.mxu0 %v2131
    %4350 = vmatpush1.bf16.msra.mxu0 %v2130
    %4351 = vmatprep.mubr.bf16.mxu0 %v4111
    %4352 = vmatmul.mubr.bf16.gmra.mrb[0].mxu0 %v4110
    %v4353 = vpop.f32.mrb[0].mxu0
    %v4354 = vadd.f32 %v4190, %v4353
    %v4355 = vpop.f32.mrb[0].mxu0
    %v4356 = vadd.f32 %v4192, %v4355
    %v4357 = vpop.f32.mrb[0].mxu0
    %v4358 = vpop.f32.mrb[0].mxu0
    %4359 = vdwg.mxu0
    %4360 = vmatprep.subr.bf16.mxu0 %v2013
    %4361 = vmatpush1.bf16.msra.mxu0 %v2012
    %4362 = vmatprep.subr.bf16.mxu0 %v2021
    %4363 = vmatpush1.bf16.msra.mxu0 %v2020
    %4364 = vmatprep.subr.bf16.mxu0 %v2029
    %4365 = vmatpush1.bf16.msra.mxu0 %v2028
    %4366 = vmatprep.subr.bf16.mxu0 %v2037
    %4367 = vmatpush1.bf16.msra.mxu0 %v2036
    %4368 = vmatprep.subr.bf16.mxu0 %v2045
    %4369 = vmatpush1.bf16.msra.mxu0 %v2044
    %4370 = vmatprep.subr.bf16.mxu0 %v2053
    %4371 = vmatpush1.bf16.msra.mxu0 %v2052
    %4372 = vmatprep.subr.bf16.mxu0 %v2061
    %4373 = vmatpush1.bf16.msra.mxu0 %v2060
    %4374 = vmatprep.subr.bf16.mxu0 %v2069
    %4375 = vmatpush1.bf16.msra.mxu0 %v2068
    %4376 = vmatprep.subr.bf16.mxu0 %v2077
    %4377 = vmatpush1.bf16.msra.mxu0 %v2076
    %4378 = vmatprep.subr.bf16.mxu0 %v2085
    %4379 = vmatpush1.bf16.msra.mxu0 %v2084
    %4380 = vmatprep.subr.bf16.mxu0 %v2093
    %4381 = vmatpush1.bf16.msra.mxu0 %v2092
    %4382 = vmatprep.subr.bf16.mxu0 %v2101
    %4383 = vmatpush1.bf16.msra.mxu0 %v2100
    %4384 = vmatprep.subr.bf16.mxu0 %v2109
    %4385 = vmatpush1.bf16.msra.mxu0 %v2108
    %4386 = vmatprep.subr.bf16.mxu0 %v2117
    %4387 = vmatpush1.bf16.msra.mxu0 %v2116
    %4388 = vmatprep.subr.bf16.mxu0 %v2125
    %4389 = vmatpush1.bf16.msra.mxu0 %v2124
    %4390 = vmatprep.subr.bf16.mxu0 %v2133
    %4391 = vmatpush1.bf16.msra.mxu0 %v2132
    %4392 = vmatprep.mubr.bf16.mxu0 %v4111
    %4393 = vmatmul.mubr.bf16.gmra.mrb[0].mxu0 %v4110
    %v4394 = vpop.f32.mrb[0].mxu0
    %v4395 = vadd.f32 %v4231, %v4394
    %v4396 = vpop.f32.mrb[0].mxu0
    %v4397 = vadd.f32 %v4233, %v4396
    %v4398 = vpop.f32.mrb[0].mxu0
    %v4399 = vpop.f32.mrb[0].mxu0
    %4400 = vdwg.mxu0
    %4401 = vmatprep.subr.bf16.mxu0 %v2015
    %4402 = vmatpush1.bf16.msra.mxu0 %v2014
    %4403 = vmatprep.subr.bf16.mxu0 %v2023
    %4404 = vmatpush1.bf16.msra.mxu0 %v2022
    %4405 = vmatprep.subr.bf16.mxu0 %v2031
    %4406 = vmatpush1.bf16.msra.mxu0 %v2030
    %4407 = vmatprep.subr.bf16.mxu0 %v2039
    %4408 = vmatpush1.bf16.msra.mxu0 %v2038
    %4409 = vmatprep.subr.bf16.mxu0 %v2047
    %4410 = vmatpush1.bf16.msra.mxu0 %v2046
    %4411 = vmatprep.subr.bf16.mxu0 %v2055
    %4412 = vmatpush1.bf16.msra.mxu0 %v2054
    %4413 = vmatprep.subr.bf16.mxu0 %v2063
    %4414 = vmatpush1.bf16.msra.mxu0 %v2062
    %4415 = vmatprep.subr.bf16.mxu0 %v2071
    %4416 = vmatpush1.bf16.msra.mxu0 %v2070
    %4417 = vmatprep.subr.bf16.mxu0 %v2079
    %4418 = vmatpush1.bf16.msra.mxu0 %v2078
    %4419 = vmatprep.subr.bf16.mxu0 %v2087
    %4420 = vmatpush1.bf16.msra.mxu0 %v2086
    %4421 = vmatprep.subr.bf16.mxu0 %v2095
    %4422 = vmatpush1.bf16.msra.mxu0 %v2094
    %4423 = vmatprep.subr.bf16.mxu0 %v2103
    %4424 = vmatpush1.bf16.msra.mxu0 %v2102
    %4425 = vmatprep.subr.bf16.mxu0 %v2111
    %4426 = vmatpush1.bf16.msra.mxu0 %v2110
    %4427 = vmatprep.subr.bf16.mxu0 %v2119
    %4428 = vmatpush1.bf16.msra.mxu0 %v2118
    %4429 = vmatprep.subr.bf16.mxu0 %v2127
    %4430 = vmatpush1.bf16.msra.mxu0 %v2126
    %4431 = vmatprep.subr.bf16.mxu0 %v2135
    %4432 = vmatpush1.bf16.msra.mxu0 %v2134
    %4433 = vmatprep.mubr.bf16.mxu0 %v4111
    %4434 = vmatmul.mubr.bf16.gmra.mrb[0].mxu0 %v4110
    %v4435 = vpop.f32.mrb[0].mxu0
    %v4436 = vadd.f32 %v4272, %v4435
    %v4437 = vpop.f32.mrb[0].mxu0
    %v4438 = vadd.f32 %v4274, %v4437
    %v4439 = vpop.f32.mrb[0].mxu0
    %v4440 = vpop.f32.mrb[0].mxu0
    %4441 = vdwg.mxu0
    %v4442 = vadd.f32 %v4313, %v961
    %v4443 = vadd.f32 %v4315, %v965
    %v4444 = vadd.f32 %v4354, %v969
    %v4445 = vadd.f32 %v4356, %v973
    %v4446 = vadd.f32 %v4395, %v977
    %v4447 = vadd.f32 %v4397, %v981
    %v4448 = vadd.f32 %v4436, %v985
    %v4449 = vadd.f32 %v4438, %v989
    %v4450 = vxor.u32 %v4442, 2147483648
    %v4451 = vxor.u32 %v4443, 2147483648
    %v4452 = vmul.f32 %v4450, 1.442695
    %v4453 = vpow.pop %v4452
    %v4454 = vmul.f32 %v4451, 1.442695
    %v4455 = vpow.pop %v4454
    %v4456 = vadd.f32 %v4453, 1.0
    %v4457 = vadd.f32 %v4455, 1.0
    %v4458 = vrcp.pop %v4456
    %v4459 = vmul.f32 1.0, %v4458
    %v4460 = vrcp.pop %v4457
    %v4461 = vmul.f32 1.0, %v4460
    %v4462 = vxor.u32 %v4444, 2147483648
    %v4463 = vxor.u32 %v4445, 2147483648
    %v4464 = vmul.f32 %v4462, 1.442695
    %v4465 = vpow.pop %v4464
    %v4466 = vmul.f32 %v4463, 1.442695
    %v4467 = vpow.pop %v4466
    %v4468 = vadd.f32 %v4465, 1.0
    %v4469 = vadd.f32 %v4467, 1.0
    %v4470 = vrcp.pop %v4468
    %v4471 = vmul.f32 1.0, %v4470
    %v4472 = vrcp.pop %v4469
    %v4473 = vmul.f32 1.0, %v4472
    %v4474 = vtanh.pop %v4446
    %v4475 = vtanh.pop %v4447
    %v4476 = vxor.u32 %v4448, 2147483648
    %v4477 = vxor.u32 %v4449, 2147483648
    %v4478 = vmul.f32 %v4476, 1.442695
    %v4479 = vpow.pop %v4478
    %v4480 = vmul.f32 %v4477, 1.442695
    %v4481 = vpow.pop %v4480
    %v4482 = vadd.f32 %v4479, 1.0
    %v4483 = vadd.f32 %v4481, 1.0
    %v4484 = vrcp.pop %v4482
    %v4485 = vmul.f32 1.0, %v4484
    %v4486 = vrcp.pop %v4483
    %v4487 = vmul.f32 1.0, %v4486
    %v4488 = vmul.f32 %v4471, %v3876
    %v4489 = vmul.f32 %v4473, %v3877
    %v4490 = vmul.f32 %v4459, %v4474
    %v4491 = vmul.f32 %v4461, %v4475
    %v4492 = vadd.f32 %v4488, %v4490
    %v4493 = vadd.f32 %v4489, %v4491
    %v4494 = vtanh.pop %v4492
    %v4495 = vtanh.pop %v4493
    %v4496 = vmul.f32 %v4485, %v4494
    %v4497 = vmul.f32 %v4487, %v4495
    %v4498 = vld [vmem:[#allocation2 + $0x100] sm:$0xff]
    %v4499 = vld [vmem:[#allocation2 + $0x108] sm:$0xff]
    %v4500 = vld [vmem:[#allocation2 + $0x110] sm:$0xff]
    %v4501 = vld [vmem:[#allocation2 + $0x118] sm:$0xff]
    %v4502 = vld [vmem:[#allocation2 + $0x120] sm:$0xff]
    %v4503 = vld [vmem:[#allocation2 + $0x128] sm:$0xff]
    %v4504 = vld [vmem:[#allocation2 + $0x130] sm:$0xff]
    %v4505 = vld [vmem:[#allocation2 + $0x138] sm:$0xff]
    %4506 = vmatprep.subr.bf16.mxu0 %v1531
    %4507 = vmatpush1.bf16.msra.mxu0 %v1530
    %4508 = vmatprep.subr.bf16.mxu0 %v1539
    %4509 = vmatpush1.bf16.msra.mxu0 %v1538
    %4510 = vmatprep.subr.bf16.mxu0 %v1547
    %4511 = vmatpush1.bf16.msra.mxu0 %v1546
    %4512 = vmatprep.subr.bf16.mxu0 %v1555
    %4513 = vmatpush1.bf16.msra.mxu0 %v1554
    %4514 = vmatprep.subr.bf16.mxu0 %v1563
    %4515 = vmatpush1.bf16.msra.mxu0 %v1562
    %4516 = vmatprep.subr.bf16.mxu0 %v1571
    %4517 = vmatpush1.bf16.msra.mxu0 %v1570
    %4518 = vmatprep.subr.bf16.mxu0 %v1579
    %4519 = vmatpush1.bf16.msra.mxu0 %v1578
    %4520 = vmatprep.subr.bf16.mxu0 %v1587
    %4521 = vmatpush1.bf16.msra.mxu0 %v1586
    %4522 = vmatprep.subr.bf16.mxu0 %v1595
    %4523 = vmatpush1.bf16.msra.mxu0 %v1594
    %4524 = vmatprep.subr.bf16.mxu0 %v1603
    %4525 = vmatpush1.bf16.msra.mxu0 %v1602
    %4526 = vmatprep.subr.bf16.mxu0 %v1611
    %4527 = vmatpush1.bf16.msra.mxu0 %v1610
    %4528 = vmatprep.subr.bf16.mxu0 %v1619
    %4529 = vmatpush1.bf16.msra.mxu0 %v1618
    %4530 = vmatprep.subr.bf16.mxu0 %v1627
    %4531 = vmatpush1.bf16.msra.mxu0 %v1626
    %4532 = vmatprep.subr.bf16.mxu0 %v1635
    %4533 = vmatpush1.bf16.msra.mxu0 %v1634
    %4534 = vmatprep.subr.bf16.mxu0 %v1643
    %4535 = vmatpush1.bf16.msra.mxu0 %v1642
    %4536 = vmatprep.subr.bf16.mxu0 %v1651
    %4537 = vmatpush1.bf16.msra.mxu0 %v1650
    %4538 = vmatprep.mubr.bf16.mxu0 %v4111
    %4539 = vmatmul.mubr.bf16.gmra.mrb[0].mxu0 %v4110
    %v4540 = vpop.f32.mrb[0].mxu0
    %v4541 = vadd.f32 0.0, %v4540
    %v4542 = vpop.f32.mrb[0].mxu0
    %v4543 = vadd.f32 0.0, %v4542
    %v4544 = vpop.f32.mrb[0].mxu0
    %v4545 = vpop.f32.mrb[0].mxu0
    %4546 = vdwg.mxu0
    %4547 = vmatprep.subr.bf16.mxu0 %v1533
    %4548 = vmatpush1.bf16.msra.mxu0 %v1532
    %4549 = vmatprep.subr.bf16.mxu0 %v1541
    %4550 = vmatpush1.bf16.msra.mxu0 %v1540
    %4551 = vmatprep.subr.bf16.mxu0 %v1549
    %4552 = vmatpush1.bf16.msra.mxu0 %v1548
    %4553 = vmatprep.subr.bf16.mxu0 %v1557
    %4554 = vmatpush1.bf16.msra.mxu0 %v1556
    %4555 = vmatprep.subr.bf16.mxu0 %v1565
    %4556 = vmatpush1.bf16.msra.mxu0 %v1564
    %4557 = vmatprep.subr.bf16.mxu0 %v1573
    %4558 = vmatpush1.bf16.msra.mxu0 %v1572
    %4559 = vmatprep.subr.bf16.mxu0 %v1581
    %4560 = vmatpush1.bf16.msra.mxu0 %v1580
    %4561 = vmatprep.subr.bf16.mxu0 %v1589
    %4562 = vmatpush1.bf16.msra.mxu0 %v1588
    %4563 = vmatprep.subr.bf16.mxu0 %v1597
    %4564 = vmatpush1.bf16.msra.mxu0 %v1596
    %4565 = vmatprep.subr.bf16.mxu0 %v1605
    %4566 = vmatpush1.bf16.msra.mxu0 %v1604
    %4567 = vmatprep.subr.bf16.mxu0 %v1613
    %4568 = vmatpush1.bf16.msra.mxu0 %v1612
    %4569 = vmatprep.subr.bf16.mxu0 %v1621
    %4570 = vmatpush1.bf16.msra.mxu0 %v1620
    %4571 = vmatprep.subr.bf16.mxu0 %v1629
    %4572 = vmatpush1.bf16.msra.mxu0 %v1628
    %4573 = vmatprep.subr.bf16.mxu0 %v1637
    %4574 = vmatpush1.bf16.msra.mxu0 %v1636
    %4575 = vmatprep.subr.bf16.mxu0 %v1645
    %4576 = vmatpush1.bf16.msra.mxu0 %v1644
    %4577 = vmatprep.subr.bf16.mxu0 %v1653
    %4578 = vmatpush1.bf16.msra.mxu0 %v1652
    %4579 = vmatprep.mubr.bf16.mxu0 %v4111
    %4580 = vmatmul.mubr.bf16.gmra.mrb[0].mxu0 %v4110
    %v4581 = vpop.f32.mrb[0].mxu0
    %v4582 = vadd.f32 0.0, %v4581
    %v4583 = vpop.f32.mrb[0].mxu0
    %v4584 = vadd.f32 0.0, %v4583
    %v4585 = vpop.f32.mrb[0].mxu0
    %v4586 = vpop.f32.mrb[0].mxu0
    %4587 = vdwg.mxu0
    %4588 = vmatprep.subr.bf16.mxu0 %v1535
    %4589 = vmatpush1.bf16.msra.mxu0 %v1534
    %4590 = vmatprep.subr.bf16.mxu0 %v1543
    %4591 = vmatpush1.bf16.msra.mxu0 %v1542
    %4592 = vmatprep.subr.bf16.mxu0 %v1551
    %4593 = vmatpush1.bf16.msra.mxu0 %v1550
    %4594 = vmatprep.subr.bf16.mxu0 %v1559
    %4595 = vmatpush1.bf16.msra.mxu0 %v1558
    %4596 = vmatprep.subr.bf16.mxu0 %v1567
    %4597 = vmatpush1.bf16.msra.mxu0 %v1566
    %4598 = vmatprep.subr.bf16.mxu0 %v1575
    %4599 = vmatpush1.bf16.msra.mxu0 %v1574
    %4600 = vmatprep.subr.bf16.mxu0 %v1583
    %4601 = vmatpush1.bf16.msra.mxu0 %v1582
    %4602 = vmatprep.subr.bf16.mxu0 %v1591
    %4603 = vmatpush1.bf16.msra.mxu0 %v1590
    %4604 = vmatprep.subr.bf16.mxu0 %v1599
    %4605 = vmatpush1.bf16.msra.mxu0 %v1598
    %4606 = vmatprep.subr.bf16.mxu0 %v1607
    %4607 = vmatpush1.bf16.msra.mxu0 %v1606
    %4608 = vmatprep.subr.bf16.mxu0 %v1615
    %4609 = vmatpush1.bf16.msra.mxu0 %v1614
    %4610 = vmatprep.subr.bf16.mxu0 %v1623
    %4611 = vmatpush1.bf16.msra.mxu0 %v1622
    %4612 = vmatprep.subr.bf16.mxu0 %v1631
    %4613 = vmatpush1.bf16.msra.mxu0 %v1630
    %4614 = vmatprep.subr.bf16.mxu0 %v1639
    %4615 = vmatpush1.bf16.msra.mxu0 %v1638
    %4616 = vmatprep.subr.bf16.mxu0 %v1647
    %4617 = vmatpush1.bf16.msra.mxu0 %v1646
    %4618 = vmatprep.subr.bf16.mxu0 %v1655
    %4619 = vmatpush1.bf16.msra.mxu0 %v1654
    %4620 = vmatprep.mubr.bf16.mxu0 %v4111
    %4621 = vmatmul.mubr.bf16.gmra.mrb[0].mxu0 %v4110
    %v4622 = vpop.f32.mrb[0].mxu0
    %v4623 = vadd.f32 0.0, %v4622
    %v4624 = vpop.f32.mrb[0].mxu0
    %v4625 = vadd.f32 0.0, %v4624
    %v4626 = vpop.f32.mrb[0].mxu0
    %v4627 = vpop.f32.mrb[0].mxu0
    %4628 = vdwg.mxu0
    %4629 = vmatprep.subr.bf16.mxu0 %v1537
    %4630 = vmatpush1.bf16.msra.mxu0 %v1536
    %4631 = vmatprep.subr.bf16.mxu0 %v1545
    %4632 = vmatpush1.bf16.msra.mxu0 %v1544
    %4633 = vmatprep.subr.bf16.mxu0 %v1553
    %4634 = vmatpush1.bf16.msra.mxu0 %v1552
    %4635 = vmatprep.subr.bf16.mxu0 %v1561
    %4636 = vmatpush1.bf16.msra.mxu0 %v1560
    %4637 = vmatprep.subr.bf16.mxu0 %v1569
    %4638 = vmatpush1.bf16.msra.mxu0 %v1568
    %4639 = vmatprep.subr.bf16.mxu0 %v1577
    %4640 = vmatpush1.bf16.msra.mxu0 %v1576
    %4641 = vmatprep.subr.bf16.mxu0 %v1585
    %4642 = vmatpush1.bf16.msra.mxu0 %v1584
    %4643 = vmatprep.subr.bf16.mxu0 %v1593
    %4644 = vmatpush1.bf16.msra.mxu0 %v1592
    %4645 = vmatprep.subr.bf16.mxu0 %v1601
    %4646 = vmatpush1.bf16.msra.mxu0 %v1600
    %4647 = vmatprep.subr.bf16.mxu0 %v1609
    %4648 = vmatpush1.bf16.msra.mxu0 %v1608
    %4649 = vmatprep.subr.bf16.mxu0 %v1617
    %4650 = vmatpush1.bf16.msra.mxu0 %v1616
    %4651 = vmatprep.subr.bf16.mxu0 %v1625
    %4652 = vmatpush1.bf16.msra.mxu0 %v1624
    %4653 = vmatprep.subr.bf16.mxu0 %v1633
    %4654 = vmatpush1.bf16.msra.mxu0 %v1632
    %4655 = vmatprep.subr.bf16.mxu0 %v1641
    %4656 = vmatpush1.bf16.msra.mxu0 %v1640
    %4657 = vmatprep.subr.bf16.mxu0 %v1649
    %4658 = vmatpush1.bf16.msra.mxu0 %v1648
    %4659 = vmatprep.subr.bf16.mxu0 %v1657
    %4660 = vmatpush1.bf16.msra.mxu0 %v1656
    %4661 = vmatprep.mubr.bf16.mxu0 %v4111
    %4662 = vmatmul.mubr.bf16.gmra.mrb[0].mxu0 %v4110
    %v4663 = vpop.f32.mrb[0].mxu0
    %v4664 = vadd.f32 0.0, %v4663
    %v4665 = vpop.f32.mrb[0].mxu0
    %v4666 = vadd.f32 0.0, %v4665
    %v4667 = vpop.f32.mrb[0].mxu0
    %v4668 = vpop.f32.mrb[0].mxu0
    %4669 = vdwg.mxu0
    %v4670 = vadd.f32 %v4498, %v4541
    %v4671 = vadd.f32 %v4499, %v4543
    %v4672 = vadd.f32 %v4500, %v4582
    %v4673 = vadd.f32 %v4501, %v4584
    %v4674 = vadd.f32 %v4502, %v4623
    %v4675 = vadd.f32 %v4503, %v4625
    %v4676 = vadd.f32 %v4504, %v4664
    %v4677 = vadd.f32 %v4505, %v4666
    %v4678 = vxor.u32 %v4670, 2147483648
    %v4679 = vxor.u32 %v4671, 2147483648
    %v4680 = vmul.f32 %v4678, 1.442695
    %v4681 = vpow.pop %v4680
    %v4682 = vmul.f32 %v4679, 1.442695
    %v4683 = vpow.pop %v4682
    %v4684 = vadd.f32 %v4681, 1.0
    %v4685 = vadd.f32 %v4683, 1.0
    %v4686 = vrcp.pop %v4684
    %v4687 = vmul.f32 1.0, %v4686
    %v4688 = vrcp.pop %v4685
    %v4689 = vmul.f32 1.0, %v4688
    %v4690 = vxor.u32 %v4672, 2147483648
    %v4691 = vxor.u32 %v4673, 2147483648
    %v4692 = vmul.f32 %v4690, 1.442695
    %v4693 = vpow.pop %v4692
    %v4694 = vmul.f32 %v4691, 1.442695
    %v4695 = vpow.pop %v4694
    %v4696 = vadd.f32 %v4693, 1.0
    %v4697 = vadd.f32 %v4695, 1.0
    %v4698 = vrcp.pop %v4696
    %v4699 = vmul.f32 1.0, %v4698
    %v4700 = vrcp.pop %v4697
    %v4701 = vmul.f32 1.0, %v4700
    %v4702 = vtanh.pop %v4674
    %v4703 = vtanh.pop %v4675
    %v4704 = vxor.u32 %v4676, 2147483648
    %v4705 = vxor.u32 %v4677, 2147483648
    %v4706 = vmul.f32 %v4704, 1.442695
    %v4707 = vpow.pop %v4706
    %v4708 = vmul.f32 %v4705, 1.442695
    %v4709 = vpow.pop %v4708
    %v4710 = vadd.f32 %v4707, 1.0
    %v4711 = vadd.f32 %v4709, 1.0
    %v4712 = vrcp.pop %v4710
    %v4713 = vmul.f32 1.0, %v4712
    %v4714 = vrcp.pop %v4711
    %v4715 = vmul.f32 1.0, %v4714
    %v4716 = vmul.f32 %v4699, %v4104
    %v4717 = vmul.f32 %v4701, %v4105
    %v4718 = vmul.f32 %v4687, %v4702
    %v4719 = vmul.f32 %v4689, %v4703
    %v4720 = vadd.f32 %v4716, %v4718
    %v4721 = vadd.f32 %v4717, %v4719
    %v4722 = vtanh.pop %v4720
    %v4723 = vtanh.pop %v4721
    %v4724 = vmul.f32 %v4713, %v4722
    %v4725 = vmul.f32 %v4715, %v4723
    %v4726 = vpack.c.bf16 %v4724, %v4724
    %v4727 = vpack.c.bf16 %v4725, %v4725
    %v4728 = vpack.c.bf16 %v4496, %v4496
    %v4729 = vpack.c.bf16 %v4497, %v4497
    %4730 = vmatprep.subr.bf16.mxu0 %v2139
    %4731 = vmatpush1.bf16.msra.mxu0 %v2138
    %4732 = vmatprep.subr.bf16.mxu0 %v2147
    %4733 = vmatpush1.bf16.msra.mxu0 %v2146
    %4734 = vmatprep.subr.bf16.mxu0 %v2155
    %4735 = vmatpush1.bf16.msra.mxu0 %v2154
    %4736 = vmatprep.subr.bf16.mxu0 %v2163
    %4737 = vmatpush1.bf16.msra.mxu0 %v2162
    %4738 = vmatprep.subr.bf16.mxu0 %v2171
    %4739 = vmatpush1.bf16.msra.mxu0 %v2170
    %4740 = vmatprep.subr.bf16.mxu0 %v2179
    %4741 = vmatpush1.bf16.msra.mxu0 %v2178
    %4742 = vmatprep.subr.bf16.mxu0 %v2187
    %4743 = vmatpush1.bf16.msra.mxu0 %v2186
    %4744 = vmatprep.subr.bf16.mxu0 %v2195
    %4745 = vmatpush1.bf16.msra.mxu0 %v2194
    %4746 = vmatprep.subr.bf16.mxu0 %v2203
    %4747 = vmatpush1.bf16.msra.mxu0 %v2202
    %4748 = vmatprep.subr.bf16.mxu0 %v2211
    %4749 = vmatpush1.bf16.msra.mxu0 %v2210
    %4750 = vmatprep.subr.bf16.mxu0 %v2219
    %4751 = vmatpush1.bf16.msra.mxu0 %v2218
    %4752 = vmatprep.subr.bf16.mxu0 %v2227
    %4753 = vmatpush1.bf16.msra.mxu0 %v2226
    %4754 = vmatprep.subr.bf16.mxu0 %v2235
    %4755 = vmatpush1.bf16.msra.mxu0 %v2234
    %4756 = vmatprep.subr.bf16.mxu0 %v2243
    %4757 = vmatpush1.bf16.msra.mxu0 %v2242
    %4758 = vmatprep.subr.bf16.mxu0 %v2251
    %4759 = vmatpush1.bf16.msra.mxu0 %v2250
    %4760 = vmatprep.subr.bf16.mxu0 %v2259
    %4761 = vmatpush1.bf16.msra.mxu0 %v2258
    %4762 = vmatprep.mubr.bf16.mxu0 %v4729
    %4763 = vmatmul.mubr.bf16.gmra.mrb[0].mxu0 %v4728
    %v4764 = vpop.f32.mrb[0].mxu0
    %v4765 = vadd.f32 0.0, %v4764
    %v4766 = vpop.f32.mrb[0].mxu0
    %v4767 = vadd.f32 0.0, %v4766
    %v4768 = vpop.f32.mrb[0].mxu0
    %v4769 = vpop.f32.mrb[0].mxu0
    %4770 = vdwg.mxu0
    %4771 = vmatprep.subr.bf16.mxu0 %v2141
    %4772 = vmatpush1.bf16.msra.mxu0 %v2140
    %4773 = vmatprep.subr.bf16.mxu0 %v2149
    %4774 = vmatpush1.bf16.msra.mxu0 %v2148
    %4775 = vmatprep.subr.bf16.mxu0 %v2157
    %4776 = vmatpush1.bf16.msra.mxu0 %v2156
    %4777 = vmatprep.subr.bf16.mxu0 %v2165
    %4778 = vmatpush1.bf16.msra.mxu0 %v2164
    %4779 = vmatprep.subr.bf16.mxu0 %v2173
    %4780 = vmatpush1.bf16.msra.mxu0 %v2172
    %4781 = vmatprep.subr.bf16.mxu0 %v2181
    %4782 = vmatpush1.bf16.msra.mxu0 %v2180
    %4783 = vmatprep.subr.bf16.mxu0 %v2189
    %4784 = vmatpush1.bf16.msra.mxu0 %v2188
    %4785 = vmatprep.subr.bf16.mxu0 %v2197
    %4786 = vmatpush1.bf16.msra.mxu0 %v2196
    %4787 = vmatprep.subr.bf16.mxu0 %v2205
    %4788 = vmatpush1.bf16.msra.mxu0 %v2204
    %4789 = vmatprep.subr.bf16.mxu0 %v2213
    %4790 = vmatpush1.bf16.msra.mxu0 %v2212
    %4791 = vmatprep.subr.bf16.mxu0 %v2221
    %4792 = vmatpush1.bf16.msra.mxu0 %v2220
    %4793 = vmatprep.subr.bf16.mxu0 %v2229
    %4794 = vmatpush1.bf16.msra.mxu0 %v2228
    %4795 = vmatprep.subr.bf16.mxu0 %v2237
    %4796 = vmatpush1.bf16.msra.mxu0 %v2236
    %4797 = vmatprep.subr.bf16.mxu0 %v2245
    %4798 = vmatpush1.bf16.msra.mxu0 %v2244
    %4799 = vmatprep.subr.bf16.mxu0 %v2253
    %4800 = vmatpush1.bf16.msra.mxu0 %v2252
    %4801 = vmatprep.subr.bf16.mxu0 %v2261
    %4802 = vmatpush1.bf16.msra.mxu0 %v2260
    %4803 = vmatprep.mubr.bf16.mxu0 %v4729
    %4804 = vmatmul.mubr.bf16.gmra.mrb[0].mxu0 %v4728
    %v4805 = vpop.f32.mrb[0].mxu0
    %v4806 = vadd.f32 0.0, %v4805
    %v4807 = vpop.f32.mrb[0].mxu0
    %v4808 = vadd.f32 0.0, %v4807
    %v4809 = vpop.f32.mrb[0].mxu0
    %v4810 = vpop.f32.mrb[0].mxu0
    %4811 = vdwg.mxu0
    %4812 = vmatprep.subr.bf16.mxu0 %v2143
    %4813 = vmatpush1.bf16.msra.mxu0 %v2142
    %4814 = vmatprep.subr.bf16.mxu0 %v2151
    %4815 = vmatpush1.bf16.msra.mxu0 %v2150
    %4816 = vmatprep.subr.bf16.mxu0 %v2159
    %4817 = vmatpush1.bf16.msra.mxu0 %v2158
    %4818 = vmatprep.subr.bf16.mxu0 %v2167
    %4819 = vmatpush1.bf16.msra.mxu0 %v2166
    %4820 = vmatprep.subr.bf16.mxu0 %v2175
    %4821 = vmatpush1.bf16.msra.mxu0 %v2174
    %4822 = vmatprep.subr.bf16.mxu0 %v2183
    %4823 = vmatpush1.bf16.msra.mxu0 %v2182
    %4824 = vmatprep.subr.bf16.mxu0 %v2191
    %4825 = vmatpush1.bf16.msra.mxu0 %v2190
    %4826 = vmatprep.subr.bf16.mxu0 %v2199
    %4827 = vmatpush1.bf16.msra.mxu0 %v2198
    %4828 = vmatprep.subr.bf16.mxu0 %v2207
    %4829 = vmatpush1.bf16.msra.mxu0 %v2206
    %4830 = vmatprep.subr.bf16.mxu0 %v2215
    %4831 = vmatpush1.bf16.msra.mxu0 %v2214
    %4832 = vmatprep.subr.bf16.mxu0 %v2223
    %4833 = vmatpush1.bf16.msra.mxu0 %v2222
    %4834 = vmatprep.subr.bf16.mxu0 %v2231
    %4835 = vmatpush1.bf16.msra.mxu0 %v2230
    %4836 = vmatprep.subr.bf16.mxu0 %v2239
    %4837 = vmatpush1.bf16.msra.mxu0 %v2238
    %4838 = vmatprep.subr.bf16.mxu0 %v2247
    %4839 = vmatpush1.bf16.msra.mxu0 %v2246
    %4840 = vmatprep.subr.bf16.mxu0 %v2255
    %4841 = vmatpush1.bf16.msra.mxu0 %v2254
    %4842 = vmatprep.subr.bf16.mxu0 %v2263
    %4843 = vmatpush1.bf16.msra.mxu0 %v2262
    %4844 = vmatprep.mubr.bf16.mxu0 %v4729
    %4845 = vmatmul.mubr.bf16.gmra.mrb[0].mxu0 %v4728
    %v4846 = vpop.f32.mrb[0].mxu0
    %v4847 = vadd.f32 0.0, %v4846
    %v4848 = vpop.f32.mrb[0].mxu0
    %v4849 = vadd.f32 0.0, %v4848
    %v4850 = vpop.f32.mrb[0].mxu0
    %v4851 = vpop.f32.mrb[0].mxu0
    %4852 = vdwg.mxu0
    %4853 = vmatprep.subr.bf16.mxu0 %v2145
    %4854 = vmatpush1.bf16.msra.mxu0 %v2144
    %4855 = vmatprep.subr.bf16.mxu0 %v2153
    %4856 = vmatpush1.bf16.msra.mxu0 %v2152
    %4857 = vmatprep.subr.bf16.mxu0 %v2161
    %4858 = vmatpush1.bf16.msra.mxu0 %v2160
    %4859 = vmatprep.subr.bf16.mxu0 %v2169
    %4860 = vmatpush1.bf16.msra.mxu0 %v2168
    %4861 = vmatprep.subr.bf16.mxu0 %v2177
    %4862 = vmatpush1.bf16.msra.mxu0 %v2176
    %4863 = vmatprep.subr.bf16.mxu0 %v2185
    %4864 = vmatpush1.bf16.msra.mxu0 %v2184
    %4865 = vmatprep.subr.bf16.mxu0 %v2193
    %4866 = vmatpush1.bf16.msra.mxu0 %v2192
    %4867 = vmatprep.subr.bf16.mxu0 %v2201
    %4868 = vmatpush1.bf16.msra.mxu0 %v2200
    %4869 = vmatprep.subr.bf16.mxu0 %v2209
    %4870 = vmatpush1.bf16.msra.mxu0 %v2208
    %4871 = vmatprep.subr.bf16.mxu0 %v2217
    %4872 = vmatpush1.bf16.msra.mxu0 %v2216
    %4873 = vmatprep.subr.bf16.mxu0 %v2225
    %4874 = vmatpush1.bf16.msra.mxu0 %v2224
    %4875 = vmatprep.subr.bf16.mxu0 %v2233
    %4876 = vmatpush1.bf16.msra.mxu0 %v2232
    %4877 = vmatprep.subr.bf16.mxu0 %v2241
    %4878 = vmatpush1.bf16.msra.mxu0 %v2240
    %4879 = vmatprep.subr.bf16.mxu0 %v2249
    %4880 = vmatpush1.bf16.msra.mxu0 %v2248
    %4881 = vmatprep.subr.bf16.mxu0 %v2257
    %4882 = vmatpush1.bf16.msra.mxu0 %v2256
    %4883 = vmatprep.subr.bf16.mxu0 %v2265
    %4884 = vmatpush1.bf16.msra.mxu0 %v2264
    %4885 = vmatprep.mubr.bf16.mxu0 %v4729
    %4886 = vmatmul.mubr.bf16.gmra.mrb[0].mxu0 %v4728
    %v4887 = vpop.f32.mrb[0].mxu0
    %v4888 = vadd.f32 0.0, %v4887
    %v4889 = vpop.f32.mrb[0].mxu0
    %v4890 = vadd.f32 0.0, %v4889
    %v4891 = vpop.f32.mrb[0].mxu0
    %v4892 = vpop.f32.mrb[0].mxu0
    %4893 = vdwg.mxu0
    %4894 = vmatprep.subr.bf16.mxu0 %v2009
    %4895 = vmatpush1.bf16.msra.mxu0 %v2008
    %4896 = vmatprep.subr.bf16.mxu0 %v2017
    %4897 = vmatpush1.bf16.msra.mxu0 %v2016
    %4898 = vmatprep.subr.bf16.mxu0 %v2025
    %4899 = vmatpush1.bf16.msra.mxu0 %v2024
    %4900 = vmatprep.subr.bf16.mxu0 %v2033
    %4901 = vmatpush1.bf16.msra.mxu0 %v2032
    %4902 = vmatprep.subr.bf16.mxu0 %v2041
    %4903 = vmatpush1.bf16.msra.mxu0 %v2040
    %4904 = vmatprep.subr.bf16.mxu0 %v2049
    %4905 = vmatpush1.bf16.msra.mxu0 %v2048
    %4906 = vmatprep.subr.bf16.mxu0 %v2057
    %4907 = vmatpush1.bf16.msra.mxu0 %v2056
    %4908 = vmatprep.subr.bf16.mxu0 %v2065
    %4909 = vmatpush1.bf16.msra.mxu0 %v2064
    %4910 = vmatprep.subr.bf16.mxu0 %v2073
    %4911 = vmatpush1.bf16.msra.mxu0 %v2072
    %4912 = vmatprep.subr.bf16.mxu0 %v2081
    %4913 = vmatpush1.bf16.msra.mxu0 %v2080
    %4914 = vmatprep.subr.bf16.mxu0 %v2089
    %4915 = vmatpush1.bf16.msra.mxu0 %v2088
    %4916 = vmatprep.subr.bf16.mxu0 %v2097
    %4917 = vmatpush1.bf16.msra.mxu0 %v2096
    %4918 = vmatprep.subr.bf16.mxu0 %v2105
    %4919 = vmatpush1.bf16.msra.mxu0 %v2104
    %4920 = vmatprep.subr.bf16.mxu0 %v2113
    %4921 = vmatpush1.bf16.msra.mxu0 %v2112
    %4922 = vmatprep.subr.bf16.mxu0 %v2121
    %4923 = vmatpush1.bf16.msra.mxu0 %v2120
    %4924 = vmatprep.subr.bf16.mxu0 %v2129
    %4925 = vmatpush1.bf16.msra.mxu0 %v2128
    %4926 = vmatprep.mubr.bf16.mxu0 %v4727
    %4927 = vmatmul.mubr.bf16.gmra.mrb[0].mxu0 %v4726
    %v4928 = vpop.f32.mrb[0].mxu0
    %v4929 = vadd.f32 %v4765, %v4928
    %v4930 = vpop.f32.mrb[0].mxu0
    %v4931 = vadd.f32 %v4767, %v4930
    %v4932 = vpop.f32.mrb[0].mxu0
    %v4933 = vpop.f32.mrb[0].mxu0
    %4934 = vdwg.mxu0
    %4935 = vmatprep.subr.bf16.mxu0 %v2011
    %4936 = vmatpush1.bf16.msra.mxu0 %v2010
    %4937 = vmatprep.subr.bf16.mxu0 %v2019
    %4938 = vmatpush1.bf16.msra.mxu0 %v2018
    %4939 = vmatprep.subr.bf16.mxu0 %v2027
    %4940 = vmatpush1.bf16.msra.mxu0 %v2026
    %4941 = vmatprep.subr.bf16.mxu0 %v2035
    %4942 = vmatpush1.bf16.msra.mxu0 %v2034
    %4943 = vmatprep.subr.bf16.mxu0 %v2043
    %4944 = vmatpush1.bf16.msra.mxu0 %v2042
    %4945 = vmatprep.subr.bf16.mxu0 %v2051
    %4946 = vmatpush1.bf16.msra.mxu0 %v2050
    %4947 = vmatprep.subr.bf16.mxu0 %v2059
    %4948 = vmatpush1.bf16.msra.mxu0 %v2058
    %4949 = vmatprep.subr.bf16.mxu0 %v2067
    %4950 = vmatpush1.bf16.msra.mxu0 %v2066
    %4951 = vmatprep.subr.bf16.mxu0 %v2075
    %4952 = vmatpush1.bf16.msra.mxu0 %v2074
    %4953 = vmatprep.subr.bf16.mxu0 %v2083
    %4954 = vmatpush1.bf16.msra.mxu0 %v2082
    %4955 = vmatprep.subr.bf16.mxu0 %v2091
    %4956 = vmatpush1.bf16.msra.mxu0 %v2090
    %4957 = vmatprep.subr.bf16.mxu0 %v2099
    %4958 = vmatpush1.bf16.msra.mxu0 %v2098
    %4959 = vmatprep.subr.bf16.mxu0 %v2107
    %4960 = vmatpush1.bf16.msra.mxu0 %v2106
    %4961 = vmatprep.subr.bf16.mxu0 %v2115
    %4962 = vmatpush1.bf16.msra.mxu0 %v2114
    %4963 = vmatprep.subr.bf16.mxu0 %v2123
    %4964 = vmatpush1.bf16.msra.mxu0 %v2122
    %4965 = vmatprep.subr.bf16.mxu0 %v2131
    %4966 = vmatpush1.bf16.msra.mxu0 %v2130
    %4967 = vmatprep.mubr.bf16.mxu0 %v4727
    %4968 = vmatmul.mubr.bf16.gmra.mrb[0].mxu0 %v4726
    %v4969 = vpop.f32.mrb[0].mxu0
    %v4970 = vadd.f32 %v4806, %v4969
    %v4971 = vpop.f32.mrb[0].mxu0
    %v4972 = vadd.f32 %v4808, %v4971
    %v4973 = vpop.f32.mrb[0].mxu0
    %v4974 = vpop.f32.mrb[0].mxu0
    %4975 = vdwg.mxu0
    %4976 = vmatprep.subr.bf16.mxu0 %v2013
    %4977 = vmatpush1.bf16.msra.mxu0 %v2012
    %4978 = vmatprep.subr.bf16.mxu0 %v2021
    %4979 = vmatpush1.bf16.msra.mxu0 %v2020
    %4980 = vmatprep.subr.bf16.mxu0 %v2029
    %4981 = vmatpush1.bf16.msra.mxu0 %v2028
    %4982 = vmatprep.subr.bf16.mxu0 %v2037
    %4983 = vmatpush1.bf16.msra.mxu0 %v2036
    %4984 = vmatprep.subr.bf16.mxu0 %v2045
    %4985 = vmatpush1.bf16.msra.mxu0 %v2044
    %4986 = vmatprep.subr.bf16.mxu0 %v2053
    %4987 = vmatpush1.bf16.msra.mxu0 %v2052
    %4988 = vmatprep.subr.bf16.mxu0 %v2061
    %4989 = vmatpush1.bf16.msra.mxu0 %v2060
    %4990 = vmatprep.subr.bf16.mxu0 %v2069
    %4991 = vmatpush1.bf16.msra.mxu0 %v2068
    %4992 = vmatprep.subr.bf16.mxu0 %v2077
    %4993 = vmatpush1.bf16.msra.mxu0 %v2076
    %4994 = vmatprep.subr.bf16.mxu0 %v2085
    %4995 = vmatpush1.bf16.msra.mxu0 %v2084
    %4996 = vmatprep.subr.bf16.mxu0 %v2093
    %4997 = vmatpush1.bf16.msra.mxu0 %v2092
    %4998 = vmatprep.subr.bf16.mxu0 %v2101
    %4999 = vmatpush1.bf16.msra.mxu0 %v2100
    %5000 = vmatprep.subr.bf16.mxu0 %v2109
    %5001 = vmatpush1.bf16.msra.mxu0 %v2108
    %5002 = vmatprep.subr.bf16.mxu0 %v2117
    %5003 = vmatpush1.bf16.msra.mxu0 %v2116
    %5004 = vmatprep.subr.bf16.mxu0 %v2125
    %5005 = vmatpush1.bf16.msra.mxu0 %v2124
    %5006 = vmatprep.subr.bf16.mxu0 %v2133
    %5007 = vmatpush1.bf16.msra.mxu0 %v2132
    %5008 = vmatprep.mubr.bf16.mxu0 %v4727
    %5009 = vmatmul.mubr.bf16.gmra.mrb[0].mxu0 %v4726
    %v5010 = vpop.f32.mrb[0].mxu0
    %v5011 = vadd.f32 %v4847, %v5010
    %v5012 = vpop.f32.mrb[0].mxu0
    %v5013 = vadd.f32 %v4849, %v5012
    %v5014 = vpop.f32.mrb[0].mxu0
    %v5015 = vpop.f32.mrb[0].mxu0
    %5016 = vdwg.mxu0
    %5017 = vmatprep.subr.bf16.mxu0 %v2015
    %5018 = vmatpush1.bf16.msra.mxu0 %v2014
    %5019 = vmatprep.subr.bf16.mxu0 %v2023
    %5020 = vmatpush1.bf16.msra.mxu0 %v2022
    %5021 = vmatprep.subr.bf16.mxu0 %v2031
    %5022 = vmatpush1.bf16.msra.mxu0 %v2030
    %5023 = vmatprep.subr.bf16.mxu0 %v2039
    %5024 = vmatpush1.bf16.msra.mxu0 %v2038
    %5025 = vmatprep.subr.bf16.mxu0 %v2047
    %5026 = vmatpush1.bf16.msra.mxu0 %v2046
    %5027 = vmatprep.subr.bf16.mxu0 %v2055
    %5028 = vmatpush1.bf16.msra.mxu0 %v2054
    %5029 = vmatprep.subr.bf16.mxu0 %v2063
    %5030 = vmatpush1.bf16.msra.mxu0 %v2062
    %5031 = vmatprep.subr.bf16.mxu0 %v2071
    %5032 = vmatpush1.bf16.msra.mxu0 %v2070
    %5033 = vmatprep.subr.bf16.mxu0 %v2079
    %5034 = vmatpush1.bf16.msra.mxu0 %v2078
    %5035 = vmatprep.subr.bf16.mxu0 %v2087
    %5036 = vmatpush1.bf16.msra.mxu0 %v2086
    %5037 = vmatprep.subr.bf16.mxu0 %v2095
    %5038 = vmatpush1.bf16.msra.mxu0 %v2094
    %5039 = vmatprep.subr.bf16.mxu0 %v2103
    %5040 = vmatpush1.bf16.msra.mxu0 %v2102
    %5041 = vmatprep.subr.bf16.mxu0 %v2111
    %5042 = vmatpush1.bf16.msra.mxu0 %v2110
    %5043 = vmatprep.subr.bf16.mxu0 %v2119
    %5044 = vmatpush1.bf16.msra.mxu0 %v2118
    %5045 = vmatprep.subr.bf16.mxu0 %v2127
    %5046 = vmatpush1.bf16.msra.mxu0 %v2126
    %5047 = vmatprep.subr.bf16.mxu0 %v2135
    %5048 = vmatpush1.bf16.msra.mxu0 %v2134
    %5049 = vmatprep.mubr.bf16.mxu0 %v4727
    %5050 = vmatmul.mubr.bf16.gmra.mrb[0].mxu0 %v4726
    %v5051 = vpop.f32.mrb[0].mxu0
    %v5052 = vadd.f32 %v4888, %v5051
    %v5053 = vpop.f32.mrb[0].mxu0
    %v5054 = vadd.f32 %v4890, %v5053
    %v5055 = vpop.f32.mrb[0].mxu0
    %v5056 = vpop.f32.mrb[0].mxu0
    %5057 = vdwg.mxu0
    %v5058 = vadd.f32 %v4929, %v961
    %v5059 = vadd.f32 %v4931, %v965
    %v5060 = vadd.f32 %v4970, %v969
    %v5061 = vadd.f32 %v4972, %v973
    %v5062 = vadd.f32 %v5011, %v977
    %v5063 = vadd.f32 %v5013, %v981
    %v5064 = vadd.f32 %v5052, %v985
    %v5065 = vadd.f32 %v5054, %v989
    %v5066 = vxor.u32 %v5058, 2147483648
    %v5067 = vxor.u32 %v5059, 2147483648
    %v5068 = vmul.f32 %v5066, 1.442695
    %v5069 = vpow.pop %v5068
    %v5070 = vmul.f32 %v5067, 1.442695
    %v5071 = vpow.pop %v5070
    %v5072 = vadd.f32 %v5069, 1.0
    %v5073 = vadd.f32 %v5071, 1.0
    %v5074 = vrcp.pop %v5072
    %v5075 = vmul.f32 1.0, %v5074
    %v5076 = vrcp.pop %v5073
    %v5077 = vmul.f32 1.0, %v5076
    %v5078 = vxor.u32 %v5060, 2147483648
    %v5079 = vxor.u32 %v5061, 2147483648
    %v5080 = vmul.f32 %v5078, 1.442695
    %v5081 = vpow.pop %v5080
    %v5082 = vmul.f32 %v5079, 1.442695
    %v5083 = vpow.pop %v5082
    %v5084 = vadd.f32 %v5081, 1.0
    %v5085 = vadd.f32 %v5083, 1.0
    %v5086 = vrcp.pop %v5084
    %v5087 = vmul.f32 1.0, %v5086
    %v5088 = vrcp.pop %v5085
    %v5089 = vmul.f32 1.0, %v5088
    %v5090 = vtanh.pop %v5062
    %v5091 = vtanh.pop %v5063
    %v5092 = vxor.u32 %v5064, 2147483648
    %v5093 = vxor.u32 %v5065, 2147483648
    %v5094 = vmul.f32 %v5092, 1.442695
    %v5095 = vpow.pop %v5094
    %v5096 = vmul.f32 %v5093, 1.442695
    %v5097 = vpow.pop %v5096
    %v5098 = vadd.f32 %v5095, 1.0
    %v5099 = vadd.f32 %v5097, 1.0
    %v5100 = vrcp.pop %v5098
    %v5101 = vmul.f32 1.0, %v5100
    %v5102 = vrcp.pop %v5099
    %v5103 = vmul.f32 1.0, %v5102
    %v5104 = vmul.f32 %v5087, %v4492
    %v5105 = vmul.f32 %v5089, %v4493
    %v5106 = vmul.f32 %v5075, %v5090
    %v5107 = vmul.f32 %v5077, %v5091
    %v5108 = vadd.f32 %v5104, %v5106
    %v5109 = vadd.f32 %v5105, %v5107
    %v5110 = vtanh.pop %v5108
    %v5111 = vtanh.pop %v5109
    %v5112 = vmul.f32 %v5101, %v5110
    %v5113 = vmul.f32 %v5103, %v5111
    %v5114 = vld [vmem:[#allocation2 + $0x140] sm:$0xff]
    %v5115 = vld [vmem:[#allocation2 + $0x148] sm:$0xff]
    %v5116 = vld [vmem:[#allocation2 + $0x150] sm:$0xff]
    %v5117 = vld [vmem:[#allocation2 + $0x158] sm:$0xff]
    %v5118 = vld [vmem:[#allocation2 + $0x160] sm:$0xff]
    %v5119 = vld [vmem:[#allocation2 + $0x168] sm:$0xff]
    %v5120 = vld [vmem:[#allocation2 + $0x170] sm:$0xff]
    %v5121 = vld [vmem:[#allocation2 + $0x178] sm:$0xff]
    %5122 = vmatprep.subr.bf16.mxu0 %v1531
    %5123 = vmatpush1.bf16.msra.mxu0 %v1530
    %5124 = vmatprep.subr.bf16.mxu0 %v1539
    %5125 = vmatpush1.bf16.msra.mxu0 %v1538
    %5126 = vmatprep.subr.bf16.mxu0 %v1547
    %5127 = vmatpush1.bf16.msra.mxu0 %v1546
    %5128 = vmatprep.subr.bf16.mxu0 %v1555
    %5129 = vmatpush1.bf16.msra.mxu0 %v1554
    %5130 = vmatprep.subr.bf16.mxu0 %v1563
    %5131 = vmatpush1.bf16.msra.mxu0 %v1562
    %5132 = vmatprep.subr.bf16.mxu0 %v1571
    %5133 = vmatpush1.bf16.msra.mxu0 %v1570
    %5134 = vmatprep.subr.bf16.mxu0 %v1579
    %5135 = vmatpush1.bf16.msra.mxu0 %v1578
    %5136 = vmatprep.subr.bf16.mxu0 %v1587
    %5137 = vmatpush1.bf16.msra.mxu0 %v1586
    %5138 = vmatprep.subr.bf16.mxu0 %v1595
    %5139 = vmatpush1.bf16.msra.mxu0 %v1594
    %5140 = vmatprep.subr.bf16.mxu0 %v1603
    %5141 = vmatpush1.bf16.msra.mxu0 %v1602
    %5142 = vmatprep.subr.bf16.mxu0 %v1611
    %5143 = vmatpush1.bf16.msra.mxu0 %v1610
    %5144 = vmatprep.subr.bf16.mxu0 %v1619
    %5145 = vmatpush1.bf16.msra.mxu0 %v1618
    %5146 = vmatprep.subr.bf16.mxu0 %v1627
    %5147 = vmatpush1.bf16.msra.mxu0 %v1626
    %5148 = vmatprep.subr.bf16.mxu0 %v1635
    %5149 = vmatpush1.bf16.msra.mxu0 %v1634
    %5150 = vmatprep.subr.bf16.mxu0 %v1643
    %5151 = vmatpush1.bf16.msra.mxu0 %v1642
    %5152 = vmatprep.subr.bf16.mxu0 %v1651
    %5153 = vmatpush1.bf16.msra.mxu0 %v1650
    %5154 = vmatprep.mubr.bf16.mxu0 %v4727
    %5155 = vmatmul.mubr.bf16.gmra.mrb[0].mxu0 %v4726
    %v5156 = vpop.f32.mrb[0].mxu0
    %v5157 = vadd.f32 0.0, %v5156
    %v5158 = vpop.f32.mrb[0].mxu0
    %v5159 = vadd.f32 0.0, %v5158
    %v5160 = vpop.f32.mrb[0].mxu0
    %v5161 = vpop.f32.mrb[0].mxu0
    %5162 = vdwg.mxu0
    %5163 = vmatprep.subr.bf16.mxu0 %v1533
    %5164 = vmatpush1.bf16.msra.mxu0 %v1532
    %5165 = vmatprep.subr.bf16.mxu0 %v1541
    %5166 = vmatpush1.bf16.msra.mxu0 %v1540
    %5167 = vmatprep.subr.bf16.mxu0 %v1549
    %5168 = vmatpush1.bf16.msra.mxu0 %v1548
    %5169 = vmatprep.subr.bf16.mxu0 %v1557
    %5170 = vmatpush1.bf16.msra.mxu0 %v1556
    %5171 = vmatprep.subr.bf16.mxu0 %v1565
    %5172 = vmatpush1.bf16.msra.mxu0 %v1564
    %5173 = vmatprep.subr.bf16.mxu0 %v1573
    %5174 = vmatpush1.bf16.msra.mxu0 %v1572
    %5175 = vmatprep.subr.bf16.mxu0 %v1581
    %5176 = vmatpush1.bf16.msra.mxu0 %v1580
    %5177 = vmatprep.subr.bf16.mxu0 %v1589
    %5178 = vmatpush1.bf16.msra.mxu0 %v1588
    %5179 = vmatprep.subr.bf16.mxu0 %v1597
    %5180 = vmatpush1.bf16.msra.mxu0 %v1596
    %5181 = vmatprep.subr.bf16.mxu0 %v1605
    %5182 = vmatpush1.bf16.msra.mxu0 %v1604
    %5183 = vmatprep.subr.bf16.mxu0 %v1613
    %5184 = vmatpush1.bf16.msra.mxu0 %v1612
    %5185 = vmatprep.subr.bf16.mxu0 %v1621
    %5186 = vmatpush1.bf16.msra.mxu0 %v1620
    %5187 = vmatprep.subr.bf16.mxu0 %v1629
    %5188 = vmatpush1.bf16.msra.mxu0 %v1628
    %5189 = vmatprep.subr.bf16.mxu0 %v1637
    %5190 = vmatpush1.bf16.msra.mxu0 %v1636
    %5191 = vmatprep.subr.bf16.mxu0 %v1645
    %5192 = vmatpush1.bf16.msra.mxu0 %v1644
    %5193 = vmatprep.subr.bf16.mxu0 %v1653
    %5194 = vmatpush1.bf16.msra.mxu0 %v1652
    %5195 = vmatprep.mubr.bf16.mxu0 %v4727
    %5196 = vmatmul.mubr.bf16.gmra.mrb[0].mxu0 %v4726
    %v5197 = vpop.f32.mrb[0].mxu0
    %v5198 = vadd.f32 0.0, %v5197
    %v5199 = vpop.f32.mrb[0].mxu0
    %v5200 = vadd.f32 0.0, %v5199
    %v5201 = vpop.f32.mrb[0].mxu0
    %v5202 = vpop.f32.mrb[0].mxu0
    %5203 = vdwg.mxu0
    %5204 = vmatprep.subr.bf16.mxu0 %v1535
    %5205 = vmatpush1.bf16.msra.mxu0 %v1534
    %5206 = vmatprep.subr.bf16.mxu0 %v1543
    %5207 = vmatpush1.bf16.msra.mxu0 %v1542
    %5208 = vmatprep.subr.bf16.mxu0 %v1551
    %5209 = vmatpush1.bf16.msra.mxu0 %v1550
    %5210 = vmatprep.subr.bf16.mxu0 %v1559
    %5211 = vmatpush1.bf16.msra.mxu0 %v1558
    %5212 = vmatprep.subr.bf16.mxu0 %v1567
    %5213 = vmatpush1.bf16.msra.mxu0 %v1566
    %5214 = vmatprep.subr.bf16.mxu0 %v1575
    %5215 = vmatpush1.bf16.msra.mxu0 %v1574
    %5216 = vmatprep.subr.bf16.mxu0 %v1583
    %5217 = vmatpush1.bf16.msra.mxu0 %v1582
    %5218 = vmatprep.subr.bf16.mxu0 %v1591
    %5219 = vmatpush1.bf16.msra.mxu0 %v1590
    %5220 = vmatprep.subr.bf16.mxu0 %v1599
    %5221 = vmatpush1.bf16.msra.mxu0 %v1598
    %5222 = vmatprep.subr.bf16.mxu0 %v1607
    %5223 = vmatpush1.bf16.msra.mxu0 %v1606
    %5224 = vmatprep.subr.bf16.mxu0 %v1615
    %5225 = vmatpush1.bf16.msra.mxu0 %v1614
    %5226 = vmatprep.subr.bf16.mxu0 %v1623
    %5227 = vmatpush1.bf16.msra.mxu0 %v1622
    %5228 = vmatprep.subr.bf16.mxu0 %v1631
    %5229 = vmatpush1.bf16.msra.mxu0 %v1630
    %5230 = vmatprep.subr.bf16.mxu0 %v1639
    %5231 = vmatpush1.bf16.msra.mxu0 %v1638
    %5232 = vmatprep.subr.bf16.mxu0 %v1647
    %5233 = vmatpush1.bf16.msra.mxu0 %v1646
    %5234 = vmatprep.subr.bf16.mxu0 %v1655
    %5235 = vmatpush1.bf16.msra.mxu0 %v1654
    %5236 = vmatprep.mubr.bf16.mxu0 %v4727
    %5237 = vmatmul.mubr.bf16.gmra.mrb[0].mxu0 %v4726
    %v5238 = vpop.f32.mrb[0].mxu0
    %v5239 = vadd.f32 0.0, %v5238
    %v5240 = vpop.f32.mrb[0].mxu0
    %v5241 = vadd.f32 0.0, %v5240
    %v5242 = vpop.f32.mrb[0].mxu0
    %v5243 = vpop.f32.mrb[0].mxu0
    %5244 = vdwg.mxu0
    %5245 = vmatprep.subr.bf16.mxu0 %v1537
    %5246 = vmatpush1.bf16.msra.mxu0 %v1536
    %5247 = vmatprep.subr.bf16.mxu0 %v1545
    %5248 = vmatpush1.bf16.msra.mxu0 %v1544
    %5249 = vmatprep.subr.bf16.mxu0 %v1553
    %5250 = vmatpush1.bf16.msra.mxu0 %v1552
    %5251 = vmatprep.subr.bf16.mxu0 %v1561
    %5252 = vmatpush1.bf16.msra.mxu0 %v1560
    %5253 = vmatprep.subr.bf16.mxu0 %v1569
    %5254 = vmatpush1.bf16.msra.mxu0 %v1568
    %5255 = vmatprep.subr.bf16.mxu0 %v1577
    %5256 = vmatpush1.bf16.msra.mxu0 %v1576
    %5257 = vmatprep.subr.bf16.mxu0 %v1585
    %5258 = vmatpush1.bf16.msra.mxu0 %v1584
    %5259 = vmatprep.subr.bf16.mxu0 %v1593
    %5260 = vmatpush1.bf16.msra.mxu0 %v1592
    %5261 = vmatprep.subr.bf16.mxu0 %v1601
    %5262 = vmatpush1.bf16.msra.mxu0 %v1600
    %5263 = vmatprep.subr.bf16.mxu0 %v1609
    %5264 = vmatpush1.bf16.msra.mxu0 %v1608
    %5265 = vmatprep.subr.bf16.mxu0 %v1617
    %5266 = vmatpush1.bf16.msra.mxu0 %v1616
    %5267 = vmatprep.subr.bf16.mxu0 %v1625
    %5268 = vmatpush1.bf16.msra.mxu0 %v1624
    %5269 = vmatprep.subr.bf16.mxu0 %v1633
    %5270 = vmatpush1.bf16.msra.mxu0 %v1632
    %5271 = vmatprep.subr.bf16.mxu0 %v1641
    %5272 = vmatpush1.bf16.msra.mxu0 %v1640
    %5273 = vmatprep.subr.bf16.mxu0 %v1649
    %5274 = vmatpush1.bf16.msra.mxu0 %v1648
    %5275 = vmatprep.subr.bf16.mxu0 %v1657
    %5276 = vmatpush1.bf16.msra.mxu0 %v1656
    %5277 = vmatprep.mubr.bf16.mxu0 %v4727
    %5278 = vmatmul.mubr.bf16.gmra.mrb[0].mxu0 %v4726
    %v5279 = vpop.f32.mrb[0].mxu0
    %v5280 = vadd.f32 0.0, %v5279
    %v5281 = vpop.f32.mrb[0].mxu0
    %v5282 = vadd.f32 0.0, %v5281
    %v5283 = vpop.f32.mrb[0].mxu0
    %v5284 = vpop.f32.mrb[0].mxu0
    %5285 = vdwg.mxu0
    %v5286 = vadd.f32 %v5114, %v5157
    %v5287 = vadd.f32 %v5115, %v5159
    %v5288 = vadd.f32 %v5116, %v5198
    %v5289 = vadd.f32 %v5117, %v5200
    %v5290 = vadd.f32 %v5118, %v5239
    %v5291 = vadd.f32 %v5119, %v5241
    %v5292 = vadd.f32 %v5120, %v5280
    %v5293 = vadd.f32 %v5121, %v5282
    %v5294 = vxor.u32 %v5286, 2147483648
    %v5295 = vxor.u32 %v5287, 2147483648
    %v5296 = vmul.f32 %v5294, 1.442695
    %v5297 = vpow.pop %v5296
    %v5298 = vmul.f32 %v5295, 1.442695
    %v5299 = vpow.pop %v5298
    %v5300 = vadd.f32 %v5297, 1.0
    %v5301 = vadd.f32 %v5299, 1.0
    %v5302 = vrcp.pop %v5300
    %v5303 = vmul.f32 1.0, %v5302
    %v5304 = vrcp.pop %v5301
    %v5305 = vmul.f32 1.0, %v5304
    %v5306 = vxor.u32 %v5288, 2147483648
    %v5307 = vxor.u32 %v5289, 2147483648
    %v5308 = vmul.f32 %v5306, 1.442695
    %v5309 = vpow.pop %v5308
    %v5310 = vmul.f32 %v5307, 1.442695
    %v5311 = vpow.pop %v5310
    %v5312 = vadd.f32 %v5309, 1.0
    %v5313 = vadd.f32 %v5311, 1.0
    %v5314 = vrcp.pop %v5312
    %v5315 = vmul.f32 1.0, %v5314
    %v5316 = vrcp.pop %v5313
    %v5317 = vmul.f32 1.0, %v5316
    %v5318 = vtanh.pop %v5290
    %v5319 = vtanh.pop %v5291
    %v5320 = vxor.u32 %v5292, 2147483648
    %v5321 = vxor.u32 %v5293, 2147483648
    %v5322 = vmul.f32 %v5320, 1.442695
    %v5323 = vpow.pop %v5322
    %v5324 = vmul.f32 %v5321, 1.442695
    %v5325 = vpow.pop %v5324
    %v5326 = vadd.f32 %v5323, 1.0
    %v5327 = vadd.f32 %v5325, 1.0
    %v5328 = vrcp.pop %v5326
    %v5329 = vmul.f32 1.0, %v5328
    %v5330 = vrcp.pop %v5327
    %v5331 = vmul.f32 1.0, %v5330
    %v5332 = vmul.f32 %v5315, %v4720
    %v5333 = vmul.f32 %v5317, %v4721
    %v5334 = vmul.f32 %v5303, %v5318
    %v5335 = vmul.f32 %v5305, %v5319
    %v5336 = vadd.f32 %v5332, %v5334
    %v5337 = vadd.f32 %v5333, %v5335
    %v5338 = vtanh.pop %v5336
    %v5339 = vtanh.pop %v5337
    %v5340 = vmul.f32 %v5329, %v5338
    %v5341 = vmul.f32 %v5331, %v5339
    %v5342 = vpack.c.bf16 %v5340, %v5340
    %v5343 = vpack.c.bf16 %v5341, %v5341
    %v5344 = vpack.c.bf16 %v5112, %v5112
    %v5345 = vpack.c.bf16 %v5113, %v5113
    %5346 = vmatprep.subr.bf16.mxu0 %v2139
    %5347 = vmatpush1.bf16.msra.mxu0 %v2138
    %5348 = vmatprep.subr.bf16.mxu0 %v2147
    %5349 = vmatpush1.bf16.msra.mxu0 %v2146
    %5350 = vmatprep.subr.bf16.mxu0 %v2155
    %5351 = vmatpush1.bf16.msra.mxu0 %v2154
    %5352 = vmatprep.subr.bf16.mxu0 %v2163
    %5353 = vmatpush1.bf16.msra.mxu0 %v2162
    %5354 = vmatprep.subr.bf16.mxu0 %v2171
    %5355 = vmatpush1.bf16.msra.mxu0 %v2170
    %5356 = vmatprep.subr.bf16.mxu0 %v2179
    %5357 = vmatpush1.bf16.msra.mxu0 %v2178
    %5358 = vmatprep.subr.bf16.mxu0 %v2187
    %5359 = vmatpush1.bf16.msra.mxu0 %v2186
    %5360 = vmatprep.subr.bf16.mxu0 %v2195
    %5361 = vmatpush1.bf16.msra.mxu0 %v2194
    %5362 = vmatprep.subr.bf16.mxu0 %v2203
    %5363 = vmatpush1.bf16.msra.mxu0 %v2202
    %5364 = vmatprep.subr.bf16.mxu0 %v2211
    %5365 = vmatpush1.bf16.msra.mxu0 %v2210
    %5366 = vmatprep.subr.bf16.mxu0 %v2219
    %5367 = vmatpush1.bf16.msra.mxu0 %v2218
    %5368 = vmatprep.subr.bf16.mxu0 %v2227
    %5369 = vmatpush1.bf16.msra.mxu0 %v2226
    %5370 = vmatprep.subr.bf16.mxu0 %v2235
    %5371 = vmatpush1.bf16.msra.mxu0 %v2234
    %5372 = vmatprep.subr.bf16.mxu0 %v2243
    %5373 = vmatpush1.bf16.msra.mxu0 %v2242
    %5374 = vmatprep.subr.bf16.mxu0 %v2251
    %5375 = vmatpush1.bf16.msra.mxu0 %v2250
    %5376 = vmatprep.subr.bf16.mxu0 %v2259
    %5377 = vmatpush1.bf16.msra.mxu0 %v2258
    %5378 = vmatprep.mubr.bf16.mxu0 %v5345
    %5379 = vmatmul.mubr.bf16.gmra.mrb[0].mxu0 %v5344
    %v5380 = vpop.f32.mrb[0].mxu0
    %v5381 = vadd.f32 0.0, %v5380
    %v5382 = vpop.f32.mrb[0].mxu0
    %v5383 = vadd.f32 0.0, %v5382
    %v5384 = vpop.f32.mrb[0].mxu0
    %v5385 = vpop.f32.mrb[0].mxu0
    %5386 = vdwg.mxu0
    %5387 = vmatprep.subr.bf16.mxu0 %v2141
    %5388 = vmatpush1.bf16.msra.mxu0 %v2140
    %5389 = vmatprep.subr.bf16.mxu0 %v2149
    %5390 = vmatpush1.bf16.msra.mxu0 %v2148
    %5391 = vmatprep.subr.bf16.mxu0 %v2157
    %5392 = vmatpush1.bf16.msra.mxu0 %v2156
    %5393 = vmatprep.subr.bf16.mxu0 %v2165
    %5394 = vmatpush1.bf16.msra.mxu0 %v2164
    %5395 = vmatprep.subr.bf16.mxu0 %v2173
    %5396 = vmatpush1.bf16.msra.mxu0 %v2172
    %5397 = vmatprep.subr.bf16.mxu0 %v2181
    %5398 = vmatpush1.bf16.msra.mxu0 %v2180
    %5399 = vmatprep.subr.bf16.mxu0 %v2189
    %5400 = vmatpush1.bf16.msra.mxu0 %v2188
    %5401 = vmatprep.subr.bf16.mxu0 %v2197
    %5402 = vmatpush1.bf16.msra.mxu0 %v2196
    %5403 = vmatprep.subr.bf16.mxu0 %v2205
    %5404 = vmatpush1.bf16.msra.mxu0 %v2204
    %5405 = vmatprep.subr.bf16.mxu0 %v2213
    %5406 = vmatpush1.bf16.msra.mxu0 %v2212
    %5407 = vmatprep.subr.bf16.mxu0 %v2221
    %5408 = vmatpush1.bf16.msra.mxu0 %v2220
    %5409 = vmatprep.subr.bf16.mxu0 %v2229
    %5410 = vmatpush1.bf16.msra.mxu0 %v2228
    %5411 = vmatprep.subr.bf16.mxu0 %v2237
    %5412 = vmatpush1.bf16.msra.mxu0 %v2236
    %5413 = vmatprep.subr.bf16.mxu0 %v2245
    %5414 = vmatpush1.bf16.msra.mxu0 %v2244
    %5415 = vmatprep.subr.bf16.mxu0 %v2253
    %5416 = vmatpush1.bf16.msra.mxu0 %v2252
    %5417 = vmatprep.subr.bf16.mxu0 %v2261
    %5418 = vmatpush1.bf16.msra.mxu0 %v2260
    %5419 = vmatprep.mubr.bf16.mxu0 %v5345
    %5420 = vmatmul.mubr.bf16.gmra.mrb[0].mxu0 %v5344
    %v5421 = vpop.f32.mrb[0].mxu0
    %v5422 = vadd.f32 0.0, %v5421
    %v5423 = vpop.f32.mrb[0].mxu0
    %v5424 = vadd.f32 0.0, %v5423
    %v5425 = vpop.f32.mrb[0].mxu0
    %v5426 = vpop.f32.mrb[0].mxu0
    %5427 = vdwg.mxu0
    %5428 = vmatprep.subr.bf16.mxu0 %v2143
    %5429 = vmatpush1.bf16.msra.mxu0 %v2142
    %5430 = vmatprep.subr.bf16.mxu0 %v2151
    %5431 = vmatpush1.bf16.msra.mxu0 %v2150
    %5432 = vmatprep.subr.bf16.mxu0 %v2159
    %5433 = vmatpush1.bf16.msra.mxu0 %v2158
    %5434 = vmatprep.subr.bf16.mxu0 %v2167
    %5435 = vmatpush1.bf16.msra.mxu0 %v2166
    %5436 = vmatprep.subr.bf16.mxu0 %v2175
    %5437 = vmatpush1.bf16.msra.mxu0 %v2174
    %5438 = vmatprep.subr.bf16.mxu0 %v2183
    %5439 = vmatpush1.bf16.msra.mxu0 %v2182
    %5440 = vmatprep.subr.bf16.mxu0 %v2191
    %5441 = vmatpush1.bf16.msra.mxu0 %v2190
    %5442 = vmatprep.subr.bf16.mxu0 %v2199
    %5443 = vmatpush1.bf16.msra.mxu0 %v2198
    %5444 = vmatprep.subr.bf16.mxu0 %v2207
    %5445 = vmatpush1.bf16.msra.mxu0 %v2206
    %5446 = vmatprep.subr.bf16.mxu0 %v2215
    %5447 = vmatpush1.bf16.msra.mxu0 %v2214
    %5448 = vmatprep.subr.bf16.mxu0 %v2223
    %5449 = vmatpush1.bf16.msra.mxu0 %v2222
    %5450 = vmatprep.subr.bf16.mxu0 %v2231
    %5451 = vmatpush1.bf16.msra.mxu0 %v2230
    %5452 = vmatprep.subr.bf16.mxu0 %v2239
    %5453 = vmatpush1.bf16.msra.mxu0 %v2238
    %5454 = vmatprep.subr.bf16.mxu0 %v2247
    %5455 = vmatpush1.bf16.msra.mxu0 %v2246
    %5456 = vmatprep.subr.bf16.mxu0 %v2255
    %5457 = vmatpush1.bf16.msra.mxu0 %v2254
    %5458 = vmatprep.subr.bf16.mxu0 %v2263
    %5459 = vmatpush1.bf16.msra.mxu0 %v2262
    %5460 = vmatprep.mubr.bf16.mxu0 %v5345
    %5461 = vmatmul.mubr.bf16.gmra.mrb[0].mxu0 %v5344
    %v5462 = vpop.f32.mrb[0].mxu0
    %v5463 = vadd.f32 0.0, %v5462
    %v5464 = vpop.f32.mrb[0].mxu0
    %v5465 = vadd.f32 0.0, %v5464
    %v5466 = vpop.f32.mrb[0].mxu0
    %v5467 = vpop.f32.mrb[0].mxu0
    %5468 = vdwg.mxu0
    %5469 = vmatprep.subr.bf16.mxu0 %v2145
    %5470 = vmatpush1.bf16.msra.mxu0 %v2144
    %5471 = vmatprep.subr.bf16.mxu0 %v2153
    %5472 = vmatpush1.bf16.msra.mxu0 %v2152
    %5473 = vmatprep.subr.bf16.mxu0 %v2161
    %5474 = vmatpush1.bf16.msra.mxu0 %v2160
    %5475 = vmatprep.subr.bf16.mxu0 %v2169
    %5476 = vmatpush1.bf16.msra.mxu0 %v2168
    %5477 = vmatprep.subr.bf16.mxu0 %v2177
    %5478 = vmatpush1.bf16.msra.mxu0 %v2176
    %5479 = vmatprep.subr.bf16.mxu0 %v2185
    %5480 = vmatpush1.bf16.msra.mxu0 %v2184
    %5481 = vmatprep.subr.bf16.mxu0 %v2193
    %5482 = vmatpush1.bf16.msra.mxu0 %v2192
    %5483 = vmatprep.subr.bf16.mxu0 %v2201
    %5484 = vmatpush1.bf16.msra.mxu0 %v2200
    %5485 = vmatprep.subr.bf16.mxu0 %v2209
    %5486 = vmatpush1.bf16.msra.mxu0 %v2208
    %5487 = vmatprep.subr.bf16.mxu0 %v2217
    %5488 = vmatpush1.bf16.msra.mxu0 %v2216
    %5489 = vmatprep.subr.bf16.mxu0 %v2225
    %5490 = vmatpush1.bf16.msra.mxu0 %v2224
    %5491 = vmatprep.subr.bf16.mxu0 %v2233
    %5492 = vmatpush1.bf16.msra.mxu0 %v2232
    %5493 = vmatprep.subr.bf16.mxu0 %v2241
    %5494 = vmatpush1.bf16.msra.mxu0 %v2240
    %5495 = vmatprep.subr.bf16.mxu0 %v2249
    %5496 = vmatpush1.bf16.msra.mxu0 %v2248
    %5497 = vmatprep.subr.bf16.mxu0 %v2257
    %5498 = vmatpush1.bf16.msra.mxu0 %v2256
    %5499 = vmatprep.subr.bf16.mxu0 %v2265
    %5500 = vmatpush1.bf16.msra.mxu0 %v2264
    %5501 = vmatprep.mubr.bf16.mxu0 %v5345
    %5502 = vmatmul.mubr.bf16.gmra.mrb[0].mxu0 %v5344
    %v5503 = vpop.f32.mrb[0].mxu0
    %v5504 = vadd.f32 0.0, %v5503
    %v5505 = vpop.f32.mrb[0].mxu0
    %v5506 = vadd.f32 0.0, %v5505
    %v5507 = vpop.f32.mrb[0].mxu0
    %v5508 = vpop.f32.mrb[0].mxu0
    %5509 = vdwg.mxu0
    %5510 = vmatprep.subr.bf16.mxu0 %v2009
    %5511 = vmatpush1.bf16.msra.mxu0 %v2008
    %5512 = vmatprep.subr.bf16.mxu0 %v2017
    %5513 = vmatpush1.bf16.msra.mxu0 %v2016
    %5514 = vmatprep.subr.bf16.mxu0 %v2025
    %5515 = vmatpush1.bf16.msra.mxu0 %v2024
    %5516 = vmatprep.subr.bf16.mxu0 %v2033
    %5517 = vmatpush1.bf16.msra.mxu0 %v2032
    %5518 = vmatprep.subr.bf16.mxu0 %v2041
    %5519 = vmatpush1.bf16.msra.mxu0 %v2040
    %5520 = vmatprep.subr.bf16.mxu0 %v2049
    %5521 = vmatpush1.bf16.msra.mxu0 %v2048
    %5522 = vmatprep.subr.bf16.mxu0 %v2057
    %5523 = vmatpush1.bf16.msra.mxu0 %v2056
    %5524 = vmatprep.subr.bf16.mxu0 %v2065
    %5525 = vmatpush1.bf16.msra.mxu0 %v2064
    %5526 = vmatprep.subr.bf16.mxu0 %v2073
    %5527 = vmatpush1.bf16.msra.mxu0 %v2072
    %5528 = vmatprep.subr.bf16.mxu0 %v2081
    %5529 = vmatpush1.bf16.msra.mxu0 %v2080
    %5530 = vmatprep.subr.bf16.mxu0 %v2089
    %5531 = vmatpush1.bf16.msra.mxu0 %v2088
    %5532 = vmatprep.subr.bf16.mxu0 %v2097
    %5533 = vmatpush1.bf16.msra.mxu0 %v2096
    %5534 = vmatprep.subr.bf16.mxu0 %v2105
    %5535 = vmatpush1.bf16.msra.mxu0 %v2104
    %5536 = vmatprep.subr.bf16.mxu0 %v2113
    %5537 = vmatpush1.bf16.msra.mxu0 %v2112
    %5538 = vmatprep.subr.bf16.mxu0 %v2121
    %5539 = vmatpush1.bf16.msra.mxu0 %v2120
    %5540 = vmatprep.subr.bf16.mxu0 %v2129
    %5541 = vmatpush1.bf16.msra.mxu0 %v2128
    %5542 = vmatprep.mubr.bf16.mxu0 %v5343
    %5543 = vmatmul.mubr.bf16.gmra.mrb[0].mxu0 %v5342
    %v5544 = vpop.f32.mrb[0].mxu0
    %v5545 = vadd.f32 %v5381, %v5544
    %v5546 = vpop.f32.mrb[0].mxu0
    %v5547 = vadd.f32 %v5383, %v5546
    %v5548 = vpop.f32.mrb[0].mxu0
    %v5549 = vpop.f32.mrb[0].mxu0
    %5550 = vdwg.mxu0
    %5551 = vmatprep.subr.bf16.mxu0 %v2011
    %5552 = vmatpush1.bf16.msra.mxu0 %v2010
    %5553 = vmatprep.subr.bf16.mxu0 %v2019
    %5554 = vmatpush1.bf16.msra.mxu0 %v2018
    %5555 = vmatprep.subr.bf16.mxu0 %v2027
    %5556 = vmatpush1.bf16.msra.mxu0 %v2026
    %5557 = vmatprep.subr.bf16.mxu0 %v2035
    %5558 = vmatpush1.bf16.msra.mxu0 %v2034
    %5559 = vmatprep.subr.bf16.mxu0 %v2043
    %5560 = vmatpush1.bf16.msra.mxu0 %v2042
    %5561 = vmatprep.subr.bf16.mxu0 %v2051
    %5562 = vmatpush1.bf16.msra.mxu0 %v2050
    %5563 = vmatprep.subr.bf16.mxu0 %v2059
    %5564 = vmatpush1.bf16.msra.mxu0 %v2058
    %5565 = vmatprep.subr.bf16.mxu0 %v2067
    %5566 = vmatpush1.bf16.msra.mxu0 %v2066
    %5567 = vmatprep.subr.bf16.mxu0 %v2075
    %5568 = vmatpush1.bf16.msra.mxu0 %v2074
    %5569 = vmatprep.subr.bf16.mxu0 %v2083
    %5570 = vmatpush1.bf16.msra.mxu0 %v2082
    %5571 = vmatprep.subr.bf16.mxu0 %v2091
    %5572 = vmatpush1.bf16.msra.mxu0 %v2090
    %5573 = vmatprep.subr.bf16.mxu0 %v2099
    %5574 = vmatpush1.bf16.msra.mxu0 %v2098
    %5575 = vmatprep.subr.bf16.mxu0 %v2107
    %5576 = vmatpush1.bf16.msra.mxu0 %v2106
    %5577 = vmatprep.subr.bf16.mxu0 %v2115
    %5578 = vmatpush1.bf16.msra.mxu0 %v2114
    %5579 = vmatprep.subr.bf16.mxu0 %v2123
    %5580 = vmatpush1.bf16.msra.mxu0 %v2122
    %5581 = vmatprep.subr.bf16.mxu0 %v2131
    %5582 = vmatpush1.bf16.msra.mxu0 %v2130
    %5583 = vmatprep.mubr.bf16.mxu0 %v5343
    %5584 = vmatmul.mubr.bf16.gmra.mrb[0].mxu0 %v5342
    %v5585 = vpop.f32.mrb[0].mxu0
    %v5586 = vadd.f32 %v5422, %v5585
    %v5587 = vpop.f32.mrb[0].mxu0
    %v5588 = vadd.f32 %v5424, %v5587
    %v5589 = vpop.f32.mrb[0].mxu0
    %v5590 = vpop.f32.mrb[0].mxu0
    %5591 = vdwg.mxu0
    %5592 = vmatprep.subr.bf16.mxu0 %v2013
    %5593 = vmatpush1.bf16.msra.mxu0 %v2012
    %5594 = vmatprep.subr.bf16.mxu0 %v2021
    %5595 = vmatpush1.bf16.msra.mxu0 %v2020
    %5596 = vmatprep.subr.bf16.mxu0 %v2029
    %5597 = vmatpush1.bf16.msra.mxu0 %v2028
    %5598 = vmatprep.subr.bf16.mxu0 %v2037
    %5599 = vmatpush1.bf16.msra.mxu0 %v2036
    %5600 = vmatprep.subr.bf16.mxu0 %v2045
    %5601 = vmatpush1.bf16.msra.mxu0 %v2044
    %5602 = vmatprep.subr.bf16.mxu0 %v2053
    %5603 = vmatpush1.bf16.msra.mxu0 %v2052
    %5604 = vmatprep.subr.bf16.mxu0 %v2061
    %5605 = vmatpush1.bf16.msra.mxu0 %v2060
    %5606 = vmatprep.subr.bf16.mxu0 %v2069
    %5607 = vmatpush1.bf16.msra.mxu0 %v2068
    %5608 = vmatprep.subr.bf16.mxu0 %v2077
    %5609 = vmatpush1.bf16.msra.mxu0 %v2076
    %5610 = vmatprep.subr.bf16.mxu0 %v2085
    %5611 = vmatpush1.bf16.msra.mxu0 %v2084
    %5612 = vmatprep.subr.bf16.mxu0 %v2093
    %5613 = vmatpush1.bf16.msra.mxu0 %v2092
    %5614 = vmatprep.subr.bf16.mxu0 %v2101
    %5615 = vmatpush1.bf16.msra.mxu0 %v2100
    %5616 = vmatprep.subr.bf16.mxu0 %v2109
    %5617 = vmatpush1.bf16.msra.mxu0 %v2108
    %5618 = vmatprep.subr.bf16.mxu0 %v2117
    %5619 = vmatpush1.bf16.msra.mxu0 %v2116
    %5620 = vmatprep.subr.bf16.mxu0 %v2125
    %5621 = vmatpush1.bf16.msra.mxu0 %v2124
    %5622 = vmatprep.subr.bf16.mxu0 %v2133
    %5623 = vmatpush1.bf16.msra.mxu0 %v2132
    %5624 = vmatprep.mubr.bf16.mxu0 %v5343
    %5625 = vmatmul.mubr.bf16.gmra.mrb[0].mxu0 %v5342
    %v5626 = vpop.f32.mrb[0].mxu0
    %v5627 = vadd.f32 %v5463, %v5626
    %v5628 = vpop.f32.mrb[0].mxu0
    %v5629 = vadd.f32 %v5465, %v5628
    %v5630 = vpop.f32.mrb[0].mxu0
    %v5631 = vpop.f32.mrb[0].mxu0
    %5632 = vdwg.mxu0
    %5633 = vmatprep.subr.bf16.mxu0 %v2015
    %5634 = vmatpush1.bf16.msra.mxu0 %v2014
    %5635 = vmatprep.subr.bf16.mxu0 %v2023
    %5636 = vmatpush1.bf16.msra.mxu0 %v2022
    %5637 = vmatprep.subr.bf16.mxu0 %v2031
    %5638 = vmatpush1.bf16.msra.mxu0 %v2030
    %5639 = vmatprep.subr.bf16.mxu0 %v2039
    %5640 = vmatpush1.bf16.msra.mxu0 %v2038
    %5641 = vmatprep.subr.bf16.mxu0 %v2047
    %5642 = vmatpush1.bf16.msra.mxu0 %v2046
    %5643 = vmatprep.subr.bf16.mxu0 %v2055
    %5644 = vmatpush1.bf16.msra.mxu0 %v2054
    %5645 = vmatprep.subr.bf16.mxu0 %v2063
    %5646 = vmatpush1.bf16.msra.mxu0 %v2062
    %5647 = vmatprep.subr.bf16.mxu0 %v2071
    %5648 = vmatpush1.bf16.msra.mxu0 %v2070
    %5649 = vmatprep.subr.bf16.mxu0 %v2079
    %5650 = vmatpush1.bf16.msra.mxu0 %v2078
    %5651 = vmatprep.subr.bf16.mxu0 %v2087
    %5652 = vmatpush1.bf16.msra.mxu0 %v2086
    %5653 = vmatprep.subr.bf16.mxu0 %v2095
    %5654 = vmatpush1.bf16.msra.mxu0 %v2094
    %5655 = vmatprep.subr.bf16.mxu0 %v2103
    %5656 = vmatpush1.bf16.msra.mxu0 %v2102
    %5657 = vmatprep.subr.bf16.mxu0 %v2111
    %5658 = vmatpush1.bf16.msra.mxu0 %v2110
    %5659 = vmatprep.subr.bf16.mxu0 %v2119
    %5660 = vmatpush1.bf16.msra.mxu0 %v2118
    %5661 = vmatprep.subr.bf16.mxu0 %v2127
    %5662 = vmatpush1.bf16.msra.mxu0 %v2126
    %5663 = vmatprep.subr.bf16.mxu0 %v2135
    %5664 = vmatpush1.bf16.msra.mxu0 %v2134
    %5665 = vmatprep.mubr.bf16.mxu0 %v5343
    %5666 = vmatmul.mubr.bf16.gmra.mrb[0].mxu0 %v5342
    %v5667 = vpop.f32.mrb[0].mxu0
    %v5668 = vadd.f32 %v5504, %v5667
    %v5669 = vpop.f32.mrb[0].mxu0
    %v5670 = vadd.f32 %v5506, %v5669
    %v5671 = vpop.f32.mrb[0].mxu0
    %v5672 = vpop.f32.mrb[0].mxu0
    %5673 = vdwg.mxu0
    %v5674 = vadd.f32 %v5545, %v961
    %v5675 = vadd.f32 %v5547, %v965
    %v5676 = vadd.f32 %v5586, %v969
    %v5677 = vadd.f32 %v5588, %v973
    %v5678 = vadd.f32 %v5627, %v977
    %v5679 = vadd.f32 %v5629, %v981
    %v5680 = vadd.f32 %v5668, %v985
    %v5681 = vadd.f32 %v5670, %v989
    %v5682 = vxor.u32 %v5674, 2147483648
    %v5683 = vxor.u32 %v5675, 2147483648
    %v5684 = vmul.f32 %v5682, 1.442695
    %v5685 = vpow.pop %v5684
    %v5686 = vmul.f32 %v5683, 1.442695
    %v5687 = vpow.pop %v5686
    %v5688 = vadd.f32 %v5685, 1.0
    %v5689 = vadd.f32 %v5687, 1.0
    %v5690 = vrcp.pop %v5688
    %v5691 = vmul.f32 1.0, %v5690
    %v5692 = vrcp.pop %v5689
    %v5693 = vmul.f32 1.0, %v5692
    %v5694 = vxor.u32 %v5676, 2147483648
    %v5695 = vxor.u32 %v5677, 2147483648
    %v5696 = vmul.f32 %v5694, 1.442695
    %v5697 = vpow.pop %v5696
    %v5698 = vmul.f32 %v5695, 1.442695
    %v5699 = vpow.pop %v5698
    %v5700 = vadd.f32 %v5697, 1.0
    %v5701 = vadd.f32 %v5699, 1.0
    %v5702 = vrcp.pop %v5700
    %v5703 = vmul.f32 1.0, %v5702
    %v5704 = vrcp.pop %v5701
    %v5705 = vmul.f32 1.0, %v5704
    %v5706 = vtanh.pop %v5678
    %v5707 = vtanh.pop %v5679
    %v5708 = vxor.u32 %v5680, 2147483648
    %v5709 = vxor.u32 %v5681, 2147483648
    %v5710 = vmul.f32 %v5708, 1.442695
    %v5711 = vpow.pop %v5710
    %v5712 = vmul.f32 %v5709, 1.442695
    %v5713 = vpow.pop %v5712
    %v5714 = vadd.f32 %v5711, 1.0
    %v5715 = vadd.f32 %v5713, 1.0
    %v5716 = vrcp.pop %v5714
    %v5717 = vmul.f32 1.0, %v5716
    %v5718 = vrcp.pop %v5715
    %v5719 = vmul.f32 1.0, %v5718
    %v5720 = vmul.f32 %v5703, %v5108
    %v5721 = vmul.f32 %v5705, %v5109
    %v5722 = vmul.f32 %v5691, %v5706
    %v5723 = vmul.f32 %v5693, %v5707
    %v5724 = vadd.f32 %v5720, %v5722
    %v5725 = vadd.f32 %v5721, %v5723
    %v5726 = vtanh.pop %v5724
    %v5727 = vtanh.pop %v5725
    %v5728 = vmul.f32 %v5717, %v5726
    %v5729 = vmul.f32 %v5719, %v5727
    %v5730 = vld [vmem:[#allocation2 + $0x180] sm:$0xff]
    %v5731 = vld [vmem:[#allocation2 + $0x188] sm:$0xff]
    %v5732 = vld [vmem:[#allocation2 + $0x190] sm:$0xff]
    %v5733 = vld [vmem:[#allocation2 + $0x198] sm:$0xff]
    %v5734 = vld [vmem:[#allocation2 + $0x1a0] sm:$0xff]
    %v5735 = vld [vmem:[#allocation2 + $0x1a8] sm:$0xff]
    %v5736 = vld [vmem:[#allocation2 + $0x1b0] sm:$0xff]
    %v5737 = vld [vmem:[#allocation2 + $0x1b8] sm:$0xff]
    %5738 = vmatprep.subr.bf16.mxu0 %v1531
    %5739 = vmatpush1.bf16.msra.mxu0 %v1530
    %5740 = vmatprep.subr.bf16.mxu0 %v1539
    %5741 = vmatpush1.bf16.msra.mxu0 %v1538
    %5742 = vmatprep.subr.bf16.mxu0 %v1547
    %5743 = vmatpush1.bf16.msra.mxu0 %v1546
    %5744 = vmatprep.subr.bf16.mxu0 %v1555
    %5745 = vmatpush1.bf16.msra.mxu0 %v1554
    %5746 = vmatprep.subr.bf16.mxu0 %v1563
    %5747 = vmatpush1.bf16.msra.mxu0 %v1562
    %5748 = vmatprep.subr.bf16.mxu0 %v1571
    %5749 = vmatpush1.bf16.msra.mxu0 %v1570
    %5750 = vmatprep.subr.bf16.mxu0 %v1579
    %5751 = vmatpush1.bf16.msra.mxu0 %v1578
    %5752 = vmatprep.subr.bf16.mxu0 %v1587
    %5753 = vmatpush1.bf16.msra.mxu0 %v1586
    %5754 = vmatprep.subr.bf16.mxu0 %v1595
    %5755 = vmatpush1.bf16.msra.mxu0 %v1594
    %5756 = vmatprep.subr.bf16.mxu0 %v1603
    %5757 = vmatpush1.bf16.msra.mxu0 %v1602
    %5758 = vmatprep.subr.bf16.mxu0 %v1611
    %5759 = vmatpush1.bf16.msra.mxu0 %v1610
    %5760 = vmatprep.subr.bf16.mxu0 %v1619
    %5761 = vmatpush1.bf16.msra.mxu0 %v1618
    %5762 = vmatprep.subr.bf16.mxu0 %v1627
    %5763 = vmatpush1.bf16.msra.mxu0 %v1626
    %5764 = vmatprep.subr.bf16.mxu0 %v1635
    %5765 = vmatpush1.bf16.msra.mxu0 %v1634
    %5766 = vmatprep.subr.bf16.mxu0 %v1643
    %5767 = vmatpush1.bf16.msra.mxu0 %v1642
    %5768 = vmatprep.subr.bf16.mxu0 %v1651
    %5769 = vmatpush1.bf16.msra.mxu0 %v1650
    %5770 = vmatprep.mubr.bf16.mxu0 %v5343
    %5771 = vmatmul.mubr.bf16.gmra.mrb[0].mxu0 %v5342
    %v5772 = vpop.f32.mrb[0].mxu0
    %v5773 = vadd.f32 0.0, %v5772
    %v5774 = vpop.f32.mrb[0].mxu0
    %v5775 = vadd.f32 0.0, %v5774
    %v5776 = vpop.f32.mrb[0].mxu0
    %v5777 = vpop.f32.mrb[0].mxu0
    %5778 = vdwg.mxu0
    %5779 = vmatprep.subr.bf16.mxu0 %v1533
    %5780 = vmatpush1.bf16.msra.mxu0 %v1532
    %5781 = vmatprep.subr.bf16.mxu0 %v1541
    %5782 = vmatpush1.bf16.msra.mxu0 %v1540
    %5783 = vmatprep.subr.bf16.mxu0 %v1549
    %5784 = vmatpush1.bf16.msra.mxu0 %v1548
    %5785 = vmatprep.subr.bf16.mxu0 %v1557
    %5786 = vmatpush1.bf16.msra.mxu0 %v1556
    %5787 = vmatprep.subr.bf16.mxu0 %v1565
    %5788 = vmatpush1.bf16.msra.mxu0 %v1564
    %5789 = vmatprep.subr.bf16.mxu0 %v1573
    %5790 = vmatpush1.bf16.msra.mxu0 %v1572
    %5791 = vmatprep.subr.bf16.mxu0 %v1581
    %5792 = vmatpush1.bf16.msra.mxu0 %v1580
    %5793 = vmatprep.subr.bf16.mxu0 %v1589
    %5794 = vmatpush1.bf16.msra.mxu0 %v1588
    %5795 = vmatprep.subr.bf16.mxu0 %v1597
    %5796 = vmatpush1.bf16.msra.mxu0 %v1596
    %5797 = vmatprep.subr.bf16.mxu0 %v1605
    %5798 = vmatpush1.bf16.msra.mxu0 %v1604
    %5799 = vmatprep.subr.bf16.mxu0 %v1613
    %5800 = vmatpush1.bf16.msra.mxu0 %v1612
    %5801 = vmatprep.subr.bf16.mxu0 %v1621
    %5802 = vmatpush1.bf16.msra.mxu0 %v1620
    %5803 = vmatprep.subr.bf16.mxu0 %v1629
    %5804 = vmatpush1.bf16.msra.mxu0 %v1628
    %5805 = vmatprep.subr.bf16.mxu0 %v1637
    %5806 = vmatpush1.bf16.msra.mxu0 %v1636
    %5807 = vmatprep.subr.bf16.mxu0 %v1645
    %5808 = vmatpush1.bf16.msra.mxu0 %v1644
    %5809 = vmatprep.subr.bf16.mxu0 %v1653
    %5810 = vmatpush1.bf16.msra.mxu0 %v1652
    %5811 = vmatprep.mubr.bf16.mxu0 %v5343
    %5812 = vmatmul.mubr.bf16.gmra.mrb[0].mxu0 %v5342
    %v5813 = vpop.f32.mrb[0].mxu0
    %v5814 = vadd.f32 0.0, %v5813
    %v5815 = vpop.f32.mrb[0].mxu0
    %v5816 = vadd.f32 0.0, %v5815
    %v5817 = vpop.f32.mrb[0].mxu0
    %v5818 = vpop.f32.mrb[0].mxu0
    %5819 = vdwg.mxu0
    %5820 = vmatprep.subr.bf16.mxu0 %v1535
    %5821 = vmatpush1.bf16.msra.mxu0 %v1534
    %5822 = vmatprep.subr.bf16.mxu0 %v1543
    %5823 = vmatpush1.bf16.msra.mxu0 %v1542
    %5824 = vmatprep.subr.bf16.mxu0 %v1551
    %5825 = vmatpush1.bf16.msra.mxu0 %v1550
    %5826 = vmatprep.subr.bf16.mxu0 %v1559
    %5827 = vmatpush1.bf16.msra.mxu0 %v1558
    %5828 = vmatprep.subr.bf16.mxu0 %v1567
    %5829 = vmatpush1.bf16.msra.mxu0 %v1566
    %5830 = vmatprep.subr.bf16.mxu0 %v1575
    %5831 = vmatpush1.bf16.msra.mxu0 %v1574
    %5832 = vmatprep.subr.bf16.mxu0 %v1583
    %5833 = vmatpush1.bf16.msra.mxu0 %v1582
    %5834 = vmatprep.subr.bf16.mxu0 %v1591
    %5835 = vmatpush1.bf16.msra.mxu0 %v1590
    %5836 = vmatprep.subr.bf16.mxu0 %v1599
    %5837 = vmatpush1.bf16.msra.mxu0 %v1598
    %5838 = vmatprep.subr.bf16.mxu0 %v1607
    %5839 = vmatpush1.bf16.msra.mxu0 %v1606
    %5840 = vmatprep.subr.bf16.mxu0 %v1615
    %5841 = vmatpush1.bf16.msra.mxu0 %v1614
    %5842 = vmatprep.subr.bf16.mxu0 %v1623
    %5843 = vmatpush1.bf16.msra.mxu0 %v1622
    %5844 = vmatprep.subr.bf16.mxu0 %v1631
    %5845 = vmatpush1.bf16.msra.mxu0 %v1630
    %5846 = vmatprep.subr.bf16.mxu0 %v1639
    %5847 = vmatpush1.bf16.msra.mxu0 %v1638
    %5848 = vmatprep.subr.bf16.mxu0 %v1647
    %5849 = vmatpush1.bf16.msra.mxu0 %v1646
    %5850 = vmatprep.subr.bf16.mxu0 %v1655
    %5851 = vmatpush1.bf16.msra.mxu0 %v1654
    %5852 = vmatprep.mubr.bf16.mxu0 %v5343
    %5853 = vmatmul.mubr.bf16.gmra.mrb[0].mxu0 %v5342
    %v5854 = vpop.f32.mrb[0].mxu0
    %v5855 = vadd.f32 0.0, %v5854
    %v5856 = vpop.f32.mrb[0].mxu0
    %v5857 = vadd.f32 0.0, %v5856
    %v5858 = vpop.f32.mrb[0].mxu0
    %v5859 = vpop.f32.mrb[0].mxu0
    %5860 = vdwg.mxu0
    %5861 = vmatprep.subr.bf16.mxu0 %v1537
    %5862 = vmatpush1.bf16.msra.mxu0 %v1536
    %5863 = vmatprep.subr.bf16.mxu0 %v1545
    %5864 = vmatpush1.bf16.msra.mxu0 %v1544
    %5865 = vmatprep.subr.bf16.mxu0 %v1553
    %5866 = vmatpush1.bf16.msra.mxu0 %v1552
    %5867 = vmatprep.subr.bf16.mxu0 %v1561
    %5868 = vmatpush1.bf16.msra.mxu0 %v1560
    %5869 = vmatprep.subr.bf16.mxu0 %v1569
    %5870 = vmatpush1.bf16.msra.mxu0 %v1568
    %5871 = vmatprep.subr.bf16.mxu0 %v1577
    %5872 = vmatpush1.bf16.msra.mxu0 %v1576
    %5873 = vmatprep.subr.bf16.mxu0 %v1585
    %5874 = vmatpush1.bf16.msra.mxu0 %v1584
    %5875 = vmatprep.subr.bf16.mxu0 %v1593
    %5876 = vmatpush1.bf16.msra.mxu0 %v1592
    %5877 = vmatprep.subr.bf16.mxu0 %v1601
    %5878 = vmatpush1.bf16.msra.mxu0 %v1600
    %5879 = vmatprep.subr.bf16.mxu0 %v1609
    %5880 = vmatpush1.bf16.msra.mxu0 %v1608
    %5881 = vmatprep.subr.bf16.mxu0 %v1617
    %5882 = vmatpush1.bf16.msra.mxu0 %v1616
    %5883 = vmatprep.subr.bf16.mxu0 %v1625
    %5884 = vmatpush1.bf16.msra.mxu0 %v1624
    %5885 = vmatprep.subr.bf16.mxu0 %v1633
    %5886 = vmatpush1.bf16.msra.mxu0 %v1632
    %5887 = vmatprep.subr.bf16.mxu0 %v1641
    %5888 = vmatpush1.bf16.msra.mxu0 %v1640
    %5889 = vmatprep.subr.bf16.mxu0 %v1649
    %5890 = vmatpush1.bf16.msra.mxu0 %v1648
    %5891 = vmatprep.subr.bf16.mxu0 %v1657
    %5892 = vmatpush1.bf16.msra.mxu0 %v1656
    %5893 = vmatprep.mubr.bf16.mxu0 %v5343
    %5894 = vmatmul.mubr.bf16.gmra.mrb[0].mxu0 %v5342
    %v5895 = vpop.f32.mrb[0].mxu0
    %v5896 = vadd.f32 0.0, %v5895
    %v5897 = vpop.f32.mrb[0].mxu0
    %v5898 = vadd.f32 0.0, %v5897
    %v5899 = vpop.f32.mrb[0].mxu0
    %v5900 = vpop.f32.mrb[0].mxu0
    %5901 = vdwg.mxu0
    %v5902 = vadd.f32 %v5730, %v5773
    %v5903 = vadd.f32 %v5731, %v5775
    %v5904 = vadd.f32 %v5732, %v5814
    %v5905 = vadd.f32 %v5733, %v5816
    %v5906 = vadd.f32 %v5734, %v5855
    %v5907 = vadd.f32 %v5735, %v5857
    %v5908 = vadd.f32 %v5736, %v5896
    %v5909 = vadd.f32 %v5737, %v5898
    %v5910 = vxor.u32 %v5902, 2147483648
    %v5911 = vxor.u32 %v5903, 2147483648
    %v5912 = vmul.f32 %v5910, 1.442695
    %v5913 = vpow.pop %v5912
    %v5914 = vmul.f32 %v5911, 1.442695
    %v5915 = vpow.pop %v5914
    %v5916 = vadd.f32 %v5913, 1.0
    %v5917 = vadd.f32 %v5915, 1.0
    %v5918 = vrcp.pop %v5916
    %v5919 = vmul.f32 1.0, %v5918
    %v5920 = vrcp.pop %v5917
    %v5921 = vmul.f32 1.0, %v5920
    %v5922 = vxor.u32 %v5904, 2147483648
    %v5923 = vxor.u32 %v5905, 2147483648
    %v5924 = vmul.f32 %v5922, 1.442695
    %v5925 = vpow.pop %v5924
    %v5926 = vmul.f32 %v5923, 1.442695
    %v5927 = vpow.pop %v5926
    %v5928 = vadd.f32 %v5925, 1.0
    %v5929 = vadd.f32 %v5927, 1.0
    %v5930 = vrcp.pop %v5928
    %v5931 = vmul.f32 1.0, %v5930
    %v5932 = vrcp.pop %v5929
    %v5933 = vmul.f32 1.0, %v5932
    %v5934 = vtanh.pop %v5906
    %v5935 = vtanh.pop %v5907
    %v5936 = vxor.u32 %v5908, 2147483648
    %v5937 = vxor.u32 %v5909, 2147483648
    %v5938 = vmul.f32 %v5936, 1.442695
    %v5939 = vpow.pop %v5938
    %v5940 = vmul.f32 %v5937, 1.442695
    %v5941 = vpow.pop %v5940
    %v5942 = vadd.f32 %v5939, 1.0
    %v5943 = vadd.f32 %v5941, 1.0
    %v5944 = vrcp.pop %v5942
    %v5945 = vmul.f32 1.0, %v5944
    %v5946 = vrcp.pop %v5943
    %v5947 = vmul.f32 1.0, %v5946
    %v5948 = vmul.f32 %v5931, %v5336
    %v5949 = vmul.f32 %v5933, %v5337
    %v5950 = vmul.f32 %v5919, %v5934
    %v5951 = vmul.f32 %v5921, %v5935
    %v5952 = vadd.f32 %v5948, %v5950
    %v5953 = vadd.f32 %v5949, %v5951
    %v5954 = vtanh.pop %v5952
    %v5955 = vtanh.pop %v5953
    %v5956 = vmul.f32 %v5945, %v5954
    %v5957 = vmul.f32 %v5947, %v5955
    %v5958 = vpack.c.bf16 %v5956, %v5956
    %v5959 = vpack.c.bf16 %v5957, %v5957
    %v5960 = vpack.c.bf16 %v5728, %v5728
    %v5961 = vpack.c.bf16 %v5729, %v5729
    %5962 = vmatprep.subr.bf16.mxu0 %v2139
    %5963 = vmatpush1.bf16.msra.mxu0 %v2138
    %5964 = vmatprep.subr.bf16.mxu0 %v2147
    %5965 = vmatpush1.bf16.msra.mxu0 %v2146
    %5966 = vmatprep.subr.bf16.mxu0 %v2155
    %5967 = vmatpush1.bf16.msra.mxu0 %v2154
    %5968 = vmatprep.subr.bf16.mxu0 %v2163
    %5969 = vmatpush1.bf16.msra.mxu0 %v2162
    %5970 = vmatprep.subr.bf16.mxu0 %v2171
    %5971 = vmatpush1.bf16.msra.mxu0 %v2170
    %5972 = vmatprep.subr.bf16.mxu0 %v2179
    %5973 = vmatpush1.bf16.msra.mxu0 %v2178
    %5974 = vmatprep.subr.bf16.mxu0 %v2187
    %5975 = vmatpush1.bf16.msra.mxu0 %v2186
    %5976 = vmatprep.subr.bf16.mxu0 %v2195
    %5977 = vmatpush1.bf16.msra.mxu0 %v2194
    %5978 = vmatprep.subr.bf16.mxu0 %v2203
    %5979 = vmatpush1.bf16.msra.mxu0 %v2202
    %5980 = vmatprep.subr.bf16.mxu0 %v2211
    %5981 = vmatpush1.bf16.msra.mxu0 %v2210
    %5982 = vmatprep.subr.bf16.mxu0 %v2219
    %5983 = vmatpush1.bf16.msra.mxu0 %v2218
    %5984 = vmatprep.subr.bf16.mxu0 %v2227
    %5985 = vmatpush1.bf16.msra.mxu0 %v2226
    %5986 = vmatprep.subr.bf16.mxu0 %v2235
    %5987 = vmatpush1.bf16.msra.mxu0 %v2234
    %5988 = vmatprep.subr.bf16.mxu0 %v2243
    %5989 = vmatpush1.bf16.msra.mxu0 %v2242
    %5990 = vmatprep.subr.bf16.mxu0 %v2251
    %5991 = vmatpush1.bf16.msra.mxu0 %v2250
    %5992 = vmatprep.subr.bf16.mxu0 %v2259
    %5993 = vmatpush1.bf16.msra.mxu0 %v2258
    %5994 = vmatprep.mubr.bf16.mxu0 %v5961
    %5995 = vmatmul.mubr.bf16.gmra.mrb[0].mxu0 %v5960
    %v5996 = vpop.f32.mrb[0].mxu0
    %v5997 = vadd.f32 0.0, %v5996
    %v5998 = vpop.f32.mrb[0].mxu0
    %v5999 = vadd.f32 0.0, %v5998
    %v6000 = vpop.f32.mrb[0].mxu0
    %v6001 = vpop.f32.mrb[0].mxu0
    %6002 = vdwg.mxu0
    %6003 = vmatprep.subr.bf16.mxu0 %v2141
    %6004 = vmatpush1.bf16.msra.mxu0 %v2140
    %6005 = vmatprep.subr.bf16.mxu0 %v2149
    %6006 = vmatpush1.bf16.msra.mxu0 %v2148
    %6007 = vmatprep.subr.bf16.mxu0 %v2157
    %6008 = vmatpush1.bf16.msra.mxu0 %v2156
    %6009 = vmatprep.subr.bf16.mxu0 %v2165
    %6010 = vmatpush1.bf16.msra.mxu0 %v2164
    %6011 = vmatprep.subr.bf16.mxu0 %v2173
    %6012 = vmatpush1.bf16.msra.mxu0 %v2172
    %6013 = vmatprep.subr.bf16.mxu0 %v2181
    %6014 = vmatpush1.bf16.msra.mxu0 %v2180
    %6015 = vmatprep.subr.bf16.mxu0 %v2189
    %6016 = vmatpush1.bf16.msra.mxu0 %v2188
    %6017 = vmatprep.subr.bf16.mxu0 %v2197
    %6018 = vmatpush1.bf16.msra.mxu0 %v2196
    %6019 = vmatprep.subr.bf16.mxu0 %v2205
    %6020 = vmatpush1.bf16.msra.mxu0 %v2204
    %6021 = vmatprep.subr.bf16.mxu0 %v2213
    %6022 = vmatpush1.bf16.msra.mxu0 %v2212
    %6023 = vmatprep.subr.bf16.mxu0 %v2221
    %6024 = vmatpush1.bf16.msra.mxu0 %v2220
    %6025 = vmatprep.subr.bf16.mxu0 %v2229
    %6026 = vmatpush1.bf16.msra.mxu0 %v2228
    %6027 = vmatprep.subr.bf16.mxu0 %v2237
    %6028 = vmatpush1.bf16.msra.mxu0 %v2236
    %6029 = vmatprep.subr.bf16.mxu0 %v2245
    %6030 = vmatpush1.bf16.msra.mxu0 %v2244
    %6031 = vmatprep.subr.bf16.mxu0 %v2253
    %6032 = vmatpush1.bf16.msra.mxu0 %v2252
    %6033 = vmatprep.subr.bf16.mxu0 %v2261
    %6034 = vmatpush1.bf16.msra.mxu0 %v2260
    %6035 = vmatprep.mubr.bf16.mxu0 %v5961
    %6036 = vmatmul.mubr.bf16.gmra.mrb[0].mxu0 %v5960
    %v6037 = vpop.f32.mrb[0].mxu0
    %v6038 = vadd.f32 0.0, %v6037
    %v6039 = vpop.f32.mrb[0].mxu0
    %v6040 = vadd.f32 0.0, %v6039
    %v6041 = vpop.f32.mrb[0].mxu0
    %v6042 = vpop.f32.mrb[0].mxu0
    %6043 = vdwg.mxu0
    %6044 = vmatprep.subr.bf16.mxu0 %v2143
    %6045 = vmatpush1.bf16.msra.mxu0 %v2142
    %6046 = vmatprep.subr.bf16.mxu0 %v2151
    %6047 = vmatpush1.bf16.msra.mxu0 %v2150
    %6048 = vmatprep.subr.bf16.mxu0 %v2159
    %6049 = vmatpush1.bf16.msra.mxu0 %v2158
    %6050 = vmatprep.subr.bf16.mxu0 %v2167
    %6051 = vmatpush1.bf16.msra.mxu0 %v2166
    %6052 = vmatprep.subr.bf16.mxu0 %v2175
    %6053 = vmatpush1.bf16.msra.mxu0 %v2174
    %6054 = vmatprep.subr.bf16.mxu0 %v2183
    %6055 = vmatpush1.bf16.msra.mxu0 %v2182
    %6056 = vmatprep.subr.bf16.mxu0 %v2191
    %6057 = vmatpush1.bf16.msra.mxu0 %v2190
    %6058 = vmatprep.subr.bf16.mxu0 %v2199
    %6059 = vmatpush1.bf16.msra.mxu0 %v2198
    %6060 = vmatprep.subr.bf16.mxu0 %v2207
    %6061 = vmatpush1.bf16.msra.mxu0 %v2206
    %6062 = vmatprep.subr.bf16.mxu0 %v2215
    %6063 = vmatpush1.bf16.msra.mxu0 %v2214
    %6064 = vmatprep.subr.bf16.mxu0 %v2223
    %6065 = vmatpush1.bf16.msra.mxu0 %v2222
    %6066 = vmatprep.subr.bf16.mxu0 %v2231
    %6067 = vmatpush1.bf16.msra.mxu0 %v2230
    %6068 = vmatprep.subr.bf16.mxu0 %v2239
    %6069 = vmatpush1.bf16.msra.mxu0 %v2238
    %6070 = vmatprep.subr.bf16.mxu0 %v2247
    %6071 = vmatpush1.bf16.msra.mxu0 %v2246
    %6072 = vmatprep.subr.bf16.mxu0 %v2255
    %6073 = vmatpush1.bf16.msra.mxu0 %v2254
    %6074 = vmatprep.subr.bf16.mxu0 %v2263
    %6075 = vmatpush1.bf16.msra.mxu0 %v2262
    %6076 = vmatprep.mubr.bf16.mxu0 %v5961
    %6077 = vmatmul.mubr.bf16.gmra.mrb[0].mxu0 %v5960
    %v6078 = vpop.f32.mrb[0].mxu0
    %v6079 = vadd.f32 0.0, %v6078
    %v6080 = vpop.f32.mrb[0].mxu0
    %v6081 = vadd.f32 0.0, %v6080
    %v6082 = vpop.f32.mrb[0].mxu0
    %v6083 = vpop.f32.mrb[0].mxu0
    %6084 = vdwg.mxu0
    %6085 = vmatprep.subr.bf16.mxu0 %v2145
    %6086 = vmatpush1.bf16.msra.mxu0 %v2144
    %6087 = vmatprep.subr.bf16.mxu0 %v2153
    %6088 = vmatpush1.bf16.msra.mxu0 %v2152
    %6089 = vmatprep.subr.bf16.mxu0 %v2161
    %6090 = vmatpush1.bf16.msra.mxu0 %v2160
    %6091 = vmatprep.subr.bf16.mxu0 %v2169
    %6092 = vmatpush1.bf16.msra.mxu0 %v2168
    %6093 = vmatprep.subr.bf16.mxu0 %v2177
    %6094 = vmatpush1.bf16.msra.mxu0 %v2176
    %6095 = vmatprep.subr.bf16.mxu0 %v2185
    %6096 = vmatpush1.bf16.msra.mxu0 %v2184
    %6097 = vmatprep.subr.bf16.mxu0 %v2193
    %6098 = vmatpush1.bf16.msra.mxu0 %v2192
    %6099 = vmatprep.subr.bf16.mxu0 %v2201
    %6100 = vmatpush1.bf16.msra.mxu0 %v2200
    %6101 = vmatprep.subr.bf16.mxu0 %v2209
    %6102 = vmatpush1.bf16.msra.mxu0 %v2208
    %6103 = vmatprep.subr.bf16.mxu0 %v2217
    %6104 = vmatpush1.bf16.msra.mxu0 %v2216
    %6105 = vmatprep.subr.bf16.mxu0 %v2225
    %6106 = vmatpush1.bf16.msra.mxu0 %v2224
    %6107 = vmatprep.subr.bf16.mxu0 %v2233
    %6108 = vmatpush1.bf16.msra.mxu0 %v2232
    %6109 = vmatprep.subr.bf16.mxu0 %v2241
    %6110 = vmatpush1.bf16.msra.mxu0 %v2240
    %6111 = vmatprep.subr.bf16.mxu0 %v2249
    %6112 = vmatpush1.bf16.msra.mxu0 %v2248
    %6113 = vmatprep.subr.bf16.mxu0 %v2257
    %6114 = vmatpush1.bf16.msra.mxu0 %v2256
    %6115 = vmatprep.subr.bf16.mxu0 %v2265
    %6116 = vmatpush1.bf16.msra.mxu0 %v2264
    %6117 = vmatprep.mubr.bf16.mxu0 %v5961
    %6118 = vmatmul.mubr.bf16.gmra.mrb[0].mxu0 %v5960
    %v6119 = vpop.f32.mrb[0].mxu0
    %v6120 = vadd.f32 0.0, %v6119
    %v6121 = vpop.f32.mrb[0].mxu0
    %v6122 = vadd.f32 0.0, %v6121
    %v6123 = vpop.f32.mrb[0].mxu0
    %v6124 = vpop.f32.mrb[0].mxu0
    %6125 = vdwg.mxu0
    %6126 = vmatprep.subr.bf16.mxu0 %v2009
    %6127 = vmatpush1.bf16.msra.mxu0 %v2008
    %6128 = vmatprep.subr.bf16.mxu0 %v2017
    %6129 = vmatpush1.bf16.msra.mxu0 %v2016
    %6130 = vmatprep.subr.bf16.mxu0 %v2025
    %6131 = vmatpush1.bf16.msra.mxu0 %v2024
    %6132 = vmatprep.subr.bf16.mxu0 %v2033
    %6133 = vmatpush1.bf16.msra.mxu0 %v2032
    %6134 = vmatprep.subr.bf16.mxu0 %v2041
    %6135 = vmatpush1.bf16.msra.mxu0 %v2040
    %6136 = vmatprep.subr.bf16.mxu0 %v2049
    %6137 = vmatpush1.bf16.msra.mxu0 %v2048
    %6138 = vmatprep.subr.bf16.mxu0 %v2057
    %6139 = vmatpush1.bf16.msra.mxu0 %v2056
    %6140 = vmatprep.subr.bf16.mxu0 %v2065
    %6141 = vmatpush1.bf16.msra.mxu0 %v2064
    %6142 = vmatprep.subr.bf16.mxu0 %v2073
    %6143 = vmatpush1.bf16.msra.mxu0 %v2072
    %6144 = vmatprep.subr.bf16.mxu0 %v2081
    %6145 = vmatpush1.bf16.msra.mxu0 %v2080
    %6146 = vmatprep.subr.bf16.mxu0 %v2089
    %6147 = vmatpush1.bf16.msra.mxu0 %v2088
    %6148 = vmatprep.subr.bf16.mxu0 %v2097
    %6149 = vmatpush1.bf16.msra.mxu0 %v2096
    %6150 = vmatprep.subr.bf16.mxu0 %v2105
    %6151 = vmatpush1.bf16.msra.mxu0 %v2104
    %6152 = vmatprep.subr.bf16.mxu0 %v2113
    %6153 = vmatpush1.bf16.msra.mxu0 %v2112
    %6154 = vmatprep.subr.bf16.mxu0 %v2121
    %6155 = vmatpush1.bf16.msra.mxu0 %v2120
    %6156 = vmatprep.subr.bf16.mxu0 %v2129
    %6157 = vmatpush1.bf16.msra.mxu0 %v2128
    %6158 = vmatprep.mubr.bf16.mxu0 %v5959
    %6159 = vmatmul.mubr.bf16.gmra.mrb[0].mxu0 %v5958
    %v6160 = vpop.f32.mrb[0].mxu0
    %v6161 = vadd.f32 %v5997, %v6160
    %v6162 = vpop.f32.mrb[0].mxu0
    %v6163 = vadd.f32 %v5999, %v6162
    %v6164 = vpop.f32.mrb[0].mxu0
    %v6165 = vpop.f32.mrb[0].mxu0
    %6166 = vdwg.mxu0
    %6167 = vmatprep.subr.bf16.mxu0 %v2011
    %6168 = vmatpush1.bf16.msra.mxu0 %v2010
    %6169 = vmatprep.subr.bf16.mxu0 %v2019
    %6170 = vmatpush1.bf16.msra.mxu0 %v2018
    %6171 = vmatprep.subr.bf16.mxu0 %v2027
    %6172 = vmatpush1.bf16.msra.mxu0 %v2026
    %6173 = vmatprep.subr.bf16.mxu0 %v2035
    %6174 = vmatpush1.bf16.msra.mxu0 %v2034
    %6175 = vmatprep.subr.bf16.mxu0 %v2043
    %6176 = vmatpush1.bf16.msra.mxu0 %v2042
    %6177 = vmatprep.subr.bf16.mxu0 %v2051
    %6178 = vmatpush1.bf16.msra.mxu0 %v2050
    %6179 = vmatprep.subr.bf16.mxu0 %v2059
    %6180 = vmatpush1.bf16.msra.mxu0 %v2058
    %6181 = vmatprep.subr.bf16.mxu0 %v2067
    %6182 = vmatpush1.bf16.msra.mxu0 %v2066
    %6183 = vmatprep.subr.bf16.mxu0 %v2075
    %6184 = vmatpush1.bf16.msra.mxu0 %v2074
    %6185 = vmatprep.subr.bf16.mxu0 %v2083
    %6186 = vmatpush1.bf16.msra.mxu0 %v2082
    %6187 = vmatprep.subr.bf16.mxu0 %v2091
    %6188 = vmatpush1.bf16.msra.mxu0 %v2090
    %6189 = vmatprep.subr.bf16.mxu0 %v2099
    %6190 = vmatpush1.bf16.msra.mxu0 %v2098
    %6191 = vmatprep.subr.bf16.mxu0 %v2107
    %6192 = vmatpush1.bf16.msra.mxu0 %v2106
    %6193 = vmatprep.subr.bf16.mxu0 %v2115
    %6194 = vmatpush1.bf16.msra.mxu0 %v2114
    %6195 = vmatprep.subr.bf16.mxu0 %v2123
    %6196 = vmatpush1.bf16.msra.mxu0 %v2122
    %6197 = vmatprep.subr.bf16.mxu0 %v2131
    %6198 = vmatpush1.bf16.msra.mxu0 %v2130
    %6199 = vmatprep.mubr.bf16.mxu0 %v5959
    %6200 = vmatmul.mubr.bf16.gmra.mrb[0].mxu0 %v5958
    %v6201 = vpop.f32.mrb[0].mxu0
    %v6202 = vadd.f32 %v6038, %v6201
    %v6203 = vpop.f32.mrb[0].mxu0
    %v6204 = vadd.f32 %v6040, %v6203
    %v6205 = vpop.f32.mrb[0].mxu0
    %v6206 = vpop.f32.mrb[0].mxu0
    %6207 = vdwg.mxu0
    %6208 = vmatprep.subr.bf16.mxu0 %v2013
    %6209 = vmatpush1.bf16.msra.mxu0 %v2012
    %6210 = vmatprep.subr.bf16.mxu0 %v2021
    %6211 = vmatpush1.bf16.msra.mxu0 %v2020
    %6212 = vmatprep.subr.bf16.mxu0 %v2029
    %6213 = vmatpush1.bf16.msra.mxu0 %v2028
    %6214 = vmatprep.subr.bf16.mxu0 %v2037
    %6215 = vmatpush1.bf16.msra.mxu0 %v2036
    %6216 = vmatprep.subr.bf16.mxu0 %v2045
    %6217 = vmatpush1.bf16.msra.mxu0 %v2044
    %6218 = vmatprep.subr.bf16.mxu0 %v2053
    %6219 = vmatpush1.bf16.msra.mxu0 %v2052
    %6220 = vmatprep.subr.bf16.mxu0 %v2061
    %6221 = vmatpush1.bf16.msra.mxu0 %v2060
    %6222 = vmatprep.subr.bf16.mxu0 %v2069
    %6223 = vmatpush1.bf16.msra.mxu0 %v2068
    %6224 = vmatprep.subr.bf16.mxu0 %v2077
    %6225 = vmatpush1.bf16.msra.mxu0 %v2076
    %6226 = vmatprep.subr.bf16.mxu0 %v2085
    %6227 = vmatpush1.bf16.msra.mxu0 %v2084
    %6228 = vmatprep.subr.bf16.mxu0 %v2093
    %6229 = vmatpush1.bf16.msra.mxu0 %v2092
    %6230 = vmatprep.subr.bf16.mxu0 %v2101
    %6231 = vmatpush1.bf16.msra.mxu0 %v2100
    %6232 = vmatprep.subr.bf16.mxu0 %v2109
    %6233 = vmatpush1.bf16.msra.mxu0 %v2108
    %6234 = vmatprep.subr.bf16.mxu0 %v2117
    %6235 = vmatpush1.bf16.msra.mxu0 %v2116
    %6236 = vmatprep.subr.bf16.mxu0 %v2125
    %6237 = vmatpush1.bf16.msra.mxu0 %v2124
    %6238 = vmatprep.subr.bf16.mxu0 %v2133
    %6239 = vmatpush1.bf16.msra.mxu0 %v2132
    %6240 = vmatprep.mubr.bf16.mxu0 %v5959
    %6241 = vmatmul.mubr.bf16.gmra.mrb[0].mxu0 %v5958
    %v6242 = vpop.f32.mrb[0].mxu0
    %v6243 = vadd.f32 %v6079, %v6242
    %v6244 = vpop.f32.mrb[0].mxu0
    %v6245 = vadd.f32 %v6081, %v6244
    %v6246 = vpop.f32.mrb[0].mxu0
    %v6247 = vpop.f32.mrb[0].mxu0
    %6248 = vdwg.mxu0
    %6249 = vmatprep.subr.bf16.mxu0 %v2015
    %6250 = vmatpush1.bf16.msra.mxu0 %v2014
    %6251 = vmatprep.subr.bf16.mxu0 %v2023
    %6252 = vmatpush1.bf16.msra.mxu0 %v2022
    %6253 = vmatprep.subr.bf16.mxu0 %v2031
    %6254 = vmatpush1.bf16.msra.mxu0 %v2030
    %6255 = vmatprep.subr.bf16.mxu0 %v2039
    %6256 = vmatpush1.bf16.msra.mxu0 %v2038
    %6257 = vmatprep.subr.bf16.mxu0 %v2047
    %6258 = vmatpush1.bf16.msra.mxu0 %v2046
    %6259 = vmatprep.subr.bf16.mxu0 %v2055
    %6260 = vmatpush1.bf16.msra.mxu0 %v2054
    %6261 = vmatprep.subr.bf16.mxu0 %v2063
    %6262 = vmatpush1.bf16.msra.mxu0 %v2062
    %6263 = vmatprep.subr.bf16.mxu0 %v2071
    %6264 = vmatpush1.bf16.msra.mxu0 %v2070
    %6265 = vmatprep.subr.bf16.mxu0 %v2079
    %6266 = vmatpush1.bf16.msra.mxu0 %v2078
    %6267 = vmatprep.subr.bf16.mxu0 %v2087
    %6268 = vmatpush1.bf16.msra.mxu0 %v2086
    %6269 = vmatprep.subr.bf16.mxu0 %v2095
    %6270 = vmatpush1.bf16.msra.mxu0 %v2094
    %6271 = vmatprep.subr.bf16.mxu0 %v2103
    %6272 = vmatpush1.bf16.msra.mxu0 %v2102
    %6273 = vmatprep.subr.bf16.mxu0 %v2111
    %6274 = vmatpush1.bf16.msra.mxu0 %v2110
    %6275 = vmatprep.subr.bf16.mxu0 %v2119
    %6276 = vmatpush1.bf16.msra.mxu0 %v2118
    %6277 = vmatprep.subr.bf16.mxu0 %v2127
    %6278 = vmatpush1.bf16.msra.mxu0 %v2126
    %6279 = vmatprep.subr.bf16.mxu0 %v2135
    %6280 = vmatpush1.bf16.msra.mxu0 %v2134
    %6281 = vmatprep.mubr.bf16.mxu0 %v5959
    %6282 = vmatmul.mubr.bf16.gmra.mrb[0].mxu0 %v5958
    %v6283 = vpop.f32.mrb[0].mxu0
    %v6284 = vadd.f32 %v6120, %v6283
    %v6285 = vpop.f32.mrb[0].mxu0
    %v6286 = vadd.f32 %v6122, %v6285
    %v6287 = vpop.f32.mrb[0].mxu0
    %v6288 = vpop.f32.mrb[0].mxu0
    %6289 = vdwg.mxu0
    %v6290 = vadd.f32 %v6161, %v961
    %v6291 = vadd.f32 %v6163, %v965
    %v6292 = vadd.f32 %v6202, %v969
    %v6293 = vadd.f32 %v6204, %v973
    %v6294 = vadd.f32 %v6243, %v977
    %v6295 = vadd.f32 %v6245, %v981
    %v6296 = vadd.f32 %v6284, %v985
    %v6297 = vadd.f32 %v6286, %v989
    %v6298 = vxor.u32 %v6290, 2147483648
    %v6299 = vxor.u32 %v6291, 2147483648
    %v6300 = vmul.f32 %v6298, 1.442695
    %v6301 = vpow.pop %v6300
    %v6302 = vmul.f32 %v6299, 1.442695
    %v6303 = vpow.pop %v6302
    %v6304 = vadd.f32 %v6301, 1.0
    %v6305 = vadd.f32 %v6303, 1.0
    %v6306 = vrcp.pop %v6304
    %v6307 = vmul.f32 1.0, %v6306
    %v6308 = vrcp.pop %v6305
    %v6309 = vmul.f32 1.0, %v6308
    %v6310 = vxor.u32 %v6292, 2147483648
    %v6311 = vxor.u32 %v6293, 2147483648
    %v6312 = vmul.f32 %v6310, 1.442695
    %v6313 = vpow.pop %v6312
    %v6314 = vmul.f32 %v6311, 1.442695
    %v6315 = vpow.pop %v6314
    %v6316 = vadd.f32 %v6313, 1.0
    %v6317 = vadd.f32 %v6315, 1.0
    %v6318 = vrcp.pop %v6316
    %v6319 = vmul.f32 1.0, %v6318
    %v6320 = vrcp.pop %v6317
    %v6321 = vmul.f32 1.0, %v6320
    %v6322 = vtanh.pop %v6294
    %v6323 = vtanh.pop %v6295
    %v6324 = vxor.u32 %v6296, 2147483648
    %v6325 = vxor.u32 %v6297, 2147483648
    %v6326 = vmul.f32 %v6324, 1.442695
    %v6327 = vpow.pop %v6326
    %v6328 = vmul.f32 %v6325, 1.442695
    %v6329 = vpow.pop %v6328
    %v6330 = vadd.f32 %v6327, 1.0
    %v6331 = vadd.f32 %v6329, 1.0
    %v6332 = vrcp.pop %v6330
    %v6333 = vmul.f32 1.0, %v6332
    %v6334 = vrcp.pop %v6331
    %v6335 = vmul.f32 1.0, %v6334
    %v6336 = vmul.f32 %v6319, %v5724
    %v6337 = vmul.f32 %v6321, %v5725
    %v6338 = vmul.f32 %v6307, %v6322
    %v6339 = vmul.f32 %v6309, %v6323
    %v6340 = vadd.f32 %v6336, %v6338
    %v6341 = vadd.f32 %v6337, %v6339
    %v6342 = vtanh.pop %v6340
    %v6343 = vtanh.pop %v6341
    %v6344 = vmul.f32 %v6333, %v6342
    %v6345 = vmul.f32 %v6335, %v6343
    %v6346 = vld [vmem:[#allocation2 + $0x1c0] sm:$0xff]
    %v6347 = vld [vmem:[#allocation2 + $0x1c8] sm:$0xff]
    %v6348 = vld [vmem:[#allocation2 + $0x1d0] sm:$0xff]
    %v6349 = vld [vmem:[#allocation2 + $0x1d8] sm:$0xff]
    %v6350 = vld [vmem:[#allocation2 + $0x1e0] sm:$0xff]
    %v6351 = vld [vmem:[#allocation2 + $0x1e8] sm:$0xff]
    %v6352 = vld [vmem:[#allocation2 + $0x1f0] sm:$0xff]
    %v6353 = vld [vmem:[#allocation2 + $0x1f8] sm:$0xff]
    %6354 = vmatprep.subr.bf16.mxu0 %v1531
    %6355 = vmatpush1.bf16.msra.mxu0 %v1530
    %6356 = vmatprep.subr.bf16.mxu0 %v1539
    %6357 = vmatpush1.bf16.msra.mxu0 %v1538
    %6358 = vmatprep.subr.bf16.mxu0 %v1547
    %6359 = vmatpush1.bf16.msra.mxu0 %v1546
    %6360 = vmatprep.subr.bf16.mxu0 %v1555
    %6361 = vmatpush1.bf16.msra.mxu0 %v1554
    %6362 = vmatprep.subr.bf16.mxu0 %v1563
    %6363 = vmatpush1.bf16.msra.mxu0 %v1562
    %6364 = vmatprep.subr.bf16.mxu0 %v1571
    %6365 = vmatpush1.bf16.msra.mxu0 %v1570
    %6366 = vmatprep.subr.bf16.mxu0 %v1579
    %6367 = vmatpush1.bf16.msra.mxu0 %v1578
    %6368 = vmatprep.subr.bf16.mxu0 %v1587
    %6369 = vmatpush1.bf16.msra.mxu0 %v1586
    %6370 = vmatprep.subr.bf16.mxu0 %v1595
    %6371 = vmatpush1.bf16.msra.mxu0 %v1594
    %6372 = vmatprep.subr.bf16.mxu0 %v1603
    %6373 = vmatpush1.bf16.msra.mxu0 %v1602
    %6374 = vmatprep.subr.bf16.mxu0 %v1611
    %6375 = vmatpush1.bf16.msra.mxu0 %v1610
    %6376 = vmatprep.subr.bf16.mxu0 %v1619
    %6377 = vmatpush1.bf16.msra.mxu0 %v1618
    %6378 = vmatprep.subr.bf16.mxu0 %v1627
    %6379 = vmatpush1.bf16.msra.mxu0 %v1626
    %6380 = vmatprep.subr.bf16.mxu0 %v1635
    %6381 = vmatpush1.bf16.msra.mxu0 %v1634
    %6382 = vmatprep.subr.bf16.mxu0 %v1643
    %6383 = vmatpush1.bf16.msra.mxu0 %v1642
    %6384 = vmatprep.subr.bf16.mxu0 %v1651
    %6385 = vmatpush1.bf16.msra.mxu0 %v1650
    %6386 = vmatprep.mubr.bf16.mxu0 %v5959
    %6387 = vmatmul.mubr.bf16.gmra.mrb[0].mxu0 %v5958
    %v6388 = vpop.f32.mrb[0].mxu0
    %v6389 = vadd.f32 0.0, %v6388
    %v6390 = vpop.f32.mrb[0].mxu0
    %v6391 = vadd.f32 0.0, %v6390
    %v6392 = vpop.f32.mrb[0].mxu0
    %v6393 = vpop.f32.mrb[0].mxu0
    %6394 = vdwg.mxu0
    %6395 = vmatprep.subr.bf16.mxu0 %v1533
    %6396 = vmatpush1.bf16.msra.mxu0 %v1532
    %6397 = vmatprep.subr.bf16.mxu0 %v1541
    %6398 = vmatpush1.bf16.msra.mxu0 %v1540
    %6399 = vmatprep.subr.bf16.mxu0 %v1549
    %6400 = vmatpush1.bf16.msra.mxu0 %v1548
    %6401 = vmatprep.subr.bf16.mxu0 %v1557
    %6402 = vmatpush1.bf16.msra.mxu0 %v1556
    %6403 = vmatprep.subr.bf16.mxu0 %v1565
    %6404 = vmatpush1.bf16.msra.mxu0 %v1564
    %6405 = vmatprep.subr.bf16.mxu0 %v1573
    %6406 = vmatpush1.bf16.msra.mxu0 %v1572
    %6407 = vmatprep.subr.bf16.mxu0 %v1581
    %6408 = vmatpush1.bf16.msra.mxu0 %v1580
    %6409 = vmatprep.subr.bf16.mxu0 %v1589
    %6410 = vmatpush1.bf16.msra.mxu0 %v1588
    %6411 = vmatprep.subr.bf16.mxu0 %v1597
    %6412 = vmatpush1.bf16.msra.mxu0 %v1596
    %6413 = vmatprep.subr.bf16.mxu0 %v1605
    %6414 = vmatpush1.bf16.msra.mxu0 %v1604
    %6415 = vmatprep.subr.bf16.mxu0 %v1613
    %6416 = vmatpush1.bf16.msra.mxu0 %v1612
    %6417 = vmatprep.subr.bf16.mxu0 %v1621
    %6418 = vmatpush1.bf16.msra.mxu0 %v1620
    %6419 = vmatprep.subr.bf16.mxu0 %v1629
    %6420 = vmatpush1.bf16.msra.mxu0 %v1628
    %6421 = vmatprep.subr.bf16.mxu0 %v1637
    %6422 = vmatpush1.bf16.msra.mxu0 %v1636
    %6423 = vmatprep.subr.bf16.mxu0 %v1645
    %6424 = vmatpush1.bf16.msra.mxu0 %v1644
    %6425 = vmatprep.subr.bf16.mxu0 %v1653
    %6426 = vmatpush1.bf16.msra.mxu0 %v1652
    %6427 = vmatprep.mubr.bf16.mxu0 %v5959
    %6428 = vmatmul.mubr.bf16.gmra.mrb[0].mxu0 %v5958
    %v6429 = vpop.f32.mrb[0].mxu0
    %v6430 = vadd.f32 0.0, %v6429
    %v6431 = vpop.f32.mrb[0].mxu0
    %v6432 = vadd.f32 0.0, %v6431
    %v6433 = vpop.f32.mrb[0].mxu0
    %v6434 = vpop.f32.mrb[0].mxu0
    %6435 = vdwg.mxu0
    %6436 = vmatprep.subr.bf16.mxu0 %v1535
    %6437 = vmatpush1.bf16.msra.mxu0 %v1534
    %6438 = vmatprep.subr.bf16.mxu0 %v1543
    %6439 = vmatpush1.bf16.msra.mxu0 %v1542
    %6440 = vmatprep.subr.bf16.mxu0 %v1551
    %6441 = vmatpush1.bf16.msra.mxu0 %v1550
    %6442 = vmatprep.subr.bf16.mxu0 %v1559
    %6443 = vmatpush1.bf16.msra.mxu0 %v1558
    %6444 = vmatprep.subr.bf16.mxu0 %v1567
    %6445 = vmatpush1.bf16.msra.mxu0 %v1566
    %6446 = vmatprep.subr.bf16.mxu0 %v1575
    %6447 = vmatpush1.bf16.msra.mxu0 %v1574
    %6448 = vmatprep.subr.bf16.mxu0 %v1583
    %6449 = vmatpush1.bf16.msra.mxu0 %v1582
    %6450 = vmatprep.subr.bf16.mxu0 %v1591
    %6451 = vmatpush1.bf16.msra.mxu0 %v1590
    %6452 = vmatprep.subr.bf16.mxu0 %v1599
    %6453 = vmatpush1.bf16.msra.mxu0 %v1598
    %6454 = vmatprep.subr.bf16.mxu0 %v1607
    %6455 = vmatpush1.bf16.msra.mxu0 %v1606
    %6456 = vmatprep.subr.bf16.mxu0 %v1615
    %6457 = vmatpush1.bf16.msra.mxu0 %v1614
    %6458 = vmatprep.subr.bf16.mxu0 %v1623
    %6459 = vmatpush1.bf16.msra.mxu0 %v1622
    %6460 = vmatprep.subr.bf16.mxu0 %v1631
    %6461 = vmatpush1.bf16.msra.mxu0 %v1630
    %6462 = vmatprep.subr.bf16.mxu0 %v1639
    %6463 = vmatpush1.bf16.msra.mxu0 %v1638
    %6464 = vmatprep.subr.bf16.mxu0 %v1647
    %6465 = vmatpush1.bf16.msra.mxu0 %v1646
    %6466 = vmatprep.subr.bf16.mxu0 %v1655
    %6467 = vmatpush1.bf16.msra.mxu0 %v1654
    %6468 = vmatprep.mubr.bf16.mxu0 %v5959
    %6469 = vmatmul.mubr.bf16.gmra.mrb[0].mxu0 %v5958
    %v6470 = vpop.f32.mrb[0].mxu0
    %v6471 = vadd.f32 0.0, %v6470
    %v6472 = vpop.f32.mrb[0].mxu0
    %v6473 = vadd.f32 0.0, %v6472
    %v6474 = vpop.f32.mrb[0].mxu0
    %v6475 = vpop.f32.mrb[0].mxu0
    %6476 = vdwg.mxu0
    %6477 = vmatprep.subr.bf16.mxu0 %v1537
    %6478 = vmatpush1.bf16.msra.mxu0 %v1536
    %6479 = vmatprep.subr.bf16.mxu0 %v1545
    %6480 = vmatpush1.bf16.msra.mxu0 %v1544
    %6481 = vmatprep.subr.bf16.mxu0 %v1553
    %6482 = vmatpush1.bf16.msra.mxu0 %v1552
    %6483 = vmatprep.subr.bf16.mxu0 %v1561
    %6484 = vmatpush1.bf16.msra.mxu0 %v1560
    %6485 = vmatprep.subr.bf16.mxu0 %v1569
    %6486 = vmatpush1.bf16.msra.mxu0 %v1568
    %6487 = vmatprep.subr.bf16.mxu0 %v1577
    %6488 = vmatpush1.bf16.msra.mxu0 %v1576
    %6489 = vmatprep.subr.bf16.mxu0 %v1585
    %6490 = vmatpush1.bf16.msra.mxu0 %v1584
    %6491 = vmatprep.subr.bf16.mxu0 %v1593
    %6492 = vmatpush1.bf16.msra.mxu0 %v1592
    %6493 = vmatprep.subr.bf16.mxu0 %v1601
    %6494 = vmatpush1.bf16.msra.mxu0 %v1600
    %6495 = vmatprep.subr.bf16.mxu0 %v1609
    %6496 = vmatpush1.bf16.msra.mxu0 %v1608
    %6497 = vmatprep.subr.bf16.mxu0 %v1617
    %6498 = vmatpush1.bf16.msra.mxu0 %v1616
    %6499 = vmatprep.subr.bf16.mxu0 %v1625
    %6500 = vmatpush1.bf16.msra.mxu0 %v1624
    %6501 = vmatprep.subr.bf16.mxu0 %v1633
    %6502 = vmatpush1.bf16.msra.mxu0 %v1632
    %6503 = vmatprep.subr.bf16.mxu0 %v1641
    %6504 = vmatpush1.bf16.msra.mxu0 %v1640
    %6505 = vmatprep.subr.bf16.mxu0 %v1649
    %6506 = vmatpush1.bf16.msra.mxu0 %v1648
    %6507 = vmatprep.subr.bf16.mxu0 %v1657
    %6508 = vmatpush1.bf16.msra.mxu0 %v1656
    %6509 = vmatprep.mubr.bf16.mxu0 %v5959
    %6510 = vmatmul.mubr.bf16.gmra.mrb[0].mxu0 %v5958
    %v6511 = vpop.f32.mrb[0].mxu0
    %v6512 = vadd.f32 0.0, %v6511
    %v6513 = vpop.f32.mrb[0].mxu0
    %v6514 = vadd.f32 0.0, %v6513
    %v6515 = vpop.f32.mrb[0].mxu0
    %v6516 = vpop.f32.mrb[0].mxu0
    %6517 = vdwg.mxu0
    %v6518 = vadd.f32 %v6346, %v6389
    %v6519 = vadd.f32 %v6347, %v6391
    %v6520 = vadd.f32 %v6348, %v6430
    %v6521 = vadd.f32 %v6349, %v6432
    %v6522 = vadd.f32 %v6350, %v6471
    %v6523 = vadd.f32 %v6351, %v6473
    %v6524 = vadd.f32 %v6352, %v6512
    %v6525 = vadd.f32 %v6353, %v6514
    %v6526 = vxor.u32 %v6518, 2147483648
    %v6527 = vxor.u32 %v6519, 2147483648
    %v6528 = vmul.f32 %v6526, 1.442695
    %v6529 = vpow.pop %v6528
    %v6530 = vmul.f32 %v6527, 1.442695
    %v6531 = vpow.pop %v6530
    %v6532 = vadd.f32 %v6529, 1.0
    %v6533 = vadd.f32 %v6531, 1.0
    %v6534 = vrcp.pop %v6532
    %v6535 = vmul.f32 1.0, %v6534
    %v6536 = vrcp.pop %v6533
    %v6537 = vmul.f32 1.0, %v6536
    %v6538 = vxor.u32 %v6520, 2147483648
    %v6539 = vxor.u32 %v6521, 2147483648
    %v6540 = vmul.f32 %v6538, 1.442695
    %v6541 = vpow.pop %v6540
    %v6542 = vmul.f32 %v6539, 1.442695
    %v6543 = vpow.pop %v6542
    %v6544 = vadd.f32 %v6541, 1.0
    %v6545 = vadd.f32 %v6543, 1.0
    %v6546 = vrcp.pop %v6544
    %v6547 = vmul.f32 1.0, %v6546
    %v6548 = vrcp.pop %v6545
    %v6549 = vmul.f32 1.0, %v6548
    %v6550 = vtanh.pop %v6522
    %v6551 = vtanh.pop %v6523
    %v6552 = vxor.u32 %v6524, 2147483648
    %v6553 = vxor.u32 %v6525, 2147483648
    %v6554 = vmul.f32 %v6552, 1.442695
    %v6555 = vpow.pop %v6554
    %v6556 = vmul.f32 %v6553, 1.442695
    %v6557 = vpow.pop %v6556
    %v6558 = vadd.f32 %v6555, 1.0
    %v6559 = vadd.f32 %v6557, 1.0
    %v6560 = vrcp.pop %v6558
    %v6561 = vmul.f32 1.0, %v6560
    %v6562 = vrcp.pop %v6559
    %v6563 = vmul.f32 1.0, %v6562
    %v6564 = vmul.f32 %v6547, %v5952
    %v6565 = vmul.f32 %v6549, %v5953
    %v6566 = vmul.f32 %v6535, %v6550
    %v6567 = vmul.f32 %v6537, %v6551
    %v6568 = vadd.f32 %v6564, %v6566
    %v6569 = vadd.f32 %v6565, %v6567
    %v6570 = vtanh.pop %v6568
    %v6571 = vtanh.pop %v6569
    %v6572 = vmul.f32 %v6561, %v6570
    %v6573 = vmul.f32 %v6563, %v6571
    %v6574 = vpack.c.bf16 %v6572, %v6572
    %v6575 = vpack.c.bf16 %v6573, %v6573
    %v6576 = vpack.c.bf16 %v6344, %v6344
    %v6577 = vpack.c.bf16 %v6345, %v6345
    %6578 = vmatprep.subr.bf16.mxu0 %v2139
    %6579 = vmatpush1.bf16.msra.mxu0 %v2138
    %6580 = vmatprep.subr.bf16.mxu0 %v2147
    %6581 = vmatpush1.bf16.msra.mxu0 %v2146
    %6582 = vmatprep.subr.bf16.mxu0 %v2155
    %6583 = vmatpush1.bf16.msra.mxu0 %v2154
    %6584 = vmatprep.subr.bf16.mxu0 %v2163
    %6585 = vmatpush1.bf16.msra.mxu0 %v2162
    %6586 = vmatprep.subr.bf16.mxu0 %v2171
    %6587 = vmatpush1.bf16.msra.mxu0 %v2170
    %6588 = vmatprep.subr.bf16.mxu0 %v2179
    %6589 = vmatpush1.bf16.msra.mxu0 %v2178
    %6590 = vmatprep.subr.bf16.mxu0 %v2187
    %6591 = vmatpush1.bf16.msra.mxu0 %v2186
    %6592 = vmatprep.subr.bf16.mxu0 %v2195
    %6593 = vmatpush1.bf16.msra.mxu0 %v2194
    %6594 = vmatprep.subr.bf16.mxu0 %v2203
    %6595 = vmatpush1.bf16.msra.mxu0 %v2202
    %6596 = vmatprep.subr.bf16.mxu0 %v2211
    %6597 = vmatpush1.bf16.msra.mxu0 %v2210
    %6598 = vmatprep.subr.bf16.mxu0 %v2219
    %6599 = vmatpush1.bf16.msra.mxu0 %v2218
    %6600 = vmatprep.subr.bf16.mxu0 %v2227
    %6601 = vmatpush1.bf16.msra.mxu0 %v2226
    %6602 = vmatprep.subr.bf16.mxu0 %v2235
    %6603 = vmatpush1.bf16.msra.mxu0 %v2234
    %6604 = vmatprep.subr.bf16.mxu0 %v2243
    %6605 = vmatpush1.bf16.msra.mxu0 %v2242
    %6606 = vmatprep.subr.bf16.mxu0 %v2251
    %6607 = vmatpush1.bf16.msra.mxu0 %v2250
    %6608 = vmatprep.subr.bf16.mxu0 %v2259
    %6609 = vmatpush1.bf16.msra.mxu0 %v2258
    %6610 = vmatprep.mubr.bf16.mxu0 %v6577
    %6611 = vmatmul.mubr.bf16.gmra.mrb[0].mxu0 %v6576
    %v6612 = vpop.f32.mrb[0].mxu0
    %v6613 = vadd.f32 0.0, %v6612
    %v6614 = vpop.f32.mrb[0].mxu0
    %v6615 = vadd.f32 0.0, %v6614
    %v6616 = vpop.f32.mrb[0].mxu0
    %v6617 = vpop.f32.mrb[0].mxu0
    %6618 = vdwg.mxu0
    %6619 = vmatprep.subr.bf16.mxu0 %v2141
    %6620 = vmatpush1.bf16.msra.mxu0 %v2140
    %6621 = vmatprep.subr.bf16.mxu0 %v2149
    %6622 = vmatpush1.bf16.msra.mxu0 %v2148
    %6623 = vmatprep.subr.bf16.mxu0 %v2157
    %6624 = vmatpush1.bf16.msra.mxu0 %v2156
    %6625 = vmatprep.subr.bf16.mxu0 %v2165
    %6626 = vmatpush1.bf16.msra.mxu0 %v2164
    %6627 = vmatprep.subr.bf16.mxu0 %v2173
    %6628 = vmatpush1.bf16.msra.mxu0 %v2172
    %6629 = vmatprep.subr.bf16.mxu0 %v2181
    %6630 = vmatpush1.bf16.msra.mxu0 %v2180
    %6631 = vmatprep.subr.bf16.mxu0 %v2189
    %6632 = vmatpush1.bf16.msra.mxu0 %v2188
    %6633 = vmatprep.subr.bf16.mxu0 %v2197
    %6634 = vmatpush1.bf16.msra.mxu0 %v2196
    %6635 = vmatprep.subr.bf16.mxu0 %v2205
    %6636 = vmatpush1.bf16.msra.mxu0 %v2204
    %6637 = vmatprep.subr.bf16.mxu0 %v2213
    %6638 = vmatpush1.bf16.msra.mxu0 %v2212
    %6639 = vmatprep.subr.bf16.mxu0 %v2221
    %6640 = vmatpush1.bf16.msra.mxu0 %v2220
    %6641 = vmatprep.subr.bf16.mxu0 %v2229
    %6642 = vmatpush1.bf16.msra.mxu0 %v2228
    %6643 = vmatprep.subr.bf16.mxu0 %v2237
    %6644 = vmatpush1.bf16.msra.mxu0 %v2236
    %6645 = vmatprep.subr.bf16.mxu0 %v2245
    %6646 = vmatpush1.bf16.msra.mxu0 %v2244
    %6647 = vmatprep.subr.bf16.mxu0 %v2253
    %6648 = vmatpush1.bf16.msra.mxu0 %v2252
    %6649 = vmatprep.subr.bf16.mxu0 %v2261
    %6650 = vmatpush1.bf16.msra.mxu0 %v2260
    %6651 = vmatprep.mubr.bf16.mxu0 %v6577
    %6652 = vmatmul.mubr.bf16.gmra.mrb[0].mxu0 %v6576
    %v6653 = vpop.f32.mrb[0].mxu0
    %v6654 = vadd.f32 0.0, %v6653
    %v6655 = vpop.f32.mrb[0].mxu0
    %v6656 = vadd.f32 0.0, %v6655
    %v6657 = vpop.f32.mrb[0].mxu0
    %v6658 = vpop.f32.mrb[0].mxu0
    %6659 = vdwg.mxu0
    %6660 = vmatprep.subr.bf16.mxu0 %v2143
    %6661 = vmatpush1.bf16.msra.mxu0 %v2142
    %6662 = vmatprep.subr.bf16.mxu0 %v2151
    %6663 = vmatpush1.bf16.msra.mxu0 %v2150
    %6664 = vmatprep.subr.bf16.mxu0 %v2159
    %6665 = vmatpush1.bf16.msra.mxu0 %v2158
    %6666 = vmatprep.subr.bf16.mxu0 %v2167
    %6667 = vmatpush1.bf16.msra.mxu0 %v2166
    %6668 = vmatprep.subr.bf16.mxu0 %v2175
    %6669 = vmatpush1.bf16.msra.mxu0 %v2174
    %6670 = vmatprep.subr.bf16.mxu0 %v2183
    %6671 = vmatpush1.bf16.msra.mxu0 %v2182
    %6672 = vmatprep.subr.bf16.mxu0 %v2191
    %6673 = vmatpush1.bf16.msra.mxu0 %v2190
    %6674 = vmatprep.subr.bf16.mxu0 %v2199
    %6675 = vmatpush1.bf16.msra.mxu0 %v2198
    %6676 = vmatprep.subr.bf16.mxu0 %v2207
    %6677 = vmatpush1.bf16.msra.mxu0 %v2206
    %6678 = vmatprep.subr.bf16.mxu0 %v2215
    %6679 = vmatpush1.bf16.msra.mxu0 %v2214
    %6680 = vmatprep.subr.bf16.mxu0 %v2223
    %6681 = vmatpush1.bf16.msra.mxu0 %v2222
    %6682 = vmatprep.subr.bf16.mxu0 %v2231
    %6683 = vmatpush1.bf16.msra.mxu0 %v2230
    %6684 = vmatprep.subr.bf16.mxu0 %v2239
    %6685 = vmatpush1.bf16.msra.mxu0 %v2238
    %6686 = vmatprep.subr.bf16.mxu0 %v2247
    %6687 = vmatpush1.bf16.msra.mxu0 %v2246
    %6688 = vmatprep.subr.bf16.mxu0 %v2255
    %6689 = vmatpush1.bf16.msra.mxu0 %v2254
    %6690 = vmatprep.subr.bf16.mxu0 %v2263
    %6691 = vmatpush1.bf16.msra.mxu0 %v2262
    %6692 = vmatprep.mubr.bf16.mxu0 %v6577
    %6693 = vmatmul.mubr.bf16.gmra.mrb[0].mxu0 %v6576
    %v6694 = vpop.f32.mrb[0].mxu0
    %v6695 = vadd.f32 0.0, %v6694
    %v6696 = vpop.f32.mrb[0].mxu0
    %v6697 = vadd.f32 0.0, %v6696
    %v6698 = vpop.f32.mrb[0].mxu0
    %v6699 = vpop.f32.mrb[0].mxu0
    %6700 = vdwg.mxu0
    %6701 = vmatprep.subr.bf16.mxu0 %v2145
    %6702 = vmatpush1.bf16.msra.mxu0 %v2144
    %6703 = vmatprep.subr.bf16.mxu0 %v2153
    %6704 = vmatpush1.bf16.msra.mxu0 %v2152
    %6705 = vmatprep.subr.bf16.mxu0 %v2161
    %6706 = vmatpush1.bf16.msra.mxu0 %v2160
    %6707 = vmatprep.subr.bf16.mxu0 %v2169
    %6708 = vmatpush1.bf16.msra.mxu0 %v2168
    %6709 = vmatprep.subr.bf16.mxu0 %v2177
    %6710 = vmatpush1.bf16.msra.mxu0 %v2176
    %6711 = vmatprep.subr.bf16.mxu0 %v2185
    %6712 = vmatpush1.bf16.msra.mxu0 %v2184
    %6713 = vmatprep.subr.bf16.mxu0 %v2193
    %6714 = vmatpush1.bf16.msra.mxu0 %v2192
    %6715 = vmatprep.subr.bf16.mxu0 %v2201
    %6716 = vmatpush1.bf16.msra.mxu0 %v2200
    %6717 = vmatprep.subr.bf16.mxu0 %v2209
    %6718 = vmatpush1.bf16.msra.mxu0 %v2208
    %6719 = vmatprep.subr.bf16.mxu0 %v2217
    %6720 = vmatpush1.bf16.msra.mxu0 %v2216
    %6721 = vmatprep.subr.bf16.mxu0 %v2225
    %6722 = vmatpush1.bf16.msra.mxu0 %v2224
    %6723 = vmatprep.subr.bf16.mxu0 %v2233
    %6724 = vmatpush1.bf16.msra.mxu0 %v2232
    %6725 = vmatprep.subr.bf16.mxu0 %v2241
    %6726 = vmatpush1.bf16.msra.mxu0 %v2240
    %6727 = vmatprep.subr.bf16.mxu0 %v2249
    %6728 = vmatpush1.bf16.msra.mxu0 %v2248
    %6729 = vmatprep.subr.bf16.mxu0 %v2257
    %6730 = vmatpush1.bf16.msra.mxu0 %v2256
    %6731 = vmatprep.subr.bf16.mxu0 %v2265
    %6732 = vmatpush1.bf16.msra.mxu0 %v2264
    %6733 = vmatprep.mubr.bf16.mxu0 %v6577
    %6734 = vmatmul.mubr.bf16.gmra.mrb[0].mxu0 %v6576
    %v6735 = vpop.f32.mrb[0].mxu0
    %v6736 = vadd.f32 0.0, %v6735
    %v6737 = vpop.f32.mrb[0].mxu0
    %v6738 = vadd.f32 0.0, %v6737
    %v6739 = vpop.f32.mrb[0].mxu0
    %v6740 = vpop.f32.mrb[0].mxu0
    %6741 = vdwg.mxu0
    %6742 = vmatprep.subr.bf16.mxu0 %v2009
    %6743 = vmatpush1.bf16.msra.mxu0 %v2008
    %6744 = vmatprep.subr.bf16.mxu0 %v2017
    %6745 = vmatpush1.bf16.msra.mxu0 %v2016
    %6746 = vmatprep.subr.bf16.mxu0 %v2025
    %6747 = vmatpush1.bf16.msra.mxu0 %v2024
    %6748 = vmatprep.subr.bf16.mxu0 %v2033
    %6749 = vmatpush1.bf16.msra.mxu0 %v2032
    %6750 = vmatprep.subr.bf16.mxu0 %v2041
    %6751 = vmatpush1.bf16.msra.mxu0 %v2040
    %6752 = vmatprep.subr.bf16.mxu0 %v2049
    %6753 = vmatpush1.bf16.msra.mxu0 %v2048
    %6754 = vmatprep.subr.bf16.mxu0 %v2057
    %6755 = vmatpush1.bf16.msra.mxu0 %v2056
    %6756 = vmatprep.subr.bf16.mxu0 %v2065
    %6757 = vmatpush1.bf16.msra.mxu0 %v2064
    %6758 = vmatprep.subr.bf16.mxu0 %v2073
    %6759 = vmatpush1.bf16.msra.mxu0 %v2072
    %6760 = vmatprep.subr.bf16.mxu0 %v2081
    %6761 = vmatpush1.bf16.msra.mxu0 %v2080
    %6762 = vmatprep.subr.bf16.mxu0 %v2089
    %6763 = vmatpush1.bf16.msra.mxu0 %v2088
    %6764 = vmatprep.subr.bf16.mxu0 %v2097
    %6765 = vmatpush1.bf16.msra.mxu0 %v2096
    %6766 = vmatprep.subr.bf16.mxu0 %v2105
    %6767 = vmatpush1.bf16.msra.mxu0 %v2104
    %6768 = vmatprep.subr.bf16.mxu0 %v2113
    %6769 = vmatpush1.bf16.msra.mxu0 %v2112
    %6770 = vmatprep.subr.bf16.mxu0 %v2121
    %6771 = vmatpush1.bf16.msra.mxu0 %v2120
    %6772 = vmatprep.subr.bf16.mxu0 %v2129
    %6773 = vmatpush1.bf16.msra.mxu0 %v2128
    %6774 = vmatprep.mubr.bf16.mxu0 %v6575
    %6775 = vmatmul.mubr.bf16.gmra.mrb[0].mxu0 %v6574
    %v6776 = vpop.f32.mrb[0].mxu0
    %v6777 = vadd.f32 %v6613, %v6776
    %v6778 = vpop.f32.mrb[0].mxu0
    %v6779 = vadd.f32 %v6615, %v6778
    %v6780 = vpop.f32.mrb[0].mxu0
    %v6781 = vpop.f32.mrb[0].mxu0
    %6782 = vdwg.mxu0
    %6783 = vmatprep.subr.bf16.mxu0 %v2011
    %6784 = vmatpush1.bf16.msra.mxu0 %v2010
    %6785 = vmatprep.subr.bf16.mxu0 %v2019
    %6786 = vmatpush1.bf16.msra.mxu0 %v2018
    %6787 = vmatprep.subr.bf16.mxu0 %v2027
    %6788 = vmatpush1.bf16.msra.mxu0 %v2026
    %6789 = vmatprep.subr.bf16.mxu0 %v2035
    %6790 = vmatpush1.bf16.msra.mxu0 %v2034
    %6791 = vmatprep.subr.bf16.mxu0 %v2043
    %6792 = vmatpush1.bf16.msra.mxu0 %v2042
    %6793 = vmatprep.subr.bf16.mxu0 %v2051
    %6794 = vmatpush1.bf16.msra.mxu0 %v2050
    %6795 = vmatprep.subr.bf16.mxu0 %v2059
    %6796 = vmatpush1.bf16.msra.mxu0 %v2058
    %6797 = vmatprep.subr.bf16.mxu0 %v2067
    %6798 = vmatpush1.bf16.msra.mxu0 %v2066
    %6799 = vmatprep.subr.bf16.mxu0 %v2075
    %6800 = vmatpush1.bf16.msra.mxu0 %v2074
    %6801 = vmatprep.subr.bf16.mxu0 %v2083
    %6802 = vmatpush1.bf16.msra.mxu0 %v2082
    %6803 = vmatprep.subr.bf16.mxu0 %v2091
    %6804 = vmatpush1.bf16.msra.mxu0 %v2090
    %6805 = vmatprep.subr.bf16.mxu0 %v2099
    %6806 = vmatpush1.bf16.msra.mxu0 %v2098
    %6807 = vmatprep.subr.bf16.mxu0 %v2107
    %6808 = vmatpush1.bf16.msra.mxu0 %v2106
    %6809 = vmatprep.subr.bf16.mxu0 %v2115
    %6810 = vmatpush1.bf16.msra.mxu0 %v2114
    %6811 = vmatprep.subr.bf16.mxu0 %v2123
    %6812 = vmatpush1.bf16.msra.mxu0 %v2122
    %6813 = vmatprep.subr.bf16.mxu0 %v2131
    %6814 = vmatpush1.bf16.msra.mxu0 %v2130
    %6815 = vmatprep.mubr.bf16.mxu0 %v6575
    %6816 = vmatmul.mubr.bf16.gmra.mrb[0].mxu0 %v6574
    %v6817 = vpop.f32.mrb[0].mxu0
    %v6818 = vadd.f32 %v6654, %v6817
    %v6819 = vpop.f32.mrb[0].mxu0
    %v6820 = vadd.f32 %v6656, %v6819
    %v6821 = vpop.f32.mrb[0].mxu0
    %v6822 = vpop.f32.mrb[0].mxu0
    %6823 = vdwg.mxu0
    %6824 = vmatprep.subr.bf16.mxu0 %v2013
    %6825 = vmatpush1.bf16.msra.mxu0 %v2012
    %6826 = vmatprep.subr.bf16.mxu0 %v2021
    %6827 = vmatpush1.bf16.msra.mxu0 %v2020
    %6828 = vmatprep.subr.bf16.mxu0 %v2029
    %6829 = vmatpush1.bf16.msra.mxu0 %v2028
    %6830 = vmatprep.subr.bf16.mxu0 %v2037
    %6831 = vmatpush1.bf16.msra.mxu0 %v2036
    %6832 = vmatprep.subr.bf16.mxu0 %v2045
    %6833 = vmatpush1.bf16.msra.mxu0 %v2044
    %6834 = vmatprep.subr.bf16.mxu0 %v2053
    %6835 = vmatpush1.bf16.msra.mxu0 %v2052
    %6836 = vmatprep.subr.bf16.mxu0 %v2061
    %6837 = vmatpush1.bf16.msra.mxu0 %v2060
    %6838 = vmatprep.subr.bf16.mxu0 %v2069
    %6839 = vmatpush1.bf16.msra.mxu0 %v2068
    %6840 = vmatprep.subr.bf16.mxu0 %v2077
    %6841 = vmatpush1.bf16.msra.mxu0 %v2076
    %6842 = vmatprep.subr.bf16.mxu0 %v2085
    %6843 = vmatpush1.bf16.msra.mxu0 %v2084
    %6844 = vmatprep.subr.bf16.mxu0 %v2093
    %6845 = vmatpush1.bf16.msra.mxu0 %v2092
    %6846 = vmatprep.subr.bf16.mxu0 %v2101
    %6847 = vmatpush1.bf16.msra.mxu0 %v2100
    %6848 = vmatprep.subr.bf16.mxu0 %v2109
    %6849 = vmatpush1.bf16.msra.mxu0 %v2108
    %6850 = vmatprep.subr.bf16.mxu0 %v2117
    %6851 = vmatpush1.bf16.msra.mxu0 %v2116
    %6852 = vmatprep.subr.bf16.mxu0 %v2125
    %6853 = vmatpush1.bf16.msra.mxu0 %v2124
    %6854 = vmatprep.subr.bf16.mxu0 %v2133
    %6855 = vmatpush1.bf16.msra.mxu0 %v2132
    %6856 = vmatprep.mubr.bf16.mxu0 %v6575
    %6857 = vmatmul.mubr.bf16.gmra.mrb[0].mxu0 %v6574
    %v6858 = vpop.f32.mrb[0].mxu0
    %v6859 = vadd.f32 %v6695, %v6858
    %v6860 = vpop.f32.mrb[0].mxu0
    %v6861 = vadd.f32 %v6697, %v6860
    %v6862 = vpop.f32.mrb[0].mxu0
    %v6863 = vpop.f32.mrb[0].mxu0
    %6864 = vdwg.mxu0
    %6865 = vmatprep.subr.bf16.mxu0 %v2015
    %6866 = vmatpush1.bf16.msra.mxu0 %v2014
    %6867 = vmatprep.subr.bf16.mxu0 %v2023
    %6868 = vmatpush1.bf16.msra.mxu0 %v2022
    %6869 = vmatprep.subr.bf16.mxu0 %v2031
    %6870 = vmatpush1.bf16.msra.mxu0 %v2030
    %6871 = vmatprep.subr.bf16.mxu0 %v2039
    %6872 = vmatpush1.bf16.msra.mxu0 %v2038
    %6873 = vmatprep.subr.bf16.mxu0 %v2047
    %6874 = vmatpush1.bf16.msra.mxu0 %v2046
    %6875 = vmatprep.subr.bf16.mxu0 %v2055
    %6876 = vmatpush1.bf16.msra.mxu0 %v2054
    %6877 = vmatprep.subr.bf16.mxu0 %v2063
    %6878 = vmatpush1.bf16.msra.mxu0 %v2062
    %6879 = vmatprep.subr.bf16.mxu0 %v2071
    %6880 = vmatpush1.bf16.msra.mxu0 %v2070
    %6881 = vmatprep.subr.bf16.mxu0 %v2079
    %6882 = vmatpush1.bf16.msra.mxu0 %v2078
    %6883 = vmatprep.subr.bf16.mxu0 %v2087
    %6884 = vmatpush1.bf16.msra.mxu0 %v2086
    %6885 = vmatprep.subr.bf16.mxu0 %v2095
    %6886 = vmatpush1.bf16.msra.mxu0 %v2094
    %6887 = vmatprep.subr.bf16.mxu0 %v2103
    %6888 = vmatpush1.bf16.msra.mxu0 %v2102
    %6889 = vmatprep.subr.bf16.mxu0 %v2111
    %6890 = vmatpush1.bf16.msra.mxu0 %v2110
    %6891 = vmatprep.subr.bf16.mxu0 %v2119
    %6892 = vmatpush1.bf16.msra.mxu0 %v2118
    %6893 = vmatprep.subr.bf16.mxu0 %v2127
    %6894 = vmatpush1.bf16.msra.mxu0 %v2126
    %6895 = vmatprep.subr.bf16.mxu0 %v2135
    %6896 = vmatpush1.bf16.msra.mxu0 %v2134
    %6897 = vmatprep.mubr.bf16.mxu0 %v6575
    %6898 = vmatmul.mubr.bf16.gmra.mrb[0].mxu0 %v6574
    %v6899 = vpop.f32.mrb[0].mxu0
    %v6900 = vadd.f32 %v6736, %v6899
    %v6901 = vpop.f32.mrb[0].mxu0
    %v6902 = vadd.f32 %v6738, %v6901
    %v6903 = vpop.f32.mrb[0].mxu0
    %v6904 = vpop.f32.mrb[0].mxu0
    %6905 = vdwg.mxu0
    %v6906 = vadd.f32 %v6777, %v961
    %v6907 = vadd.f32 %v6779, %v965
    %v6908 = vadd.f32 %v6818, %v969
    %v6909 = vadd.f32 %v6820, %v973
    %v6910 = vadd.f32 %v6859, %v977
    %v6911 = vadd.f32 %v6861, %v981
    %v6912 = vadd.f32 %v6900, %v985
    %v6913 = vadd.f32 %v6902, %v989
    %v6914 = vxor.u32 %v6906, 2147483648
    %v6915 = vxor.u32 %v6907, 2147483648
    %v6916 = vmul.f32 %v6914, 1.442695
    %v6917 = vpow.pop %v6916
    %v6918 = vmul.f32 %v6915, 1.442695
    %v6919 = vpow.pop %v6918
    %v6920 = vadd.f32 %v6917, 1.0
    %v6921 = vadd.f32 %v6919, 1.0
    %v6922 = vrcp.pop %v6920
    %v6923 = vmul.f32 1.0, %v6922
    %v6924 = vrcp.pop %v6921
    %v6925 = vmul.f32 1.0, %v6924
    %v6926 = vxor.u32 %v6908, 2147483648
    %v6927 = vxor.u32 %v6909, 2147483648
    %v6928 = vmul.f32 %v6926, 1.442695
    %v6929 = vpow.pop %v6928
    %v6930 = vmul.f32 %v6927, 1.442695
    %v6931 = vpow.pop %v6930
    %v6932 = vadd.f32 %v6929, 1.0
    %v6933 = vadd.f32 %v6931, 1.0
    %v6934 = vrcp.pop %v6932
    %v6935 = vmul.f32 1.0, %v6934
    %v6936 = vrcp.pop %v6933
    %v6937 = vmul.f32 1.0, %v6936
    %v6938 = vtanh.pop %v6910
    %v6939 = vtanh.pop %v6911
    %v6940 = vxor.u32 %v6912, 2147483648
    %v6941 = vxor.u32 %v6913, 2147483648
    %v6942 = vmul.f32 %v6940, 1.442695
    %v6943 = vpow.pop %v6942
    %v6944 = vmul.f32 %v6941, 1.442695
    %v6945 = vpow.pop %v6944
    %v6946 = vadd.f32 %v6943, 1.0
    %v6947 = vadd.f32 %v6945, 1.0
    %v6948 = vrcp.pop %v6946
    %v6949 = vmul.f32 1.0, %v6948
    %v6950 = vrcp.pop %v6947
    %v6951 = vmul.f32 1.0, %v6950
    %v6952 = vmul.f32 %v6935, %v6340
    %v6953 = vmul.f32 %v6937, %v6341
    %v6954 = vmul.f32 %v6923, %v6938
    %v6955 = vmul.f32 %v6925, %v6939
    %v6956 = vadd.f32 %v6952, %v6954
    %v6957 = vadd.f32 %v6953, %v6955
    %v6958 = vtanh.pop %v6956
    %v6959 = vtanh.pop %v6957
    %v6960 = vmul.f32 %v6949, %v6958
    %v6961 = vmul.f32 %v6951, %v6959
    %6962 = vst [vmem:[%s12] sm:$0xff] %v6572
    %6963 = vst [vmem:[%s12 + $0x8] sm:$0xff] %v6573
    %6964 = vst [vmem:[%s13] sm:$0xff] %v6568
    %6965 = vst [vmem:[%s13 + $0x8] sm:$0xff] %v6569
    %s6966 = scalar_lea.vmem %s12, 16
    %6967 = vst [vmem:[%s6966] sm:$0xff] %v6960
    %6968 = vst [vmem:[%s6966 + $0x8] sm:$0xff] %v6961
    %s6969 = scalar_lea.vmem %s13, 16
    %6970 = vst [vmem:[%s6969] sm:$0xff] %v6956
    %6971 = vst [vmem:[%s6969 + $0x8] sm:$0xff] %v6957
    %v6972 = vpack.c.bf16 %v6960, %v6960
    %v6973 = vpack.c.bf16 %v6961, %v6961
    %v6974 = vld [vmem:[%s9] sm:$0xf]
    %v6975 = vld [vmem:[%s9 + $0x4] sm:$0xf]
    %v6976 = vld [vmem:[%s9 + $0x8] sm:$0xf]
    %v6977 = vld [vmem:[%s9 + $0xc] sm:$0xf]
    %v6978 = vld [vmem:[%s9 + $0x10] sm:$0xf]
    %v6979 = vld [vmem:[%s9 + $0x14] sm:$0xf]
    %v6980 = vld [vmem:[%s9 + $0x18] sm:$0xf]
    %v6981 = vld [vmem:[%s9 + $0x1c] sm:$0xf]
    %v6982 = vld [vmem:[%s9 + $0x20] sm:$0xf]
    %v6983 = vld [vmem:[%s9 + $0x24] sm:$0xf]
    %v6984 = vld [vmem:[%s9 + $0x28] sm:$0xf]
    %v6985 = vld [vmem:[%s9 + $0x2c] sm:$0xf]
    %v6986 = vld [vmem:[%s9 + $0x30] sm:$0xf]
    %v6987 = vld [vmem:[%s9 + $0x34] sm:$0xf]
    %v6988 = vld [vmem:[%s9 + $0x38] sm:$0xf]
    %v6989 = vld [vmem:[%s9 + $0x3c] sm:$0xf]
    %v6990 = vld [vmem:[%s9 + $0x40] sm:$0xf]
    %v6991 = vld [vmem:[%s9 + $0x44] sm:$0xf]
    %v6992 = vld [vmem:[%s9 + $0x48] sm:$0xf]
    %v6993 = vld [vmem:[%s9 + $0x4c] sm:$0xf]
    %v6994 = vld [vmem:[%s9 + $0x50] sm:$0xf]
    %v6995 = vld [vmem:[%s9 + $0x54] sm:$0xf]
    %v6996 = vld [vmem:[%s9 + $0x58] sm:$0xf]
    %v6997 = vld [vmem:[%s9 + $0x5c] sm:$0xf]
    %v6998 = vld [vmem:[%s9 + $0x60] sm:$0xf]
    %v6999 = vld [vmem:[%s9 + $0x64] sm:$0xf]
    %v7000 = vld [vmem:[%s9 + $0x68] sm:$0xf]
    %v7001 = vld [vmem:[%s9 + $0x6c] sm:$0xf]
    %v7002 = vld [vmem:[%s9 + $0x70] sm:$0xf]
    %v7003 = vld [vmem:[%s9 + $0x74] sm:$0xf]
    %v7004 = vld [vmem:[%s9 + $0x78] sm:$0xf]
    %v7005 = vld [vmem:[%s9 + $0x7c] sm:$0xf]
    %v7006 = vld [vmem:[%s10] sm:$0x1]
    %v7008 = vlaneseq
    %v7009 = vshrl.u32 %v7008, 7
    %v7010 = vsub.s32 0, %v7009
    %v7011 = vrot.slane %v7006, %v7010
    %v7045 = vunpack.c.l.b16 %v6974
    %v7046 = vunpack.c.l.b16 %v6975
    %v7047 = vunpack.c.l.b16 %v6976
    %v7048 = vunpack.c.l.b16 %v6977
    %v7049 = vunpack.c.l.b16 %v6978
    %v7050 = vunpack.c.l.b16 %v6979
    %v7051 = vunpack.c.l.b16 %v6980
    %v7052 = vunpack.c.l.b16 %v6981
    %v7053 = vunpack.c.l.b16 %v6982
    %v7054 = vunpack.c.l.b16 %v6983
    %v7055 = vunpack.c.l.b16 %v6984
    %v7056 = vunpack.c.l.b16 %v6985
    %v7057 = vunpack.c.l.b16 %v6986
    %v7058 = vunpack.c.l.b16 %v6987
    %v7059 = vunpack.c.l.b16 %v6988
    %v7060 = vunpack.c.l.b16 %v6989
    %v7061 = vunpack.c.l.b16 %v6990
    %v7062 = vunpack.c.l.b16 %v6991
    %v7063 = vunpack.c.l.b16 %v6992
    %v7064 = vunpack.c.l.b16 %v6993
    %v7065 = vunpack.c.l.b16 %v6994
    %v7066 = vunpack.c.l.b16 %v6995
    %v7067 = vunpack.c.l.b16 %v6996
    %v7068 = vunpack.c.l.b16 %v6997
    %v7069 = vunpack.c.l.b16 %v6998
    %v7070 = vunpack.c.l.b16 %v6999
    %v7071 = vunpack.c.l.b16 %v7000
    %v7072 = vunpack.c.l.b16 %v7001
    %v7073 = vunpack.c.l.b16 %v7002
    %v7074 = vunpack.c.l.b16 %v7003
    %v7075 = vunpack.c.l.b16 %v7004
    %v7076 = vunpack.c.l.b16 %v7005
    %v7077 = vpack.c.b16 %v7046, %v7045
    %v7078 = vpack.c.b16 %v7048, %v7047
    %v7079 = vpack.c.b16 %v7050, %v7049
    %v7080 = vpack.c.b16 %v7052, %v7051
    %v7081 = vpack.c.b16 %v7054, %v7053
    %v7082 = vpack.c.b16 %v7056, %v7055
    %v7083 = vpack.c.b16 %v7058, %v7057
    %v7084 = vpack.c.b16 %v7060, %v7059
    %v7085 = vpack.c.b16 %v7062, %v7061
    %v7086 = vpack.c.b16 %v7064, %v7063
    %v7087 = vpack.c.b16 %v7066, %v7065
    %v7088 = vpack.c.b16 %v7068, %v7067
    %v7089 = vpack.c.b16 %v7070, %v7069
    %v7090 = vpack.c.b16 %v7072, %v7071
    %v7091 = vpack.c.b16 %v7074, %v7073
    %v7092 = vpack.c.b16 %v7076, %v7075
    %7109 = vmatprep.subr.bf16.mxu0 0
    %7110 = vmatpush1.bf16.msra.mxu0 %v7077
    %7111 = vmatprep.subr.bf16.mxu0 0
    %7112 = vmatpush1.bf16.msra.mxu0 %v7078
    %7113 = vmatprep.subr.bf16.mxu0 0
    %7114 = vmatpush1.bf16.msra.mxu0 %v7079
    %7115 = vmatprep.subr.bf16.mxu0 0
    %7116 = vmatpush1.bf16.msra.mxu0 %v7080
    %7117 = vmatprep.subr.bf16.mxu0 0
    %7118 = vmatpush1.bf16.msra.mxu0 %v7081
    %7119 = vmatprep.subr.bf16.mxu0 0
    %7120 = vmatpush1.bf16.msra.mxu0 %v7082
    %7121 = vmatprep.subr.bf16.mxu0 0
    %7122 = vmatpush1.bf16.msra.mxu0 %v7083
    %7123 = vmatprep.subr.bf16.mxu0 0
    %7124 = vmatpush1.bf16.msra.mxu0 %v7084
    %7125 = vmatprep.subr.bf16.mxu0 0
    %7126 = vmatpush1.bf16.msra.mxu0 %v7085
    %7127 = vmatprep.subr.bf16.mxu0 0
    %7128 = vmatpush1.bf16.msra.mxu0 %v7086
    %7129 = vmatprep.subr.bf16.mxu0 0
    %7130 = vmatpush1.bf16.msra.mxu0 %v7087
    %7131 = vmatprep.subr.bf16.mxu0 0
    %7132 = vmatpush1.bf16.msra.mxu0 %v7088
    %7133 = vmatprep.subr.bf16.mxu0 0
    %7134 = vmatpush1.bf16.msra.mxu0 %v7089
    %7135 = vmatprep.subr.bf16.mxu0 0
    %7136 = vmatpush1.bf16.msra.mxu0 %v7090
    %7137 = vmatprep.subr.bf16.mxu0 0
    %7138 = vmatpush1.bf16.msra.mxu0 %v7091
    %7139 = vmatprep.subr.bf16.mxu0 0
    %7140 = vmatpush1.bf16.msra.mxu0 %v7092
    %7141 = vmatprep.mubr.bf16.mxu0 %v6973
    %7142 = vmatmul.mubr.bf16.gmra.mrb[0].mxu0 %v6972
    %v7143 = vpop.f32.mrb[0].mxu0
    %v7144 = vadd.f32 %v7011, %v7143
    %v7145 = vpop.f32.mrb[0].mxu0
    %v7146 = vpop.f32.mrb[0].mxu0
    %v7147 = vpop.f32.mrb[0].mxu0
    %7148 = vdwg.mxu0
    %7149 = vst [vmem:[%s11] sm:$0xff] %v7144
    // Predicated region
    $region46: #{rnn_extension_forward.1} parent=1 // pred_check
      _
    $region47: #{rnn_extension_forward.1} parent=1 // pred_check_branch
      %7151 = sbr.rel (0) target = $region49
    $region48: #{rnn_extension_forward.1} parent=1 // pred_region
      _
    $region49: #{rnn_extension_forward.1} parent=1 // pred_fallthru
      _
    // Predicated region
    $region50: #{rnn_extension_forward.1} parent=1 // pred_check
      _
    $region51: #{rnn_extension_forward.1} parent=1 // pred_check_branch
      %7153 = sbr.rel (0) target = $region53
    $region52: #{rnn_extension_forward.1} parent=1 // pred_region
      _
    $region53: #{rnn_extension_forward.1} parent=1 // pred_fallthru
      _
    // Predicated region
    $region54: #{rnn_extension_forward.1} parent=1 // pred_check
      _
    $region55: #{rnn_extension_forward.1} parent=1 // pred_check_branch
      %7155 = sbr.rel (0) target = $region57
    $region56: #{rnn_extension_forward.1} parent=1 // pred_region
      _
    $region57: #{rnn_extension_forward.1} parent=1 // pred_fallthru
      _
    // Predicated region
    $region58: #{rnn_extension_forward.1} parent=1 // pred_check
      _
    $region59: #{rnn_extension_forward.1} parent=1 // pred_check_branch
      %7157 = sbr.rel (0) target = $region61
    $region60: #{rnn_extension_forward.1} parent=1 // pred_region
      _
    $region61: #{rnn_extension_forward.1} parent=1 // pred_fallthru
      _
    // Predicated region
    $region62: #{rnn_extension_forward.1} parent=1 // pred_check
      _
    $region63: #{rnn_extension_forward.1} parent=1 // pred_check_branch
      %7159 = sbr.rel (0) target = $region65
    $region64: #{rnn_extension_forward.1} parent=1 // pred_region
      _
    $region65: #{rnn_extension_forward.1} parent=1 // pred_fallthru
      _
    // Predicated region
    $region66: #{rnn_extension_forward.1} parent=1 // pred_check
      _
    $region67: #{rnn_extension_forward.1} parent=1 // pred_check_branch
      %7161 = sbr.rel (0) target = $region69
    $region68: #{rnn_extension_forward.1} parent=1 // pred_region
      _
    $region69: #{rnn_extension_forward.1} parent=1 // pred_fallthru
      _
    %7162 = vsyncpa [#allocation7], 1
    %7163 = vsyncpa [#allocation9], 1
  %7164 = vsyncmov [#allocation5]
  %s7165 = vpop.sfrf %7164
  %p7166 = scmp.eq.s32.totalorder %s7165, 0
  %p7167 = pneg %p7166
  %7169 = shalt.err (%p7167)
  %s7170 = scalar_lea.sflag [#allocation5], 1
  %7171 = vsyncmov %s7170
  %s7172 = vpop.sfrf %7171
  %p7173 = scmp.eq.s32.totalorder %s7172, 0
  %p7174 = pneg %p7173
  %7176 = shalt.err (%p7174)

</llo_original>
